<compile_context>
chip_gen: v7x
topology: tpu7x:2x2x1
jax: 0.10.0
libtpu: 0.0.40
codegen_flags: <defaults>
</compile_context>

<pallas_src>
import math

import jax
import jax.numpy as jnp
import numpy as np
from jax import lax
from jax.experimental import pallas as pl
from jax.experimental.pallas import tpu as pltpu

# ---- scaled-down but structurally faithful hyper-parameters ----
N_NODES = 16          # graph nodes
N_EDGES = 64          # graph edges
D_FEAT  = 64          # node / edge feature dim (stands in for 300 / 600)
N_REL   = 4           # RelGraphConv num_relations
N_BASES = 4           # RelGraphConv num_bases (basis regularizer)
N_HEADS = 8           # MultiHeadAttention heads
D_HEAD  = D_FEAT // N_HEADS
OUT_DIM = 4           # linear_output2 output width
OUT_PAD = 128         # lane-dense padded output width (sliced to OUT_DIM outside)
LN_EPS  = 1e-5        # torch.nn.LayerNorm default eps


# ------------------------------------------------------------------
# Single fused kernel: RelGraphConv + message passing + MHA + LN + head
# ------------------------------------------------------------------
def _fused_forward_kernel(src_ref, dst_ref, et_ref, xn_ref, wall_ref, bias_ref,
                          wqkv_ref, wfc_ref, ln_g_ref, ln_b_ref, w2_ref, b2_ref,
                          o_ref):
    f32 = jnp.float32
    src = src_ref[...]                                   # [E, 1] int32
    dst = dst_ref[...]                                   # [E, 1] int32
    et = et_ref[...]                                     # [E, 1] int32

    # --- one-hot edge selectors (VPU): replace gather / scatter with matmuls ---
    col_n = lax.broadcasted_iota(jnp.int32, (N_EDGES, N_NODES), 1)
    oh_src = (col_n == src).astype(f32)                  # [E, N]
    oh_dst = (col_n == dst).astype(f32)                  # [E, N]

    # --- RelGraphConv: all relation transforms in ONE lane-dense matmul ---
    hr_wide = jnp.dot(xn_ref[...], wall_ref[...],
                      preferred_element_type=f32)        # [N, R*D]

    # gather source-node rows for every edge as an MXU matmul: [E,N]@[N,R*D]
    gath = jnp.dot(oh_src, hr_wide, preferred_element_type=f32)     # [E, R*D]

    # select each edge's relation block (static R-way mask-select on the VPU)
    msgs = (et == 0).astype(f32) * gath[:, 0:D_FEAT]
    for r in range(1, N_REL):
        msgs = msgs + (et == r).astype(f32) * gath[:, r * D_FEAT:(r + 1) * D_FEAT]

    # segment_sum over destination nodes == one-hot-transpose matmul (MXU)
    agg = lax.dot_general(oh_dst, msgs, (((0,), (0,)), ((), ())),
                          preferred_element_type=f32)    # [N, D]
    # TODO(synk): F.dropout is modeled as inference-mode identity (no RNG mask).
    h = jnp.maximum(agg + bias_ref[...], 0.0)            # DGL bias + ReLU

    # g.apply_edges(fn.u_add_v): edge feature = h[src] + h[dst] (single matmul;
    # self-loops get 2*h[n] which equals h[src]+h[dst], so still correct)
    xe = jnp.dot(oh_src + oh_dst, h, preferred_element_type=f32)    # [E, D]

    # --- MultiHeadAttention, batched over heads (no per-head unroll) ---
    # wqkv_ref: [3H, D, d] per-head projection weights (q heads, k heads, v heads)
    xe_b = jnp.broadcast_to(xe[None, :, :], (3 * N_HEADS, N_EDGES, D_FEAT))
    qkv = jnp.einsum("hei,hid->hed", xe_b, wqkv_ref[...],
                     preferred_element_type=f32)         # [3H, E, d]
    q3 = qkv[0:N_HEADS]                                  # [H, E, d]
    k3 = qkv[N_HEADS:2 * N_HEADS]
    v3 = qkv[2 * N_HEADS:3 * N_HEADS]

    scale = 1.0 / math.sqrt(D_HEAD)
    s = jnp.einsum("hqd,hkd->hqk", q3, k3,
                   preferred_element_type=f32) * scale   # [H, E, E]
    s = s - jnp.max(s, axis=-1, keepdims=True)
    p = jnp.exp(s)
    # softmax normalization via EUP approximate reciprocal (free bundle slot)
    p = p * pl.reciprocal(jnp.sum(p, axis=-1, keepdims=True), approx=True)

    # Context computed directly in transposed [H, d_v, E] layout so that torch's
    # context.transpose(1, 2).reshape(-1, H*d_v) becomes a plain leading-dim
    # merge.  (Exactly faithful only because E == H*d_v — asserted in wrapper.)
    ctx_t = lax.dot_general(v3, p, (((1,), (2,)), ((0,), (0,))),
                            preferred_element_type=f32)  # [H, d, E]
    scrambled = ctx_t.reshape(N_HEADS * D_HEAD, N_EDGES)            # [E, H*d]
    attn_out = jnp.dot(scrambled, wfc_ref[...], preferred_element_type=f32)

    # --- AN1: LayerNorm(attn_out + xe) ---
    y = attn_out + xe
    mean = jnp.mean(y, axis=-1, keepdims=True)
    var = jnp.mean(jnp.square(y - mean), axis=-1, keepdims=True)
    y_n = (y - mean) * lax.rsqrt(var + LN_EPS)
    y_n = y_n * ln_g_ref[...] + ln_b_ref[...]

    # --- linear_output2, padded to 128 output lanes for a lane-dense store ---
    o_ref[...] = jnp.dot(y_n, w2_ref[...], preferred_element_type=f32) + b2_ref[...]


# ------------------------------------------------------------------
# Forward pass wrapper (weight re-layout is trace-time XLA; one pallas_call)
# ------------------------------------------------------------------
def rgcn64more_forward(x_feature, feature, edge_index, edge_type, params):
    del feature  # unused by the reference forward pass
    assert N_EDGES == N_HEADS * D_HEAD  # required by torch's transpose/reshape

    src = edge_index[0].astype(jnp.int32).reshape(N_EDGES, 1)
    dst = edge_index[1].astype(jnp.int32).reshape(N_EDGES, 1)
    et = edge_type.astype(jnp.int32).reshape(N_EDGES, 1)
    node_feat = x_feature[1:N_NODES + 1]                 # x_feature[1 : num_nodes+1]

    # RelGraphConv basis regularizer, laid out as one lane-dense [D, R*D] weight
    w_rel = jnp.einsum("rb,bio->rio", params["comp"], params["bases"])   # [R, D, D]
    w_all = jnp.transpose(w_rel, (1, 0, 2)).reshape(D_FEAT, N_REL * D_FEAT)

    # per-head projection weights, q/k/v stacked along the head-batch axis
    def _split_heads(w):   # [D, D] -> [H, D, d]
        return jnp.transpose(w.reshape(D_FEAT, N_HEADS, D_HEAD), (1, 0, 2))
    wqkv = jnp.concatenate([_split_heads(params["wq"]),
                            _split_heads(params["wk"]),
                            _split_heads(params["wv"])], axis=0)         # [3H, D, d]

    # output head padded to 128 lanes (lane-dense store), sliced after the call
    w2p = jnp.zeros((D_FEAT, OUT_PAD), jnp.float32).at[:, :OUT_DIM].set(params["w2"])
    b2p = jnp.zeros((1, OUT_PAD), jnp.float32).at[:, :OUT_DIM].set(params["b2"])

    args = (src, dst, et, node_feat, w_all, params["rgcn_bias"],
            wqkv, params["wfc"], params["ln_g"], params["ln_b"], w2p, b2p)
    vmem = pl.BlockSpec(memory_space=pltpu.MemorySpace.VMEM)
    out_pad = pl.pallas_call(
        _fused_forward_kernel,
        out_shape=jax.ShapeDtypeStruct((N_EDGES, OUT_PAD), jnp.float32),
        in_specs=[vmem] * len(args),
        out_specs=vmem,
    )(*args)
    return out_pad[:, :OUT_DIM]


# ------------------------------------------------------------------
# Parameters (deterministic, in-script)
# ------------------------------------------------------------------
def init_params(key):
    ks = jax.random.split(key, 9)
    s = 0.1
    return {
        # RelGraphConv basis regularizer: W_r = sum_b comp[r,b] * bases[b]
        "bases": jax.random.normal(ks[0], (N_BASES, D_FEAT, D_FEAT), jnp.float32) * s,
        "comp": jax.random.normal(ks[1], (N_REL, N_BASES), jnp.float32) * s,
        "rgcn_bias": jax.random.normal(ks[2], (1, D_FEAT), jnp.float32) * s,
        # MultiHeadAttention (all bias-free, stored as [in, out])
        "wq": jax.random.normal(ks[3], (D_FEAT, D_FEAT), jnp.float32) * s,
        "wk": jax.random.normal(ks[4], (D_FEAT, D_FEAT), jnp.float32) * s,
        "wv": jax.random.normal(ks[5], (D_FEAT, D_FEAT), jnp.float32) * s,
        "wfc": jax.random.normal(ks[6], (D_FEAT, D_FEAT), jnp.float32) * s,
        # LayerNorm AN1 (torch default init)
        "ln_g": jnp.ones((1, D_FEAT), jnp.float32),
        "ln_b": jnp.zeros((1, D_FEAT), jnp.float32),
        # linear_output2
        "w2": jax.random.normal(ks[7], (D_FEAT, OUT_DIM), jnp.float32) * s,
        "b2": jax.random.normal(ks[8], (1, OUT_DIM), jnp.float32) * s,
    }


# ------------------------------------------------------------------
# Pure-JAX reference (mirrors the PyTorch forward, incl. the buggy reshape)
# ------------------------------------------------------------------
def reference_forward(x_feature, edge_index, edge_type, params):
    src, dst = edge_index[0], edge_index[1]
    node_feat = x_feature[1:N_NODES + 1]
    w_rel = jnp.einsum("rb,bio->rio", params["comp"], params["bases"])
    msgs = jnp.einsum("ei,eio->eo", node_feat[src], w_rel[edge_type])
    h = jax.ops.segment_sum(msgs, dst, num_segments=N_NODES) + params["rgcn_bias"]
    h = jax.nn.relu(h)
    xe = h[src] + h[dst]

    E = xe.shape[0]
    q = (xe @ params["wq"]).reshape(E, N_HEADS, D_HEAD).transpose(1, 0, 2)
    k = (xe @ params["wk"]).reshape(E, N_HEADS, D_HEAD).transpose(1, 0, 2)
    v = (xe @ params["wv"]).reshape(E, N_HEADS, D_HEAD).transpose(1, 0, 2)
    s = jnp.einsum("hqd,hkd->hqk", q, k) / math.sqrt(D_HEAD)
    p = jax.nn.softmax(s, axis=-1)
    ctx = jnp.einsum("hqk,hkd->hqd", p, v)                      # [H, E, dv]
    scrambled = jnp.transpose(ctx, (0, 2, 1)).reshape(-1, N_HEADS * D_HEAD)
    attn_out = scrambled @ params["wfc"]
    y = attn_out + xe
    mean = jnp.mean(y, axis=-1, keepdims=True)
    var = jnp.mean((y - mean) ** 2, axis=-1, keepdims=True)
    y_n = (y - mean) / jnp.sqrt(var + LN_EPS)
    y_n = y_n * params["ln_g"] + params["ln_b"]
    return y_n @ params["w2"] + params["b2"]


if __name__ == "__main__":
    key = jax.random.PRNGKey(0)
    k_feat, k_edges, k_types, k_params, k_unused = jax.random.split(key, 5)

    # x_feature needs N_NODES + 1 rows because the forward slices [1 : N+1].
    x_feature = jax.random.normal(k_feat, (N_NODES + 1, D_FEAT), jnp.float32)
    feature = jax.random.normal(k_unused, (N_NODES, D_FEAT), jnp.float32)  # unused

    # edges: a ring (so every node id up to N_NODES-1 appears) + random edges
    ring_src = jnp.arange(N_NODES, dtype=jnp.int32)
    ring_dst = jnp.roll(ring_src, 1)
    extra = jax.random.randint(k_edges, (2, N_EDGES - N_NODES), 0, N_NODES, jnp.int32)
    edge_index = jnp.stack(
        [jnp.concatenate([ring_src, extra[0]]),
         jnp.concatenate([ring_dst, extra[1]])], axis=0)                 # [2, E]
    edge_type = jax.random.randint(k_types, (N_EDGES,), 0, N_REL, jnp.int32)

    params = init_params(k_params)

    fwd = jax.jit(lambda xf, f, ei, et: rgcn64more_forward(xf, f, ei, et, params))
    out = fwd(x_feature, feature, edge_index, edge_type)
    out = jax.block_until_ready(out)

    ref = reference_forward(x_feature, edge_index, edge_type, params)
    # tolerance loosened vs. 1e-4 because of pl.reciprocal(approx=True) in softmax
    if not np.allclose(np.asarray(out), np.asarray(ref), rtol=2e-3, atol=2e-3):
        raise AssertionError("Pallas output does not match JAX reference")
    print("KERNEL_OK")
</pallas_src>

<mosaic_0001>
module attributes {stable_mosaic.version = 11 : i64} {
  func.func @_fused_forward_kernel(%arg0: memref<64x1xi32, #tpu.memory_space<vmem>>, %arg1: memref<64x1xi32, #tpu.memory_space<vmem>>, %arg2: memref<64x1xi32, #tpu.memory_space<vmem>>, %arg3: memref<16x64xf32, #tpu.memory_space<vmem>>, %arg4: memref<64x256xf32, #tpu.memory_space<vmem>>, %arg5: memref<1x64xf32, #tpu.memory_space<vmem>>, %arg6: memref<24x64x8xf32, #tpu.memory_space<vmem>>, %arg7: memref<64x64xf32, #tpu.memory_space<vmem>>, %arg8: memref<1x64xf32, #tpu.memory_space<vmem>>, %arg9: memref<1x64xf32, #tpu.memory_space<vmem>>, %arg10: memref<64x128xf32, #tpu.memory_space<vmem>>, %arg11: memref<1x128xf32, #tpu.memory_space<vmem>>, %arg12: memref<64x128xf32, #tpu.memory_space<vmem>>) attributes {dimension_semantics = [], scalar_prefetch = 0 : i64, scratch_operands = 0 : i64, tpu.core_type = #tpu.core_type<tc>} {
    %c0 = arith.constant 0 : index
    %c0_0 = arith.constant 0 : index
    %0 = vector.load %arg0[%c0, %c0_0] : memref<64x1xi32, #tpu.memory_space<vmem>>, vector<64x1xi32>
    %c0_1 = arith.constant 0 : index
    %c0_2 = arith.constant 0 : index
    %1 = vector.load %arg1[%c0_1, %c0_2] : memref<64x1xi32, #tpu.memory_space<vmem>>, vector<64x1xi32>
    %c0_3 = arith.constant 0 : index
    %c0_4 = arith.constant 0 : index
    %2 = vector.load %arg2[%c0_3, %c0_4] : memref<64x1xi32, #tpu.memory_space<vmem>>, vector<64x1xi32>
    %3 = tpu.iota {dimensions = array<i32: 1>} : vector<64x16xi32>
    %4 = vector.broadcast %0 : vector<64x1xi32> to vector<64x16xi32>
    %5 = arith.cmpi eq, %3, %4 : vector<64x16xi32>
    %6 = arith.extui %5 : vector<64x16xi1> to vector<64x16xi32>
    %7 = arith.sitofp %6 : vector<64x16xi32> to vector<64x16xf32>
    %8 = vector.broadcast %1 : vector<64x1xi32> to vector<64x16xi32>
    %9 = arith.cmpi eq, %3, %8 : vector<64x16xi32>
    %10 = arith.extui %9 : vector<64x16xi1> to vector<64x16xi32>
    %11 = arith.sitofp %10 : vector<64x16xi32> to vector<64x16xf32>
    %c0_5 = arith.constant 0 : index
    %c0_6 = arith.constant 0 : index
    %12 = vector.load %arg3[%c0_5, %c0_6] : memref<16x64xf32, #tpu.memory_space<vmem>>, vector<16x64xf32>
    %c0_7 = arith.constant 0 : index
    %c0_8 = arith.constant 0 : index
    %13 = vector.load %arg4[%c0_7, %c0_8] : memref<64x256xf32, #tpu.memory_space<vmem>>, vector<64x256xf32>
    %cst = arith.constant dense<0.000000e+00> : vector<16x256xf32>
    %14 = tpu.matmul %12, %13, %cst {dimension_numbers = #tpu.dot_dimension_numbers<[1], [0], [0], [1], [0, 0, 1, 1], [], []>} : vector<16x64xf32>, vector<64x256xf32>, vector<16x256xf32> -> vector<16x256xf32>
    %cst_9 = arith.constant dense<0.000000e+00> : vector<64x256xf32>
    %15 = tpu.matmul %7, %14, %cst_9 {dimension_numbers = #tpu.dot_dimension_numbers<[1], [0], [0], [1], [0, 0, 1, 1], [], []>} : vector<64x16xf32>, vector<16x256xf32>, vector<64x256xf32> -> vector<64x256xf32>
    %c0_i32 = arith.constant 0 : i32
    %16 = vector.broadcast %c0_i32 : i32 to vector<64x1xi32>
    %17 = arith.cmpi eq, %2, %16 : vector<64x1xi32>
    %18 = arith.extui %17 : vector<64x1xi1> to vector<64x1xi32>
    %19 = arith.sitofp %18 : vector<64x1xi32> to vector<64x1xf32>
    %20 = vector.extract_strided_slice %15 {offsets = [0, 0], sizes = [64, 64], strides = [1, 1]} : vector<64x256xf32> to vector<64x64xf32>
    %21 = vector.broadcast %19 : vector<64x1xf32> to vector<64x64xf32>
    %22 = arith.mulf %21, %20 : vector<64x64xf32>
    %c1_i32 = arith.constant 1 : i32
    %23 = vector.broadcast %c1_i32 : i32 to vector<64x1xi32>
    %24 = arith.cmpi eq, %2, %23 : vector<64x1xi32>
    %25 = arith.extui %24 : vector<64x1xi1> to vector<64x1xi32>
    %26 = arith.sitofp %25 : vector<64x1xi32> to vector<64x1xf32>
    %27 = vector.extract_strided_slice %15 {offsets = [0, 64], sizes = [64, 64], strides = [1, 1]} : vector<64x256xf32> to vector<64x64xf32>
    %28 = vector.broadcast %26 : vector<64x1xf32> to vector<64x64xf32>
    %29 = arith.mulf %28, %27 : vector<64x64xf32>
    %30 = arith.addf %22, %29 : vector<64x64xf32>
    %c2_i32 = arith.constant 2 : i32
    %31 = vector.broadcast %c2_i32 : i32 to vector<64x1xi32>
    %32 = arith.cmpi eq, %2, %31 : vector<64x1xi32>
    %33 = arith.extui %32 : vector<64x1xi1> to vector<64x1xi32>
    %34 = arith.sitofp %33 : vector<64x1xi32> to vector<64x1xf32>
    %35 = vector.extract_strided_slice %15 {offsets = [0, 128], sizes = [64, 64], strides = [1, 1]} : vector<64x256xf32> to vector<64x64xf32>
    %36 = vector.broadcast %34 : vector<64x1xf32> to vector<64x64xf32>
    %37 = arith.mulf %36, %35 : vector<64x64xf32>
    %38 = arith.addf %30, %37 : vector<64x64xf32>
    %c3_i32 = arith.constant 3 : i32
    %39 = vector.broadcast %c3_i32 : i32 to vector<64x1xi32>
    %40 = arith.cmpi eq, %2, %39 : vector<64x1xi32>
    %41 = arith.extui %40 : vector<64x1xi1> to vector<64x1xi32>
    %42 = arith.sitofp %41 : vector<64x1xi32> to vector<64x1xf32>
    %43 = vector.extract_strided_slice %15 {offsets = [0, 192], sizes = [64, 64], strides = [1, 1]} : vector<64x256xf32> to vector<64x64xf32>
    %44 = vector.broadcast %42 : vector<64x1xf32> to vector<64x64xf32>
    %45 = arith.mulf %44, %43 : vector<64x64xf32>
    %46 = arith.addf %38, %45 : vector<64x64xf32>
    %cst_10 = arith.constant dense<0.000000e+00> : vector<16x64xf32>
    %47 = tpu.matmul %11, %46, %cst_10 {dimension_numbers = #tpu.dot_dimension_numbers<[0], [0], [1], [1], [0, 1, 1, 1], [], []>} : vector<64x16xf32>, vector<64x64xf32>, vector<16x64xf32> -> vector<16x64xf32>
    %c0_11 = arith.constant 0 : index
    %c0_12 = arith.constant 0 : index
    %48 = vector.load %arg5[%c0_11, %c0_12] : memref<1x64xf32, #tpu.memory_space<vmem>>, vector<1x64xf32>
    %49 = vector.broadcast %48 : vector<1x64xf32> to vector<16x64xf32>
    %50 = arith.addf %47, %49 : vector<16x64xf32>
    %cst_13 = arith.constant 0.000000e+00 : f32
    %51 = vector.broadcast %cst_13 : f32 to vector<16x64xf32>
    %52 = arith.maximumf %50, %51 : vector<16x64xf32>
    %53 = arith.addf %7, %11 : vector<64x16xf32>
    %cst_14 = arith.constant dense<0.000000e+00> : vector<64x64xf32>
    %54 = tpu.matmul %53, %52, %cst_14 {dimension_numbers = #tpu.dot_dimension_numbers<[1], [0], [0], [1], [0, 0, 1, 1], [], []>} : vector<64x16xf32>, vector<16x64xf32>, vector<64x64xf32> -> vector<64x64xf32>
    %55 = vector.shape_cast %54 : vector<64x64xf32> to vector<1x64x64xf32>
    %56 = vector.shape_cast %55 : vector<1x64x64xf32> to vector<1x64x64xf32>
    %57 = vector.broadcast %56 : vector<1x64x64xf32> to vector<24x64x64xf32>
    %c0_15 = arith.constant 0 : index
    %c0_16 = arith.constant 0 : index
    %c0_17 = arith.constant 0 : index
    %58 = vector.load %arg6[%c0_15, %c0_16, %c0_17] : memref<24x64x8xf32, #tpu.memory_space<vmem>>, vector<24x64x8xf32>
    "tpu.trace_start"() <{level = 10 : i32, message = "hei,hid->hed"}> : () -> ()
    %cst_18 = arith.constant dense<0.000000e+00> : vector<24x64x8xf32>
    %59 = tpu.matmul %57, %58, %cst_18 {dimension_numbers = #tpu.dot_dimension_numbers<[2], [1], [1], [2], [0, 0, 0, 1, 1, 2], [0], [0]>} : vector<24x64x64xf32>, vector<24x64x8xf32>, vector<24x64x8xf32> -> vector<24x64x8xf32>
    "tpu.trace_stop"() : () -> ()
    %60 = vector.extract_strided_slice %59 {offsets = [0, 0, 0], sizes = [8, 64, 8], strides = [1, 1, 1]} : vector<24x64x8xf32> to vector<8x64x8xf32>
    %61 = vector.extract_strided_slice %59 {offsets = [8, 0, 0], sizes = [8, 64, 8], strides = [1, 1, 1]} : vector<24x64x8xf32> to vector<8x64x8xf32>
    %62 = vector.extract_strided_slice %59 {offsets = [16, 0, 0], sizes = [8, 64, 8], strides = [1, 1, 1]} : vector<24x64x8xf32> to vector<8x64x8xf32>
    "tpu.trace_start"() <{level = 10 : i32, message = "hqd,hkd->hqk"}> : () -> ()
    %cst_19 = arith.constant dense<0.000000e+00> : vector<8x64x64xf32>
    %63 = tpu.matmul %60, %61, %cst_19 {dimension_numbers = #tpu.dot_dimension_numbers<[2], [2], [1], [1], [0, 0, 0, 1, 1, 1], [0], [0]>} : vector<8x64x8xf32>, vector<8x64x8xf32>, vector<8x64x64xf32> -> vector<8x64x64xf32>
    "tpu.trace_stop"() : () -> ()
    %cst_20 = arith.constant 0.353553385 : f32
    %64 = vector.broadcast %cst_20 : f32 to vector<8x64x64xf32>
    %65 = arith.mulf %63, %64 : vector<8x64x64xf32>
    %cst_21 = arith.constant dense<0xFF800000> : vector<8x64xf32>
    %66 = vector.multi_reduction <maximumf>, %65, %cst_21 [2] : vector<8x64x64xf32> to vector<8x64xf32>
    %67 = vector.shape_cast %66 : vector<8x64xf32> to vector<8x64x1xf32>
    %68 = vector.broadcast %67 : vector<8x64x1xf32> to vector<8x64x64xf32>
    %69 = arith.subf %65, %68 : vector<8x64x64xf32>
    %70 = math.exp %69 : vector<8x64x64xf32>
    %cst_22 = arith.constant dense<0.000000e+00> : vector<8x64xf32>
    %71 = vector.multi_reduction <add>, %70, %cst_22 [2] : vector<8x64x64xf32> to vector<8x64xf32>
    %72 = vector.shape_cast %71 : vector<8x64xf32> to vector<8x64x1xf32>
    %73 = tpu.reciprocal %72 {approx = true} : vector<8x64x1xf32> -> vector<8x64x1xf32>
    %74 = vector.broadcast %73 : vector<8x64x1xf32> to vector<8x64x64xf32>
    %75 = arith.mulf %70, %74 : vector<8x64x64xf32>
    %cst_23 = arith.constant dense<0.000000e+00> : vector<8x8x64xf32>
    %76 = tpu.matmul %62, %75, %cst_23 {dimension_numbers = #tpu.dot_dimension_numbers<[1], [2], [2], [1], [0, 0, 0, 2, 1, 1], [0], [0]>} : vector<8x64x8xf32>, vector<8x64x64xf32>, vector<8x8x64xf32> -> vector<8x8x64xf32>
    %77 = vector.shape_cast %76 : vector<8x8x64xf32> to vector<64x64xf32>
    %c0_24 = arith.constant 0 : index
    %c0_25 = arith.constant 0 : index
    %78 = vector.load %arg7[%c0_24, %c0_25] : memref<64x64xf32, #tpu.memory_space<vmem>>, vector<64x64xf32>
    %cst_26 = arith.constant dense<0.000000e+00> : vector<64x64xf32>
    %79 = tpu.matmul %77, %78, %cst_26 {dimension_numbers = #tpu.dot_dimension_numbers<[1], [0], [0], [1], [0, 0, 1, 1], [], []>} : vector<64x64xf32>, vector<64x64xf32>, vector<64x64xf32> -> vector<64x64xf32>
    %80 = arith.addf %79, %54 : vector<64x64xf32>
    %cst_27 = arith.constant dense<0.000000e+00> : vector<64xf32>
    %81 = vector.multi_reduction <add>, %80, %cst_27 [1] : vector<64x64xf32> to vector<64xf32>
    %82 = vector.shape_cast %81 : vector<64xf32> to vector<64x1xf32>
    %cst_28 = arith.constant 6.400000e+01 : f32
    %83 = vector.broadcast %cst_28 : f32 to vector<64x1xf32>
    %84 = arith.divf %82, %83 : vector<64x1xf32>
    %85 = vector.broadcast %84 : vector<64x1xf32> to vector<64x64xf32>
    %86 = arith.subf %80, %85 : vector<64x64xf32>
    %87 = arith.mulf %86, %86 : vector<64x64xf32>
    %cst_29 = arith.constant dense<0.000000e+00> : vector<64xf32>
    %88 = vector.multi_reduction <add>, %87, %cst_29 [1] : vector<64x64xf32> to vector<64xf32>
    %89 = vector.shape_cast %88 : vector<64xf32> to vector<64x1xf32>
    %cst_30 = arith.constant 6.400000e+01 : f32
    %90 = vector.broadcast %cst_30 : f32 to vector<64x1xf32>
    %91 = arith.divf %89, %90 : vector<64x1xf32>
    %92 = vector.broadcast %84 : vector<64x1xf32> to vector<64x64xf32>
    %93 = arith.subf %80, %92 : vector<64x64xf32>
    %cst_31 = arith.constant 9.99999974E-6 : f32
    %94 = vector.broadcast %cst_31 : f32 to vector<64x1xf32>
    %95 = arith.addf %91, %94 : vector<64x1xf32>
    %96 = math.rsqrt %95 : vector<64x1xf32>
    %97 = vector.broadcast %96 : vector<64x1xf32> to vector<64x64xf32>
    %98 = arith.mulf %93, %97 : vector<64x64xf32>
    %c0_32 = arith.constant 0 : index
    %c0_33 = arith.constant 0 : index
    %99 = vector.load %arg8[%c0_32, %c0_33] : memref<1x64xf32, #tpu.memory_space<vmem>>, vector<1x64xf32>
    %100 = vector.broadcast %99 : vector<1x64xf32> to vector<64x64xf32>
    %101 = arith.mulf %98, %100 : vector<64x64xf32>
    %c0_34 = arith.constant 0 : index
    %c0_35 = arith.constant 0 : index
    %102 = vector.load %arg9[%c0_34, %c0_35] : memref<1x64xf32, #tpu.memory_space<vmem>>, vector<1x64xf32>
    %103 = vector.broadcast %102 : vector<1x64xf32> to vector<64x64xf32>
    %104 = arith.addf %101, %103 : vector<64x64xf32>
    %c0_36 = arith.constant 0 : index
    %c0_37 = arith.constant 0 : index
    %105 = vector.load %arg10[%c0_36, %c0_37] : memref<64x128xf32, #tpu.memory_space<vmem>>, vector<64x128xf32>
    %cst_38 = arith.constant dense<0.000000e+00> : vector<64x128xf32>
    %106 = tpu.matmul %104, %105, %cst_38 {dimension_numbers = #tpu.dot_dimension_numbers<[1], [0], [0], [1], [0, 0, 1, 1], [], []>} : vector<64x64xf32>, vector<64x128xf32>, vector<64x128xf32> -> vector<64x128xf32>
    %c0_39 = arith.constant 0 : index
    %c0_40 = arith.constant 0 : index
    %107 = vector.load %arg11[%c0_39, %c0_40] : memref<1x128xf32, #tpu.memory_space<vmem>>, vector<1x128xf32>
    %108 = vector.broadcast %107 : vector<1x128xf32> to vector<64x128xf32>
    %109 = arith.addf %106, %108 : vector<64x128xf32>
    %c0_41 = arith.constant 0 : index
    %c0_42 = arith.constant 0 : index
    %110 = vector.load %arg12[%c0_41, %c0_42] : memref<64x128xf32, #tpu.memory_space<vmem>>, vector<64x128xf32>
    tpu.vector_store %arg12[%c0_41, %c0_42], %109 {strides = array<i32>} : memref<64x128xf32, #tpu.memory_space<vmem>>, vector<64x128xf32>,
    return
  }
}

</mosaic_0001>

<llo_original>
// kernel: _lambda_.1
$region0: #{_lambda_.1}
  #allocation0 [shape = 'u32[]', space=smem, size = 0x4, offset = 0x4, fixed_abs, tag = 'smem constant byte address 0x4 - core index']
  #allocation1 [shape = 'u32[144,128]{1,0:T(1,128)}', space=vmem, size = 0x12000, scoped, tag = 'internal scratch']
  %s0 = inlined_call_operand.vmem [shape: s32[64,1], index: 0, kind: input, shape index: {}]
  %s1 = inlined_call_operand.vmem [shape: s32[64,1], index: 1, kind: input, shape index: {}]
  %s2 = inlined_call_operand.vmem [shape: s32[64,1], index: 2, kind: input, shape index: {}]
  %s3 = inlined_call_operand.vmem [shape: f32[16,64], index: 3, kind: input, shape index: {}]
  %s4 = inlined_call_operand.vmem [shape: f32[64,256], index: 4, kind: input, shape index: {}]
  %s5 = inlined_call_operand.vmem [shape: f32[1,64], index: 5, kind: input, shape index: {}]
  %s6 = inlined_call_operand.hbm [shape: f32[24,64,8], index: 6, kind: input, shape index: {}]
  %s7 = inlined_call_operand.vmem [shape: f32[64,64], index: 7, kind: input, shape index: {}]
  %s8 = inlined_call_operand.vmem [shape: f32[1,64], index: 8, kind: input, shape index: {}]
  %s9 = inlined_call_operand.vmem [shape: f32[1,64], index: 9, kind: input, shape index: {}]
  %s10 = inlined_call_operand.vmem [shape: f32[64,128], index: 10, kind: input, shape index: {}]
  %s11 = inlined_call_operand.vmem [shape: f32[1,128], index: 11, kind: input, shape index: {}]
  %s12 = inlined_call_operand.vmem [shape: f32[64,128], index: 12, kind: output, shape index: {}]
  %s13 = sld [smem:[#allocation0]]
  $region62: #{_lambda_.1} parent=0
    _
  %s15 = ssub.s32 1, %s13
  %s16 = scalar_select 0, %s15, %s13
  $region1: #{_lambda_.1} parent=0
    #allocation2 [shape = 'u8[786432]{0}', space=vmem, size = 0xc0000, scoped, tag = 'input window, operand 6, single buffered']
    #allocation3 [shape = 's32[1]{0}', space=sflag, size = 0x4, scoped, tag = 'scoped memory for _lambda_.1']
    %17 = vsyncpa [#allocation3], 0
    // Predicated region
    $region2: #{_lambda_.1} parent=1 // pred_check
      _
    $region3: #{_lambda_.1} parent=1 // pred_check_branch
      %19 = sbr.rel (0) target = $region5
    $region4: #{_lambda_.1} parent=1 // pred_region
      _
    $region5: #{_lambda_.1} parent=1 // pred_fallthru
      _
    // Predicated region
    $region6: #{_lambda_.1} parent=1 // pred_check
      _
    $region7: #{_lambda_.1} parent=1 // pred_check_branch
      %21 = sbr.rel (0) target = $region9
    $region8: #{_lambda_.1} parent=1 // pred_region
      _
    $region9: #{_lambda_.1} parent=1 // pred_fallthru
      _
    // Predicated region
    $region10: #{_lambda_.1} parent=1 // pred_check
      _
    $region11: #{_lambda_.1} parent=1 // pred_check_branch
      %23 = sbr.rel (0) target = $region13
    $region12: #{_lambda_.1} parent=1 // pred_region
      _
    $region13: #{_lambda_.1} parent=1 // pred_fallthru
      _
    // Predicated region
    $region14: #{_lambda_.1} parent=1 // pred_check
      _
    $region15: #{_lambda_.1} parent=1 // pred_check_branch
      %25 = sbr.rel (0) target = $region17
    $region16: #{_lambda_.1} parent=1 // pred_region
      _
    $region17: #{_lambda_.1} parent=1 // pred_fallthru
      _
    // Predicated region
    $region18: #{_lambda_.1} parent=1 // pred_check
      _
    $region19: #{_lambda_.1} parent=1 // pred_check_branch
      %27 = sbr.rel (0) target = $region21
    $region20: #{_lambda_.1} parent=1 // pred_region
      _
    $region21: #{_lambda_.1} parent=1 // pred_fallthru
      _
    // Predicated region
    $region22: #{_lambda_.1} parent=1 // pred_check
      _
    $region23: #{_lambda_.1} parent=1 // pred_check_branch
      %29 = sbr.rel (0) target = $region25
    $region24: #{_lambda_.1} parent=1 // pred_region
      _
    $region25: #{_lambda_.1} parent=1 // pred_fallthru
      _
    // Predicated region
    $region26: #{_lambda_.1} parent=1 // pred_check
      _
    $region27: #{_lambda_.1} parent=1 // pred_check_branch
      %31 = sbr.rel (0) target = $region29
    $region28: #{_lambda_.1} parent=1 // pred_region
      %s33 = ssub.s32 24576, 24576
      %34 = vsyncadd [#allocation3], %s33
      %s35 = sshll.u32 [#allocation2], 4
      %s36 = int_to_ptr.vmem [resolvable:$true] %s35
      %41 = dma.hbm_to_vmem [thread:$0]  %s6, 24576, %s36, [#allocation3], 128, 128, 8
    $region29: #{_lambda_.1} parent=1 // pred_fallthru
      _
    // Predicated region
    $region30: #{_lambda_.1} parent=1 // pred_check
      _
    $region31: #{_lambda_.1} parent=1 // pred_check_branch
      %43 = sbr.rel (0) target = $region33
    $region32: #{_lambda_.1} parent=1 // pred_region
      _
    $region33: #{_lambda_.1} parent=1 // pred_fallthru
      _
    // Predicated region
    $region34: #{_lambda_.1} parent=1 // pred_check
      _
    $region35: #{_lambda_.1} parent=1 // pred_check_branch
      %45 = sbr.rel (0) target = $region37
    $region36: #{_lambda_.1} parent=1 // pred_region
      _
    $region37: #{_lambda_.1} parent=1 // pred_fallthru
      _
    // Predicated region
    $region38: #{_lambda_.1} parent=1 // pred_check
      _
    $region39: #{_lambda_.1} parent=1 // pred_check_branch
      %47 = sbr.rel (0) target = $region41
    $region40: #{_lambda_.1} parent=1 // pred_region
      _
    $region41: #{_lambda_.1} parent=1 // pred_fallthru
      _
    // Predicated region
    $region42: #{_lambda_.1} parent=1 // pred_check
      _
    $region43: #{_lambda_.1} parent=1 // pred_check_branch
      %49 = sbr.rel (0) target = $region45
    $region44: #{_lambda_.1} parent=1 // pred_region
      _
    $region45: #{_lambda_.1} parent=1 // pred_fallthru
      _
    // Predicated region
    $region46: #{_lambda_.1} parent=1 // pred_check
      _
    $region47: #{_lambda_.1} parent=1 // pred_check_branch
      %51 = sbr.rel (0) target = $region49
    $region48: #{_lambda_.1} parent=1 // pred_region
      _
    $region49: #{_lambda_.1} parent=1 // pred_fallthru
      _
    // Predicated region
    $region50: #{_lambda_.1} parent=1 // pred_check
      _
    $region51: #{_lambda_.1} parent=1 // pred_check_branch
      %53 = sbr.rel (0) target = $region53
    $region52: #{_lambda_.1} parent=1 // pred_region
      %54 = dma.done [#allocation3], 24576
    $region53: #{_lambda_.1} parent=1 // pred_fallthru
      _
    %v55 = vld [vmem:[%s0] sm:$0xff]
    %v56 = vld [vmem:[%s0 + $0x8] sm:$0xff]
    %v57 = vld [vmem:[%s0 + $0x10] sm:$0xff]
    %v58 = vld [vmem:[%s0 + $0x18] sm:$0xff]
    %v59 = vld [vmem:[%s0 + $0x20] sm:$0xff]
    %v60 = vld [vmem:[%s0 + $0x28] sm:$0xff]
    %v61 = vld [vmem:[%s0 + $0x30] sm:$0xff]
    %v62 = vld [vmem:[%s0 + $0x38] sm:$0xff]
    %v63 = vld [vmem:[%s1] sm:$0xff]
    %v64 = vld [vmem:[%s1 + $0x8] sm:$0xff]
    %v65 = vld [vmem:[%s1 + $0x10] sm:$0xff]
    %v66 = vld [vmem:[%s1 + $0x18] sm:$0xff]
    %v67 = vld [vmem:[%s1 + $0x20] sm:$0xff]
    %v68 = vld [vmem:[%s1 + $0x28] sm:$0xff]
    %v69 = vld [vmem:[%s1 + $0x30] sm:$0xff]
    %v70 = vld [vmem:[%s1 + $0x38] sm:$0xff]
    %v71 = vld [vmem:[%s2] sm:$0xff]
    %v72 = vld [vmem:[%s2 + $0x8] sm:$0xff]
    %v73 = vld [vmem:[%s2 + $0x10] sm:$0xff]
    %v74 = vld [vmem:[%s2 + $0x18] sm:$0xff]
    %v75 = vld [vmem:[%s2 + $0x20] sm:$0xff]
    %v76 = vld [vmem:[%s2 + $0x28] sm:$0xff]
    %v77 = vld [vmem:[%s2 + $0x30] sm:$0xff]
    %v78 = vld [vmem:[%s2 + $0x38] sm:$0xff]
    %v79 = vlaneseq
    %v80 = vand.u32 %v79, 127
    %81 = vset.pattern.permute.xlu0 0
    %82 = vperm.xlu0 %81, %v55
    %v83 = vpop.permute.xlu0 %82
    %84 = vset.pattern.permute.xlu0 0
    %85 = vperm.xlu0 %84, %v56
    %v86 = vpop.permute.xlu0 %85
    %87 = vset.pattern.permute.xlu0 0
    %88 = vperm.xlu0 %87, %v57
    %v89 = vpop.permute.xlu0 %88
    %90 = vset.pattern.permute.xlu0 0
    %91 = vperm.xlu0 %90, %v58
    %v92 = vpop.permute.xlu0 %91
    %93 = vset.pattern.permute.xlu0 0
    %94 = vperm.xlu0 %93, %v59
    %v95 = vpop.permute.xlu0 %94
    %96 = vset.pattern.permute.xlu0 0
    %97 = vperm.xlu0 %96, %v60
    %v98 = vpop.permute.xlu0 %97
    %99 = vset.pattern.permute.xlu0 0
    %100 = vperm.xlu0 %99, %v61
    %v101 = vpop.permute.xlu0 %100
    %102 = vset.pattern.permute.xlu0 0
    %103 = vperm.xlu0 %102, %v62
    %v104 = vpop.permute.xlu0 %103
    %vm105 = vcmp.eq.s32.totalorder %v80, %v83
    %vm106 = vcmp.eq.s32.totalorder %v80, %v86
    %vm107 = vcmp.eq.s32.totalorder %v80, %v89
    %vm108 = vcmp.eq.s32.totalorder %v80, %v92
    %vm109 = vcmp.eq.s32.totalorder %v80, %v95
    %vm110 = vcmp.eq.s32.totalorder %v80, %v98
    %vm111 = vcmp.eq.s32.totalorder %v80, %v101
    %vm112 = vcmp.eq.s32.totalorder %v80, %v104
    %v113 = vsel %vm105, 1, 0
    %v114 = vsel %vm106, 1, 0
    %v115 = vsel %vm107, 1, 0
    %v116 = vsel %vm108, 1, 0
    %v117 = vsel %vm109, 1, 0
    %v118 = vsel %vm110, 1, 0
    %v119 = vsel %vm111, 1, 0
    %v120 = vsel %vm112, 1, 0
    %v121 = vcvt.s32.f32 %v113
    %v122 = vcvt.s32.f32 %v114
    %v123 = vcvt.s32.f32 %v115
    %v124 = vcvt.s32.f32 %v116
    %v125 = vcvt.s32.f32 %v117
    %v126 = vcvt.s32.f32 %v118
    %v127 = vcvt.s32.f32 %v119
    %v128 = vcvt.s32.f32 %v120
    %129 = vset.pattern.permute.xlu0 0
    %130 = vperm.xlu0 %129, %v63
    %v131 = vpop.permute.xlu0 %130
    %132 = vset.pattern.permute.xlu0 0
    %133 = vperm.xlu0 %132, %v64
    %v134 = vpop.permute.xlu0 %133
    %135 = vset.pattern.permute.xlu0 0
    %136 = vperm.xlu0 %135, %v65
    %v137 = vpop.permute.xlu0 %136
    %138 = vset.pattern.permute.xlu0 0
    %139 = vperm.xlu0 %138, %v66
    %v140 = vpop.permute.xlu0 %139
    %141 = vset.pattern.permute.xlu0 0
    %142 = vperm.xlu0 %141, %v67
    %v143 = vpop.permute.xlu0 %142
    %144 = vset.pattern.permute.xlu0 0
    %145 = vperm.xlu0 %144, %v68
    %v146 = vpop.permute.xlu0 %145
    %147 = vset.pattern.permute.xlu0 0
    %148 = vperm.xlu0 %147, %v69
    %v149 = vpop.permute.xlu0 %148
    %150 = vset.pattern.permute.xlu0 0
    %151 = vperm.xlu0 %150, %v70
    %v152 = vpop.permute.xlu0 %151
    %vm153 = vcmp.eq.s32.totalorder %v80, %v131
    %vm154 = vcmp.eq.s32.totalorder %v80, %v134
    %vm155 = vcmp.eq.s32.totalorder %v80, %v137
    %vm156 = vcmp.eq.s32.totalorder %v80, %v140
    %vm157 = vcmp.eq.s32.totalorder %v80, %v143
    %vm158 = vcmp.eq.s32.totalorder %v80, %v146
    %vm159 = vcmp.eq.s32.totalorder %v80, %v149
    %vm160 = vcmp.eq.s32.totalorder %v80, %v152
    %v161 = vsel %vm153, 1, 0
    %v162 = vsel %vm154, 1, 0
    %v163 = vsel %vm155, 1, 0
    %v164 = vsel %vm156, 1, 0
    %v165 = vsel %vm157, 1, 0
    %v166 = vsel %vm158, 1, 0
    %v167 = vsel %vm159, 1, 0
    %v168 = vsel %vm160, 1, 0
    %v169 = vcvt.s32.f32 %v161
    %v170 = vcvt.s32.f32 %v162
    %v171 = vcvt.s32.f32 %v163
    %v172 = vcvt.s32.f32 %v164
    %v173 = vcvt.s32.f32 %v165
    %v174 = vcvt.s32.f32 %v166
    %v175 = vcvt.s32.f32 %v167
    %v176 = vcvt.s32.f32 %v168
    %v177 = vld [vmem:[%s3] sm:$0xff]
    %v178 = vld [vmem:[%s3 + $0x8] sm:$0xff]
    %v179 = vld [vmem:[%s4] sm:$0xff]
    %v180 = vld [vmem:[%s4 + $0x8] sm:$0xff]
    %v181 = vld [vmem:[%s4 + $0x10] sm:$0xff]
    %v182 = vld [vmem:[%s4 + $0x18] sm:$0xff]
    %v183 = vld [vmem:[%s4 + $0x20] sm:$0xff]
    %v184 = vld [vmem:[%s4 + $0x28] sm:$0xff]
    %v185 = vld [vmem:[%s4 + $0x30] sm:$0xff]
    %v186 = vld [vmem:[%s4 + $0x38] sm:$0xff]
    %v187 = vld [vmem:[%s4 + $0x40] sm:$0xff]
    %v188 = vld [vmem:[%s4 + $0x48] sm:$0xff]
    %v189 = vld [vmem:[%s4 + $0x50] sm:$0xff]
    %v190 = vld [vmem:[%s4 + $0x58] sm:$0xff]
    %v191 = vld [vmem:[%s4 + $0x60] sm:$0xff]
    %v192 = vld [vmem:[%s4 + $0x68] sm:$0xff]
    %v193 = vld [vmem:[%s4 + $0x70] sm:$0xff]
    %v194 = vld [vmem:[%s4 + $0x78] sm:$0xff]
    %vm195 = vcmask 523264
    %v197 = vsel %vm195, %v177, 0
    %v200 = vsel %vm195, %v178, 0
    %202 = vmatprep.subr.mxu0 %v180
    %203 = vmatpush1.msra.mxu0 %v179
    %204 = vmatprep.subr.mxu0 %v182
    %205 = vmatpush1.msra.mxu0 %v181
    %206 = vmatprep.subr.mxu0 %v184
    %207 = vmatpush1.msra.mxu0 %v183
    %208 = vmatprep.subr.mxu0 %v186
    %209 = vmatpush1.msra.mxu0 %v185
    %210 = vmatprep.subr.mxu0 %v188
    %211 = vmatpush1.msra.mxu0 %v187
    %212 = vmatprep.subr.mxu0 %v190
    %213 = vmatpush1.msra.mxu0 %v189
    %214 = vmatprep.subr.mxu0 %v192
    %215 = vmatpush1.msra.mxu0 %v191
    %216 = vmatprep.subr.mxu0 %v194
    %217 = vmatpush1.msra.mxu0 %v193
    %218 = vmatprep.subr.mxu0 0.0
    %219 = vmatpush1.msra.mxu0 0.0
    %220 = vmatprep.subr.mxu0 0.0
    %221 = vmatpush1.msra.mxu0 0.0
    %222 = vmatprep.subr.mxu0 0.0
    %223 = vmatpush1.msra.mxu0 0.0
    %224 = vmatprep.subr.mxu0 0.0
    %225 = vmatpush1.msra.mxu0 0.0
    %226 = vmatprep.subr.mxu0 0.0
    %227 = vmatpush1.msra.mxu0 0.0
    %228 = vmatprep.subr.mxu0 0.0
    %229 = vmatpush1.msra.mxu0 0.0
    %230 = vmatprep.subr.mxu0 0.0
    %231 = vmatpush1.msra.mxu0 0.0
    %232 = vmatprep.subr.mxu0 0.0
    %233 = vmatpush1.msra.mxu0 0.0
    %234 = vmatprep.subr.mxu0 0.0
    %235 = vmatpush1.msra.mxu0 0.0
    %236 = vmatprep.subr.mxu0 0.0
    %237 = vmatpush1.msra.mxu0 0.0
    %238 = vmatprep.subr.mxu0 0.0
    %239 = vmatpush1.msra.mxu0 0.0
    %240 = vmatprep.subr.mxu0 0.0
    %241 = vmatpush1.msra.mxu0 0.0
    %242 = vmatprep.subr.mxu0 0.0
    %243 = vmatpush1.msra.mxu0 0.0
    %244 = vmatprep.subr.mxu0 0.0
    %245 = vmatpush1.msra.mxu0 0.0
    %246 = vmatprep.subr.mxu0 0.0
    %247 = vmatpush1.msra.mxu0 0.0
    %248 = vmatprep.subr.mxu0 0.0
    %249 = vmatpush1.msra.mxu0 0.0
    %250 = vmatprep.subr.mxu0 0.0
    %251 = vmatpush1.msra.mxu0 0.0
    %252 = vmatprep.subr.mxu0 0.0
    %253 = vmatpush1.msra.mxu0 0.0
    %254 = vmatprep.subr.mxu0 0.0
    %255 = vmatpush1.msra.mxu0 0.0
    %256 = vmatprep.subr.mxu0 0.0
    %257 = vmatpush1.msra.mxu0 0.0
    %258 = vmatprep.subr.mxu0 0.0
    %259 = vmatpush1.msra.mxu0 0.0
    %260 = vmatprep.subr.mxu0 0.0
    %261 = vmatpush1.msra.mxu0 0.0
    %262 = vmatprep.subr.mxu0 0.0
    %263 = vmatpush1.msra.mxu0 0.0
    %264 = vmatprep.subr.mxu0 0.0
    %265 = vmatpush1.msra.mxu0 0.0
    %266 = vmatprep.mubr.f32.mxu0 0.0
    %267 = vmatmul.mubr.f32.gmra.mrb[0].mxu0 %v197
    %v268 = vpop.f32.mrb[0].mxu0
    %v269 = vadd.f32 0.0, %v268
    %v270 = vpop.f32.mrb[0].mxu0
    %v271 = vadd.f32 0.0, %v270
    %272 = vmatprep.mubr.f32.mxu0 0.0
    %273 = vmatmul.mubr.f32.gmra.mrb[0].mxu0 %v200
    %v274 = vpop.f32.mrb[0].mxu0
    %v275 = vadd.f32 0.0, %v274
    %v276 = vpop.f32.mrb[0].mxu0
    %v277 = vadd.f32 0.0, %v276
    %278 = vdwg.mxu0
    %vm279 = vcmask 130048
    %v281 = vsel %vm279, %v121, 0
    %v284 = vsel %vm279, %v122, 0
    %v287 = vsel %vm279, %v123, 0
    %v290 = vsel %vm279, %v124, 0
    %v293 = vsel %vm279, %v125, 0
    %v296 = vsel %vm279, %v126, 0
    %v299 = vsel %vm279, %v127, 0
    %v302 = vsel %vm279, %v128, 0
    %304 = vmatprep.subr.mxu0 %v271
    %305 = vmatpush1.msra.mxu0 %v269
    %306 = vmatprep.subr.mxu0 %v277
    %307 = vmatpush1.msra.mxu0 %v275
    %308 = vmatprep.subr.mxu0 0.0
    %309 = vmatpush1.msra.mxu0 0.0
    %310 = vmatprep.subr.mxu0 0.0
    %311 = vmatpush1.msra.mxu0 0.0
    %312 = vmatprep.subr.mxu0 0.0
    %313 = vmatpush1.msra.mxu0 0.0
    %314 = vmatprep.subr.mxu0 0.0
    %315 = vmatpush1.msra.mxu0 0.0
    %316 = vmatprep.subr.mxu0 0.0
    %317 = vmatpush1.msra.mxu0 0.0
    %318 = vmatprep.subr.mxu0 0.0
    %319 = vmatpush1.msra.mxu0 0.0
    %320 = vmatprep.subr.mxu0 0.0
    %321 = vmatpush1.msra.mxu0 0.0
    %322 = vmatprep.subr.mxu0 0.0
    %323 = vmatpush1.msra.mxu0 0.0
    %324 = vmatprep.subr.mxu0 0.0
    %325 = vmatpush1.msra.mxu0 0.0
    %326 = vmatprep.subr.mxu0 0.0
    %327 = vmatpush1.msra.mxu0 0.0
    %328 = vmatprep.subr.mxu0 0.0
    %329 = vmatpush1.msra.mxu0 0.0
    %330 = vmatprep.subr.mxu0 0.0
    %331 = vmatpush1.msra.mxu0 0.0
    %332 = vmatprep.subr.mxu0 0.0
    %333 = vmatpush1.msra.mxu0 0.0
    %334 = vmatprep.subr.mxu0 0.0
    %335 = vmatpush1.msra.mxu0 0.0
    %336 = vmatprep.subr.mxu0 0.0
    %337 = vmatpush1.msra.mxu0 0.0
    %338 = vmatprep.subr.mxu0 0.0
    %339 = vmatpush1.msra.mxu0 0.0
    %340 = vmatprep.subr.mxu0 0.0
    %341 = vmatpush1.msra.mxu0 0.0
    %342 = vmatprep.subr.mxu0 0.0
    %343 = vmatpush1.msra.mxu0 0.0
    %344 = vmatprep.subr.mxu0 0.0
    %345 = vmatpush1.msra.mxu0 0.0
    %346 = vmatprep.subr.mxu0 0.0
    %347 = vmatpush1.msra.mxu0 0.0
    %348 = vmatprep.subr.mxu0 0.0
    %349 = vmatpush1.msra.mxu0 0.0
    %350 = vmatprep.subr.mxu0 0.0
    %351 = vmatpush1.msra.mxu0 0.0
    %352 = vmatprep.subr.mxu0 0.0
    %353 = vmatpush1.msra.mxu0 0.0
    %354 = vmatprep.subr.mxu0 0.0
    %355 = vmatpush1.msra.mxu0 0.0
    %356 = vmatprep.subr.mxu0 0.0
    %357 = vmatpush1.msra.mxu0 0.0
    %358 = vmatprep.subr.mxu0 0.0
    %359 = vmatpush1.msra.mxu0 0.0
    %360 = vmatprep.subr.mxu0 0.0
    %361 = vmatpush1.msra.mxu0 0.0
    %362 = vmatprep.subr.mxu0 0.0
    %363 = vmatpush1.msra.mxu0 0.0
    %364 = vmatprep.subr.mxu0 0.0
    %365 = vmatpush1.msra.mxu0 0.0
    %366 = vmatprep.subr.mxu0 0.0
    %367 = vmatpush1.msra.mxu0 0.0
    %368 = vmatprep.mubr.f32.mxu0 0.0
    %369 = vmatmul.mubr.f32.gmra.mrb[0].mxu0 %v281
    %v370 = vpop.f32.mrb[0].mxu0
    %v371 = vadd.f32 0.0, %v370
    %v372 = vpop.f32.mrb[0].mxu0
    %v373 = vadd.f32 0.0, %v372
    %374 = vmatprep.mubr.f32.mxu0 0.0
    %375 = vmatmul.mubr.f32.gmra.mrb[0].mxu0 %v284
    %v376 = vpop.f32.mrb[0].mxu0
    %v377 = vadd.f32 0.0, %v376
    %v378 = vpop.f32.mrb[0].mxu0
    %v379 = vadd.f32 0.0, %v378
    %380 = vmatprep.mubr.f32.mxu0 0.0
    %381 = vmatmul.mubr.f32.gmra.mrb[0].mxu0 %v287
    %v382 = vpop.f32.mrb[0].mxu0
    %v383 = vadd.f32 0.0, %v382
    %v384 = vpop.f32.mrb[0].mxu0
    %v385 = vadd.f32 0.0, %v384
    %386 = vmatprep.mubr.f32.mxu0 0.0
    %387 = vmatmul.mubr.f32.gmra.mrb[0].mxu0 %v290
    %v388 = vpop.f32.mrb[0].mxu0
    %v389 = vadd.f32 0.0, %v388
    %v390 = vpop.f32.mrb[0].mxu0
    %v391 = vadd.f32 0.0, %v390
    %392 = vmatprep.mubr.f32.mxu0 0.0
    %393 = vmatmul.mubr.f32.gmra.mrb[0].mxu0 %v293
    %v394 = vpop.f32.mrb[0].mxu0
    %v395 = vadd.f32 0.0, %v394
    %v396 = vpop.f32.mrb[0].mxu0
    %v397 = vadd.f32 0.0, %v396
    %398 = vmatprep.mubr.f32.mxu0 0.0
    %399 = vmatmul.mubr.f32.gmra.mrb[0].mxu0 %v296
    %v400 = vpop.f32.mrb[0].mxu0
    %v401 = vadd.f32 0.0, %v400
    %v402 = vpop.f32.mrb[0].mxu0
    %v403 = vadd.f32 0.0, %v402
    %404 = vmatprep.mubr.f32.mxu0 0.0
    %405 = vmatmul.mubr.f32.gmra.mrb[0].mxu0 %v299
    %v406 = vpop.f32.mrb[0].mxu0
    %v407 = vadd.f32 0.0, %v406
    %v408 = vpop.f32.mrb[0].mxu0
    %v409 = vadd.f32 0.0, %v408
    %410 = vmatprep.mubr.f32.mxu0 0.0
    %411 = vmatmul.mubr.f32.gmra.mrb[0].mxu0 %v302
    %v412 = vpop.f32.mrb[0].mxu0
    %v413 = vadd.f32 0.0, %v412
    %v414 = vpop.f32.mrb[0].mxu0
    %v415 = vadd.f32 0.0, %v414
    %416 = vdwg.mxu0
    %vm417 = vcmp.eq.s32.totalorder %v71, 0
    %vm418 = vcmp.eq.s32.totalorder %v72, 0
    %vm419 = vcmp.eq.s32.totalorder %v73, 0
    %vm420 = vcmp.eq.s32.totalorder %v74, 0
    %vm421 = vcmp.eq.s32.totalorder %v75, 0
    %vm422 = vcmp.eq.s32.totalorder %v76, 0
    %vm423 = vcmp.eq.s32.totalorder %v77, 0
    %vm424 = vcmp.eq.s32.totalorder %v78, 0
    %v425 = vsel %vm417, 1, 0
    %v426 = vsel %vm418, 1, 0
    %v427 = vsel %vm419, 1, 0
    %v428 = vsel %vm420, 1, 0
    %v429 = vsel %vm421, 1, 0
    %v430 = vsel %vm422, 1, 0
    %v431 = vsel %vm423, 1, 0
    %v432 = vsel %vm424, 1, 0
    %v433 = vcvt.s32.f32 %v425
    %v434 = vcvt.s32.f32 %v426
    %v435 = vcvt.s32.f32 %v427
    %v436 = vcvt.s32.f32 %v428
    %v437 = vcvt.s32.f32 %v429
    %v438 = vcvt.s32.f32 %v430
    %v439 = vcvt.s32.f32 %v431
    %v440 = vcvt.s32.f32 %v432
    %442 = vset.pattern.permute.xlu0 0
    %443 = vperm.xlu0 %442, %v433
    %v444 = vpop.permute.xlu0 %443
    %447 = vset.pattern.permute.xlu0 0
    %448 = vperm.xlu0 %447, %v434
    %v449 = vpop.permute.xlu0 %448
    %452 = vset.pattern.permute.xlu0 0
    %453 = vperm.xlu0 %452, %v435
    %v454 = vpop.permute.xlu0 %453
    %457 = vset.pattern.permute.xlu0 0
    %458 = vperm.xlu0 %457, %v436
    %v459 = vpop.permute.xlu0 %458
    %462 = vset.pattern.permute.xlu0 0
    %463 = vperm.xlu0 %462, %v437
    %v464 = vpop.permute.xlu0 %463
    %467 = vset.pattern.permute.xlu0 0
    %468 = vperm.xlu0 %467, %v438
    %v469 = vpop.permute.xlu0 %468
    %472 = vset.pattern.permute.xlu0 0
    %473 = vperm.xlu0 %472, %v439
    %v474 = vpop.permute.xlu0 %473
    %477 = vset.pattern.permute.xlu0 0
    %478 = vperm.xlu0 %477, %v440
    %v479 = vpop.permute.xlu0 %478
    %v481 = vmul.f32 %v444, %v371
    %v482 = vmul.f32 %v449, %v377
    %v483 = vmul.f32 %v454, %v383
    %v484 = vmul.f32 %v459, %v389
    %v485 = vmul.f32 %v464, %v395
    %v486 = vmul.f32 %v469, %v401
    %v487 = vmul.f32 %v474, %v407
    %v488 = vmul.f32 %v479, %v413
    %vm489 = vcmp.eq.s32.totalorder %v71, 1
    %vm490 = vcmp.eq.s32.totalorder %v72, 1
    %vm491 = vcmp.eq.s32.totalorder %v73, 1
    %vm492 = vcmp.eq.s32.totalorder %v74, 1
    %vm493 = vcmp.eq.s32.totalorder %v75, 1
    %vm494 = vcmp.eq.s32.totalorder %v76, 1
    %vm495 = vcmp.eq.s32.totalorder %v77, 1
    %vm496 = vcmp.eq.s32.totalorder %v78, 1
    %v497 = vsel %vm489, 1, 0
    %v498 = vsel %vm490, 1, 0
    %v499 = vsel %vm491, 1, 0
    %v500 = vsel %vm492, 1, 0
    %v501 = vsel %vm493, 1, 0
    %v502 = vsel %vm494, 1, 0
    %v503 = vsel %vm495, 1, 0
    %v504 = vsel %vm496, 1, 0
    %v505 = vcvt.s32.f32 %v497
    %v506 = vcvt.s32.f32 %v498
    %v507 = vcvt.s32.f32 %v499
    %v508 = vcvt.s32.f32 %v500
    %v509 = vcvt.s32.f32 %v501
    %v510 = vcvt.s32.f32 %v502
    %v511 = vcvt.s32.f32 %v503
    %v512 = vcvt.s32.f32 %v504
    %514 = vset.pattern.permute.xlu0 0
    %515 = vperm.xlu0 %514, %v505
    %v516 = vpop.permute.xlu0 %515
    %519 = vset.pattern.permute.xlu0 0
    %520 = vperm.xlu0 %519, %v506
    %v521 = vpop.permute.xlu0 %520
    %524 = vset.pattern.permute.xlu0 0
    %525 = vperm.xlu0 %524, %v507
    %v526 = vpop.permute.xlu0 %525
    %529 = vset.pattern.permute.xlu0 0
    %530 = vperm.xlu0 %529, %v508
    %v531 = vpop.permute.xlu0 %530
    %534 = vset.pattern.permute.xlu0 0
    %535 = vperm.xlu0 %534, %v509
    %v536 = vpop.permute.xlu0 %535
    %539 = vset.pattern.permute.xlu0 0
    %540 = vperm.xlu0 %539, %v510
    %v541 = vpop.permute.xlu0 %540
    %544 = vset.pattern.permute.xlu0 0
    %545 = vperm.xlu0 %544, %v511
    %v546 = vpop.permute.xlu0 %545
    %549 = vset.pattern.permute.xlu0 0
    %550 = vperm.xlu0 %549, %v512
    %v551 = vpop.permute.xlu0 %550
    %v553 = vmul.f32 %v516, %v371
    %v554 = vmul.f32 %v521, %v377
    %v555 = vmul.f32 %v526, %v383
    %v556 = vmul.f32 %v531, %v389
    %v557 = vmul.f32 %v536, %v395
    %v558 = vmul.f32 %v541, %v401
    %v559 = vmul.f32 %v546, %v407
    %v560 = vmul.f32 %v551, %v413
    %569 = vrot.lane.b32.xlu0 %v553, 64
    %v570 = vpop.permute.xlu0 %569
    %571 = vrot.lane.b32.xlu0 %v554, 64
    %v572 = vpop.permute.xlu0 %571
    %573 = vrot.lane.b32.xlu0 %v555, 64
    %v574 = vpop.permute.xlu0 %573
    %575 = vrot.lane.b32.xlu0 %v556, 64
    %v576 = vpop.permute.xlu0 %575
    %577 = vrot.lane.b32.xlu0 %v557, 64
    %v578 = vpop.permute.xlu0 %577
    %579 = vrot.lane.b32.xlu0 %v558, 64
    %v580 = vpop.permute.xlu0 %579
    %581 = vrot.lane.b32.xlu0 %v559, 64
    %v582 = vpop.permute.xlu0 %581
    %583 = vrot.lane.b32.xlu0 %v560, 64
    %v584 = vpop.permute.xlu0 %583
    %v593 = vadd.f32 %v481, %v570
    %v594 = vadd.f32 %v482, %v572
    %v595 = vadd.f32 %v483, %v574
    %v596 = vadd.f32 %v484, %v576
    %v597 = vadd.f32 %v485, %v578
    %v598 = vadd.f32 %v486, %v580
    %v599 = vadd.f32 %v487, %v582
    %v600 = vadd.f32 %v488, %v584
    %vm601 = vcmp.eq.s32.totalorder %v71, 2
    %vm602 = vcmp.eq.s32.totalorder %v72, 2
    %vm603 = vcmp.eq.s32.totalorder %v73, 2
    %vm604 = vcmp.eq.s32.totalorder %v74, 2
    %vm605 = vcmp.eq.s32.totalorder %v75, 2
    %vm606 = vcmp.eq.s32.totalorder %v76, 2
    %vm607 = vcmp.eq.s32.totalorder %v77, 2
    %vm608 = vcmp.eq.s32.totalorder %v78, 2
    %v609 = vsel %vm601, 1, 0
    %v610 = vsel %vm602, 1, 0
    %v611 = vsel %vm603, 1, 0
    %v612 = vsel %vm604, 1, 0
    %v613 = vsel %vm605, 1, 0
    %v614 = vsel %vm606, 1, 0
    %v615 = vsel %vm607, 1, 0
    %v616 = vsel %vm608, 1, 0
    %v617 = vcvt.s32.f32 %v609
    %v618 = vcvt.s32.f32 %v610
    %v619 = vcvt.s32.f32 %v611
    %v620 = vcvt.s32.f32 %v612
    %v621 = vcvt.s32.f32 %v613
    %v622 = vcvt.s32.f32 %v614
    %v623 = vcvt.s32.f32 %v615
    %v624 = vcvt.s32.f32 %v616
    %626 = vset.pattern.permute.xlu0 0
    %627 = vperm.xlu0 %626, %v617
    %v628 = vpop.permute.xlu0 %627
    %631 = vset.pattern.permute.xlu0 0
    %632 = vperm.xlu0 %631, %v618
    %v633 = vpop.permute.xlu0 %632
    %636 = vset.pattern.permute.xlu0 0
    %637 = vperm.xlu0 %636, %v619
    %v638 = vpop.permute.xlu0 %637
    %641 = vset.pattern.permute.xlu0 0
    %642 = vperm.xlu0 %641, %v620
    %v643 = vpop.permute.xlu0 %642
    %646 = vset.pattern.permute.xlu0 0
    %647 = vperm.xlu0 %646, %v621
    %v648 = vpop.permute.xlu0 %647
    %651 = vset.pattern.permute.xlu0 0
    %652 = vperm.xlu0 %651, %v622
    %v653 = vpop.permute.xlu0 %652
    %656 = vset.pattern.permute.xlu0 0
    %657 = vperm.xlu0 %656, %v623
    %v658 = vpop.permute.xlu0 %657
    %661 = vset.pattern.permute.xlu0 0
    %662 = vperm.xlu0 %661, %v624
    %v663 = vpop.permute.xlu0 %662
    %v665 = vmul.f32 %v628, %v373
    %v666 = vmul.f32 %v633, %v379
    %v667 = vmul.f32 %v638, %v385
    %v668 = vmul.f32 %v643, %v391
    %v669 = vmul.f32 %v648, %v397
    %v670 = vmul.f32 %v653, %v403
    %v671 = vmul.f32 %v658, %v409
    %v672 = vmul.f32 %v663, %v415
    %v673 = vadd.f32 %v593, %v665
    %v674 = vadd.f32 %v594, %v666
    %v675 = vadd.f32 %v595, %v667
    %v676 = vadd.f32 %v596, %v668
    %v677 = vadd.f32 %v597, %v669
    %v678 = vadd.f32 %v598, %v670
    %v679 = vadd.f32 %v599, %v671
    %v680 = vadd.f32 %v600, %v672
    %vm681 = vcmp.eq.s32.totalorder %v71, 3
    %vm682 = vcmp.eq.s32.totalorder %v72, 3
    %vm683 = vcmp.eq.s32.totalorder %v73, 3
    %vm684 = vcmp.eq.s32.totalorder %v74, 3
    %vm685 = vcmp.eq.s32.totalorder %v75, 3
    %vm686 = vcmp.eq.s32.totalorder %v76, 3
    %vm687 = vcmp.eq.s32.totalorder %v77, 3
    %vm688 = vcmp.eq.s32.totalorder %v78, 3
    %v689 = vsel %vm681, 1, 0
    %v690 = vsel %vm682, 1, 0
    %v691 = vsel %vm683, 1, 0
    %v692 = vsel %vm684, 1, 0
    %v693 = vsel %vm685, 1, 0
    %v694 = vsel %vm686, 1, 0
    %v695 = vsel %vm687, 1, 0
    %v696 = vsel %vm688, 1, 0
    %v697 = vcvt.s32.f32 %v689
    %v698 = vcvt.s32.f32 %v690
    %v699 = vcvt.s32.f32 %v691
    %v700 = vcvt.s32.f32 %v692
    %v701 = vcvt.s32.f32 %v693
    %v702 = vcvt.s32.f32 %v694
    %v703 = vcvt.s32.f32 %v695
    %v704 = vcvt.s32.f32 %v696
    %706 = vset.pattern.permute.xlu0 0
    %707 = vperm.xlu0 %706, %v697
    %v708 = vpop.permute.xlu0 %707
    %711 = vset.pattern.permute.xlu0 0
    %712 = vperm.xlu0 %711, %v698
    %v713 = vpop.permute.xlu0 %712
    %716 = vset.pattern.permute.xlu0 0
    %717 = vperm.xlu0 %716, %v699
    %v718 = vpop.permute.xlu0 %717
    %721 = vset.pattern.permute.xlu0 0
    %722 = vperm.xlu0 %721, %v700
    %v723 = vpop.permute.xlu0 %722
    %726 = vset.pattern.permute.xlu0 0
    %727 = vperm.xlu0 %726, %v701
    %v728 = vpop.permute.xlu0 %727
    %731 = vset.pattern.permute.xlu0 0
    %732 = vperm.xlu0 %731, %v702
    %v733 = vpop.permute.xlu0 %732
    %736 = vset.pattern.permute.xlu0 0
    %737 = vperm.xlu0 %736, %v703
    %v738 = vpop.permute.xlu0 %737
    %741 = vset.pattern.permute.xlu0 0
    %742 = vperm.xlu0 %741, %v704
    %v743 = vpop.permute.xlu0 %742
    %v745 = vmul.f32 %v708, %v373
    %v746 = vmul.f32 %v713, %v379
    %v747 = vmul.f32 %v718, %v385
    %v748 = vmul.f32 %v723, %v391
    %v749 = vmul.f32 %v728, %v397
    %v750 = vmul.f32 %v733, %v403
    %v751 = vmul.f32 %v738, %v409
    %v752 = vmul.f32 %v743, %v415
    %761 = vrot.lane.b32.xlu0 %v745, 64
    %v762 = vpop.permute.xlu0 %761
    %763 = vrot.lane.b32.xlu0 %v746, 64
    %v764 = vpop.permute.xlu0 %763
    %765 = vrot.lane.b32.xlu0 %v747, 64
    %v766 = vpop.permute.xlu0 %765
    %767 = vrot.lane.b32.xlu0 %v748, 64
    %v768 = vpop.permute.xlu0 %767
    %769 = vrot.lane.b32.xlu0 %v749, 64
    %v770 = vpop.permute.xlu0 %769
    %771 = vrot.lane.b32.xlu0 %v750, 64
    %v772 = vpop.permute.xlu0 %771
    %773 = vrot.lane.b32.xlu0 %v751, 64
    %v774 = vpop.permute.xlu0 %773
    %775 = vrot.lane.b32.xlu0 %v752, 64
    %v776 = vpop.permute.xlu0 %775
    %v785 = vadd.f32 %v673, %v762
    %v786 = vadd.f32 %v674, %v764
    %v787 = vadd.f32 %v675, %v766
    %v788 = vadd.f32 %v676, %v768
    %v789 = vadd.f32 %v677, %v770
    %v790 = vadd.f32 %v678, %v772
    %v791 = vadd.f32 %v679, %v774
    %v792 = vadd.f32 %v680, %v776
    %v793 = vld [vmem:[%s5] sm:$0x1]
    %v795 = vlaneseq
    %v796 = vshrl.u32 %v795, 7
    %v797 = vsub.s32 0, %v796
    %v798 = vrot.slane %v793, %v797
    %800 = vxpose.xlu0.b32.start [1/16] %v169, 128
    %801 = vxpose.xlu0.b32.cont [2/16] %v170, 128
    %802 = vxpose.xlu0.b32.cont [3/16] %v171, 128
    %803 = vxpose.xlu0.b32.cont [4/16] %v172, 128
    %804 = vxpose.xlu0.b32.cont [5/16] %v173, 128
    %805 = vxpose.xlu0.b32.cont [6/16] %v174, 128
    %806 = vxpose.xlu0.b32.cont [7/16] %v175, 128
    %807 = vxpose.xlu0.b32.cont [8/16] %v176, 128
    %808 = vxpose.xlu0.b32.cont [9/16] 0.0, 128
    %809 = vxpose.xlu0.b32.cont [10/16] 0.0, 128
    %810 = vxpose.xlu0.b32.cont [11/16] 0.0, 128
    %811 = vxpose.xlu0.b32.cont [12/16] 0.0, 128
    %812 = vxpose.xlu0.b32.cont [13/16] 0.0, 128
    %813 = vxpose.xlu0.b32.cont [14/16] 0.0, 128
    %814 = vxpose.xlu0.b32.cont [15/16] 0.0, 128
    %815 = vxpose.xlu0.b32.end [16/16] 0.0, 128
    %v816 = vpop.trf.xlu0
    %v817 = vpop.trf.xlu0
    %v818 = vpop.trf.xlu0
    %v819 = vpop.trf.xlu0
    %v820 = vpop.trf.xlu0
    %v821 = vpop.trf.xlu0
    %v822 = vpop.trf.xlu0
    %v823 = vpop.trf.xlu0
    %v824 = vpop.trf.xlu0
    %v825 = vpop.trf.xlu0
    %v826 = vpop.trf.xlu0
    %v827 = vpop.trf.xlu0
    %v828 = vpop.trf.xlu0
    %v829 = vpop.trf.xlu0
    %v830 = vpop.trf.xlu0
    %v831 = vpop.trf.xlu0
    %v833 = vsel %vm195, %v816, 0
    %v836 = vsel %vm195, %v817, 0
    %838 = vmatprep.subr.mxu0 0.0
    %839 = vmatpush1.msra.mxu0 %v785
    %840 = vmatprep.subr.mxu0 0.0
    %841 = vmatpush1.msra.mxu0 %v786
    %842 = vmatprep.subr.mxu0 0.0
    %843 = vmatpush1.msra.mxu0 %v787
    %844 = vmatprep.subr.mxu0 0.0
    %845 = vmatpush1.msra.mxu0 %v788
    %846 = vmatprep.subr.mxu0 0.0
    %847 = vmatpush1.msra.mxu0 %v789
    %848 = vmatprep.subr.mxu0 0.0
    %849 = vmatpush1.msra.mxu0 %v790
    %850 = vmatprep.subr.mxu0 0.0
    %851 = vmatpush1.msra.mxu0 %v791
    %852 = vmatprep.subr.mxu0 0.0
    %853 = vmatpush1.msra.mxu0 %v792
    %854 = vmatprep.subr.mxu0 0.0
    %855 = vmatpush1.msra.mxu0 0.0
    %856 = vmatprep.subr.mxu0 0.0
    %857 = vmatpush1.msra.mxu0 0.0
    %858 = vmatprep.subr.mxu0 0.0
    %859 = vmatpush1.msra.mxu0 0.0
    %860 = vmatprep.subr.mxu0 0.0
    %861 = vmatpush1.msra.mxu0 0.0
    %862 = vmatprep.subr.mxu0 0.0
    %863 = vmatpush1.msra.mxu0 0.0
    %864 = vmatprep.subr.mxu0 0.0
    %865 = vmatpush1.msra.mxu0 0.0
    %866 = vmatprep.subr.mxu0 0.0
    %867 = vmatpush1.msra.mxu0 0.0
    %868 = vmatprep.subr.mxu0 0.0
    %869 = vmatpush1.msra.mxu0 0.0
    %870 = vmatprep.subr.mxu0 0.0
    %871 = vmatpush1.msra.mxu0 0.0
    %872 = vmatprep.subr.mxu0 0.0
    %873 = vmatpush1.msra.mxu0 0.0
    %874 = vmatprep.subr.mxu0 0.0
    %875 = vmatpush1.msra.mxu0 0.0
    %876 = vmatprep.subr.mxu0 0.0
    %877 = vmatpush1.msra.mxu0 0.0
    %878 = vmatprep.subr.mxu0 0.0
    %879 = vmatpush1.msra.mxu0 0.0
    %880 = vmatprep.subr.mxu0 0.0
    %881 = vmatpush1.msra.mxu0 0.0
    %882 = vmatprep.subr.mxu0 0.0
    %883 = vmatpush1.msra.mxu0 0.0
    %884 = vmatprep.subr.mxu0 0.0
    %885 = vmatpush1.msra.mxu0 0.0
    %886 = vmatprep.subr.mxu0 0.0
    %887 = vmatpush1.msra.mxu0 0.0
    %888 = vmatprep.subr.mxu0 0.0
    %889 = vmatpush1.msra.mxu0 0.0
    %890 = vmatprep.subr.mxu0 0.0
    %891 = vmatpush1.msra.mxu0 0.0
    %892 = vmatprep.subr.mxu0 0.0
    %893 = vmatpush1.msra.mxu0 0.0
    %894 = vmatprep.subr.mxu0 0.0
    %895 = vmatpush1.msra.mxu0 0.0
    %896 = vmatprep.subr.mxu0 0.0
    %897 = vmatpush1.msra.mxu0 0.0
    %898 = vmatprep.subr.mxu0 0.0
    %899 = vmatpush1.msra.mxu0 0.0
    %900 = vmatprep.subr.mxu0 0.0
    %901 = vmatpush1.msra.mxu0 0.0
    %902 = vmatprep.mubr.f32.mxu0 0.0
    %903 = vmatmul.mubr.f32.gmra.mrb[0].mxu0 %v833
    %v904 = vpop.f32.mrb[0].mxu0
    %v905 = vadd.f32 %v798, %v904
    %v906 = vpop.f32.mrb[0].mxu0
    %907 = vmatprep.mubr.f32.mxu0 0.0
    %908 = vmatmul.mubr.f32.gmra.mrb[0].mxu0 %v836
    %v909 = vpop.f32.mrb[0].mxu0
    %v910 = vadd.f32 %v798, %v909
    %v911 = vpop.f32.mrb[0].mxu0
    %912 = vdwg.mxu0
    %v913 = vmax.f32 %v905, 0.0
    %v914 = vmax.f32 %v910, 0.0
    %v915 = vadd.f32 %v121, %v169
    %v916 = vadd.f32 %v122, %v170
    %v917 = vadd.f32 %v123, %v171
    %v918 = vadd.f32 %v124, %v172
    %v919 = vadd.f32 %v125, %v173
    %v920 = vadd.f32 %v126, %v174
    %v921 = vadd.f32 %v127, %v175
    %v922 = vadd.f32 %v128, %v176
    %v924 = vsel %vm279, %v915, 0
    %v927 = vsel %vm279, %v916, 0
    %v930 = vsel %vm279, %v917, 0
    %v933 = vsel %vm279, %v918, 0
    %v936 = vsel %vm279, %v919, 0
    %v939 = vsel %vm279, %v920, 0
    %v942 = vsel %vm279, %v921, 0
    %v945 = vsel %vm279, %v922, 0
    %947 = vmatprep.subr.mxu0 0.0
    %948 = vmatpush1.msra.mxu0 %v913
    %949 = vmatprep.subr.mxu0 0.0
    %950 = vmatpush1.msra.mxu0 %v914
    %951 = vmatprep.subr.mxu0 0.0
    %952 = vmatpush1.msra.mxu0 0.0
    %953 = vmatprep.subr.mxu0 0.0
    %954 = vmatpush1.msra.mxu0 0.0
    %955 = vmatprep.subr.mxu0 0.0
    %956 = vmatpush1.msra.mxu0 0.0
    %957 = vmatprep.subr.mxu0 0.0
    %958 = vmatpush1.msra.mxu0 0.0
    %959 = vmatprep.subr.mxu0 0.0
    %960 = vmatpush1.msra.mxu0 0.0
    %961 = vmatprep.subr.mxu0 0.0
    %962 = vmatpush1.msra.mxu0 0.0
    %963 = vmatprep.subr.mxu0 0.0
    %964 = vmatpush1.msra.mxu0 0.0
    %965 = vmatprep.subr.mxu0 0.0
    %966 = vmatpush1.msra.mxu0 0.0
    %967 = vmatprep.subr.mxu0 0.0
    %968 = vmatpush1.msra.mxu0 0.0
    %969 = vmatprep.subr.mxu0 0.0
    %970 = vmatpush1.msra.mxu0 0.0
    %971 = vmatprep.subr.mxu0 0.0
    %972 = vmatpush1.msra.mxu0 0.0
    %973 = vmatprep.subr.mxu0 0.0
    %974 = vmatpush1.msra.mxu0 0.0
    %975 = vmatprep.subr.mxu0 0.0
    %976 = vmatpush1.msra.mxu0 0.0
    %977 = vmatprep.subr.mxu0 0.0
    %978 = vmatpush1.msra.mxu0 0.0
    %979 = vmatprep.subr.mxu0 0.0
    %980 = vmatpush1.msra.mxu0 0.0
    %981 = vmatprep.subr.mxu0 0.0
    %982 = vmatpush1.msra.mxu0 0.0
    %983 = vmatprep.subr.mxu0 0.0
    %984 = vmatpush1.msra.mxu0 0.0
    %985 = vmatprep.subr.mxu0 0.0
    %986 = vmatpush1.msra.mxu0 0.0
    %987 = vmatprep.subr.mxu0 0.0
    %988 = vmatpush1.msra.mxu0 0.0
    %989 = vmatprep.subr.mxu0 0.0
    %990 = vmatpush1.msra.mxu0 0.0
    %991 = vmatprep.subr.mxu0 0.0
    %992 = vmatpush1.msra.mxu0 0.0
    %993 = vmatprep.subr.mxu0 0.0
    %994 = vmatpush1.msra.mxu0 0.0
    %995 = vmatprep.subr.mxu0 0.0
    %996 = vmatpush1.msra.mxu0 0.0
    %997 = vmatprep.subr.mxu0 0.0
    %998 = vmatpush1.msra.mxu0 0.0
    %999 = vmatprep.subr.mxu0 0.0
    %1000 = vmatpush1.msra.mxu0 0.0
    %1001 = vmatprep.subr.mxu0 0.0
    %1002 = vmatpush1.msra.mxu0 0.0
    %1003 = vmatprep.subr.mxu0 0.0
    %1004 = vmatpush1.msra.mxu0 0.0
    %1005 = vmatprep.subr.mxu0 0.0
    %1006 = vmatpush1.msra.mxu0 0.0
    %1007 = vmatprep.subr.mxu0 0.0
    %1008 = vmatpush1.msra.mxu0 0.0
    %1009 = vmatprep.subr.mxu0 0.0
    %1010 = vmatpush1.msra.mxu0 0.0
    %1011 = vmatprep.mubr.f32.mxu0 0.0
    %1012 = vmatmul.mubr.f32.gmra.mrb[0].mxu0 %v924
    %v1013 = vpop.f32.mrb[0].mxu0
    %v1014 = vadd.f32 0.0, %v1013
    %v1015 = vpop.f32.mrb[0].mxu0
    %1016 = vmatprep.mubr.f32.mxu0 0.0
    %1017 = vmatmul.mubr.f32.gmra.mrb[0].mxu0 %v927
    %v1018 = vpop.f32.mrb[0].mxu0
    %v1019 = vadd.f32 0.0, %v1018
    %v1020 = vpop.f32.mrb[0].mxu0
    %1021 = vmatprep.mubr.f32.mxu0 0.0
    %1022 = vmatmul.mubr.f32.gmra.mrb[0].mxu0 %v930
    %v1023 = vpop.f32.mrb[0].mxu0
    %v1024 = vadd.f32 0.0, %v1023
    %v1025 = vpop.f32.mrb[0].mxu0
    %1026 = vmatprep.mubr.f32.mxu0 0.0
    %1027 = vmatmul.mubr.f32.gmra.mrb[0].mxu0 %v933
    %v1028 = vpop.f32.mrb[0].mxu0
    %v1029 = vadd.f32 0.0, %v1028
    %v1030 = vpop.f32.mrb[0].mxu0
    %1031 = vmatprep.mubr.f32.mxu0 0.0
    %1032 = vmatmul.mubr.f32.gmra.mrb[0].mxu0 %v936
    %v1033 = vpop.f32.mrb[0].mxu0
    %v1034 = vadd.f32 0.0, %v1033
    %v1035 = vpop.f32.mrb[0].mxu0
    %1036 = vmatprep.mubr.f32.mxu0 0.0
    %1037 = vmatmul.mubr.f32.gmra.mrb[0].mxu0 %v939
    %v1038 = vpop.f32.mrb[0].mxu0
    %v1039 = vadd.f32 0.0, %v1038
    %v1040 = vpop.f32.mrb[0].mxu0
    %1041 = vmatprep.mubr.f32.mxu0 0.0
    %1042 = vmatmul.mubr.f32.gmra.mrb[0].mxu0 %v942
    %v1043 = vpop.f32.mrb[0].mxu0
    %v1044 = vadd.f32 0.0, %v1043
    %v1045 = vpop.f32.mrb[0].mxu0
    %1046 = vmatprep.mubr.f32.mxu0 0.0
    %1047 = vmatmul.mubr.f32.gmra.mrb[0].mxu0 %v945
    %v1048 = vpop.f32.mrb[0].mxu0
    %v1049 = vadd.f32 0.0, %v1048
    %v1050 = vpop.f32.mrb[0].mxu0
    %1051 = vdwg.mxu0
    %v1052 = vld [vmem:[#allocation2] sm:$0xff]
    %v1053 = vld [vmem:[#allocation2 + $0x8] sm:$0xff]
    %v1054 = vld [vmem:[#allocation2 + $0x10] sm:$0xff]
    %v1055 = vld [vmem:[#allocation2 + $0x18] sm:$0xff]
    %v1056 = vld [vmem:[#allocation2 + $0x20] sm:$0xff]
    %v1057 = vld [vmem:[#allocation2 + $0x28] sm:$0xff]
    %v1058 = vld [vmem:[#allocation2 + $0x30] sm:$0xff]
    %v1059 = vld [vmem:[#allocation2 + $0x38] sm:$0xff]
    %v1060 = vld [vmem:[#allocation2 + $0x40] sm:$0xff]
    %v1061 = vld [vmem:[#allocation2 + $0x48] sm:$0xff]
    %v1062 = vld [vmem:[#allocation2 + $0x50] sm:$0xff]
    %v1063 = vld [vmem:[#allocation2 + $0x58] sm:$0xff]
    %v1064 = vld [vmem:[#allocation2 + $0x60] sm:$0xff]
    %v1065 = vld [vmem:[#allocation2 + $0x68] sm:$0xff]
    %v1066 = vld [vmem:[#allocation2 + $0x70] sm:$0xff]
    %v1067 = vld [vmem:[#allocation2 + $0x78] sm:$0xff]
    %v1068 = vld [vmem:[#allocation2 + $0x80] sm:$0xff]
    %v1069 = vld [vmem:[#allocation2 + $0x88] sm:$0xff]
    %v1070 = vld [vmem:[#allocation2 + $0x90] sm:$0xff]
    %v1071 = vld [vmem:[#allocation2 + $0x98] sm:$0xff]
    %v1072 = vld [vmem:[#allocation2 + $0xa0] sm:$0xff]
    %v1073 = vld [vmem:[#allocation2 + $0xa8] sm:$0xff]
    %v1074 = vld [vmem:[#allocation2 + $0xb0] sm:$0xff]
    %v1075 = vld [vmem:[#allocation2 + $0xb8] sm:$0xff]
    %v1076 = vld [vmem:[#allocation2 + $0xc0] sm:$0xff]
    %v1077 = vld [vmem:[#allocation2 + $0xc8] sm:$0xff]
    %v1078 = vld [vmem:[#allocation2 + $0xd0] sm:$0xff]
    %v1079 = vld [vmem:[#allocation2 + $0xd8] sm:$0xff]
    %v1080 = vld [vmem:[#allocation2 + $0xe0] sm:$0xff]
    %v1081 = vld [vmem:[#allocation2 + $0xe8] sm:$0xff]
    %v1082 = vld [vmem:[#allocation2 + $0xf0] sm:$0xff]
    %v1083 = vld [vmem:[#allocation2 + $0xf8] sm:$0xff]
    %v1084 = vld [vmem:[#allocation2 + $0x100] sm:$0xff]
    %v1085 = vld [vmem:[#allocation2 + $0x108] sm:$0xff]
    %v1086 = vld [vmem:[#allocation2 + $0x110] sm:$0xff]
    %v1087 = vld [vmem:[#allocation2 + $0x118] sm:$0xff]
    %v1088 = vld [vmem:[#allocation2 + $0x120] sm:$0xff]
    %v1089 = vld [vmem:[#allocation2 + $0x128] sm:$0xff]
    %v1090 = vld [vmem:[#allocation2 + $0x130] sm:$0xff]
    %v1091 = vld [vmem:[#allocation2 + $0x138] sm:$0xff]
    %v1092 = vld [vmem:[#allocation2 + $0x140] sm:$0xff]
    %v1093 = vld [vmem:[#allocation2 + $0x148] sm:$0xff]
    %v1094 = vld [vmem:[#allocation2 + $0x150] sm:$0xff]
    %v1095 = vld [vmem:[#allocation2 + $0x158] sm:$0xff]
    %v1096 = vld [vmem:[#allocation2 + $0x160] sm:$0xff]
    %v1097 = vld [vmem:[#allocation2 + $0x168] sm:$0xff]
    %v1098 = vld [vmem:[#allocation2 + $0x170] sm:$0xff]
    %v1099 = vld [vmem:[#allocation2 + $0x178] sm:$0xff]
    %v1100 = vld [vmem:[#allocation2 + $0x180] sm:$0xff]
    %v1101 = vld [vmem:[#allocation2 + $0x188] sm:$0xff]
    %v1102 = vld [vmem:[#allocation2 + $0x190] sm:$0xff]
    %v1103 = vld [vmem:[#allocation2 + $0x198] sm:$0xff]
    %v1104 = vld [vmem:[#allocation2 + $0x1a0] sm:$0xff]
    %v1105 = vld [vmem:[#allocation2 + $0x1a8] sm:$0xff]
    %v1106 = vld [vmem:[#allocation2 + $0x1b0] sm:$0xff]
    %v1107 = vld [vmem:[#allocation2 + $0x1b8] sm:$0xff]
    %v1108 = vld [vmem:[#allocation2 + $0x1c0] sm:$0xff]
    %v1109 = vld [vmem:[#allocation2 + $0x1c8] sm:$0xff]
    %v1110 = vld [vmem:[#allocation2 + $0x1d0] sm:$0xff]
    %v1111 = vld [vmem:[#allocation2 + $0x1d8] sm:$0xff]
    %v1112 = vld [vmem:[#allocation2 + $0x1e0] sm:$0xff]
    %v1113 = vld [vmem:[#allocation2 + $0x1e8] sm:$0xff]
    %v1114 = vld [vmem:[#allocation2 + $0x1f0] sm:$0xff]
    %v1115 = vld [vmem:[#allocation2 + $0x1f8] sm:$0xff]
    %v1116 = vld [vmem:[#allocation2 + $0x200] sm:$0xff]
    %v1117 = vld [vmem:[#allocation2 + $0x208] sm:$0xff]
    %v1118 = vld [vmem:[#allocation2 + $0x210] sm:$0xff]
    %v1119 = vld [vmem:[#allocation2 + $0x218] sm:$0xff]
    %v1120 = vld [vmem:[#allocation2 + $0x220] sm:$0xff]
    %v1121 = vld [vmem:[#allocation2 + $0x228] sm:$0xff]
    %v1122 = vld [vmem:[#allocation2 + $0x230] sm:$0xff]
    %v1123 = vld [vmem:[#allocation2 + $0x238] sm:$0xff]
    %v1124 = vld [vmem:[#allocation2 + $0x240] sm:$0xff]
    %v1125 = vld [vmem:[#allocation2 + $0x248] sm:$0xff]
    %v1126 = vld [vmem:[#allocation2 + $0x250] sm:$0xff]
    %v1127 = vld [vmem:[#allocation2 + $0x258] sm:$0xff]
    %v1128 = vld [vmem:[#allocation2 + $0x260] sm:$0xff]
    %v1129 = vld [vmem:[#allocation2 + $0x268] sm:$0xff]
    %v1130 = vld [vmem:[#allocation2 + $0x270] sm:$0xff]
    %v1131 = vld [vmem:[#allocation2 + $0x278] sm:$0xff]
    %v1132 = vld [vmem:[#allocation2 + $0x280] sm:$0xff]
    %v1133 = vld [vmem:[#allocation2 + $0x288] sm:$0xff]
    %v1134 = vld [vmem:[#allocation2 + $0x290] sm:$0xff]
    %v1135 = vld [vmem:[#allocation2 + $0x298] sm:$0xff]
    %v1136 = vld [vmem:[#allocation2 + $0x2a0] sm:$0xff]
    %v1137 = vld [vmem:[#allocation2 + $0x2a8] sm:$0xff]
    %v1138 = vld [vmem:[#allocation2 + $0x2b0] sm:$0xff]
    %v1139 = vld [vmem:[#allocation2 + $0x2b8] sm:$0xff]
    %v1140 = vld [vmem:[#allocation2 + $0x2c0] sm:$0xff]
    %v1141 = vld [vmem:[#allocation2 + $0x2c8] sm:$0xff]
    %v1142 = vld [vmem:[#allocation2 + $0x2d0] sm:$0xff]
    %v1143 = vld [vmem:[#allocation2 + $0x2d8] sm:$0xff]
    %v1144 = vld [vmem:[#allocation2 + $0x2e0] sm:$0xff]
    %v1145 = vld [vmem:[#allocation2 + $0x2e8] sm:$0xff]
    %v1146 = vld [vmem:[#allocation2 + $0x2f0] sm:$0xff]
    %v1147 = vld [vmem:[#allocation2 + $0x2f8] sm:$0xff]
    %v1148 = vld [vmem:[#allocation2 + $0x300] sm:$0xff]
    %v1149 = vld [vmem:[#allocation2 + $0x308] sm:$0xff]
    %v1150 = vld [vmem:[#allocation2 + $0x310] sm:$0xff]
    %v1151 = vld [vmem:[#allocation2 + $0x318] sm:$0xff]
    %v1152 = vld [vmem:[#allocation2 + $0x320] sm:$0xff]
    %v1153 = vld [vmem:[#allocation2 + $0x328] sm:$0xff]
    %v1154 = vld [vmem:[#allocation2 + $0x330] sm:$0xff]
    %v1155 = vld [vmem:[#allocation2 + $0x338] sm:$0xff]
    %v1156 = vld [vmem:[#allocation2 + $0x340] sm:$0xff]
    %v1157 = vld [vmem:[#allocation2 + $0x348] sm:$0xff]
    %v1158 = vld [vmem:[#allocation2 + $0x350] sm:$0xff]
    %v1159 = vld [vmem:[#allocation2 + $0x358] sm:$0xff]
    %v1160 = vld [vmem:[#allocation2 + $0x360] sm:$0xff]
    %v1161 = vld [vmem:[#allocation2 + $0x368] sm:$0xff]
    %v1162 = vld [vmem:[#allocation2 + $0x370] sm:$0xff]
    %v1163 = vld [vmem:[#allocation2 + $0x378] sm:$0xff]
    %v1164 = vld [vmem:[#allocation2 + $0x380] sm:$0xff]
    %v1165 = vld [vmem:[#allocation2 + $0x388] sm:$0xff]
    %v1166 = vld [vmem:[#allocation2 + $0x390] sm:$0xff]
    %v1167 = vld [vmem:[#allocation2 + $0x398] sm:$0xff]
    %v1168 = vld [vmem:[#allocation2 + $0x3a0] sm:$0xff]
    %v1169 = vld [vmem:[#allocation2 + $0x3a8] sm:$0xff]
    %v1170 = vld [vmem:[#allocation2 + $0x3b0] sm:$0xff]
    %v1171 = vld [vmem:[#allocation2 + $0x3b8] sm:$0xff]
    %v1172 = vld [vmem:[#allocation2 + $0x3c0] sm:$0xff]
    %v1173 = vld [vmem:[#allocation2 + $0x3c8] sm:$0xff]
    %v1174 = vld [vmem:[#allocation2 + $0x3d0] sm:$0xff]
    %v1175 = vld [vmem:[#allocation2 + $0x3d8] sm:$0xff]
    %v1176 = vld [vmem:[#allocation2 + $0x3e0] sm:$0xff]
    %v1177 = vld [vmem:[#allocation2 + $0x3e8] sm:$0xff]
    %v1178 = vld [vmem:[#allocation2 + $0x3f0] sm:$0xff]
    %v1179 = vld [vmem:[#allocation2 + $0x3f8] sm:$0xff]
    %v1180 = vld [vmem:[#allocation2 + $0x400] sm:$0xff]
    %v1181 = vld [vmem:[#allocation2 + $0x408] sm:$0xff]
    %v1182 = vld [vmem:[#allocation2 + $0x410] sm:$0xff]
    %v1183 = vld [vmem:[#allocation2 + $0x418] sm:$0xff]
    %v1184 = vld [vmem:[#allocation2 + $0x420] sm:$0xff]
    %v1185 = vld [vmem:[#allocation2 + $0x428] sm:$0xff]
    %v1186 = vld [vmem:[#allocation2 + $0x430] sm:$0xff]
    %v1187 = vld [vmem:[#allocation2 + $0x438] sm:$0xff]
    %v1188 = vld [vmem:[#allocation2 + $0x440] sm:$0xff]
    %v1189 = vld [vmem:[#allocation2 + $0x448] sm:$0xff]
    %v1190 = vld [vmem:[#allocation2 + $0x450] sm:$0xff]
    %v1191 = vld [vmem:[#allocation2 + $0x458] sm:$0xff]
    %v1192 = vld [vmem:[#allocation2 + $0x460] sm:$0xff]
    %v1193 = vld [vmem:[#allocation2 + $0x468] sm:$0xff]
    %v1194 = vld [vmem:[#allocation2 + $0x470] sm:$0xff]
    %v1195 = vld [vmem:[#allocation2 + $0x478] sm:$0xff]
    %v1196 = vld [vmem:[#allocation2 + $0x480] sm:$0xff]
    %v1197 = vld [vmem:[#allocation2 + $0x488] sm:$0xff]
    %v1198 = vld [vmem:[#allocation2 + $0x490] sm:$0xff]
    %v1199 = vld [vmem:[#allocation2 + $0x498] sm:$0xff]
    %v1200 = vld [vmem:[#allocation2 + $0x4a0] sm:$0xff]
    %v1201 = vld [vmem:[#allocation2 + $0x4a8] sm:$0xff]
    %v1202 = vld [vmem:[#allocation2 + $0x4b0] sm:$0xff]
    %v1203 = vld [vmem:[#allocation2 + $0x4b8] sm:$0xff]
    %v1204 = vld [vmem:[#allocation2 + $0x4c0] sm:$0xff]
    %v1205 = vld [vmem:[#allocation2 + $0x4c8] sm:$0xff]
    %v1206 = vld [vmem:[#allocation2 + $0x4d0] sm:$0xff]
    %v1207 = vld [vmem:[#allocation2 + $0x4d8] sm:$0xff]
    %v1208 = vld [vmem:[#allocation2 + $0x4e0] sm:$0xff]
    %v1209 = vld [vmem:[#allocation2 + $0x4e8] sm:$0xff]
    %v1210 = vld [vmem:[#allocation2 + $0x4f0] sm:$0xff]
    %v1211 = vld [vmem:[#allocation2 + $0x4f8] sm:$0xff]
    %v1212 = vld [vmem:[#allocation2 + $0x500] sm:$0xff]
    %v1213 = vld [vmem:[#allocation2 + $0x508] sm:$0xff]
    %v1214 = vld [vmem:[#allocation2 + $0x510] sm:$0xff]
    %v1215 = vld [vmem:[#allocation2 + $0x518] sm:$0xff]
    %v1216 = vld [vmem:[#allocation2 + $0x520] sm:$0xff]
    %v1217 = vld [vmem:[#allocation2 + $0x528] sm:$0xff]
    %v1218 = vld [vmem:[#allocation2 + $0x530] sm:$0xff]
    %v1219 = vld [vmem:[#allocation2 + $0x538] sm:$0xff]
    %v1220 = vld [vmem:[#allocation2 + $0x540] sm:$0xff]
    %v1221 = vld [vmem:[#allocation2 + $0x548] sm:$0xff]
    %v1222 = vld [vmem:[#allocation2 + $0x550] sm:$0xff]
    %v1223 = vld [vmem:[#allocation2 + $0x558] sm:$0xff]
    %v1224 = vld [vmem:[#allocation2 + $0x560] sm:$0xff]
    %v1225 = vld [vmem:[#allocation2 + $0x568] sm:$0xff]
    %v1226 = vld [vmem:[#allocation2 + $0x570] sm:$0xff]
    %v1227 = vld [vmem:[#allocation2 + $0x578] sm:$0xff]
    %v1228 = vld [vmem:[#allocation2 + $0x580] sm:$0xff]
    %v1229 = vld [vmem:[#allocation2 + $0x588] sm:$0xff]
    %v1230 = vld [vmem:[#allocation2 + $0x590] sm:$0xff]
    %v1231 = vld [vmem:[#allocation2 + $0x598] sm:$0xff]
    %v1232 = vld [vmem:[#allocation2 + $0x5a0] sm:$0xff]
    %v1233 = vld [vmem:[#allocation2 + $0x5a8] sm:$0xff]
    %v1234 = vld [vmem:[#allocation2 + $0x5b0] sm:$0xff]
    %v1235 = vld [vmem:[#allocation2 + $0x5b8] sm:$0xff]
    %v1236 = vld [vmem:[#allocation2 + $0x5c0] sm:$0xff]
    %v1237 = vld [vmem:[#allocation2 + $0x5c8] sm:$0xff]
    %v1238 = vld [vmem:[#allocation2 + $0x5d0] sm:$0xff]
    %v1239 = vld [vmem:[#allocation2 + $0x5d8] sm:$0xff]
    %v1240 = vld [vmem:[#allocation2 + $0x5e0] sm:$0xff]
    %v1241 = vld [vmem:[#allocation2 + $0x5e8] sm:$0xff]
    %v1242 = vld [vmem:[#allocation2 + $0x5f0] sm:$0xff]
    %v1243 = vld [vmem:[#allocation2 + $0x5f8] sm:$0xff]
    %v1245 = vsel %vm195, %v1014, 0
    %v1248 = vsel %vm195, %v1019, 0
    %v1251 = vsel %vm195, %v1024, 0
    %v1254 = vsel %vm195, %v1029, 0
    %v1257 = vsel %vm195, %v1034, 0
    %v1260 = vsel %vm195, %v1039, 0
    %v1263 = vsel %vm195, %v1044, 0
    %v1266 = vsel %vm195, %v1049, 0
    %1268 = vmatprep.subr.mxu0 0.0
    %1269 = vmatpush1.msra.mxu0 %v1052
    %1270 = vmatprep.subr.mxu0 0.0
    %1271 = vmatpush1.msra.mxu0 %v1053
    %1272 = vmatprep.subr.mxu0 0.0
    %1273 = vmatpush1.msra.mxu0 %v1054
    %1274 = vmatprep.subr.mxu0 0.0
    %1275 = vmatpush1.msra.mxu0 %v1055
    %1276 = vmatprep.subr.mxu0 0.0
    %1277 = vmatpush1.msra.mxu0 %v1056
    %1278 = vmatprep.subr.mxu0 0.0
    %1279 = vmatpush1.msra.mxu0 %v1057
    %1280 = vmatprep.subr.mxu0 0.0
    %1281 = vmatpush1.msra.mxu0 %v1058
    %1282 = vmatprep.subr.mxu0 0.0
    %1283 = vmatpush1.msra.mxu0 %v1059
    %1284 = vmatprep.subr.mxu0 0.0
    %1285 = vmatpush1.msra.mxu0 0.0
    %1286 = vmatprep.subr.mxu0 0.0
    %1287 = vmatpush1.msra.mxu0 0.0
    %1288 = vmatprep.subr.mxu0 0.0
    %1289 = vmatpush1.msra.mxu0 0.0
    %1290 = vmatprep.subr.mxu0 0.0
    %1291 = vmatpush1.msra.mxu0 0.0
    %1292 = vmatprep.subr.mxu0 0.0
    %1293 = vmatpush1.msra.mxu0 0.0
    %1294 = vmatprep.subr.mxu0 0.0
    %1295 = vmatpush1.msra.mxu0 0.0
    %1296 = vmatprep.subr.mxu0 0.0
    %1297 = vmatpush1.msra.mxu0 0.0
    %1298 = vmatprep.subr.mxu0 0.0
    %1299 = vmatpush1.msra.mxu0 0.0
    %1300 = vmatprep.subr.mxu0 0.0
    %1301 = vmatpush1.msra.mxu0 0.0
    %1302 = vmatprep.subr.mxu0 0.0
    %1303 = vmatpush1.msra.mxu0 0.0
    %1304 = vmatprep.subr.mxu0 0.0
    %1305 = vmatpush1.msra.mxu0 0.0
    %1306 = vmatprep.subr.mxu0 0.0
    %1307 = vmatpush1.msra.mxu0 0.0
    %1308 = vmatprep.subr.mxu0 0.0
    %1309 = vmatpush1.msra.mxu0 0.0
    %1310 = vmatprep.subr.mxu0 0.0
    %1311 = vmatpush1.msra.mxu0 0.0
    %1312 = vmatprep.subr.mxu0 0.0
    %1313 = vmatpush1.msra.mxu0 0.0
    %1314 = vmatprep.subr.mxu0 0.0
    %1315 = vmatpush1.msra.mxu0 0.0
    %1316 = vmatprep.subr.mxu0 0.0
    %1317 = vmatpush1.msra.mxu0 0.0
    %1318 = vmatprep.subr.mxu0 0.0
    %1319 = vmatpush1.msra.mxu0 0.0
    %1320 = vmatprep.subr.mxu0 0.0
    %1321 = vmatpush1.msra.mxu0 0.0
    %1322 = vmatprep.subr.mxu0 0.0
    %1323 = vmatpush1.msra.mxu0 0.0
    %1324 = vmatprep.subr.mxu0 0.0
    %1325 = vmatpush1.msra.mxu0 0.0
    %1326 = vmatprep.subr.mxu0 0.0
    %1327 = vmatpush1.msra.mxu0 0.0
    %1328 = vmatprep.subr.mxu0 0.0
    %1329 = vmatpush1.msra.mxu0 0.0
    %1330 = vmatprep.subr.mxu0 0.0
    %1331 = vmatpush1.msra.mxu0 0.0
    %1332 = vmatprep.mubr.f32.mxu0 0.0
    %1333 = vmatmul.mubr.f32.gmra.mrb[0].mxu0 %v1245
    %v1334 = vpop.f32.mrb[0].mxu0
    %v1335 = vadd.f32 0.0, %v1334
    %v1336 = vpop.f32.mrb[0].mxu0
    %1337 = vmatprep.mubr.f32.mxu0 0.0
    %1338 = vmatmul.mubr.f32.gmra.mrb[0].mxu0 %v1248
    %v1339 = vpop.f32.mrb[0].mxu0
    %v1340 = vadd.f32 0.0, %v1339
    %v1341 = vpop.f32.mrb[0].mxu0
    %1342 = vmatprep.mubr.f32.mxu0 0.0
    %1343 = vmatmul.mubr.f32.gmra.mrb[0].mxu0 %v1251
    %v1344 = vpop.f32.mrb[0].mxu0
    %v1345 = vadd.f32 0.0, %v1344
    %v1346 = vpop.f32.mrb[0].mxu0
    %1347 = vmatprep.mubr.f32.mxu0 0.0
    %1348 = vmatmul.mubr.f32.gmra.mrb[0].mxu0 %v1254
    %v1349 = vpop.f32.mrb[0].mxu0
    %v1350 = vadd.f32 0.0, %v1349
    %v1351 = vpop.f32.mrb[0].mxu0
    %1352 = vmatprep.mubr.f32.mxu0 0.0
    %1353 = vmatmul.mubr.f32.gmra.mrb[0].mxu0 %v1257
    %v1354 = vpop.f32.mrb[0].mxu0
    %v1355 = vadd.f32 0.0, %v1354
    %v1356 = vpop.f32.mrb[0].mxu0
    %1357 = vmatprep.mubr.f32.mxu0 0.0
    %1358 = vmatmul.mubr.f32.gmra.mrb[0].mxu0 %v1260
    %v1359 = vpop.f32.mrb[0].mxu0
    %v1360 = vadd.f32 0.0, %v1359
    %v1361 = vpop.f32.mrb[0].mxu0
    %1362 = vmatprep.mubr.f32.mxu0 0.0
    %1363 = vmatmul.mubr.f32.gmra.mrb[0].mxu0 %v1263
    %v1364 = vpop.f32.mrb[0].mxu0
    %v1365 = vadd.f32 0.0, %v1364
    %v1366 = vpop.f32.mrb[0].mxu0
    %1367 = vmatprep.mubr.f32.mxu0 0.0
    %1368 = vmatmul.mubr.f32.gmra.mrb[0].mxu0 %v1266
    %v1369 = vpop.f32.mrb[0].mxu0
    %v1370 = vadd.f32 0.0, %v1369
    %v1371 = vpop.f32.mrb[0].mxu0
    %1372 = vdwg.mxu0
    %1373 = vmatprep.subr.mxu0 0.0
    %1374 = vmatpush1.msra.mxu0 %v1060
    %1375 = vmatprep.subr.mxu0 0.0
    %1376 = vmatpush1.msra.mxu0 %v1061
    %1377 = vmatprep.subr.mxu0 0.0
    %1378 = vmatpush1.msra.mxu0 %v1062
    %1379 = vmatprep.subr.mxu0 0.0
    %1380 = vmatpush1.msra.mxu0 %v1063
    %1381 = vmatprep.subr.mxu0 0.0
    %1382 = vmatpush1.msra.mxu0 %v1064
    %1383 = vmatprep.subr.mxu0 0.0
    %1384 = vmatpush1.msra.mxu0 %v1065
    %1385 = vmatprep.subr.mxu0 0.0
    %1386 = vmatpush1.msra.mxu0 %v1066
    %1387 = vmatprep.subr.mxu0 0.0
    %1388 = vmatpush1.msra.mxu0 %v1067
    %1389 = vmatprep.subr.mxu0 0.0
    %1390 = vmatpush1.msra.mxu0 0.0
    %1391 = vmatprep.subr.mxu0 0.0
    %1392 = vmatpush1.msra.mxu0 0.0
    %1393 = vmatprep.subr.mxu0 0.0
    %1394 = vmatpush1.msra.mxu0 0.0
    %1395 = vmatprep.subr.mxu0 0.0
    %1396 = vmatpush1.msra.mxu0 0.0
    %1397 = vmatprep.subr.mxu0 0.0
    %1398 = vmatpush1.msra.mxu0 0.0
    %1399 = vmatprep.subr.mxu0 0.0
    %1400 = vmatpush1.msra.mxu0 0.0
    %1401 = vmatprep.subr.mxu0 0.0
    %1402 = vmatpush1.msra.mxu0 0.0
    %1403 = vmatprep.subr.mxu0 0.0
    %1404 = vmatpush1.msra.mxu0 0.0
    %1405 = vmatprep.subr.mxu0 0.0
    %1406 = vmatpush1.msra.mxu0 0.0
    %1407 = vmatprep.subr.mxu0 0.0
    %1408 = vmatpush1.msra.mxu0 0.0
    %1409 = vmatprep.subr.mxu0 0.0
    %1410 = vmatpush1.msra.mxu0 0.0
    %1411 = vmatprep.subr.mxu0 0.0
    %1412 = vmatpush1.msra.mxu0 0.0
    %1413 = vmatprep.subr.mxu0 0.0
    %1414 = vmatpush1.msra.mxu0 0.0
    %1415 = vmatprep.subr.mxu0 0.0
    %1416 = vmatpush1.msra.mxu0 0.0
    %1417 = vmatprep.subr.mxu0 0.0
    %1418 = vmatpush1.msra.mxu0 0.0
    %1419 = vmatprep.subr.mxu0 0.0
    %1420 = vmatpush1.msra.mxu0 0.0
    %1421 = vmatprep.subr.mxu0 0.0
    %1422 = vmatpush1.msra.mxu0 0.0
    %1423 = vmatprep.subr.mxu0 0.0
    %1424 = vmatpush1.msra.mxu0 0.0
    %1425 = vmatprep.subr.mxu0 0.0
    %1426 = vmatpush1.msra.mxu0 0.0
    %1427 = vmatprep.subr.mxu0 0.0
    %1428 = vmatpush1.msra.mxu0 0.0
    %1429 = vmatprep.subr.mxu0 0.0
    %1430 = vmatpush1.msra.mxu0 0.0
    %1431 = vmatprep.subr.mxu0 0.0
    %1432 = vmatpush1.msra.mxu0 0.0
    %1433 = vmatprep.subr.mxu0 0.0
    %1434 = vmatpush1.msra.mxu0 0.0
    %1435 = vmatprep.subr.mxu0 0.0
    %1436 = vmatpush1.msra.mxu0 0.0
    %1437 = vmatprep.mubr.f32.mxu0 0.0
    %1438 = vmatmul.mubr.f32.gmra.mrb[0].mxu0 %v1245
    %v1439 = vpop.f32.mrb[0].mxu0
    %v1440 = vadd.f32 0.0, %v1439
    %v1441 = vpop.f32.mrb[0].mxu0
    %1442 = vmatprep.mubr.f32.mxu0 0.0
    %1443 = vmatmul.mubr.f32.gmra.mrb[0].mxu0 %v1248
    %v1444 = vpop.f32.mrb[0].mxu0
    %v1445 = vadd.f32 0.0, %v1444
    %v1446 = vpop.f32.mrb[0].mxu0
    %1447 = vmatprep.mubr.f32.mxu0 0.0
    %1448 = vmatmul.mubr.f32.gmra.mrb[0].mxu0 %v1251
    %v1449 = vpop.f32.mrb[0].mxu0
    %v1450 = vadd.f32 0.0, %v1449
    %v1451 = vpop.f32.mrb[0].mxu0
    %1452 = vmatprep.mubr.f32.mxu0 0.0
    %1453 = vmatmul.mubr.f32.gmra.mrb[0].mxu0 %v1254
    %v1454 = vpop.f32.mrb[0].mxu0
    %v1455 = vadd.f32 0.0, %v1454
    %v1456 = vpop.f32.mrb[0].mxu0
    %1457 = vmatprep.mubr.f32.mxu0 0.0
    %1458 = vmatmul.mubr.f32.gmra.mrb[0].mxu0 %v1257
    %v1459 = vpop.f32.mrb[0].mxu0
    %v1460 = vadd.f32 0.0, %v1459
    %v1461 = vpop.f32.mrb[0].mxu0
    %1462 = vmatprep.mubr.f32.mxu0 0.0
    %1463 = vmatmul.mubr.f32.gmra.mrb[0].mxu0 %v1260
    %v1464 = vpop.f32.mrb[0].mxu0
    %v1465 = vadd.f32 0.0, %v1464
    %v1466 = vpop.f32.mrb[0].mxu0
    %1467 = vmatprep.mubr.f32.mxu0 0.0
    %1468 = vmatmul.mubr.f32.gmra.mrb[0].mxu0 %v1263
    %v1469 = vpop.f32.mrb[0].mxu0
    %v1470 = vadd.f32 0.0, %v1469
    %v1471 = vpop.f32.mrb[0].mxu0
    %1472 = vmatprep.mubr.f32.mxu0 0.0
    %1473 = vmatmul.mubr.f32.gmra.mrb[0].mxu0 %v1266
    %v1474 = vpop.f32.mrb[0].mxu0
    %v1475 = vadd.f32 0.0, %v1474
    %v1476 = vpop.f32.mrb[0].mxu0
    %1477 = vdwg.mxu0
    %1478 = vmatprep.subr.mxu0 0.0
    %1479 = vmatpush1.msra.mxu0 %v1068
    %1480 = vmatprep.subr.mxu0 0.0
    %1481 = vmatpush1.msra.mxu0 %v1069
    %1482 = vmatprep.subr.mxu0 0.0
    %1483 = vmatpush1.msra.mxu0 %v1070
    %1484 = vmatprep.subr.mxu0 0.0
    %1485 = vmatpush1.msra.mxu0 %v1071
    %1486 = vmatprep.subr.mxu0 0.0
    %1487 = vmatpush1.msra.mxu0 %v1072
    %1488 = vmatprep.subr.mxu0 0.0
    %1489 = vmatpush1.msra.mxu0 %v1073
    %1490 = vmatprep.subr.mxu0 0.0
    %1491 = vmatpush1.msra.mxu0 %v1074
    %1492 = vmatprep.subr.mxu0 0.0
    %1493 = vmatpush1.msra.mxu0 %v1075
    %1494 = vmatprep.subr.mxu0 0.0
    %1495 = vmatpush1.msra.mxu0 0.0
    %1496 = vmatprep.subr.mxu0 0.0
    %1497 = vmatpush1.msra.mxu0 0.0
    %1498 = vmatprep.subr.mxu0 0.0
    %1499 = vmatpush1.msra.mxu0 0.0
    %1500 = vmatprep.subr.mxu0 0.0
    %1501 = vmatpush1.msra.mxu0 0.0
    %1502 = vmatprep.subr.mxu0 0.0
    %1503 = vmatpush1.msra.mxu0 0.0
    %1504 = vmatprep.subr.mxu0 0.0
    %1505 = vmatpush1.msra.mxu0 0.0
    %1506 = vmatprep.subr.mxu0 0.0
    %1507 = vmatpush1.msra.mxu0 0.0
    %1508 = vmatprep.subr.mxu0 0.0
    %1509 = vmatpush1.msra.mxu0 0.0
    %1510 = vmatprep.subr.mxu0 0.0
    %1511 = vmatpush1.msra.mxu0 0.0
    %1512 = vmatprep.subr.mxu0 0.0
    %1513 = vmatpush1.msra.mxu0 0.0
    %1514 = vmatprep.subr.mxu0 0.0
    %1515 = vmatpush1.msra.mxu0 0.0
    %1516 = vmatprep.subr.mxu0 0.0
    %1517 = vmatpush1.msra.mxu0 0.0
    %1518 = vmatprep.subr.mxu0 0.0
    %1519 = vmatpush1.msra.mxu0 0.0
    %1520 = vmatprep.subr.mxu0 0.0
    %1521 = vmatpush1.msra.mxu0 0.0
    %1522 = vmatprep.subr.mxu0 0.0
    %1523 = vmatpush1.msra.mxu0 0.0
    %1524 = vmatprep.subr.mxu0 0.0
    %1525 = vmatpush1.msra.mxu0 0.0
    %1526 = vmatprep.subr.mxu0 0.0
    %1527 = vmatpush1.msra.mxu0 0.0
    %1528 = vmatprep.subr.mxu0 0.0
    %1529 = vmatpush1.msra.mxu0 0.0
    %1530 = vmatprep.subr.mxu0 0.0
    %1531 = vmatpush1.msra.mxu0 0.0
    %1532 = vmatprep.subr.mxu0 0.0
    %1533 = vmatpush1.msra.mxu0 0.0
    %1534 = vmatprep.subr.mxu0 0.0
    %1535 = vmatpush1.msra.mxu0 0.0
    %1536 = vmatprep.subr.mxu0 0.0
    %1537 = vmatpush1.msra.mxu0 0.0
    %1538 = vmatprep.subr.mxu0 0.0
    %1539 = vmatpush1.msra.mxu0 0.0
    %1540 = vmatprep.subr.mxu0 0.0
    %1541 = vmatpush1.msra.mxu0 0.0
    %1542 = vmatprep.mubr.f32.mxu0 0.0
    %1543 = vmatmul.mubr.f32.gmra.mrb[0].mxu0 %v1245
    %v1544 = vpop.f32.mrb[0].mxu0
    %v1545 = vadd.f32 0.0, %v1544
    %v1546 = vpop.f32.mrb[0].mxu0
    %1547 = vmatprep.mubr.f32.mxu0 0.0
    %1548 = vmatmul.mubr.f32.gmra.mrb[0].mxu0 %v1248
    %v1549 = vpop.f32.mrb[0].mxu0
    %v1550 = vadd.f32 0.0, %v1549
    %v1551 = vpop.f32.mrb[0].mxu0
    %1552 = vmatprep.mubr.f32.mxu0 0.0
    %1553 = vmatmul.mubr.f32.gmra.mrb[0].mxu0 %v1251
    %v1554 = vpop.f32.mrb[0].mxu0
    %v1555 = vadd.f32 0.0, %v1554
    %v1556 = vpop.f32.mrb[0].mxu0
    %1557 = vmatprep.mubr.f32.mxu0 0.0
    %1558 = vmatmul.mubr.f32.gmra.mrb[0].mxu0 %v1254
    %v1559 = vpop.f32.mrb[0].mxu0
    %v1560 = vadd.f32 0.0, %v1559
    %v1561 = vpop.f32.mrb[0].mxu0
    %1562 = vmatprep.mubr.f32.mxu0 0.0
    %1563 = vmatmul.mubr.f32.gmra.mrb[0].mxu0 %v1257
    %v1564 = vpop.f32.mrb[0].mxu0
    %v1565 = vadd.f32 0.0, %v1564
    %v1566 = vpop.f32.mrb[0].mxu0
    %1567 = vmatprep.mubr.f32.mxu0 0.0
    %1568 = vmatmul.mubr.f32.gmra.mrb[0].mxu0 %v1260
    %v1569 = vpop.f32.mrb[0].mxu0
    %v1570 = vadd.f32 0.0, %v1569
    %v1571 = vpop.f32.mrb[0].mxu0
    %1572 = vmatprep.mubr.f32.mxu0 0.0
    %1573 = vmatmul.mubr.f32.gmra.mrb[0].mxu0 %v1263
    %v1574 = vpop.f32.mrb[0].mxu0
    %v1575 = vadd.f32 0.0, %v1574
    %v1576 = vpop.f32.mrb[0].mxu0
    %1577 = vmatprep.mubr.f32.mxu0 0.0
    %1578 = vmatmul.mubr.f32.gmra.mrb[0].mxu0 %v1266
    %v1579 = vpop.f32.mrb[0].mxu0
    %v1580 = vadd.f32 0.0, %v1579
    %v1581 = vpop.f32.mrb[0].mxu0
    %1582 = vdwg.mxu0
    %1583 = vmatprep.subr.mxu0 0.0
    %1584 = vmatpush1.msra.mxu0 %v1076
    %1585 = vmatprep.subr.mxu0 0.0
    %1586 = vmatpush1.msra.mxu0 %v1077
    %1587 = vmatprep.subr.mxu0 0.0
    %1588 = vmatpush1.msra.mxu0 %v1078
    %1589 = vmatprep.subr.mxu0 0.0
    %1590 = vmatpush1.msra.mxu0 %v1079
    %1591 = vmatprep.subr.mxu0 0.0
    %1592 = vmatpush1.msra.mxu0 %v1080
    %1593 = vmatprep.subr.mxu0 0.0
    %1594 = vmatpush1.msra.mxu0 %v1081
    %1595 = vmatprep.subr.mxu0 0.0
    %1596 = vmatpush1.msra.mxu0 %v1082
    %1597 = vmatprep.subr.mxu0 0.0
    %1598 = vmatpush1.msra.mxu0 %v1083
    %1599 = vmatprep.subr.mxu0 0.0
    %1600 = vmatpush1.msra.mxu0 0.0
    %1601 = vmatprep.subr.mxu0 0.0
    %1602 = vmatpush1.msra.mxu0 0.0
    %1603 = vmatprep.subr.mxu0 0.0
    %1604 = vmatpush1.msra.mxu0 0.0
    %1605 = vmatprep.subr.mxu0 0.0
    %1606 = vmatpush1.msra.mxu0 0.0
    %1607 = vmatprep.subr.mxu0 0.0
    %1608 = vmatpush1.msra.mxu0 0.0
    %1609 = vmatprep.subr.mxu0 0.0
    %1610 = vmatpush1.msra.mxu0 0.0
    %1611 = vmatprep.subr.mxu0 0.0
    %1612 = vmatpush1.msra.mxu0 0.0
    %1613 = vmatprep.subr.mxu0 0.0
    %1614 = vmatpush1.msra.mxu0 0.0
    %1615 = vmatprep.subr.mxu0 0.0
    %1616 = vmatpush1.msra.mxu0 0.0
    %1617 = vmatprep.subr.mxu0 0.0
    %1618 = vmatpush1.msra.mxu0 0.0
    %1619 = vmatprep.subr.mxu0 0.0
    %1620 = vmatpush1.msra.mxu0 0.0
    %1621 = vmatprep.subr.mxu0 0.0
    %1622 = vmatpush1.msra.mxu0 0.0
    %1623 = vmatprep.subr.mxu0 0.0
    %1624 = vmatpush1.msra.mxu0 0.0
    %1625 = vmatprep.subr.mxu0 0.0
    %1626 = vmatpush1.msra.mxu0 0.0
    %1627 = vmatprep.subr.mxu0 0.0
    %1628 = vmatpush1.msra.mxu0 0.0
    %1629 = vmatprep.subr.mxu0 0.0
    %1630 = vmatpush1.msra.mxu0 0.0
    %1631 = vmatprep.subr.mxu0 0.0
    %1632 = vmatpush1.msra.mxu0 0.0
    %1633 = vmatprep.subr.mxu0 0.0
    %1634 = vmatpush1.msra.mxu0 0.0
    %1635 = vmatprep.subr.mxu0 0.0
    %1636 = vmatpush1.msra.mxu0 0.0
    %1637 = vmatprep.subr.mxu0 0.0
    %1638 = vmatpush1.msra.mxu0 0.0
    %1639 = vmatprep.subr.mxu0 0.0
    %1640 = vmatpush1.msra.mxu0 0.0
    %1641 = vmatprep.subr.mxu0 0.0
    %1642 = vmatpush1.msra.mxu0 0.0
    %1643 = vmatprep.subr.mxu0 0.0
    %1644 = vmatpush1.msra.mxu0 0.0
    %1645 = vmatprep.subr.mxu0 0.0
    %1646 = vmatpush1.msra.mxu0 0.0
    %1647 = vmatprep.mubr.f32.mxu0 0.0
    %1648 = vmatmul.mubr.f32.gmra.mrb[0].mxu0 %v1245
    %v1649 = vpop.f32.mrb[0].mxu0
    %v1650 = vadd.f32 0.0, %v1649
    %v1651 = vpop.f32.mrb[0].mxu0
    %1652 = vmatprep.mubr.f32.mxu0 0.0
    %1653 = vmatmul.mubr.f32.gmra.mrb[0].mxu0 %v1248
    %v1654 = vpop.f32.mrb[0].mxu0
    %v1655 = vadd.f32 0.0, %v1654
    %v1656 = vpop.f32.mrb[0].mxu0
    %1657 = vmatprep.mubr.f32.mxu0 0.0
    %1658 = vmatmul.mubr.f32.gmra.mrb[0].mxu0 %v1251
    %v1659 = vpop.f32.mrb[0].mxu0
    %v1660 = vadd.f32 0.0, %v1659
    %v1661 = vpop.f32.mrb[0].mxu0
    %1662 = vmatprep.mubr.f32.mxu0 0.0
    %1663 = vmatmul.mubr.f32.gmra.mrb[0].mxu0 %v1254
    %v1664 = vpop.f32.mrb[0].mxu0
    %v1665 = vadd.f32 0.0, %v1664
    %v1666 = vpop.f32.mrb[0].mxu0
    %1667 = vmatprep.mubr.f32.mxu0 0.0
    %1668 = vmatmul.mubr.f32.gmra.mrb[0].mxu0 %v1257
    %v1669 = vpop.f32.mrb[0].mxu0
    %v1670 = vadd.f32 0.0, %v1669
    %v1671 = vpop.f32.mrb[0].mxu0
    %1672 = vmatprep.mubr.f32.mxu0 0.0
    %1673 = vmatmul.mubr.f32.gmra.mrb[0].mxu0 %v1260
    %v1674 = vpop.f32.mrb[0].mxu0
    %v1675 = vadd.f32 0.0, %v1674
    %v1676 = vpop.f32.mrb[0].mxu0
    %1677 = vmatprep.mubr.f32.mxu0 0.0
    %1678 = vmatmul.mubr.f32.gmra.mrb[0].mxu0 %v1263
    %v1679 = vpop.f32.mrb[0].mxu0
    %v1680 = vadd.f32 0.0, %v1679
    %v1681 = vpop.f32.mrb[0].mxu0
    %1682 = vmatprep.mubr.f32.mxu0 0.0
    %1683 = vmatmul.mubr.f32.gmra.mrb[0].mxu0 %v1266
    %v1684 = vpop.f32.mrb[0].mxu0
    %v1685 = vadd.f32 0.0, %v1684
    %v1686 = vpop.f32.mrb[0].mxu0
    %1687 = vdwg.mxu0
    %1688 = vmatprep.subr.mxu0 0.0
    %1689 = vmatpush1.msra.mxu0 %v1084
    %1690 = vmatprep.subr.mxu0 0.0
    %1691 = vmatpush1.msra.mxu0 %v1085
    %1692 = vmatprep.subr.mxu0 0.0
    %1693 = vmatpush1.msra.mxu0 %v1086
    %1694 = vmatprep.subr.mxu0 0.0
    %1695 = vmatpush1.msra.mxu0 %v1087
    %1696 = vmatprep.subr.mxu0 0.0
    %1697 = vmatpush1.msra.mxu0 %v1088
    %1698 = vmatprep.subr.mxu0 0.0
    %1699 = vmatpush1.msra.mxu0 %v1089
    %1700 = vmatprep.subr.mxu0 0.0
    %1701 = vmatpush1.msra.mxu0 %v1090
    %1702 = vmatprep.subr.mxu0 0.0
    %1703 = vmatpush1.msra.mxu0 %v1091
    %1704 = vmatprep.subr.mxu0 0.0
    %1705 = vmatpush1.msra.mxu0 0.0
    %1706 = vmatprep.subr.mxu0 0.0
    %1707 = vmatpush1.msra.mxu0 0.0
    %1708 = vmatprep.subr.mxu0 0.0
    %1709 = vmatpush1.msra.mxu0 0.0
    %1710 = vmatprep.subr.mxu0 0.0
    %1711 = vmatpush1.msra.mxu0 0.0
    %1712 = vmatprep.subr.mxu0 0.0
    %1713 = vmatpush1.msra.mxu0 0.0
    %1714 = vmatprep.subr.mxu0 0.0
    %1715 = vmatpush1.msra.mxu0 0.0
    %1716 = vmatprep.subr.mxu0 0.0
    %1717 = vmatpush1.msra.mxu0 0.0
    %1718 = vmatprep.subr.mxu0 0.0
    %1719 = vmatpush1.msra.mxu0 0.0
    %1720 = vmatprep.subr.mxu0 0.0
    %1721 = vmatpush1.msra.mxu0 0.0
    %1722 = vmatprep.subr.mxu0 0.0
    %1723 = vmatpush1.msra.mxu0 0.0
    %1724 = vmatprep.subr.mxu0 0.0
    %1725 = vmatpush1.msra.mxu0 0.0
    %1726 = vmatprep.subr.mxu0 0.0
    %1727 = vmatpush1.msra.mxu0 0.0
    %1728 = vmatprep.subr.mxu0 0.0
    %1729 = vmatpush1.msra.mxu0 0.0
    %1730 = vmatprep.subr.mxu0 0.0
    %1731 = vmatpush1.msra.mxu0 0.0
    %1732 = vmatprep.subr.mxu0 0.0
    %1733 = vmatpush1.msra.mxu0 0.0
    %1734 = vmatprep.subr.mxu0 0.0
    %1735 = vmatpush1.msra.mxu0 0.0
    %1736 = vmatprep.subr.mxu0 0.0
    %1737 = vmatpush1.msra.mxu0 0.0
    %1738 = vmatprep.subr.mxu0 0.0
    %1739 = vmatpush1.msra.mxu0 0.0
    %1740 = vmatprep.subr.mxu0 0.0
    %1741 = vmatpush1.msra.mxu0 0.0
    %1742 = vmatprep.subr.mxu0 0.0
    %1743 = vmatpush1.msra.mxu0 0.0
    %1744 = vmatprep.subr.mxu0 0.0
    %1745 = vmatpush1.msra.mxu0 0.0
    %1746 = vmatprep.subr.mxu0 0.0
    %1747 = vmatpush1.msra.mxu0 0.0
    %1748 = vmatprep.subr.mxu0 0.0
    %1749 = vmatpush1.msra.mxu0 0.0
    %1750 = vmatprep.subr.mxu0 0.0
    %1751 = vmatpush1.msra.mxu0 0.0
    %1752 = vmatprep.mubr.f32.mxu0 0.0
    %1753 = vmatmul.mubr.f32.gmra.mrb[0].mxu0 %v1245
    %v1754 = vpop.f32.mrb[0].mxu0
    %v1755 = vadd.f32 0.0, %v1754
    %v1756 = vpop.f32.mrb[0].mxu0
    %1757 = vmatprep.mubr.f32.mxu0 0.0
    %1758 = vmatmul.mubr.f32.gmra.mrb[0].mxu0 %v1248
    %v1759 = vpop.f32.mrb[0].mxu0
    %v1760 = vadd.f32 0.0, %v1759
    %v1761 = vpop.f32.mrb[0].mxu0
    %1762 = vmatprep.mubr.f32.mxu0 0.0
    %1763 = vmatmul.mubr.f32.gmra.mrb[0].mxu0 %v1251
    %v1764 = vpop.f32.mrb[0].mxu0
    %v1765 = vadd.f32 0.0, %v1764
    %v1766 = vpop.f32.mrb[0].mxu0
    %1767 = vmatprep.mubr.f32.mxu0 0.0
    %1768 = vmatmul.mubr.f32.gmra.mrb[0].mxu0 %v1254
    %v1769 = vpop.f32.mrb[0].mxu0
    %v1770 = vadd.f32 0.0, %v1769
    %v1771 = vpop.f32.mrb[0].mxu0
    %1772 = vmatprep.mubr.f32.mxu0 0.0
    %1773 = vmatmul.mubr.f32.gmra.mrb[0].mxu0 %v1257
    %v1774 = vpop.f32.mrb[0].mxu0
    %v1775 = vadd.f32 0.0, %v1774
    %v1776 = vpop.f32.mrb[0].mxu0
    %1777 = vmatprep.mubr.f32.mxu0 0.0
    %1778 = vmatmul.mubr.f32.gmra.mrb[0].mxu0 %v1260
    %v1779 = vpop.f32.mrb[0].mxu0
    %v1780 = vadd.f32 0.0, %v1779
    %v1781 = vpop.f32.mrb[0].mxu0
    %1782 = vmatprep.mubr.f32.mxu0 0.0
    %1783 = vmatmul.mubr.f32.gmra.mrb[0].mxu0 %v1263
    %v1784 = vpop.f32.mrb[0].mxu0
    %v1785 = vadd.f32 0.0, %v1784
    %v1786 = vpop.f32.mrb[0].mxu0
    %1787 = vmatprep.mubr.f32.mxu0 0.0
    %1788 = vmatmul.mubr.f32.gmra.mrb[0].mxu0 %v1266
    %v1789 = vpop.f32.mrb[0].mxu0
    %v1790 = vadd.f32 0.0, %v1789
    %v1791 = vpop.f32.mrb[0].mxu0
    %1792 = vdwg.mxu0
    %1793 = vmatprep.subr.mxu0 0.0
    %1794 = vmatpush1.msra.mxu0 %v1092
    %1795 = vmatprep.subr.mxu0 0.0
    %1796 = vmatpush1.msra.mxu0 %v1093
    %1797 = vmatprep.subr.mxu0 0.0
    %1798 = vmatpush1.msra.mxu0 %v1094
    %1799 = vmatprep.subr.mxu0 0.0
    %1800 = vmatpush1.msra.mxu0 %v1095
    %1801 = vmatprep.subr.mxu0 0.0
    %1802 = vmatpush1.msra.mxu0 %v1096
    %1803 = vmatprep.subr.mxu0 0.0
    %1804 = vmatpush1.msra.mxu0 %v1097
    %1805 = vmatprep.subr.mxu0 0.0
    %1806 = vmatpush1.msra.mxu0 %v1098
    %1807 = vmatprep.subr.mxu0 0.0
    %1808 = vmatpush1.msra.mxu0 %v1099
    %1809 = vmatprep.subr.mxu0 0.0
    %1810 = vmatpush1.msra.mxu0 0.0
    %1811 = vmatprep.subr.mxu0 0.0
    %1812 = vmatpush1.msra.mxu0 0.0
    %1813 = vmatprep.subr.mxu0 0.0
    %1814 = vmatpush1.msra.mxu0 0.0
    %1815 = vmatprep.subr.mxu0 0.0
    %1816 = vmatpush1.msra.mxu0 0.0
    %1817 = vmatprep.subr.mxu0 0.0
    %1818 = vmatpush1.msra.mxu0 0.0
    %1819 = vmatprep.subr.mxu0 0.0
    %1820 = vmatpush1.msra.mxu0 0.0
    %1821 = vmatprep.subr.mxu0 0.0
    %1822 = vmatpush1.msra.mxu0 0.0
    %1823 = vmatprep.subr.mxu0 0.0
    %1824 = vmatpush1.msra.mxu0 0.0
    %1825 = vmatprep.subr.mxu0 0.0
    %1826 = vmatpush1.msra.mxu0 0.0
    %1827 = vmatprep.subr.mxu0 0.0
    %1828 = vmatpush1.msra.mxu0 0.0
    %1829 = vmatprep.subr.mxu0 0.0
    %1830 = vmatpush1.msra.mxu0 0.0
    %1831 = vmatprep.subr.mxu0 0.0
    %1832 = vmatpush1.msra.mxu0 0.0
    %1833 = vmatprep.subr.mxu0 0.0
    %1834 = vmatpush1.msra.mxu0 0.0
    %1835 = vmatprep.subr.mxu0 0.0
    %1836 = vmatpush1.msra.mxu0 0.0
    %1837 = vmatprep.subr.mxu0 0.0
    %1838 = vmatpush1.msra.mxu0 0.0
    %1839 = vmatprep.subr.mxu0 0.0
    %1840 = vmatpush1.msra.mxu0 0.0
    %1841 = vmatprep.subr.mxu0 0.0
    %1842 = vmatpush1.msra.mxu0 0.0
    %1843 = vmatprep.subr.mxu0 0.0
    %1844 = vmatpush1.msra.mxu0 0.0
    %1845 = vmatprep.subr.mxu0 0.0
    %1846 = vmatpush1.msra.mxu0 0.0
    %1847 = vmatprep.subr.mxu0 0.0
    %1848 = vmatpush1.msra.mxu0 0.0
    %1849 = vmatprep.subr.mxu0 0.0
    %1850 = vmatpush1.msra.mxu0 0.0
    %1851 = vmatprep.subr.mxu0 0.0
    %1852 = vmatpush1.msra.mxu0 0.0
    %1853 = vmatprep.subr.mxu0 0.0
    %1854 = vmatpush1.msra.mxu0 0.0
    %1855 = vmatprep.subr.mxu0 0.0
    %1856 = vmatpush1.msra.mxu0 0.0
    %1857 = vmatprep.mubr.f32.mxu0 0.0
    %1858 = vmatmul.mubr.f32.gmra.mrb[0].mxu0 %v1245
    %v1859 = vpop.f32.mrb[0].mxu0
    %v1860 = vadd.f32 0.0, %v1859
    %v1861 = vpop.f32.mrb[0].mxu0
    %1862 = vmatprep.mubr.f32.mxu0 0.0
    %1863 = vmatmul.mubr.f32.gmra.mrb[0].mxu0 %v1248
    %v1864 = vpop.f32.mrb[0].mxu0
    %v1865 = vadd.f32 0.0, %v1864
    %v1866 = vpop.f32.mrb[0].mxu0
    %1867 = vmatprep.mubr.f32.mxu0 0.0
    %1868 = vmatmul.mubr.f32.gmra.mrb[0].mxu0 %v1251
    %v1869 = vpop.f32.mrb[0].mxu0
    %v1870 = vadd.f32 0.0, %v1869
    %v1871 = vpop.f32.mrb[0].mxu0
    %1872 = vmatprep.mubr.f32.mxu0 0.0
    %1873 = vmatmul.mubr.f32.gmra.mrb[0].mxu0 %v1254
    %v1874 = vpop.f32.mrb[0].mxu0
    %v1875 = vadd.f32 0.0, %v1874
    %v1876 = vpop.f32.mrb[0].mxu0
    %1877 = vmatprep.mubr.f32.mxu0 0.0
    %1878 = vmatmul.mubr.f32.gmra.mrb[0].mxu0 %v1257
    %v1879 = vpop.f32.mrb[0].mxu0
    %v1880 = vadd.f32 0.0, %v1879
    %v1881 = vpop.f32.mrb[0].mxu0
    %1882 = vmatprep.mubr.f32.mxu0 0.0
    %1883 = vmatmul.mubr.f32.gmra.mrb[0].mxu0 %v1260
    %v1884 = vpop.f32.mrb[0].mxu0
    %v1885 = vadd.f32 0.0, %v1884
    %v1886 = vpop.f32.mrb[0].mxu0
    %1887 = vmatprep.mubr.f32.mxu0 0.0
    %1888 = vmatmul.mubr.f32.gmra.mrb[0].mxu0 %v1263
    %v1889 = vpop.f32.mrb[0].mxu0
    %v1890 = vadd.f32 0.0, %v1889
    %v1891 = vpop.f32.mrb[0].mxu0
    %1892 = vmatprep.mubr.f32.mxu0 0.0
    %1893 = vmatmul.mubr.f32.gmra.mrb[0].mxu0 %v1266
    %v1894 = vpop.f32.mrb[0].mxu0
    %v1895 = vadd.f32 0.0, %v1894
    %v1896 = vpop.f32.mrb[0].mxu0
    %1897 = vdwg.mxu0
    %1898 = vmatprep.subr.mxu0 0.0
    %1899 = vmatpush1.msra.mxu0 %v1100
    %1900 = vmatprep.subr.mxu0 0.0
    %1901 = vmatpush1.msra.mxu0 %v1101
    %1902 = vmatprep.subr.mxu0 0.0
    %1903 = vmatpush1.msra.mxu0 %v1102
    %1904 = vmatprep.subr.mxu0 0.0
    %1905 = vmatpush1.msra.mxu0 %v1103
    %1906 = vmatprep.subr.mxu0 0.0
    %1907 = vmatpush1.msra.mxu0 %v1104
    %1908 = vmatprep.subr.mxu0 0.0
    %1909 = vmatpush1.msra.mxu0 %v1105
    %1910 = vmatprep.subr.mxu0 0.0
    %1911 = vmatpush1.msra.mxu0 %v1106
    %1912 = vmatprep.subr.mxu0 0.0
    %1913 = vmatpush1.msra.mxu0 %v1107
    %1914 = vmatprep.subr.mxu0 0.0
    %1915 = vmatpush1.msra.mxu0 0.0
    %1916 = vmatprep.subr.mxu0 0.0
    %1917 = vmatpush1.msra.mxu0 0.0
    %1918 = vmatprep.subr.mxu0 0.0
    %1919 = vmatpush1.msra.mxu0 0.0
    %1920 = vmatprep.subr.mxu0 0.0
    %1921 = vmatpush1.msra.mxu0 0.0
    %1922 = vmatprep.subr.mxu0 0.0
    %1923 = vmatpush1.msra.mxu0 0.0
    %1924 = vmatprep.subr.mxu0 0.0
    %1925 = vmatpush1.msra.mxu0 0.0
    %1926 = vmatprep.subr.mxu0 0.0
    %1927 = vmatpush1.msra.mxu0 0.0
    %1928 = vmatprep.subr.mxu0 0.0
    %1929 = vmatpush1.msra.mxu0 0.0
    %1930 = vmatprep.subr.mxu0 0.0
    %1931 = vmatpush1.msra.mxu0 0.0
    %1932 = vmatprep.subr.mxu0 0.0
    %1933 = vmatpush1.msra.mxu0 0.0
    %1934 = vmatprep.subr.mxu0 0.0
    %1935 = vmatpush1.msra.mxu0 0.0
    %1936 = vmatprep.subr.mxu0 0.0
    %1937 = vmatpush1.msra.mxu0 0.0
    %1938 = vmatprep.subr.mxu0 0.0
    %1939 = vmatpush1.msra.mxu0 0.0
    %1940 = vmatprep.subr.mxu0 0.0
    %1941 = vmatpush1.msra.mxu0 0.0
    %1942 = vmatprep.subr.mxu0 0.0
    %1943 = vmatpush1.msra.mxu0 0.0
    %1944 = vmatprep.subr.mxu0 0.0
    %1945 = vmatpush1.msra.mxu0 0.0
    %1946 = vmatprep.subr.mxu0 0.0
    %1947 = vmatpush1.msra.mxu0 0.0
    %1948 = vmatprep.subr.mxu0 0.0
    %1949 = vmatpush1.msra.mxu0 0.0
    %1950 = vmatprep.subr.mxu0 0.0
    %1951 = vmatpush1.msra.mxu0 0.0
    %1952 = vmatprep.subr.mxu0 0.0
    %1953 = vmatpush1.msra.mxu0 0.0
    %1954 = vmatprep.subr.mxu0 0.0
    %1955 = vmatpush1.msra.mxu0 0.0
    %1956 = vmatprep.subr.mxu0 0.0
    %1957 = vmatpush1.msra.mxu0 0.0
    %1958 = vmatprep.subr.mxu0 0.0
    %1959 = vmatpush1.msra.mxu0 0.0
    %1960 = vmatprep.subr.mxu0 0.0
    %1961 = vmatpush1.msra.mxu0 0.0
    %1962 = vmatprep.mubr.f32.mxu0 0.0
    %1963 = vmatmul.mubr.f32.gmra.mrb[0].mxu0 %v1245
    %v1964 = vpop.f32.mrb[0].mxu0
    %v1965 = vadd.f32 0.0, %v1964
    %v1966 = vpop.f32.mrb[0].mxu0
    %1967 = vmatprep.mubr.f32.mxu0 0.0
    %1968 = vmatmul.mubr.f32.gmra.mrb[0].mxu0 %v1248
    %v1969 = vpop.f32.mrb[0].mxu0
    %v1970 = vadd.f32 0.0, %v1969
    %v1971 = vpop.f32.mrb[0].mxu0
    %1972 = vmatprep.mubr.f32.mxu0 0.0
    %1973 = vmatmul.mubr.f32.gmra.mrb[0].mxu0 %v1251
    %v1974 = vpop.f32.mrb[0].mxu0
    %v1975 = vadd.f32 0.0, %v1974
    %v1976 = vpop.f32.mrb[0].mxu0
    %1977 = vmatprep.mubr.f32.mxu0 0.0
    %1978 = vmatmul.mubr.f32.gmra.mrb[0].mxu0 %v1254
    %v1979 = vpop.f32.mrb[0].mxu0
    %v1980 = vadd.f32 0.0, %v1979
    %v1981 = vpop.f32.mrb[0].mxu0
    %1982 = vmatprep.mubr.f32.mxu0 0.0
    %1983 = vmatmul.mubr.f32.gmra.mrb[0].mxu0 %v1257
    %v1984 = vpop.f32.mrb[0].mxu0
    %v1985 = vadd.f32 0.0, %v1984
    %v1986 = vpop.f32.mrb[0].mxu0
    %1987 = vmatprep.mubr.f32.mxu0 0.0
    %1988 = vmatmul.mubr.f32.gmra.mrb[0].mxu0 %v1260
    %v1989 = vpop.f32.mrb[0].mxu0
    %v1990 = vadd.f32 0.0, %v1989
    %v1991 = vpop.f32.mrb[0].mxu0
    %1992 = vmatprep.mubr.f32.mxu0 0.0
    %1993 = vmatmul.mubr.f32.gmra.mrb[0].mxu0 %v1263
    %v1994 = vpop.f32.mrb[0].mxu0
    %v1995 = vadd.f32 0.0, %v1994
    %v1996 = vpop.f32.mrb[0].mxu0
    %1997 = vmatprep.mubr.f32.mxu0 0.0
    %1998 = vmatmul.mubr.f32.gmra.mrb[0].mxu0 %v1266
    %v1999 = vpop.f32.mrb[0].mxu0
    %v2000 = vadd.f32 0.0, %v1999
    %v2001 = vpop.f32.mrb[0].mxu0
    %2002 = vdwg.mxu0
    %2003 = vmatprep.subr.mxu0 0.0
    %2004 = vmatpush1.msra.mxu0 %v1108
    %2005 = vmatprep.subr.mxu0 0.0
    %2006 = vmatpush1.msra.mxu0 %v1109
    %2007 = vmatprep.subr.mxu0 0.0
    %2008 = vmatpush1.msra.mxu0 %v1110
    %2009 = vmatprep.subr.mxu0 0.0
    %2010 = vmatpush1.msra.mxu0 %v1111
    %2011 = vmatprep.subr.mxu0 0.0
    %2012 = vmatpush1.msra.mxu0 %v1112
    %2013 = vmatprep.subr.mxu0 0.0
    %2014 = vmatpush1.msra.mxu0 %v1113
    %2015 = vmatprep.subr.mxu0 0.0
    %2016 = vmatpush1.msra.mxu0 %v1114
    %2017 = vmatprep.subr.mxu0 0.0
    %2018 = vmatpush1.msra.mxu0 %v1115
    %2019 = vmatprep.subr.mxu0 0.0
    %2020 = vmatpush1.msra.mxu0 0.0
    %2021 = vmatprep.subr.mxu0 0.0
    %2022 = vmatpush1.msra.mxu0 0.0
    %2023 = vmatprep.subr.mxu0 0.0
    %2024 = vmatpush1.msra.mxu0 0.0
    %2025 = vmatprep.subr.mxu0 0.0
    %2026 = vmatpush1.msra.mxu0 0.0
    %2027 = vmatprep.subr.mxu0 0.0
    %2028 = vmatpush1.msra.mxu0 0.0
    %2029 = vmatprep.subr.mxu0 0.0
    %2030 = vmatpush1.msra.mxu0 0.0
    %2031 = vmatprep.subr.mxu0 0.0
    %2032 = vmatpush1.msra.mxu0 0.0
    %2033 = vmatprep.subr.mxu0 0.0
    %2034 = vmatpush1.msra.mxu0 0.0
    %2035 = vmatprep.subr.mxu0 0.0
    %2036 = vmatpush1.msra.mxu0 0.0
    %2037 = vmatprep.subr.mxu0 0.0
    %2038 = vmatpush1.msra.mxu0 0.0
    %2039 = vmatprep.subr.mxu0 0.0
    %2040 = vmatpush1.msra.mxu0 0.0
    %2041 = vmatprep.subr.mxu0 0.0
    %2042 = vmatpush1.msra.mxu0 0.0
    %2043 = vmatprep.subr.mxu0 0.0
    %2044 = vmatpush1.msra.mxu0 0.0
    %2045 = vmatprep.subr.mxu0 0.0
    %2046 = vmatpush1.msra.mxu0 0.0
    %2047 = vmatprep.subr.mxu0 0.0
    %2048 = vmatpush1.msra.mxu0 0.0
    %2049 = vmatprep.subr.mxu0 0.0
    %2050 = vmatpush1.msra.mxu0 0.0
    %2051 = vmatprep.subr.mxu0 0.0
    %2052 = vmatpush1.msra.mxu0 0.0
    %2053 = vmatprep.subr.mxu0 0.0
    %2054 = vmatpush1.msra.mxu0 0.0
    %2055 = vmatprep.subr.mxu0 0.0
    %2056 = vmatpush1.msra.mxu0 0.0
    %2057 = vmatprep.subr.mxu0 0.0
    %2058 = vmatpush1.msra.mxu0 0.0
    %2059 = vmatprep.subr.mxu0 0.0
    %2060 = vmatpush1.msra.mxu0 0.0
    %2061 = vmatprep.subr.mxu0 0.0
    %2062 = vmatpush1.msra.mxu0 0.0
    %2063 = vmatprep.subr.mxu0 0.0
    %2064 = vmatpush1.msra.mxu0 0.0
    %2065 = vmatprep.subr.mxu0 0.0
    %2066 = vmatpush1.msra.mxu0 0.0
    %2067 = vmatprep.mubr.f32.mxu0 0.0
    %2068 = vmatmul.mubr.f32.gmra.mrb[0].mxu0 %v1245
    %v2069 = vpop.f32.mrb[0].mxu0
    %v2070 = vadd.f32 0.0, %v2069
    %v2071 = vpop.f32.mrb[0].mxu0
    %2072 = vmatprep.mubr.f32.mxu0 0.0
    %2073 = vmatmul.mubr.f32.gmra.mrb[0].mxu0 %v1248
    %v2074 = vpop.f32.mrb[0].mxu0
    %v2075 = vadd.f32 0.0, %v2074
    %v2076 = vpop.f32.mrb[0].mxu0
    %2077 = vmatprep.mubr.f32.mxu0 0.0
    %2078 = vmatmul.mubr.f32.gmra.mrb[0].mxu0 %v1251
    %v2079 = vpop.f32.mrb[0].mxu0
    %v2080 = vadd.f32 0.0, %v2079
    %v2081 = vpop.f32.mrb[0].mxu0
    %2082 = vmatprep.mubr.f32.mxu0 0.0
    %2083 = vmatmul.mubr.f32.gmra.mrb[0].mxu0 %v1254
    %v2084 = vpop.f32.mrb[0].mxu0
    %v2085 = vadd.f32 0.0, %v2084
    %v2086 = vpop.f32.mrb[0].mxu0
    %2087 = vmatprep.mubr.f32.mxu0 0.0
    %2088 = vmatmul.mubr.f32.gmra.mrb[0].mxu0 %v1257
    %v2089 = vpop.f32.mrb[0].mxu0
    %v2090 = vadd.f32 0.0, %v2089
    %v2091 = vpop.f32.mrb[0].mxu0
    %2092 = vmatprep.mubr.f32.mxu0 0.0
    %2093 = vmatmul.mubr.f32.gmra.mrb[0].mxu0 %v1260
    %v2094 = vpop.f32.mrb[0].mxu0
    %v2095 = vadd.f32 0.0, %v2094
    %v2096 = vpop.f32.mrb[0].mxu0
    %2097 = vmatprep.mubr.f32.mxu0 0.0
    %2098 = vmatmul.mubr.f32.gmra.mrb[0].mxu0 %v1263
    %v2099 = vpop.f32.mrb[0].mxu0
    %v2100 = vadd.f32 0.0, %v2099
    %v2101 = vpop.f32.mrb[0].mxu0
    %2102 = vmatprep.mubr.f32.mxu0 0.0
    %2103 = vmatmul.mubr.f32.gmra.mrb[0].mxu0 %v1266
    %v2104 = vpop.f32.mrb[0].mxu0
    %v2105 = vadd.f32 0.0, %v2104
    %v2106 = vpop.f32.mrb[0].mxu0
    %2107 = vdwg.mxu0
    %2108 = vmatprep.subr.mxu0 0.0
    %2109 = vmatpush1.msra.mxu0 %v1116
    %2110 = vmatprep.subr.mxu0 0.0
    %2111 = vmatpush1.msra.mxu0 %v1117
    %2112 = vmatprep.subr.mxu0 0.0
    %2113 = vmatpush1.msra.mxu0 %v1118
    %2114 = vmatprep.subr.mxu0 0.0
    %2115 = vmatpush1.msra.mxu0 %v1119
    %2116 = vmatprep.subr.mxu0 0.0
    %2117 = vmatpush1.msra.mxu0 %v1120
    %2118 = vmatprep.subr.mxu0 0.0
    %2119 = vmatpush1.msra.mxu0 %v1121
    %2120 = vmatprep.subr.mxu0 0.0
    %2121 = vmatpush1.msra.mxu0 %v1122
    %2122 = vmatprep.subr.mxu0 0.0
    %2123 = vmatpush1.msra.mxu0 %v1123
    %2124 = vmatprep.subr.mxu0 0.0
    %2125 = vmatpush1.msra.mxu0 0.0
    %2126 = vmatprep.subr.mxu0 0.0
    %2127 = vmatpush1.msra.mxu0 0.0
    %2128 = vmatprep.subr.mxu0 0.0
    %2129 = vmatpush1.msra.mxu0 0.0
    %2130 = vmatprep.subr.mxu0 0.0
    %2131 = vmatpush1.msra.mxu0 0.0
    %2132 = vmatprep.subr.mxu0 0.0
    %2133 = vmatpush1.msra.mxu0 0.0
    %2134 = vmatprep.subr.mxu0 0.0
    %2135 = vmatpush1.msra.mxu0 0.0
    %2136 = vmatprep.subr.mxu0 0.0
    %2137 = vmatpush1.msra.mxu0 0.0
    %2138 = vmatprep.subr.mxu0 0.0
    %2139 = vmatpush1.msra.mxu0 0.0
    %2140 = vmatprep.subr.mxu0 0.0
    %2141 = vmatpush1.msra.mxu0 0.0
    %2142 = vmatprep.subr.mxu0 0.0
    %2143 = vmatpush1.msra.mxu0 0.0
    %2144 = vmatprep.subr.mxu0 0.0
    %2145 = vmatpush1.msra.mxu0 0.0
    %2146 = vmatprep.subr.mxu0 0.0
    %2147 = vmatpush1.msra.mxu0 0.0
    %2148 = vmatprep.subr.mxu0 0.0
    %2149 = vmatpush1.msra.mxu0 0.0
    %2150 = vmatprep.subr.mxu0 0.0
    %2151 = vmatpush1.msra.mxu0 0.0
    %2152 = vmatprep.subr.mxu0 0.0
    %2153 = vmatpush1.msra.mxu0 0.0
    %2154 = vmatprep.subr.mxu0 0.0
    %2155 = vmatpush1.msra.mxu0 0.0
    %2156 = vmatprep.subr.mxu0 0.0
    %2157 = vmatpush1.msra.mxu0 0.0
    %2158 = vmatprep.subr.mxu0 0.0
    %2159 = vmatpush1.msra.mxu0 0.0
    %2160 = vmatprep.subr.mxu0 0.0
    %2161 = vmatpush1.msra.mxu0 0.0
    %2162 = vmatprep.subr.mxu0 0.0
    %2163 = vmatpush1.msra.mxu0 0.0
    %2164 = vmatprep.subr.mxu0 0.0
    %2165 = vmatpush1.msra.mxu0 0.0
    %2166 = vmatprep.subr.mxu0 0.0
    %2167 = vmatpush1.msra.mxu0 0.0
    %2168 = vmatprep.subr.mxu0 0.0
    %2169 = vmatpush1.msra.mxu0 0.0
    %2170 = vmatprep.subr.mxu0 0.0
    %2171 = vmatpush1.msra.mxu0 0.0
    %2172 = vmatprep.mubr.f32.mxu0 0.0
    %2173 = vmatmul.mubr.f32.gmra.mrb[0].mxu0 %v1245
    %v2174 = vpop.f32.mrb[0].mxu0
    %v2175 = vadd.f32 0.0, %v2174
    %v2176 = vpop.f32.mrb[0].mxu0
    %2177 = vmatprep.mubr.f32.mxu0 0.0
    %2178 = vmatmul.mubr.f32.gmra.mrb[0].mxu0 %v1248
    %v2179 = vpop.f32.mrb[0].mxu0
    %v2180 = vadd.f32 0.0, %v2179
    %v2181 = vpop.f32.mrb[0].mxu0
    %2182 = vmatprep.mubr.f32.mxu0 0.0
    %2183 = vmatmul.mubr.f32.gmra.mrb[0].mxu0 %v1251
    %v2184 = vpop.f32.mrb[0].mxu0
    %v2185 = vadd.f32 0.0, %v2184
    %v2186 = vpop.f32.mrb[0].mxu0
    %2187 = vmatprep.mubr.f32.mxu0 0.0
    %2188 = vmatmul.mubr.f32.gmra.mrb[0].mxu0 %v1254
    %v2189 = vpop.f32.mrb[0].mxu0
    %v2190 = vadd.f32 0.0, %v2189
    %v2191 = vpop.f32.mrb[0].mxu0
    %2192 = vmatprep.mubr.f32.mxu0 0.0
    %2193 = vmatmul.mubr.f32.gmra.mrb[0].mxu0 %v1257
    %v2194 = vpop.f32.mrb[0].mxu0
    %v2195 = vadd.f32 0.0, %v2194
    %v2196 = vpop.f32.mrb[0].mxu0
    %2197 = vmatprep.mubr.f32.mxu0 0.0
    %2198 = vmatmul.mubr.f32.gmra.mrb[0].mxu0 %v1260
    %v2199 = vpop.f32.mrb[0].mxu0
    %v2200 = vadd.f32 0.0, %v2199
    %v2201 = vpop.f32.mrb[0].mxu0
    %2202 = vmatprep.mubr.f32.mxu0 0.0
    %2203 = vmatmul.mubr.f32.gmra.mrb[0].mxu0 %v1263
    %v2204 = vpop.f32.mrb[0].mxu0
    %v2205 = vadd.f32 0.0, %v2204
    %v2206 = vpop.f32.mrb[0].mxu0
    %2207 = vmatprep.mubr.f32.mxu0 0.0
    %2208 = vmatmul.mubr.f32.gmra.mrb[0].mxu0 %v1266
    %v2209 = vpop.f32.mrb[0].mxu0
    %v2210 = vadd.f32 0.0, %v2209
    %v2211 = vpop.f32.mrb[0].mxu0
    %2212 = vdwg.mxu0
    %2213 = vmatprep.subr.mxu0 0.0
    %2214 = vmatpush1.msra.mxu0 %v1124
    %2215 = vmatprep.subr.mxu0 0.0
    %2216 = vmatpush1.msra.mxu0 %v1125
    %2217 = vmatprep.subr.mxu0 0.0
    %2218 = vmatpush1.msra.mxu0 %v1126
    %2219 = vmatprep.subr.mxu0 0.0
    %2220 = vmatpush1.msra.mxu0 %v1127
    %2221 = vmatprep.subr.mxu0 0.0
    %2222 = vmatpush1.msra.mxu0 %v1128
    %2223 = vmatprep.subr.mxu0 0.0
    %2224 = vmatpush1.msra.mxu0 %v1129
    %2225 = vmatprep.subr.mxu0 0.0
    %2226 = vmatpush1.msra.mxu0 %v1130
    %2227 = vmatprep.subr.mxu0 0.0
    %2228 = vmatpush1.msra.mxu0 %v1131
    %2229 = vmatprep.subr.mxu0 0.0
    %2230 = vmatpush1.msra.mxu0 0.0
    %2231 = vmatprep.subr.mxu0 0.0
    %2232 = vmatpush1.msra.mxu0 0.0
    %2233 = vmatprep.subr.mxu0 0.0
    %2234 = vmatpush1.msra.mxu0 0.0
    %2235 = vmatprep.subr.mxu0 0.0
    %2236 = vmatpush1.msra.mxu0 0.0
    %2237 = vmatprep.subr.mxu0 0.0
    %2238 = vmatpush1.msra.mxu0 0.0
    %2239 = vmatprep.subr.mxu0 0.0
    %2240 = vmatpush1.msra.mxu0 0.0
    %2241 = vmatprep.subr.mxu0 0.0
    %2242 = vmatpush1.msra.mxu0 0.0
    %2243 = vmatprep.subr.mxu0 0.0
    %2244 = vmatpush1.msra.mxu0 0.0
    %2245 = vmatprep.subr.mxu0 0.0
    %2246 = vmatpush1.msra.mxu0 0.0
    %2247 = vmatprep.subr.mxu0 0.0
    %2248 = vmatpush1.msra.mxu0 0.0
    %2249 = vmatprep.subr.mxu0 0.0
    %2250 = vmatpush1.msra.mxu0 0.0
    %2251 = vmatprep.subr.mxu0 0.0
    %2252 = vmatpush1.msra.mxu0 0.0
    %2253 = vmatprep.subr.mxu0 0.0
    %2254 = vmatpush1.msra.mxu0 0.0
    %2255 = vmatprep.subr.mxu0 0.0
    %2256 = vmatpush1.msra.mxu0 0.0
    %2257 = vmatprep.subr.mxu0 0.0
    %2258 = vmatpush1.msra.mxu0 0.0
    %2259 = vmatprep.subr.mxu0 0.0
    %2260 = vmatpush1.msra.mxu0 0.0
    %2261 = vmatprep.subr.mxu0 0.0
    %2262 = vmatpush1.msra.mxu0 0.0
    %2263 = vmatprep.subr.mxu0 0.0
    %2264 = vmatpush1.msra.mxu0 0.0
    %2265 = vmatprep.subr.mxu0 0.0
    %2266 = vmatpush1.msra.mxu0 0.0
    %2267 = vmatprep.subr.mxu0 0.0
    %2268 = vmatpush1.msra.mxu0 0.0
    %2269 = vmatprep.subr.mxu0 0.0
    %2270 = vmatpush1.msra.mxu0 0.0
    %2271 = vmatprep.subr.mxu0 0.0
    %2272 = vmatpush1.msra.mxu0 0.0
    %2273 = vmatprep.subr.mxu0 0.0
    %2274 = vmatpush1.msra.mxu0 0.0
    %2275 = vmatprep.subr.mxu0 0.0
    %2276 = vmatpush1.msra.mxu0 0.0
    %2277 = vmatprep.mubr.f32.mxu0 0.0
    %2278 = vmatmul.mubr.f32.gmra.mrb[0].mxu0 %v1245
    %v2279 = vpop.f32.mrb[0].mxu0
    %v2280 = vadd.f32 0.0, %v2279
    %v2281 = vpop.f32.mrb[0].mxu0
    %2282 = vmatprep.mubr.f32.mxu0 0.0
    %2283 = vmatmul.mubr.f32.gmra.mrb[0].mxu0 %v1248
    %v2284 = vpop.f32.mrb[0].mxu0
    %v2285 = vadd.f32 0.0, %v2284
    %v2286 = vpop.f32.mrb[0].mxu0
    %2287 = vmatprep.mubr.f32.mxu0 0.0
    %2288 = vmatmul.mubr.f32.gmra.mrb[0].mxu0 %v1251
    %v2289 = vpop.f32.mrb[0].mxu0
    %v2290 = vadd.f32 0.0, %v2289
    %v2291 = vpop.f32.mrb[0].mxu0
    %2292 = vmatprep.mubr.f32.mxu0 0.0
    %2293 = vmatmul.mubr.f32.gmra.mrb[0].mxu0 %v1254
    %v2294 = vpop.f32.mrb[0].mxu0
    %v2295 = vadd.f32 0.0, %v2294
    %v2296 = vpop.f32.mrb[0].mxu0
    %2297 = vmatprep.mubr.f32.mxu0 0.0
    %2298 = vmatmul.mubr.f32.gmra.mrb[0].mxu0 %v1257
    %v2299 = vpop.f32.mrb[0].mxu0
    %v2300 = vadd.f32 0.0, %v2299
    %v2301 = vpop.f32.mrb[0].mxu0
    %2302 = vmatprep.mubr.f32.mxu0 0.0
    %2303 = vmatmul.mubr.f32.gmra.mrb[0].mxu0 %v1260
    %v2304 = vpop.f32.mrb[0].mxu0
    %v2305 = vadd.f32 0.0, %v2304
    %v2306 = vpop.f32.mrb[0].mxu0
    %2307 = vmatprep.mubr.f32.mxu0 0.0
    %2308 = vmatmul.mubr.f32.gmra.mrb[0].mxu0 %v1263
    %v2309 = vpop.f32.mrb[0].mxu0
    %v2310 = vadd.f32 0.0, %v2309
    %v2311 = vpop.f32.mrb[0].mxu0
    %2312 = vmatprep.mubr.f32.mxu0 0.0
    %2313 = vmatmul.mubr.f32.gmra.mrb[0].mxu0 %v1266
    %v2314 = vpop.f32.mrb[0].mxu0
    %v2315 = vadd.f32 0.0, %v2314
    %v2316 = vpop.f32.mrb[0].mxu0
    %2317 = vdwg.mxu0
    %2318 = vmatprep.subr.mxu0 0.0
    %2319 = vmatpush1.msra.mxu0 %v1132
    %2320 = vmatprep.subr.mxu0 0.0
    %2321 = vmatpush1.msra.mxu0 %v1133
    %2322 = vmatprep.subr.mxu0 0.0
    %2323 = vmatpush1.msra.mxu0 %v1134
    %2324 = vmatprep.subr.mxu0 0.0
    %2325 = vmatpush1.msra.mxu0 %v1135
    %2326 = vmatprep.subr.mxu0 0.0
    %2327 = vmatpush1.msra.mxu0 %v1136
    %2328 = vmatprep.subr.mxu0 0.0
    %2329 = vmatpush1.msra.mxu0 %v1137
    %2330 = vmatprep.subr.mxu0 0.0
    %2331 = vmatpush1.msra.mxu0 %v1138
    %2332 = vmatprep.subr.mxu0 0.0
    %2333 = vmatpush1.msra.mxu0 %v1139
    %2334 = vmatprep.subr.mxu0 0.0
    %2335 = vmatpush1.msra.mxu0 0.0
    %2336 = vmatprep.subr.mxu0 0.0
    %2337 = vmatpush1.msra.mxu0 0.0
    %2338 = vmatprep.subr.mxu0 0.0
    %2339 = vmatpush1.msra.mxu0 0.0
    %2340 = vmatprep.subr.mxu0 0.0
    %2341 = vmatpush1.msra.mxu0 0.0
    %2342 = vmatprep.subr.mxu0 0.0
    %2343 = vmatpush1.msra.mxu0 0.0
    %2344 = vmatprep.subr.mxu0 0.0
    %2345 = vmatpush1.msra.mxu0 0.0
    %2346 = vmatprep.subr.mxu0 0.0
    %2347 = vmatpush1.msra.mxu0 0.0
    %2348 = vmatprep.subr.mxu0 0.0
    %2349 = vmatpush1.msra.mxu0 0.0
    %2350 = vmatprep.subr.mxu0 0.0
    %2351 = vmatpush1.msra.mxu0 0.0
    %2352 = vmatprep.subr.mxu0 0.0
    %2353 = vmatpush1.msra.mxu0 0.0
    %2354 = vmatprep.subr.mxu0 0.0
    %2355 = vmatpush1.msra.mxu0 0.0
    %2356 = vmatprep.subr.mxu0 0.0
    %2357 = vmatpush1.msra.mxu0 0.0
    %2358 = vmatprep.subr.mxu0 0.0
    %2359 = vmatpush1.msra.mxu0 0.0
    %2360 = vmatprep.subr.mxu0 0.0
    %2361 = vmatpush1.msra.mxu0 0.0
    %2362 = vmatprep.subr.mxu0 0.0
    %2363 = vmatpush1.msra.mxu0 0.0
    %2364 = vmatprep.subr.mxu0 0.0
    %2365 = vmatpush1.msra.mxu0 0.0
    %2366 = vmatprep.subr.mxu0 0.0
    %2367 = vmatpush1.msra.mxu0 0.0
    %2368 = vmatprep.subr.mxu0 0.0
    %2369 = vmatpush1.msra.mxu0 0.0
    %2370 = vmatprep.subr.mxu0 0.0
    %2371 = vmatpush1.msra.mxu0 0.0
    %2372 = vmatprep.subr.mxu0 0.0
    %2373 = vmatpush1.msra.mxu0 0.0
    %2374 = vmatprep.subr.mxu0 0.0
    %2375 = vmatpush1.msra.mxu0 0.0
    %2376 = vmatprep.subr.mxu0 0.0
    %2377 = vmatpush1.msra.mxu0 0.0
    %2378 = vmatprep.subr.mxu0 0.0
    %2379 = vmatpush1.msra.mxu0 0.0
    %2380 = vmatprep.subr.mxu0 0.0
    %2381 = vmatpush1.msra.mxu0 0.0
    %2382 = vmatprep.mubr.f32.mxu0 0.0
    %2383 = vmatmul.mubr.f32.gmra.mrb[0].mxu0 %v1245
    %v2384 = vpop.f32.mrb[0].mxu0
    %v2385 = vadd.f32 0.0, %v2384
    %v2386 = vpop.f32.mrb[0].mxu0
    %2387 = vmatprep.mubr.f32.mxu0 0.0
    %2388 = vmatmul.mubr.f32.gmra.mrb[0].mxu0 %v1248
    %v2389 = vpop.f32.mrb[0].mxu0
    %v2390 = vadd.f32 0.0, %v2389
    %v2391 = vpop.f32.mrb[0].mxu0
    %2392 = vmatprep.mubr.f32.mxu0 0.0
    %2393 = vmatmul.mubr.f32.gmra.mrb[0].mxu0 %v1251
    %v2394 = vpop.f32.mrb[0].mxu0
    %v2395 = vadd.f32 0.0, %v2394
    %v2396 = vpop.f32.mrb[0].mxu0
    %2397 = vmatprep.mubr.f32.mxu0 0.0
    %2398 = vmatmul.mubr.f32.gmra.mrb[0].mxu0 %v1254
    %v2399 = vpop.f32.mrb[0].mxu0
    %v2400 = vadd.f32 0.0, %v2399
    %v2401 = vpop.f32.mrb[0].mxu0
    %2402 = vmatprep.mubr.f32.mxu0 0.0
    %2403 = vmatmul.mubr.f32.gmra.mrb[0].mxu0 %v1257
    %v2404 = vpop.f32.mrb[0].mxu0
    %v2405 = vadd.f32 0.0, %v2404
    %v2406 = vpop.f32.mrb[0].mxu0
    %2407 = vmatprep.mubr.f32.mxu0 0.0
    %2408 = vmatmul.mubr.f32.gmra.mrb[0].mxu0 %v1260
    %v2409 = vpop.f32.mrb[0].mxu0
    %v2410 = vadd.f32 0.0, %v2409
    %v2411 = vpop.f32.mrb[0].mxu0
    %2412 = vmatprep.mubr.f32.mxu0 0.0
    %2413 = vmatmul.mubr.f32.gmra.mrb[0].mxu0 %v1263
    %v2414 = vpop.f32.mrb[0].mxu0
    %v2415 = vadd.f32 0.0, %v2414
    %v2416 = vpop.f32.mrb[0].mxu0
    %2417 = vmatprep.mubr.f32.mxu0 0.0
    %2418 = vmatmul.mubr.f32.gmra.mrb[0].mxu0 %v1266
    %v2419 = vpop.f32.mrb[0].mxu0
    %v2420 = vadd.f32 0.0, %v2419
    %v2421 = vpop.f32.mrb[0].mxu0
    %2422 = vdwg.mxu0
    %2423 = vmatprep.subr.mxu0 0.0
    %2424 = vmatpush1.msra.mxu0 %v1140
    %2425 = vmatprep.subr.mxu0 0.0
    %2426 = vmatpush1.msra.mxu0 %v1141
    %2427 = vmatprep.subr.mxu0 0.0
    %2428 = vmatpush1.msra.mxu0 %v1142
    %2429 = vmatprep.subr.mxu0 0.0
    %2430 = vmatpush1.msra.mxu0 %v1143
    %2431 = vmatprep.subr.mxu0 0.0
    %2432 = vmatpush1.msra.mxu0 %v1144
    %2433 = vmatprep.subr.mxu0 0.0
    %2434 = vmatpush1.msra.mxu0 %v1145
    %2435 = vmatprep.subr.mxu0 0.0
    %2436 = vmatpush1.msra.mxu0 %v1146
    %2437 = vmatprep.subr.mxu0 0.0
    %2438 = vmatpush1.msra.mxu0 %v1147
    %2439 = vmatprep.subr.mxu0 0.0
    %2440 = vmatpush1.msra.mxu0 0.0
    %2441 = vmatprep.subr.mxu0 0.0
    %2442 = vmatpush1.msra.mxu0 0.0
    %2443 = vmatprep.subr.mxu0 0.0
    %2444 = vmatpush1.msra.mxu0 0.0
    %2445 = vmatprep.subr.mxu0 0.0
    %2446 = vmatpush1.msra.mxu0 0.0
    %2447 = vmatprep.subr.mxu0 0.0
    %2448 = vmatpush1.msra.mxu0 0.0
    %2449 = vmatprep.subr.mxu0 0.0
    %2450 = vmatpush1.msra.mxu0 0.0
    %2451 = vmatprep.subr.mxu0 0.0
    %2452 = vmatpush1.msra.mxu0 0.0
    %2453 = vmatprep.subr.mxu0 0.0
    %2454 = vmatpush1.msra.mxu0 0.0
    %2455 = vmatprep.subr.mxu0 0.0
    %2456 = vmatpush1.msra.mxu0 0.0
    %2457 = vmatprep.subr.mxu0 0.0
    %2458 = vmatpush1.msra.mxu0 0.0
    %2459 = vmatprep.subr.mxu0 0.0
    %2460 = vmatpush1.msra.mxu0 0.0
    %2461 = vmatprep.subr.mxu0 0.0
    %2462 = vmatpush1.msra.mxu0 0.0
    %2463 = vmatprep.subr.mxu0 0.0
    %2464 = vmatpush1.msra.mxu0 0.0
    %2465 = vmatprep.subr.mxu0 0.0
    %2466 = vmatpush1.msra.mxu0 0.0
    %2467 = vmatprep.subr.mxu0 0.0
    %2468 = vmatpush1.msra.mxu0 0.0
    %2469 = vmatprep.subr.mxu0 0.0
    %2470 = vmatpush1.msra.mxu0 0.0
    %2471 = vmatprep.subr.mxu0 0.0
    %2472 = vmatpush1.msra.mxu0 0.0
    %2473 = vmatprep.subr.mxu0 0.0
    %2474 = vmatpush1.msra.mxu0 0.0
    %2475 = vmatprep.subr.mxu0 0.0
    %2476 = vmatpush1.msra.mxu0 0.0
    %2477 = vmatprep.subr.mxu0 0.0
    %2478 = vmatpush1.msra.mxu0 0.0
    %2479 = vmatprep.subr.mxu0 0.0
    %2480 = vmatpush1.msra.mxu0 0.0
    %2481 = vmatprep.subr.mxu0 0.0
    %2482 = vmatpush1.msra.mxu0 0.0
    %2483 = vmatprep.subr.mxu0 0.0
    %2484 = vmatpush1.msra.mxu0 0.0
    %2485 = vmatprep.subr.mxu0 0.0
    %2486 = vmatpush1.msra.mxu0 0.0
    %2487 = vmatprep.mubr.f32.mxu0 0.0
    %2488 = vmatmul.mubr.f32.gmra.mrb[0].mxu0 %v1245
    %v2489 = vpop.f32.mrb[0].mxu0
    %v2490 = vadd.f32 0.0, %v2489
    %v2491 = vpop.f32.mrb[0].mxu0
    %2492 = vmatprep.mubr.f32.mxu0 0.0
    %2493 = vmatmul.mubr.f32.gmra.mrb[0].mxu0 %v1248
    %v2494 = vpop.f32.mrb[0].mxu0
    %v2495 = vadd.f32 0.0, %v2494
    %v2496 = vpop.f32.mrb[0].mxu0
    %2497 = vmatprep.mubr.f32.mxu0 0.0
    %2498 = vmatmul.mubr.f32.gmra.mrb[0].mxu0 %v1251
    %v2499 = vpop.f32.mrb[0].mxu0
    %v2500 = vadd.f32 0.0, %v2499
    %v2501 = vpop.f32.mrb[0].mxu0
    %2502 = vmatprep.mubr.f32.mxu0 0.0
    %2503 = vmatmul.mubr.f32.gmra.mrb[0].mxu0 %v1254
    %v2504 = vpop.f32.mrb[0].mxu0
    %v2505 = vadd.f32 0.0, %v2504
    %v2506 = vpop.f32.mrb[0].mxu0
    %2507 = vmatprep.mubr.f32.mxu0 0.0
    %2508 = vmatmul.mubr.f32.gmra.mrb[0].mxu0 %v1257
    %v2509 = vpop.f32.mrb[0].mxu0
    %v2510 = vadd.f32 0.0, %v2509
    %v2511 = vpop.f32.mrb[0].mxu0
    %2512 = vmatprep.mubr.f32.mxu0 0.0
    %2513 = vmatmul.mubr.f32.gmra.mrb[0].mxu0 %v1260
    %v2514 = vpop.f32.mrb[0].mxu0
    %v2515 = vadd.f32 0.0, %v2514
    %v2516 = vpop.f32.mrb[0].mxu0
    %2517 = vmatprep.mubr.f32.mxu0 0.0
    %2518 = vmatmul.mubr.f32.gmra.mrb[0].mxu0 %v1263
    %v2519 = vpop.f32.mrb[0].mxu0
    %v2520 = vadd.f32 0.0, %v2519
    %v2521 = vpop.f32.mrb[0].mxu0
    %2522 = vmatprep.mubr.f32.mxu0 0.0
    %2523 = vmatmul.mubr.f32.gmra.mrb[0].mxu0 %v1266
    %v2524 = vpop.f32.mrb[0].mxu0
    %v2525 = vadd.f32 0.0, %v2524
    %v2526 = vpop.f32.mrb[0].mxu0
    %2527 = vdwg.mxu0
    %2528 = vmatprep.subr.mxu0 0.0
    %2529 = vmatpush1.msra.mxu0 %v1148
    %2530 = vmatprep.subr.mxu0 0.0
    %2531 = vmatpush1.msra.mxu0 %v1149
    %2532 = vmatprep.subr.mxu0 0.0
    %2533 = vmatpush1.msra.mxu0 %v1150
    %2534 = vmatprep.subr.mxu0 0.0
    %2535 = vmatpush1.msra.mxu0 %v1151
    %2536 = vmatprep.subr.mxu0 0.0
    %2537 = vmatpush1.msra.mxu0 %v1152
    %2538 = vmatprep.subr.mxu0 0.0
    %2539 = vmatpush1.msra.mxu0 %v1153
    %2540 = vmatprep.subr.mxu0 0.0
    %2541 = vmatpush1.msra.mxu0 %v1154
    %2542 = vmatprep.subr.mxu0 0.0
    %2543 = vmatpush1.msra.mxu0 %v1155
    %2544 = vmatprep.subr.mxu0 0.0
    %2545 = vmatpush1.msra.mxu0 0.0
    %2546 = vmatprep.subr.mxu0 0.0
    %2547 = vmatpush1.msra.mxu0 0.0
    %2548 = vmatprep.subr.mxu0 0.0
    %2549 = vmatpush1.msra.mxu0 0.0
    %2550 = vmatprep.subr.mxu0 0.0
    %2551 = vmatpush1.msra.mxu0 0.0
    %2552 = vmatprep.subr.mxu0 0.0
    %2553 = vmatpush1.msra.mxu0 0.0
    %2554 = vmatprep.subr.mxu0 0.0
    %2555 = vmatpush1.msra.mxu0 0.0
    %2556 = vmatprep.subr.mxu0 0.0
    %2557 = vmatpush1.msra.mxu0 0.0
    %2558 = vmatprep.subr.mxu0 0.0
    %2559 = vmatpush1.msra.mxu0 0.0
    %2560 = vmatprep.subr.mxu0 0.0
    %2561 = vmatpush1.msra.mxu0 0.0
    %2562 = vmatprep.subr.mxu0 0.0
    %2563 = vmatpush1.msra.mxu0 0.0
    %2564 = vmatprep.subr.mxu0 0.0
    %2565 = vmatpush1.msra.mxu0 0.0
    %2566 = vmatprep.subr.mxu0 0.0
    %2567 = vmatpush1.msra.mxu0 0.0
    %2568 = vmatprep.subr.mxu0 0.0
    %2569 = vmatpush1.msra.mxu0 0.0
    %2570 = vmatprep.subr.mxu0 0.0
    %2571 = vmatpush1.msra.mxu0 0.0
    %2572 = vmatprep.subr.mxu0 0.0
    %2573 = vmatpush1.msra.mxu0 0.0
    %2574 = vmatprep.subr.mxu0 0.0
    %2575 = vmatpush1.msra.mxu0 0.0
    %2576 = vmatprep.subr.mxu0 0.0
    %2577 = vmatpush1.msra.mxu0 0.0
    %2578 = vmatprep.subr.mxu0 0.0
    %2579 = vmatpush1.msra.mxu0 0.0
    %2580 = vmatprep.subr.mxu0 0.0
    %2581 = vmatpush1.msra.mxu0 0.0
    %2582 = vmatprep.subr.mxu0 0.0
    %2583 = vmatpush1.msra.mxu0 0.0
    %2584 = vmatprep.subr.mxu0 0.0
    %2585 = vmatpush1.msra.mxu0 0.0
    %2586 = vmatprep.subr.mxu0 0.0
    %2587 = vmatpush1.msra.mxu0 0.0
    %2588 = vmatprep.subr.mxu0 0.0
    %2589 = vmatpush1.msra.mxu0 0.0
    %2590 = vmatprep.subr.mxu0 0.0
    %2591 = vmatpush1.msra.mxu0 0.0
    %2592 = vmatprep.mubr.f32.mxu0 0.0
    %2593 = vmatmul.mubr.f32.gmra.mrb[0].mxu0 %v1245
    %v2594 = vpop.f32.mrb[0].mxu0
    %v2595 = vadd.f32 0.0, %v2594
    %v2596 = vpop.f32.mrb[0].mxu0
    %2597 = vmatprep.mubr.f32.mxu0 0.0
    %2598 = vmatmul.mubr.f32.gmra.mrb[0].mxu0 %v1248
    %v2599 = vpop.f32.mrb[0].mxu0
    %v2600 = vadd.f32 0.0, %v2599
    %v2601 = vpop.f32.mrb[0].mxu0
    %2602 = vmatprep.mubr.f32.mxu0 0.0
    %2603 = vmatmul.mubr.f32.gmra.mrb[0].mxu0 %v1251
    %v2604 = vpop.f32.mrb[0].mxu0
    %v2605 = vadd.f32 0.0, %v2604
    %v2606 = vpop.f32.mrb[0].mxu0
    %2607 = vmatprep.mubr.f32.mxu0 0.0
    %2608 = vmatmul.mubr.f32.gmra.mrb[0].mxu0 %v1254
    %v2609 = vpop.f32.mrb[0].mxu0
    %v2610 = vadd.f32 0.0, %v2609
    %v2611 = vpop.f32.mrb[0].mxu0
    %2612 = vmatprep.mubr.f32.mxu0 0.0
    %2613 = vmatmul.mubr.f32.gmra.mrb[0].mxu0 %v1257
    %v2614 = vpop.f32.mrb[0].mxu0
    %v2615 = vadd.f32 0.0, %v2614
    %v2616 = vpop.f32.mrb[0].mxu0
    %2617 = vmatprep.mubr.f32.mxu0 0.0
    %2618 = vmatmul.mubr.f32.gmra.mrb[0].mxu0 %v1260
    %v2619 = vpop.f32.mrb[0].mxu0
    %v2620 = vadd.f32 0.0, %v2619
    %v2621 = vpop.f32.mrb[0].mxu0
    %2622 = vmatprep.mubr.f32.mxu0 0.0
    %2623 = vmatmul.mubr.f32.gmra.mrb[0].mxu0 %v1263
    %v2624 = vpop.f32.mrb[0].mxu0
    %v2625 = vadd.f32 0.0, %v2624
    %v2626 = vpop.f32.mrb[0].mxu0
    %2627 = vmatprep.mubr.f32.mxu0 0.0
    %2628 = vmatmul.mubr.f32.gmra.mrb[0].mxu0 %v1266
    %v2629 = vpop.f32.mrb[0].mxu0
    %v2630 = vadd.f32 0.0, %v2629
    %v2631 = vpop.f32.mrb[0].mxu0
    %2632 = vdwg.mxu0
    %2633 = vmatprep.subr.mxu0 0.0
    %2634 = vmatpush1.msra.mxu0 %v1156
    %2635 = vmatprep.subr.mxu0 0.0
    %2636 = vmatpush1.msra.mxu0 %v1157
    %2637 = vmatprep.subr.mxu0 0.0
    %2638 = vmatpush1.msra.mxu0 %v1158
    %2639 = vmatprep.subr.mxu0 0.0
    %2640 = vmatpush1.msra.mxu0 %v1159
    %2641 = vmatprep.subr.mxu0 0.0
    %2642 = vmatpush1.msra.mxu0 %v1160
    %2643 = vmatprep.subr.mxu0 0.0
    %2644 = vmatpush1.msra.mxu0 %v1161
    %2645 = vmatprep.subr.mxu0 0.0
    %2646 = vmatpush1.msra.mxu0 %v1162
    %2647 = vmatprep.subr.mxu0 0.0
    %2648 = vmatpush1.msra.mxu0 %v1163
    %2649 = vmatprep.subr.mxu0 0.0
    %2650 = vmatpush1.msra.mxu0 0.0
    %2651 = vmatprep.subr.mxu0 0.0
    %2652 = vmatpush1.msra.mxu0 0.0
    %2653 = vmatprep.subr.mxu0 0.0
    %2654 = vmatpush1.msra.mxu0 0.0
    %2655 = vmatprep.subr.mxu0 0.0
    %2656 = vmatpush1.msra.mxu0 0.0
    %2657 = vmatprep.subr.mxu0 0.0
    %2658 = vmatpush1.msra.mxu0 0.0
    %2659 = vmatprep.subr.mxu0 0.0
    %2660 = vmatpush1.msra.mxu0 0.0
    %2661 = vmatprep.subr.mxu0 0.0
    %2662 = vmatpush1.msra.mxu0 0.0
    %2663 = vmatprep.subr.mxu0 0.0
    %2664 = vmatpush1.msra.mxu0 0.0
    %2665 = vmatprep.subr.mxu0 0.0
    %2666 = vmatpush1.msra.mxu0 0.0
    %2667 = vmatprep.subr.mxu0 0.0
    %2668 = vmatpush1.msra.mxu0 0.0
    %2669 = vmatprep.subr.mxu0 0.0
    %2670 = vmatpush1.msra.mxu0 0.0
    %2671 = vmatprep.subr.mxu0 0.0
    %2672 = vmatpush1.msra.mxu0 0.0
    %2673 = vmatprep.subr.mxu0 0.0
    %2674 = vmatpush1.msra.mxu0 0.0
    %2675 = vmatprep.subr.mxu0 0.0
    %2676 = vmatpush1.msra.mxu0 0.0
    %2677 = vmatprep.subr.mxu0 0.0
    %2678 = vmatpush1.msra.mxu0 0.0
    %2679 = vmatprep.subr.mxu0 0.0
    %2680 = vmatpush1.msra.mxu0 0.0
    %2681 = vmatprep.subr.mxu0 0.0
    %2682 = vmatpush1.msra.mxu0 0.0
    %2683 = vmatprep.subr.mxu0 0.0
    %2684 = vmatpush1.msra.mxu0 0.0
    %2685 = vmatprep.subr.mxu0 0.0
    %2686 = vmatpush1.msra.mxu0 0.0
    %2687 = vmatprep.subr.mxu0 0.0
    %2688 = vmatpush1.msra.mxu0 0.0
    %2689 = vmatprep.subr.mxu0 0.0
    %2690 = vmatpush1.msra.mxu0 0.0
    %2691 = vmatprep.subr.mxu0 0.0
    %2692 = vmatpush1.msra.mxu0 0.0
    %2693 = vmatprep.subr.mxu0 0.0
    %2694 = vmatpush1.msra.mxu0 0.0
    %2695 = vmatprep.subr.mxu0 0.0
    %2696 = vmatpush1.msra.mxu0 0.0
    %2697 = vmatprep.mubr.f32.mxu0 0.0
    %2698 = vmatmul.mubr.f32.gmra.mrb[0].mxu0 %v1245
    %v2699 = vpop.f32.mrb[0].mxu0
    %v2700 = vadd.f32 0.0, %v2699
    %v2701 = vpop.f32.mrb[0].mxu0
    %2702 = vmatprep.mubr.f32.mxu0 0.0
    %2703 = vmatmul.mubr.f32.gmra.mrb[0].mxu0 %v1248
    %v2704 = vpop.f32.mrb[0].mxu0
    %v2705 = vadd.f32 0.0, %v2704
    %v2706 = vpop.f32.mrb[0].mxu0
    %2707 = vmatprep.mubr.f32.mxu0 0.0
    %2708 = vmatmul.mubr.f32.gmra.mrb[0].mxu0 %v1251
    %v2709 = vpop.f32.mrb[0].mxu0
    %v2710 = vadd.f32 0.0, %v2709
    %v2711 = vpop.f32.mrb[0].mxu0
    %2712 = vmatprep.mubr.f32.mxu0 0.0
    %2713 = vmatmul.mubr.f32.gmra.mrb[0].mxu0 %v1254
    %v2714 = vpop.f32.mrb[0].mxu0
    %v2715 = vadd.f32 0.0, %v2714
    %v2716 = vpop.f32.mrb[0].mxu0
    %2717 = vmatprep.mubr.f32.mxu0 0.0
    %2718 = vmatmul.mubr.f32.gmra.mrb[0].mxu0 %v1257
    %v2719 = vpop.f32.mrb[0].mxu0
    %v2720 = vadd.f32 0.0, %v2719
    %v2721 = vpop.f32.mrb[0].mxu0
    %2722 = vmatprep.mubr.f32.mxu0 0.0
    %2723 = vmatmul.mubr.f32.gmra.mrb[0].mxu0 %v1260
    %v2724 = vpop.f32.mrb[0].mxu0
    %v2725 = vadd.f32 0.0, %v2724
    %v2726 = vpop.f32.mrb[0].mxu0
    %2727 = vmatprep.mubr.f32.mxu0 0.0
    %2728 = vmatmul.mubr.f32.gmra.mrb[0].mxu0 %v1263
    %v2729 = vpop.f32.mrb[0].mxu0
    %v2730 = vadd.f32 0.0, %v2729
    %v2731 = vpop.f32.mrb[0].mxu0
    %2732 = vmatprep.mubr.f32.mxu0 0.0
    %2733 = vmatmul.mubr.f32.gmra.mrb[0].mxu0 %v1266
    %v2734 = vpop.f32.mrb[0].mxu0
    %v2735 = vadd.f32 0.0, %v2734
    %v2736 = vpop.f32.mrb[0].mxu0
    %2737 = vdwg.mxu0
    %2738 = vmatprep.subr.mxu0 0.0
    %2739 = vmatpush1.msra.mxu0 %v1164
    %2740 = vmatprep.subr.mxu0 0.0
    %2741 = vmatpush1.msra.mxu0 %v1165
    %2742 = vmatprep.subr.mxu0 0.0
    %2743 = vmatpush1.msra.mxu0 %v1166
    %2744 = vmatprep.subr.mxu0 0.0
    %2745 = vmatpush1.msra.mxu0 %v1167
    %2746 = vmatprep.subr.mxu0 0.0
    %2747 = vmatpush1.msra.mxu0 %v1168
    %2748 = vmatprep.subr.mxu0 0.0
    %2749 = vmatpush1.msra.mxu0 %v1169
    %2750 = vmatprep.subr.mxu0 0.0
    %2751 = vmatpush1.msra.mxu0 %v1170
    %2752 = vmatprep.subr.mxu0 0.0
    %2753 = vmatpush1.msra.mxu0 %v1171
    %2754 = vmatprep.subr.mxu0 0.0
    %2755 = vmatpush1.msra.mxu0 0.0
    %2756 = vmatprep.subr.mxu0 0.0
    %2757 = vmatpush1.msra.mxu0 0.0
    %2758 = vmatprep.subr.mxu0 0.0
    %2759 = vmatpush1.msra.mxu0 0.0
    %2760 = vmatprep.subr.mxu0 0.0
    %2761 = vmatpush1.msra.mxu0 0.0
    %2762 = vmatprep.subr.mxu0 0.0
    %2763 = vmatpush1.msra.mxu0 0.0
    %2764 = vmatprep.subr.mxu0 0.0
    %2765 = vmatpush1.msra.mxu0 0.0
    %2766 = vmatprep.subr.mxu0 0.0
    %2767 = vmatpush1.msra.mxu0 0.0
    %2768 = vmatprep.subr.mxu0 0.0
    %2769 = vmatpush1.msra.mxu0 0.0
    %2770 = vmatprep.subr.mxu0 0.0
    %2771 = vmatpush1.msra.mxu0 0.0
    %2772 = vmatprep.subr.mxu0 0.0
    %2773 = vmatpush1.msra.mxu0 0.0
    %2774 = vmatprep.subr.mxu0 0.0
    %2775 = vmatpush1.msra.mxu0 0.0
    %2776 = vmatprep.subr.mxu0 0.0
    %2777 = vmatpush1.msra.mxu0 0.0
    %2778 = vmatprep.subr.mxu0 0.0
    %2779 = vmatpush1.msra.mxu0 0.0
    %2780 = vmatprep.subr.mxu0 0.0
    %2781 = vmatpush1.msra.mxu0 0.0
    %2782 = vmatprep.subr.mxu0 0.0
    %2783 = vmatpush1.msra.mxu0 0.0
    %2784 = vmatprep.subr.mxu0 0.0
    %2785 = vmatpush1.msra.mxu0 0.0
    %2786 = vmatprep.subr.mxu0 0.0
    %2787 = vmatpush1.msra.mxu0 0.0
    %2788 = vmatprep.subr.mxu0 0.0
    %2789 = vmatpush1.msra.mxu0 0.0
    %2790 = vmatprep.subr.mxu0 0.0
    %2791 = vmatpush1.msra.mxu0 0.0
    %2792 = vmatprep.subr.mxu0 0.0
    %2793 = vmatpush1.msra.mxu0 0.0
    %2794 = vmatprep.subr.mxu0 0.0
    %2795 = vmatpush1.msra.mxu0 0.0
    %2796 = vmatprep.subr.mxu0 0.0
    %2797 = vmatpush1.msra.mxu0 0.0
    %2798 = vmatprep.subr.mxu0 0.0
    %2799 = vmatpush1.msra.mxu0 0.0
    %2800 = vmatprep.subr.mxu0 0.0
    %2801 = vmatpush1.msra.mxu0 0.0
    %2802 = vmatprep.mubr.f32.mxu0 0.0
    %2803 = vmatmul.mubr.f32.gmra.mrb[0].mxu0 %v1245
    %v2804 = vpop.f32.mrb[0].mxu0
    %v2805 = vadd.f32 0.0, %v2804
    %v2806 = vpop.f32.mrb[0].mxu0
    %2807 = vmatprep.mubr.f32.mxu0 0.0
    %2808 = vmatmul.mubr.f32.gmra.mrb[0].mxu0 %v1248
    %v2809 = vpop.f32.mrb[0].mxu0
    %v2810 = vadd.f32 0.0, %v2809
    %v2811 = vpop.f32.mrb[0].mxu0
    %2812 = vmatprep.mubr.f32.mxu0 0.0
    %2813 = vmatmul.mubr.f32.gmra.mrb[0].mxu0 %v1251
    %v2814 = vpop.f32.mrb[0].mxu0
    %v2815 = vadd.f32 0.0, %v2814
    %v2816 = vpop.f32.mrb[0].mxu0
    %2817 = vmatprep.mubr.f32.mxu0 0.0
    %2818 = vmatmul.mubr.f32.gmra.mrb[0].mxu0 %v1254
    %v2819 = vpop.f32.mrb[0].mxu0
    %v2820 = vadd.f32 0.0, %v2819
    %v2821 = vpop.f32.mrb[0].mxu0
    %2822 = vmatprep.mubr.f32.mxu0 0.0
    %2823 = vmatmul.mubr.f32.gmra.mrb[0].mxu0 %v1257
    %v2824 = vpop.f32.mrb[0].mxu0
    %v2825 = vadd.f32 0.0, %v2824
    %v2826 = vpop.f32.mrb[0].mxu0
    %2827 = vmatprep.mubr.f32.mxu0 0.0
    %2828 = vmatmul.mubr.f32.gmra.mrb[0].mxu0 %v1260
    %v2829 = vpop.f32.mrb[0].mxu0
    %v2830 = vadd.f32 0.0, %v2829
    %v2831 = vpop.f32.mrb[0].mxu0
    %2832 = vmatprep.mubr.f32.mxu0 0.0
    %2833 = vmatmul.mubr.f32.gmra.mrb[0].mxu0 %v1263
    %v2834 = vpop.f32.mrb[0].mxu0
    %v2835 = vadd.f32 0.0, %v2834
    %v2836 = vpop.f32.mrb[0].mxu0
    %2837 = vmatprep.mubr.f32.mxu0 0.0
    %2838 = vmatmul.mubr.f32.gmra.mrb[0].mxu0 %v1266
    %v2839 = vpop.f32.mrb[0].mxu0
    %v2840 = vadd.f32 0.0, %v2839
    %v2841 = vpop.f32.mrb[0].mxu0
    %2842 = vdwg.mxu0
    %2843 = vmatprep.subr.mxu0 0.0
    %2844 = vmatpush1.msra.mxu0 %v1172
    %2845 = vmatprep.subr.mxu0 0.0
    %2846 = vmatpush1.msra.mxu0 %v1173
    %2847 = vmatprep.subr.mxu0 0.0
    %2848 = vmatpush1.msra.mxu0 %v1174
    %2849 = vmatprep.subr.mxu0 0.0
    %2850 = vmatpush1.msra.mxu0 %v1175
    %2851 = vmatprep.subr.mxu0 0.0
    %2852 = vmatpush1.msra.mxu0 %v1176
    %2853 = vmatprep.subr.mxu0 0.0
    %2854 = vmatpush1.msra.mxu0 %v1177
    %2855 = vmatprep.subr.mxu0 0.0
    %2856 = vmatpush1.msra.mxu0 %v1178
    %2857 = vmatprep.subr.mxu0 0.0
    %2858 = vmatpush1.msra.mxu0 %v1179
    %2859 = vmatprep.subr.mxu0 0.0
    %2860 = vmatpush1.msra.mxu0 0.0
    %2861 = vmatprep.subr.mxu0 0.0
    %2862 = vmatpush1.msra.mxu0 0.0
    %2863 = vmatprep.subr.mxu0 0.0
    %2864 = vmatpush1.msra.mxu0 0.0
    %2865 = vmatprep.subr.mxu0 0.0
    %2866 = vmatpush1.msra.mxu0 0.0
    %2867 = vmatprep.subr.mxu0 0.0
    %2868 = vmatpush1.msra.mxu0 0.0
    %2869 = vmatprep.subr.mxu0 0.0
    %2870 = vmatpush1.msra.mxu0 0.0
    %2871 = vmatprep.subr.mxu0 0.0
    %2872 = vmatpush1.msra.mxu0 0.0
    %2873 = vmatprep.subr.mxu0 0.0
    %2874 = vmatpush1.msra.mxu0 0.0
    %2875 = vmatprep.subr.mxu0 0.0
    %2876 = vmatpush1.msra.mxu0 0.0
    %2877 = vmatprep.subr.mxu0 0.0
    %2878 = vmatpush1.msra.mxu0 0.0
    %2879 = vmatprep.subr.mxu0 0.0
    %2880 = vmatpush1.msra.mxu0 0.0
    %2881 = vmatprep.subr.mxu0 0.0
    %2882 = vmatpush1.msra.mxu0 0.0
    %2883 = vmatprep.subr.mxu0 0.0
    %2884 = vmatpush1.msra.mxu0 0.0
    %2885 = vmatprep.subr.mxu0 0.0
    %2886 = vmatpush1.msra.mxu0 0.0
    %2887 = vmatprep.subr.mxu0 0.0
    %2888 = vmatpush1.msra.mxu0 0.0
    %2889 = vmatprep.subr.mxu0 0.0
    %2890 = vmatpush1.msra.mxu0 0.0
    %2891 = vmatprep.subr.mxu0 0.0
    %2892 = vmatpush1.msra.mxu0 0.0
    %2893 = vmatprep.subr.mxu0 0.0
    %2894 = vmatpush1.msra.mxu0 0.0
    %2895 = vmatprep.subr.mxu0 0.0
    %2896 = vmatpush1.msra.mxu0 0.0
    %2897 = vmatprep.subr.mxu0 0.0
    %2898 = vmatpush1.msra.mxu0 0.0
    %2899 = vmatprep.subr.mxu0 0.0
    %2900 = vmatpush1.msra.mxu0 0.0
    %2901 = vmatprep.subr.mxu0 0.0
    %2902 = vmatpush1.msra.mxu0 0.0
    %2903 = vmatprep.subr.mxu0 0.0
    %2904 = vmatpush1.msra.mxu0 0.0
    %2905 = vmatprep.subr.mxu0 0.0
    %2906 = vmatpush1.msra.mxu0 0.0
    %2907 = vmatprep.mubr.f32.mxu0 0.0
    %2908 = vmatmul.mubr.f32.gmra.mrb[0].mxu0 %v1245
    %v2909 = vpop.f32.mrb[0].mxu0
    %v2910 = vadd.f32 0.0, %v2909
    %v2911 = vpop.f32.mrb[0].mxu0
    %2912 = vmatprep.mubr.f32.mxu0 0.0
    %2913 = vmatmul.mubr.f32.gmra.mrb[0].mxu0 %v1248
    %v2914 = vpop.f32.mrb[0].mxu0
    %v2915 = vadd.f32 0.0, %v2914
    %v2916 = vpop.f32.mrb[0].mxu0
    %2917 = vmatprep.mubr.f32.mxu0 0.0
    %2918 = vmatmul.mubr.f32.gmra.mrb[0].mxu0 %v1251
    %v2919 = vpop.f32.mrb[0].mxu0
    %v2920 = vadd.f32 0.0, %v2919
    %v2921 = vpop.f32.mrb[0].mxu0
    %2922 = vmatprep.mubr.f32.mxu0 0.0
    %2923 = vmatmul.mubr.f32.gmra.mrb[0].mxu0 %v1254
    %v2924 = vpop.f32.mrb[0].mxu0
    %v2925 = vadd.f32 0.0, %v2924
    %v2926 = vpop.f32.mrb[0].mxu0
    %2927 = vmatprep.mubr.f32.mxu0 0.0
    %2928 = vmatmul.mubr.f32.gmra.mrb[0].mxu0 %v1257
    %v2929 = vpop.f32.mrb[0].mxu0
    %v2930 = vadd.f32 0.0, %v2929
    %v2931 = vpop.f32.mrb[0].mxu0
    %2932 = vmatprep.mubr.f32.mxu0 0.0
    %2933 = vmatmul.mubr.f32.gmra.mrb[0].mxu0 %v1260
    %v2934 = vpop.f32.mrb[0].mxu0
    %v2935 = vadd.f32 0.0, %v2934
    %v2936 = vpop.f32.mrb[0].mxu0
    %2937 = vmatprep.mubr.f32.mxu0 0.0
    %2938 = vmatmul.mubr.f32.gmra.mrb[0].mxu0 %v1263
    %v2939 = vpop.f32.mrb[0].mxu0
    %v2940 = vadd.f32 0.0, %v2939
    %v2941 = vpop.f32.mrb[0].mxu0
    %2942 = vmatprep.mubr.f32.mxu0 0.0
    %2943 = vmatmul.mubr.f32.gmra.mrb[0].mxu0 %v1266
    %v2944 = vpop.f32.mrb[0].mxu0
    %v2945 = vadd.f32 0.0, %v2944
    %v2946 = vpop.f32.mrb[0].mxu0
    %2947 = vdwg.mxu0
    %2948 = vmatprep.subr.mxu0 0.0
    %2949 = vmatpush1.msra.mxu0 %v1180
    %2950 = vmatprep.subr.mxu0 0.0
    %2951 = vmatpush1.msra.mxu0 %v1181
    %2952 = vmatprep.subr.mxu0 0.0
    %2953 = vmatpush1.msra.mxu0 %v1182
    %2954 = vmatprep.subr.mxu0 0.0
    %2955 = vmatpush1.msra.mxu0 %v1183
    %2956 = vmatprep.subr.mxu0 0.0
    %2957 = vmatpush1.msra.mxu0 %v1184
    %2958 = vmatprep.subr.mxu0 0.0
    %2959 = vmatpush1.msra.mxu0 %v1185
    %2960 = vmatprep.subr.mxu0 0.0
    %2961 = vmatpush1.msra.mxu0 %v1186
    %2962 = vmatprep.subr.mxu0 0.0
    %2963 = vmatpush1.msra.mxu0 %v1187
    %2964 = vmatprep.subr.mxu0 0.0
    %2965 = vmatpush1.msra.mxu0 0.0
    %2966 = vmatprep.subr.mxu0 0.0
    %2967 = vmatpush1.msra.mxu0 0.0
    %2968 = vmatprep.subr.mxu0 0.0
    %2969 = vmatpush1.msra.mxu0 0.0
    %2970 = vmatprep.subr.mxu0 0.0
    %2971 = vmatpush1.msra.mxu0 0.0
    %2972 = vmatprep.subr.mxu0 0.0
    %2973 = vmatpush1.msra.mxu0 0.0
    %2974 = vmatprep.subr.mxu0 0.0
    %2975 = vmatpush1.msra.mxu0 0.0
    %2976 = vmatprep.subr.mxu0 0.0
    %2977 = vmatpush1.msra.mxu0 0.0
    %2978 = vmatprep.subr.mxu0 0.0
    %2979 = vmatpush1.msra.mxu0 0.0
    %2980 = vmatprep.subr.mxu0 0.0
    %2981 = vmatpush1.msra.mxu0 0.0
    %2982 = vmatprep.subr.mxu0 0.0
    %2983 = vmatpush1.msra.mxu0 0.0
    %2984 = vmatprep.subr.mxu0 0.0
    %2985 = vmatpush1.msra.mxu0 0.0
    %2986 = vmatprep.subr.mxu0 0.0
    %2987 = vmatpush1.msra.mxu0 0.0
    %2988 = vmatprep.subr.mxu0 0.0
    %2989 = vmatpush1.msra.mxu0 0.0
    %2990 = vmatprep.subr.mxu0 0.0
    %2991 = vmatpush1.msra.mxu0 0.0
    %2992 = vmatprep.subr.mxu0 0.0
    %2993 = vmatpush1.msra.mxu0 0.0
    %2994 = vmatprep.subr.mxu0 0.0
    %2995 = vmatpush1.msra.mxu0 0.0
    %2996 = vmatprep.subr.mxu0 0.0
    %2997 = vmatpush1.msra.mxu0 0.0
    %2998 = vmatprep.subr.mxu0 0.0
    %2999 = vmatpush1.msra.mxu0 0.0
    %3000 = vmatprep.subr.mxu0 0.0
    %3001 = vmatpush1.msra.mxu0 0.0
    %3002 = vmatprep.subr.mxu0 0.0
    %3003 = vmatpush1.msra.mxu0 0.0
    %3004 = vmatprep.subr.mxu0 0.0
    %3005 = vmatpush1.msra.mxu0 0.0
    %3006 = vmatprep.subr.mxu0 0.0
    %3007 = vmatpush1.msra.mxu0 0.0
    %3008 = vmatprep.subr.mxu0 0.0
    %3009 = vmatpush1.msra.mxu0 0.0
    %3010 = vmatprep.subr.mxu0 0.0
    %3011 = vmatpush1.msra.mxu0 0.0
    %3012 = vmatprep.mubr.f32.mxu0 0.0
    %3013 = vmatmul.mubr.f32.gmra.mrb[0].mxu0 %v1245
    %v3014 = vpop.f32.mrb[0].mxu0
    %v3015 = vadd.f32 0.0, %v3014
    %v3016 = vpop.f32.mrb[0].mxu0
    %3017 = vmatprep.mubr.f32.mxu0 0.0
    %3018 = vmatmul.mubr.f32.gmra.mrb[0].mxu0 %v1248
    %v3019 = vpop.f32.mrb[0].mxu0
    %v3020 = vadd.f32 0.0, %v3019
    %v3021 = vpop.f32.mrb[0].mxu0
    %3022 = vmatprep.mubr.f32.mxu0 0.0
    %3023 = vmatmul.mubr.f32.gmra.mrb[0].mxu0 %v1251
    %v3024 = vpop.f32.mrb[0].mxu0
    %v3025 = vadd.f32 0.0, %v3024
    %v3026 = vpop.f32.mrb[0].mxu0
    %3027 = vmatprep.mubr.f32.mxu0 0.0
    %3028 = vmatmul.mubr.f32.gmra.mrb[0].mxu0 %v1254
    %v3029 = vpop.f32.mrb[0].mxu0
    %v3030 = vadd.f32 0.0, %v3029
    %v3031 = vpop.f32.mrb[0].mxu0
    %3032 = vmatprep.mubr.f32.mxu0 0.0
    %3033 = vmatmul.mubr.f32.gmra.mrb[0].mxu0 %v1257
    %v3034 = vpop.f32.mrb[0].mxu0
    %v3035 = vadd.f32 0.0, %v3034
    %v3036 = vpop.f32.mrb[0].mxu0
    %3037 = vmatprep.mubr.f32.mxu0 0.0
    %3038 = vmatmul.mubr.f32.gmra.mrb[0].mxu0 %v1260
    %v3039 = vpop.f32.mrb[0].mxu0
    %v3040 = vadd.f32 0.0, %v3039
    %v3041 = vpop.f32.mrb[0].mxu0
    %3042 = vmatprep.mubr.f32.mxu0 0.0
    %3043 = vmatmul.mubr.f32.gmra.mrb[0].mxu0 %v1263
    %v3044 = vpop.f32.mrb[0].mxu0
    %v3045 = vadd.f32 0.0, %v3044
    %v3046 = vpop.f32.mrb[0].mxu0
    %3047 = vmatprep.mubr.f32.mxu0 0.0
    %3048 = vmatmul.mubr.f32.gmra.mrb[0].mxu0 %v1266
    %v3049 = vpop.f32.mrb[0].mxu0
    %v3050 = vadd.f32 0.0, %v3049
    %v3051 = vpop.f32.mrb[0].mxu0
    %3052 = vdwg.mxu0
    %3053 = vmatprep.subr.mxu0 0.0
    %3054 = vmatpush1.msra.mxu0 %v1188
    %3055 = vmatprep.subr.mxu0 0.0
    %3056 = vmatpush1.msra.mxu0 %v1189
    %3057 = vmatprep.subr.mxu0 0.0
    %3058 = vmatpush1.msra.mxu0 %v1190
    %3059 = vmatprep.subr.mxu0 0.0
    %3060 = vmatpush1.msra.mxu0 %v1191
    %3061 = vmatprep.subr.mxu0 0.0
    %3062 = vmatpush1.msra.mxu0 %v1192
    %3063 = vmatprep.subr.mxu0 0.0
    %3064 = vmatpush1.msra.mxu0 %v1193
    %3065 = vmatprep.subr.mxu0 0.0
    %3066 = vmatpush1.msra.mxu0 %v1194
    %3067 = vmatprep.subr.mxu0 0.0
    %3068 = vmatpush1.msra.mxu0 %v1195
    %3069 = vmatprep.subr.mxu0 0.0
    %3070 = vmatpush1.msra.mxu0 0.0
    %3071 = vmatprep.subr.mxu0 0.0
    %3072 = vmatpush1.msra.mxu0 0.0
    %3073 = vmatprep.subr.mxu0 0.0
    %3074 = vmatpush1.msra.mxu0 0.0
    %3075 = vmatprep.subr.mxu0 0.0
    %3076 = vmatpush1.msra.mxu0 0.0
    %3077 = vmatprep.subr.mxu0 0.0
    %3078 = vmatpush1.msra.mxu0 0.0
    %3079 = vmatprep.subr.mxu0 0.0
    %3080 = vmatpush1.msra.mxu0 0.0
    %3081 = vmatprep.subr.mxu0 0.0
    %3082 = vmatpush1.msra.mxu0 0.0
    %3083 = vmatprep.subr.mxu0 0.0
    %3084 = vmatpush1.msra.mxu0 0.0
    %3085 = vmatprep.subr.mxu0 0.0
    %3086 = vmatpush1.msra.mxu0 0.0
    %3087 = vmatprep.subr.mxu0 0.0
    %3088 = vmatpush1.msra.mxu0 0.0
    %3089 = vmatprep.subr.mxu0 0.0
    %3090 = vmatpush1.msra.mxu0 0.0
    %3091 = vmatprep.subr.mxu0 0.0
    %3092 = vmatpush1.msra.mxu0 0.0
    %3093 = vmatprep.subr.mxu0 0.0
    %3094 = vmatpush1.msra.mxu0 0.0
    %3095 = vmatprep.subr.mxu0 0.0
    %3096 = vmatpush1.msra.mxu0 0.0
    %3097 = vmatprep.subr.mxu0 0.0
    %3098 = vmatpush1.msra.mxu0 0.0
    %3099 = vmatprep.subr.mxu0 0.0
    %3100 = vmatpush1.msra.mxu0 0.0
    %3101 = vmatprep.subr.mxu0 0.0
    %3102 = vmatpush1.msra.mxu0 0.0
    %3103 = vmatprep.subr.mxu0 0.0
    %3104 = vmatpush1.msra.mxu0 0.0
    %3105 = vmatprep.subr.mxu0 0.0
    %3106 = vmatpush1.msra.mxu0 0.0
    %3107 = vmatprep.subr.mxu0 0.0
    %3108 = vmatpush1.msra.mxu0 0.0
    %3109 = vmatprep.subr.mxu0 0.0
    %3110 = vmatpush1.msra.mxu0 0.0
    %3111 = vmatprep.subr.mxu0 0.0
    %3112 = vmatpush1.msra.mxu0 0.0
    %3113 = vmatprep.subr.mxu0 0.0
    %3114 = vmatpush1.msra.mxu0 0.0
    %3115 = vmatprep.subr.mxu0 0.0
    %3116 = vmatpush1.msra.mxu0 0.0
    %3117 = vmatprep.mubr.f32.mxu0 0.0
    %3118 = vmatmul.mubr.f32.gmra.mrb[0].mxu0 %v1245
    %v3119 = vpop.f32.mrb[0].mxu0
    %v3120 = vadd.f32 0.0, %v3119
    %v3121 = vpop.f32.mrb[0].mxu0
    %3122 = vmatprep.mubr.f32.mxu0 0.0
    %3123 = vmatmul.mubr.f32.gmra.mrb[0].mxu0 %v1248
    %v3124 = vpop.f32.mrb[0].mxu0
    %v3125 = vadd.f32 0.0, %v3124
    %v3126 = vpop.f32.mrb[0].mxu0
    %3127 = vmatprep.mubr.f32.mxu0 0.0
    %3128 = vmatmul.mubr.f32.gmra.mrb[0].mxu0 %v1251
    %v3129 = vpop.f32.mrb[0].mxu0
    %v3130 = vadd.f32 0.0, %v3129
    %v3131 = vpop.f32.mrb[0].mxu0
    %3132 = vmatprep.mubr.f32.mxu0 0.0
    %3133 = vmatmul.mubr.f32.gmra.mrb[0].mxu0 %v1254
    %v3134 = vpop.f32.mrb[0].mxu0
    %v3135 = vadd.f32 0.0, %v3134
    %v3136 = vpop.f32.mrb[0].mxu0
    %3137 = vmatprep.mubr.f32.mxu0 0.0
    %3138 = vmatmul.mubr.f32.gmra.mrb[0].mxu0 %v1257
    %v3139 = vpop.f32.mrb[0].mxu0
    %v3140 = vadd.f32 0.0, %v3139
    %v3141 = vpop.f32.mrb[0].mxu0
    %3142 = vmatprep.mubr.f32.mxu0 0.0
    %3143 = vmatmul.mubr.f32.gmra.mrb[0].mxu0 %v1260
    %v3144 = vpop.f32.mrb[0].mxu0
    %v3145 = vadd.f32 0.0, %v3144
    %v3146 = vpop.f32.mrb[0].mxu0
    %3147 = vmatprep.mubr.f32.mxu0 0.0
    %3148 = vmatmul.mubr.f32.gmra.mrb[0].mxu0 %v1263
    %v3149 = vpop.f32.mrb[0].mxu0
    %v3150 = vadd.f32 0.0, %v3149
    %v3151 = vpop.f32.mrb[0].mxu0
    %3152 = vmatprep.mubr.f32.mxu0 0.0
    %3153 = vmatmul.mubr.f32.gmra.mrb[0].mxu0 %v1266
    %v3154 = vpop.f32.mrb[0].mxu0
    %v3155 = vadd.f32 0.0, %v3154
    %v3156 = vpop.f32.mrb[0].mxu0
    %3157 = vdwg.mxu0
    %3158 = vmatprep.subr.mxu0 0.0
    %3159 = vmatpush1.msra.mxu0 %v1196
    %3160 = vmatprep.subr.mxu0 0.0
    %3161 = vmatpush1.msra.mxu0 %v1197
    %3162 = vmatprep.subr.mxu0 0.0
    %3163 = vmatpush1.msra.mxu0 %v1198
    %3164 = vmatprep.subr.mxu0 0.0
    %3165 = vmatpush1.msra.mxu0 %v1199
    %3166 = vmatprep.subr.mxu0 0.0
    %3167 = vmatpush1.msra.mxu0 %v1200
    %3168 = vmatprep.subr.mxu0 0.0
    %3169 = vmatpush1.msra.mxu0 %v1201
    %3170 = vmatprep.subr.mxu0 0.0
    %3171 = vmatpush1.msra.mxu0 %v1202
    %3172 = vmatprep.subr.mxu0 0.0
    %3173 = vmatpush1.msra.mxu0 %v1203
    %3174 = vmatprep.subr.mxu0 0.0
    %3175 = vmatpush1.msra.mxu0 0.0
    %3176 = vmatprep.subr.mxu0 0.0
    %3177 = vmatpush1.msra.mxu0 0.0
    %3178 = vmatprep.subr.mxu0 0.0
    %3179 = vmatpush1.msra.mxu0 0.0
    %3180 = vmatprep.subr.mxu0 0.0
    %3181 = vmatpush1.msra.mxu0 0.0
    %3182 = vmatprep.subr.mxu0 0.0
    %3183 = vmatpush1.msra.mxu0 0.0
    %3184 = vmatprep.subr.mxu0 0.0
    %3185 = vmatpush1.msra.mxu0 0.0
    %3186 = vmatprep.subr.mxu0 0.0
    %3187 = vmatpush1.msra.mxu0 0.0
    %3188 = vmatprep.subr.mxu0 0.0
    %3189 = vmatpush1.msra.mxu0 0.0
    %3190 = vmatprep.subr.mxu0 0.0
    %3191 = vmatpush1.msra.mxu0 0.0
    %3192 = vmatprep.subr.mxu0 0.0
    %3193 = vmatpush1.msra.mxu0 0.0
    %3194 = vmatprep.subr.mxu0 0.0
    %3195 = vmatpush1.msra.mxu0 0.0
    %3196 = vmatprep.subr.mxu0 0.0
    %3197 = vmatpush1.msra.mxu0 0.0
    %3198 = vmatprep.subr.mxu0 0.0
    %3199 = vmatpush1.msra.mxu0 0.0
    %3200 = vmatprep.subr.mxu0 0.0
    %3201 = vmatpush1.msra.mxu0 0.0
    %3202 = vmatprep.subr.mxu0 0.0
    %3203 = vmatpush1.msra.mxu0 0.0
    %3204 = vmatprep.subr.mxu0 0.0
    %3205 = vmatpush1.msra.mxu0 0.0
    %3206 = vmatprep.subr.mxu0 0.0
    %3207 = vmatpush1.msra.mxu0 0.0
    %3208 = vmatprep.subr.mxu0 0.0
    %3209 = vmatpush1.msra.mxu0 0.0
    %3210 = vmatprep.subr.mxu0 0.0
    %3211 = vmatpush1.msra.mxu0 0.0
    %3212 = vmatprep.subr.mxu0 0.0
    %3213 = vmatpush1.msra.mxu0 0.0
    %3214 = vmatprep.subr.mxu0 0.0
    %3215 = vmatpush1.msra.mxu0 0.0
    %3216 = vmatprep.subr.mxu0 0.0
    %3217 = vmatpush1.msra.mxu0 0.0
    %3218 = vmatprep.subr.mxu0 0.0
    %3219 = vmatpush1.msra.mxu0 0.0
    %3220 = vmatprep.subr.mxu0 0.0
    %3221 = vmatpush1.msra.mxu0 0.0
    %3222 = vmatprep.mubr.f32.mxu0 0.0
    %3223 = vmatmul.mubr.f32.gmra.mrb[0].mxu0 %v1245
    %v3224 = vpop.f32.mrb[0].mxu0
    %v3225 = vadd.f32 0.0, %v3224
    %v3226 = vpop.f32.mrb[0].mxu0
    %3227 = vmatprep.mubr.f32.mxu0 0.0
    %3228 = vmatmul.mubr.f32.gmra.mrb[0].mxu0 %v1248
    %v3229 = vpop.f32.mrb[0].mxu0
    %v3230 = vadd.f32 0.0, %v3229
    %v3231 = vpop.f32.mrb[0].mxu0
    %3232 = vmatprep.mubr.f32.mxu0 0.0
    %3233 = vmatmul.mubr.f32.gmra.mrb[0].mxu0 %v1251
    %v3234 = vpop.f32.mrb[0].mxu0
    %v3235 = vadd.f32 0.0, %v3234
    %v3236 = vpop.f32.mrb[0].mxu0
    %3237 = vmatprep.mubr.f32.mxu0 0.0
    %3238 = vmatmul.mubr.f32.gmra.mrb[0].mxu0 %v1254
    %v3239 = vpop.f32.mrb[0].mxu0
    %v3240 = vadd.f32 0.0, %v3239
    %v3241 = vpop.f32.mrb[0].mxu0
    %3242 = vmatprep.mubr.f32.mxu0 0.0
    %3243 = vmatmul.mubr.f32.gmra.mrb[0].mxu0 %v1257
    %v3244 = vpop.f32.mrb[0].mxu0
    %v3245 = vadd.f32 0.0, %v3244
    %v3246 = vpop.f32.mrb[0].mxu0
    %3247 = vmatprep.mubr.f32.mxu0 0.0
    %3248 = vmatmul.mubr.f32.gmra.mrb[0].mxu0 %v1260
    %v3249 = vpop.f32.mrb[0].mxu0
    %v3250 = vadd.f32 0.0, %v3249
    %v3251 = vpop.f32.mrb[0].mxu0
    %3252 = vmatprep.mubr.f32.mxu0 0.0
    %3253 = vmatmul.mubr.f32.gmra.mrb[0].mxu0 %v1263
    %v3254 = vpop.f32.mrb[0].mxu0
    %v3255 = vadd.f32 0.0, %v3254
    %v3256 = vpop.f32.mrb[0].mxu0
    %3257 = vmatprep.mubr.f32.mxu0 0.0
    %3258 = vmatmul.mubr.f32.gmra.mrb[0].mxu0 %v1266
    %v3259 = vpop.f32.mrb[0].mxu0
    %v3260 = vadd.f32 0.0, %v3259
    %v3261 = vpop.f32.mrb[0].mxu0
    %3262 = vdwg.mxu0
    %3263 = vmatprep.subr.mxu0 0.0
    %3264 = vmatpush1.msra.mxu0 %v1204
    %3265 = vmatprep.subr.mxu0 0.0
    %3266 = vmatpush1.msra.mxu0 %v1205
    %3267 = vmatprep.subr.mxu0 0.0
    %3268 = vmatpush1.msra.mxu0 %v1206
    %3269 = vmatprep.subr.mxu0 0.0
    %3270 = vmatpush1.msra.mxu0 %v1207
    %3271 = vmatprep.subr.mxu0 0.0
    %3272 = vmatpush1.msra.mxu0 %v1208
    %3273 = vmatprep.subr.mxu0 0.0
    %3274 = vmatpush1.msra.mxu0 %v1209
    %3275 = vmatprep.subr.mxu0 0.0
    %3276 = vmatpush1.msra.mxu0 %v1210
    %3277 = vmatprep.subr.mxu0 0.0
    %3278 = vmatpush1.msra.mxu0 %v1211
    %3279 = vmatprep.subr.mxu0 0.0
    %3280 = vmatpush1.msra.mxu0 0.0
    %3281 = vmatprep.subr.mxu0 0.0
    %3282 = vmatpush1.msra.mxu0 0.0
    %3283 = vmatprep.subr.mxu0 0.0
    %3284 = vmatpush1.msra.mxu0 0.0
    %3285 = vmatprep.subr.mxu0 0.0
    %3286 = vmatpush1.msra.mxu0 0.0
    %3287 = vmatprep.subr.mxu0 0.0
    %3288 = vmatpush1.msra.mxu0 0.0
    %3289 = vmatprep.subr.mxu0 0.0
    %3290 = vmatpush1.msra.mxu0 0.0
    %3291 = vmatprep.subr.mxu0 0.0
    %3292 = vmatpush1.msra.mxu0 0.0
    %3293 = vmatprep.subr.mxu0 0.0
    %3294 = vmatpush1.msra.mxu0 0.0
    %3295 = vmatprep.subr.mxu0 0.0
    %3296 = vmatpush1.msra.mxu0 0.0
    %3297 = vmatprep.subr.mxu0 0.0
    %3298 = vmatpush1.msra.mxu0 0.0
    %3299 = vmatprep.subr.mxu0 0.0
    %3300 = vmatpush1.msra.mxu0 0.0
    %3301 = vmatprep.subr.mxu0 0.0
    %3302 = vmatpush1.msra.mxu0 0.0
    %3303 = vmatprep.subr.mxu0 0.0
    %3304 = vmatpush1.msra.mxu0 0.0
    %3305 = vmatprep.subr.mxu0 0.0
    %3306 = vmatpush1.msra.mxu0 0.0
    %3307 = vmatprep.subr.mxu0 0.0
    %3308 = vmatpush1.msra.mxu0 0.0
    %3309 = vmatprep.subr.mxu0 0.0
    %3310 = vmatpush1.msra.mxu0 0.0
    %3311 = vmatprep.subr.mxu0 0.0
    %3312 = vmatpush1.msra.mxu0 0.0
    %3313 = vmatprep.subr.mxu0 0.0
    %3314 = vmatpush1.msra.mxu0 0.0
    %3315 = vmatprep.subr.mxu0 0.0
    %3316 = vmatpush1.msra.mxu0 0.0
    %3317 = vmatprep.subr.mxu0 0.0
    %3318 = vmatpush1.msra.mxu0 0.0
    %3319 = vmatprep.subr.mxu0 0.0
    %3320 = vmatpush1.msra.mxu0 0.0
    %3321 = vmatprep.subr.mxu0 0.0
    %3322 = vmatpush1.msra.mxu0 0.0
    %3323 = vmatprep.subr.mxu0 0.0
    %3324 = vmatpush1.msra.mxu0 0.0
    %3325 = vmatprep.subr.mxu0 0.0
    %3326 = vmatpush1.msra.mxu0 0.0
    %3327 = vmatprep.mubr.f32.mxu0 0.0
    %3328 = vmatmul.mubr.f32.gmra.mrb[0].mxu0 %v1245
    %v3329 = vpop.f32.mrb[0].mxu0
    %v3330 = vadd.f32 0.0, %v3329
    %v3331 = vpop.f32.mrb[0].mxu0
    %3332 = vmatprep.mubr.f32.mxu0 0.0
    %3333 = vmatmul.mubr.f32.gmra.mrb[0].mxu0 %v1248
    %v3334 = vpop.f32.mrb[0].mxu0
    %v3335 = vadd.f32 0.0, %v3334
    %v3336 = vpop.f32.mrb[0].mxu0
    %3337 = vmatprep.mubr.f32.mxu0 0.0
    %3338 = vmatmul.mubr.f32.gmra.mrb[0].mxu0 %v1251
    %v3339 = vpop.f32.mrb[0].mxu0
    %v3340 = vadd.f32 0.0, %v3339
    %v3341 = vpop.f32.mrb[0].mxu0
    %3342 = vmatprep.mubr.f32.mxu0 0.0
    %3343 = vmatmul.mubr.f32.gmra.mrb[0].mxu0 %v1254
    %v3344 = vpop.f32.mrb[0].mxu0
    %v3345 = vadd.f32 0.0, %v3344
    %v3346 = vpop.f32.mrb[0].mxu0
    %3347 = vmatprep.mubr.f32.mxu0 0.0
    %3348 = vmatmul.mubr.f32.gmra.mrb[0].mxu0 %v1257
    %v3349 = vpop.f32.mrb[0].mxu0
    %v3350 = vadd.f32 0.0, %v3349
    %v3351 = vpop.f32.mrb[0].mxu0
    %3352 = vmatprep.mubr.f32.mxu0 0.0
    %3353 = vmatmul.mubr.f32.gmra.mrb[0].mxu0 %v1260
    %v3354 = vpop.f32.mrb[0].mxu0
    %v3355 = vadd.f32 0.0, %v3354
    %v3356 = vpop.f32.mrb[0].mxu0
    %3357 = vmatprep.mubr.f32.mxu0 0.0
    %3358 = vmatmul.mubr.f32.gmra.mrb[0].mxu0 %v1263
    %v3359 = vpop.f32.mrb[0].mxu0
    %v3360 = vadd.f32 0.0, %v3359
    %v3361 = vpop.f32.mrb[0].mxu0
    %3362 = vmatprep.mubr.f32.mxu0 0.0
    %3363 = vmatmul.mubr.f32.gmra.mrb[0].mxu0 %v1266
    %v3364 = vpop.f32.mrb[0].mxu0
    %v3365 = vadd.f32 0.0, %v3364
    %v3366 = vpop.f32.mrb[0].mxu0
    %3367 = vdwg.mxu0
    %3368 = vmatprep.subr.mxu0 0.0
    %3369 = vmatpush1.msra.mxu0 %v1212
    %3370 = vmatprep.subr.mxu0 0.0
    %3371 = vmatpush1.msra.mxu0 %v1213
    %3372 = vmatprep.subr.mxu0 0.0
    %3373 = vmatpush1.msra.mxu0 %v1214
    %3374 = vmatprep.subr.mxu0 0.0
    %3375 = vmatpush1.msra.mxu0 %v1215
    %3376 = vmatprep.subr.mxu0 0.0
    %3377 = vmatpush1.msra.mxu0 %v1216
    %3378 = vmatprep.subr.mxu0 0.0
    %3379 = vmatpush1.msra.mxu0 %v1217
    %3380 = vmatprep.subr.mxu0 0.0
    %3381 = vmatpush1.msra.mxu0 %v1218
    %3382 = vmatprep.subr.mxu0 0.0
    %3383 = vmatpush1.msra.mxu0 %v1219
    %3384 = vmatprep.subr.mxu0 0.0
    %3385 = vmatpush1.msra.mxu0 0.0
    %3386 = vmatprep.subr.mxu0 0.0
    %3387 = vmatpush1.msra.mxu0 0.0
    %3388 = vmatprep.subr.mxu0 0.0
    %3389 = vmatpush1.msra.mxu0 0.0
    %3390 = vmatprep.subr.mxu0 0.0
    %3391 = vmatpush1.msra.mxu0 0.0
    %3392 = vmatprep.subr.mxu0 0.0
    %3393 = vmatpush1.msra.mxu0 0.0
    %3394 = vmatprep.subr.mxu0 0.0
    %3395 = vmatpush1.msra.mxu0 0.0
    %3396 = vmatprep.subr.mxu0 0.0
    %3397 = vmatpush1.msra.mxu0 0.0
    %3398 = vmatprep.subr.mxu0 0.0
    %3399 = vmatpush1.msra.mxu0 0.0
    %3400 = vmatprep.subr.mxu0 0.0
    %3401 = vmatpush1.msra.mxu0 0.0
    %3402 = vmatprep.subr.mxu0 0.0
    %3403 = vmatpush1.msra.mxu0 0.0
    %3404 = vmatprep.subr.mxu0 0.0
    %3405 = vmatpush1.msra.mxu0 0.0
    %3406 = vmatprep.subr.mxu0 0.0
    %3407 = vmatpush1.msra.mxu0 0.0
    %3408 = vmatprep.subr.mxu0 0.0
    %3409 = vmatpush1.msra.mxu0 0.0
    %3410 = vmatprep.subr.mxu0 0.0
    %3411 = vmatpush1.msra.mxu0 0.0
    %3412 = vmatprep.subr.mxu0 0.0
    %3413 = vmatpush1.msra.mxu0 0.0
    %3414 = vmatprep.subr.mxu0 0.0
    %3415 = vmatpush1.msra.mxu0 0.0
    %3416 = vmatprep.subr.mxu0 0.0
    %3417 = vmatpush1.msra.mxu0 0.0
    %3418 = vmatprep.subr.mxu0 0.0
    %3419 = vmatpush1.msra.mxu0 0.0
    %3420 = vmatprep.subr.mxu0 0.0
    %3421 = vmatpush1.msra.mxu0 0.0
    %3422 = vmatprep.subr.mxu0 0.0
    %3423 = vmatpush1.msra.mxu0 0.0
    %3424 = vmatprep.subr.mxu0 0.0
    %3425 = vmatpush1.msra.mxu0 0.0
    %3426 = vmatprep.subr.mxu0 0.0
    %3427 = vmatpush1.msra.mxu0 0.0
    %3428 = vmatprep.subr.mxu0 0.0
    %3429 = vmatpush1.msra.mxu0 0.0
    %3430 = vmatprep.subr.mxu0 0.0
    %3431 = vmatpush1.msra.mxu0 0.0
    %3432 = vmatprep.mubr.f32.mxu0 0.0
    %3433 = vmatmul.mubr.f32.gmra.mrb[0].mxu0 %v1245
    %v3434 = vpop.f32.mrb[0].mxu0
    %v3435 = vadd.f32 0.0, %v3434
    %v3436 = vpop.f32.mrb[0].mxu0
    %3437 = vmatprep.mubr.f32.mxu0 0.0
    %3438 = vmatmul.mubr.f32.gmra.mrb[0].mxu0 %v1248
    %v3439 = vpop.f32.mrb[0].mxu0
    %v3440 = vadd.f32 0.0, %v3439
    %v3441 = vpop.f32.mrb[0].mxu0
    %3442 = vmatprep.mubr.f32.mxu0 0.0
    %3443 = vmatmul.mubr.f32.gmra.mrb[0].mxu0 %v1251
    %v3444 = vpop.f32.mrb[0].mxu0
    %v3445 = vadd.f32 0.0, %v3444
    %v3446 = vpop.f32.mrb[0].mxu0
    %3447 = vmatprep.mubr.f32.mxu0 0.0
    %3448 = vmatmul.mubr.f32.gmra.mrb[0].mxu0 %v1254
    %v3449 = vpop.f32.mrb[0].mxu0
    %v3450 = vadd.f32 0.0, %v3449
    %v3451 = vpop.f32.mrb[0].mxu0
    %3452 = vmatprep.mubr.f32.mxu0 0.0
    %3453 = vmatmul.mubr.f32.gmra.mrb[0].mxu0 %v1257
    %v3454 = vpop.f32.mrb[0].mxu0
    %v3455 = vadd.f32 0.0, %v3454
    %v3456 = vpop.f32.mrb[0].mxu0
    %3457 = vmatprep.mubr.f32.mxu0 0.0
    %3458 = vmatmul.mubr.f32.gmra.mrb[0].mxu0 %v1260
    %v3459 = vpop.f32.mrb[0].mxu0
    %v3460 = vadd.f32 0.0, %v3459
    %v3461 = vpop.f32.mrb[0].mxu0
    %3462 = vmatprep.mubr.f32.mxu0 0.0
    %3463 = vmatmul.mubr.f32.gmra.mrb[0].mxu0 %v1263
    %v3464 = vpop.f32.mrb[0].mxu0
    %v3465 = vadd.f32 0.0, %v3464
    %v3466 = vpop.f32.mrb[0].mxu0
    %3467 = vmatprep.mubr.f32.mxu0 0.0
    %3468 = vmatmul.mubr.f32.gmra.mrb[0].mxu0 %v1266
    %v3469 = vpop.f32.mrb[0].mxu0
    %v3470 = vadd.f32 0.0, %v3469
    %v3471 = vpop.f32.mrb[0].mxu0
    %3472 = vdwg.mxu0
    %3473 = vmatprep.subr.mxu0 0.0
    %3474 = vmatpush1.msra.mxu0 %v1220
    %3475 = vmatprep.subr.mxu0 0.0
    %3476 = vmatpush1.msra.mxu0 %v1221
    %3477 = vmatprep.subr.mxu0 0.0
    %3478 = vmatpush1.msra.mxu0 %v1222
    %3479 = vmatprep.subr.mxu0 0.0
    %3480 = vmatpush1.msra.mxu0 %v1223
    %3481 = vmatprep.subr.mxu0 0.0
    %3482 = vmatpush1.msra.mxu0 %v1224
    %3483 = vmatprep.subr.mxu0 0.0
    %3484 = vmatpush1.msra.mxu0 %v1225
    %3485 = vmatprep.subr.mxu0 0.0
    %3486 = vmatpush1.msra.mxu0 %v1226
    %3487 = vmatprep.subr.mxu0 0.0
    %3488 = vmatpush1.msra.mxu0 %v1227
    %3489 = vmatprep.subr.mxu0 0.0
    %3490 = vmatpush1.msra.mxu0 0.0
    %3491 = vmatprep.subr.mxu0 0.0
    %3492 = vmatpush1.msra.mxu0 0.0
    %3493 = vmatprep.subr.mxu0 0.0
    %3494 = vmatpush1.msra.mxu0 0.0
    %3495 = vmatprep.subr.mxu0 0.0
    %3496 = vmatpush1.msra.mxu0 0.0
    %3497 = vmatprep.subr.mxu0 0.0
    %3498 = vmatpush1.msra.mxu0 0.0
    %3499 = vmatprep.subr.mxu0 0.0
    %3500 = vmatpush1.msra.mxu0 0.0
    %3501 = vmatprep.subr.mxu0 0.0
    %3502 = vmatpush1.msra.mxu0 0.0
    %3503 = vmatprep.subr.mxu0 0.0
    %3504 = vmatpush1.msra.mxu0 0.0
    %3505 = vmatprep.subr.mxu0 0.0
    %3506 = vmatpush1.msra.mxu0 0.0
    %3507 = vmatprep.subr.mxu0 0.0
    %3508 = vmatpush1.msra.mxu0 0.0
    %3509 = vmatprep.subr.mxu0 0.0
    %3510 = vmatpush1.msra.mxu0 0.0
    %3511 = vmatprep.subr.mxu0 0.0
    %3512 = vmatpush1.msra.mxu0 0.0
    %3513 = vmatprep.subr.mxu0 0.0
    %3514 = vmatpush1.msra.mxu0 0.0
    %3515 = vmatprep.subr.mxu0 0.0
    %3516 = vmatpush1.msra.mxu0 0.0
    %3517 = vmatprep.subr.mxu0 0.0
    %3518 = vmatpush1.msra.mxu0 0.0
    %3519 = vmatprep.subr.mxu0 0.0
    %3520 = vmatpush1.msra.mxu0 0.0
    %3521 = vmatprep.subr.mxu0 0.0
    %3522 = vmatpush1.msra.mxu0 0.0
    %3523 = vmatprep.subr.mxu0 0.0
    %3524 = vmatpush1.msra.mxu0 0.0
    %3525 = vmatprep.subr.mxu0 0.0
    %3526 = vmatpush1.msra.mxu0 0.0
    %3527 = vmatprep.subr.mxu0 0.0
    %3528 = vmatpush1.msra.mxu0 0.0
    %3529 = vmatprep.subr.mxu0 0.0
    %3530 = vmatpush1.msra.mxu0 0.0
    %3531 = vmatprep.subr.mxu0 0.0
    %3532 = vmatpush1.msra.mxu0 0.0
    %3533 = vmatprep.subr.mxu0 0.0
    %3534 = vmatpush1.msra.mxu0 0.0
    %3535 = vmatprep.subr.mxu0 0.0
    %3536 = vmatpush1.msra.mxu0 0.0
    %3537 = vmatprep.mubr.f32.mxu0 0.0
    %3538 = vmatmul.mubr.f32.gmra.mrb[0].mxu0 %v1245
    %v3539 = vpop.f32.mrb[0].mxu0
    %v3540 = vadd.f32 0.0, %v3539
    %v3541 = vpop.f32.mrb[0].mxu0
    %3542 = vmatprep.mubr.f32.mxu0 0.0
    %3543 = vmatmul.mubr.f32.gmra.mrb[0].mxu0 %v1248
    %v3544 = vpop.f32.mrb[0].mxu0
    %v3545 = vadd.f32 0.0, %v3544
    %v3546 = vpop.f32.mrb[0].mxu0
    %3547 = vmatprep.mubr.f32.mxu0 0.0
    %3548 = vmatmul.mubr.f32.gmra.mrb[0].mxu0 %v1251
    %v3549 = vpop.f32.mrb[0].mxu0
    %v3550 = vadd.f32 0.0, %v3549
    %v3551 = vpop.f32.mrb[0].mxu0
    %3552 = vmatprep.mubr.f32.mxu0 0.0
    %3553 = vmatmul.mubr.f32.gmra.mrb[0].mxu0 %v1254
    %v3554 = vpop.f32.mrb[0].mxu0
    %v3555 = vadd.f32 0.0, %v3554
    %v3556 = vpop.f32.mrb[0].mxu0
    %3557 = vmatprep.mubr.f32.mxu0 0.0
    %3558 = vmatmul.mubr.f32.gmra.mrb[0].mxu0 %v1257
    %v3559 = vpop.f32.mrb[0].mxu0
    %v3560 = vadd.f32 0.0, %v3559
    %v3561 = vpop.f32.mrb[0].mxu0
    %3562 = vmatprep.mubr.f32.mxu0 0.0
    %3563 = vmatmul.mubr.f32.gmra.mrb[0].mxu0 %v1260
    %v3564 = vpop.f32.mrb[0].mxu0
    %v3565 = vadd.f32 0.0, %v3564
    %v3566 = vpop.f32.mrb[0].mxu0
    %3567 = vmatprep.mubr.f32.mxu0 0.0
    %3568 = vmatmul.mubr.f32.gmra.mrb[0].mxu0 %v1263
    %v3569 = vpop.f32.mrb[0].mxu0
    %v3570 = vadd.f32 0.0, %v3569
    %v3571 = vpop.f32.mrb[0].mxu0
    %3572 = vmatprep.mubr.f32.mxu0 0.0
    %3573 = vmatmul.mubr.f32.gmra.mrb[0].mxu0 %v1266
    %v3574 = vpop.f32.mrb[0].mxu0
    %v3575 = vadd.f32 0.0, %v3574
    %v3576 = vpop.f32.mrb[0].mxu0
    %3577 = vdwg.mxu0
    %3578 = vmatprep.subr.mxu0 0.0
    %3579 = vmatpush1.msra.mxu0 %v1228
    %3580 = vmatprep.subr.mxu0 0.0
    %3581 = vmatpush1.msra.mxu0 %v1229
    %3582 = vmatprep.subr.mxu0 0.0
    %3583 = vmatpush1.msra.mxu0 %v1230
    %3584 = vmatprep.subr.mxu0 0.0
    %3585 = vmatpush1.msra.mxu0 %v1231
    %3586 = vmatprep.subr.mxu0 0.0
    %3587 = vmatpush1.msra.mxu0 %v1232
    %3588 = vmatprep.subr.mxu0 0.0
    %3589 = vmatpush1.msra.mxu0 %v1233
    %3590 = vmatprep.subr.mxu0 0.0
    %3591 = vmatpush1.msra.mxu0 %v1234
    %3592 = vmatprep.subr.mxu0 0.0
    %3593 = vmatpush1.msra.mxu0 %v1235
    %3594 = vmatprep.subr.mxu0 0.0
    %3595 = vmatpush1.msra.mxu0 0.0
    %3596 = vmatprep.subr.mxu0 0.0
    %3597 = vmatpush1.msra.mxu0 0.0
    %3598 = vmatprep.subr.mxu0 0.0
    %3599 = vmatpush1.msra.mxu0 0.0
    %3600 = vmatprep.subr.mxu0 0.0
    %3601 = vmatpush1.msra.mxu0 0.0
    %3602 = vmatprep.subr.mxu0 0.0
    %3603 = vmatpush1.msra.mxu0 0.0
    %3604 = vmatprep.subr.mxu0 0.0
    %3605 = vmatpush1.msra.mxu0 0.0
    %3606 = vmatprep.subr.mxu0 0.0
    %3607 = vmatpush1.msra.mxu0 0.0
    %3608 = vmatprep.subr.mxu0 0.0
    %3609 = vmatpush1.msra.mxu0 0.0
    %3610 = vmatprep.subr.mxu0 0.0
    %3611 = vmatpush1.msra.mxu0 0.0
    %3612 = vmatprep.subr.mxu0 0.0
    %3613 = vmatpush1.msra.mxu0 0.0
    %3614 = vmatprep.subr.mxu0 0.0
    %3615 = vmatpush1.msra.mxu0 0.0
    %3616 = vmatprep.subr.mxu0 0.0
    %3617 = vmatpush1.msra.mxu0 0.0
    %3618 = vmatprep.subr.mxu0 0.0
    %3619 = vmatpush1.msra.mxu0 0.0
    %3620 = vmatprep.subr.mxu0 0.0
    %3621 = vmatpush1.msra.mxu0 0.0
    %3622 = vmatprep.subr.mxu0 0.0
    %3623 = vmatpush1.msra.mxu0 0.0
    %3624 = vmatprep.subr.mxu0 0.0
    %3625 = vmatpush1.msra.mxu0 0.0
    %3626 = vmatprep.subr.mxu0 0.0
    %3627 = vmatpush1.msra.mxu0 0.0
    %3628 = vmatprep.subr.mxu0 0.0
    %3629 = vmatpush1.msra.mxu0 0.0
    %3630 = vmatprep.subr.mxu0 0.0
    %3631 = vmatpush1.msra.mxu0 0.0
    %3632 = vmatprep.subr.mxu0 0.0
    %3633 = vmatpush1.msra.mxu0 0.0
    %3634 = vmatprep.subr.mxu0 0.0
    %3635 = vmatpush1.msra.mxu0 0.0
    %3636 = vmatprep.subr.mxu0 0.0
    %3637 = vmatpush1.msra.mxu0 0.0
    %3638 = vmatprep.subr.mxu0 0.0
    %3639 = vmatpush1.msra.mxu0 0.0
    %3640 = vmatprep.subr.mxu0 0.0
    %3641 = vmatpush1.msra.mxu0 0.0
    %3642 = vmatprep.mubr.f32.mxu0 0.0
    %3643 = vmatmul.mubr.f32.gmra.mrb[0].mxu0 %v1245
    %v3644 = vpop.f32.mrb[0].mxu0
    %v3645 = vadd.f32 0.0, %v3644
    %v3646 = vpop.f32.mrb[0].mxu0
    %3647 = vmatprep.mubr.f32.mxu0 0.0
    %3648 = vmatmul.mubr.f32.gmra.mrb[0].mxu0 %v1248
    %v3649 = vpop.f32.mrb[0].mxu0
    %v3650 = vadd.f32 0.0, %v3649
    %v3651 = vpop.f32.mrb[0].mxu0
    %3652 = vmatprep.mubr.f32.mxu0 0.0
    %3653 = vmatmul.mubr.f32.gmra.mrb[0].mxu0 %v1251
    %v3654 = vpop.f32.mrb[0].mxu0
    %v3655 = vadd.f32 0.0, %v3654
    %v3656 = vpop.f32.mrb[0].mxu0
    %3657 = vmatprep.mubr.f32.mxu0 0.0
    %3658 = vmatmul.mubr.f32.gmra.mrb[0].mxu0 %v1254
    %v3659 = vpop.f32.mrb[0].mxu0
    %v3660 = vadd.f32 0.0, %v3659
    %v3661 = vpop.f32.mrb[0].mxu0
    %3662 = vmatprep.mubr.f32.mxu0 0.0
    %3663 = vmatmul.mubr.f32.gmra.mrb[0].mxu0 %v1257
    %v3664 = vpop.f32.mrb[0].mxu0
    %v3665 = vadd.f32 0.0, %v3664
    %v3666 = vpop.f32.mrb[0].mxu0
    %3667 = vmatprep.mubr.f32.mxu0 0.0
    %3668 = vmatmul.mubr.f32.gmra.mrb[0].mxu0 %v1260
    %v3669 = vpop.f32.mrb[0].mxu0
    %v3670 = vadd.f32 0.0, %v3669
    %v3671 = vpop.f32.mrb[0].mxu0
    %3672 = vmatprep.mubr.f32.mxu0 0.0
    %3673 = vmatmul.mubr.f32.gmra.mrb[0].mxu0 %v1263
    %v3674 = vpop.f32.mrb[0].mxu0
    %v3675 = vadd.f32 0.0, %v3674
    %v3676 = vpop.f32.mrb[0].mxu0
    %3677 = vmatprep.mubr.f32.mxu0 0.0
    %3678 = vmatmul.mubr.f32.gmra.mrb[0].mxu0 %v1266
    %v3679 = vpop.f32.mrb[0].mxu0
    %v3680 = vadd.f32 0.0, %v3679
    %v3681 = vpop.f32.mrb[0].mxu0
    %3682 = vdwg.mxu0
    %3683 = vmatprep.subr.mxu0 0.0
    %3684 = vmatpush1.msra.mxu0 %v1236
    %3685 = vmatprep.subr.mxu0 0.0
    %3686 = vmatpush1.msra.mxu0 %v1237
    %3687 = vmatprep.subr.mxu0 0.0
    %3688 = vmatpush1.msra.mxu0 %v1238
    %3689 = vmatprep.subr.mxu0 0.0
    %3690 = vmatpush1.msra.mxu0 %v1239
    %3691 = vmatprep.subr.mxu0 0.0
    %3692 = vmatpush1.msra.mxu0 %v1240
    %3693 = vmatprep.subr.mxu0 0.0
    %3694 = vmatpush1.msra.mxu0 %v1241
    %3695 = vmatprep.subr.mxu0 0.0
    %3696 = vmatpush1.msra.mxu0 %v1242
    %3697 = vmatprep.subr.mxu0 0.0
    %3698 = vmatpush1.msra.mxu0 %v1243
    %3699 = vmatprep.subr.mxu0 0.0
    %3700 = vmatpush1.msra.mxu0 0.0
    %3701 = vmatprep.subr.mxu0 0.0
    %3702 = vmatpush1.msra.mxu0 0.0
    %3703 = vmatprep.subr.mxu0 0.0
    %3704 = vmatpush1.msra.mxu0 0.0
    %3705 = vmatprep.subr.mxu0 0.0
    %3706 = vmatpush1.msra.mxu0 0.0
    %3707 = vmatprep.subr.mxu0 0.0
    %3708 = vmatpush1.msra.mxu0 0.0
    %3709 = vmatprep.subr.mxu0 0.0
    %3710 = vmatpush1.msra.mxu0 0.0
    %3711 = vmatprep.subr.mxu0 0.0
    %3712 = vmatpush1.msra.mxu0 0.0
    %3713 = vmatprep.subr.mxu0 0.0
    %3714 = vmatpush1.msra.mxu0 0.0
    %3715 = vmatprep.subr.mxu0 0.0
    %3716 = vmatpush1.msra.mxu0 0.0
    %3717 = vmatprep.subr.mxu0 0.0
    %3718 = vmatpush1.msra.mxu0 0.0
    %3719 = vmatprep.subr.mxu0 0.0
    %3720 = vmatpush1.msra.mxu0 0.0
    %3721 = vmatprep.subr.mxu0 0.0
    %3722 = vmatpush1.msra.mxu0 0.0
    %3723 = vmatprep.subr.mxu0 0.0
    %3724 = vmatpush1.msra.mxu0 0.0
    %3725 = vmatprep.subr.mxu0 0.0
    %3726 = vmatpush1.msra.mxu0 0.0
    %3727 = vmatprep.subr.mxu0 0.0
    %3728 = vmatpush1.msra.mxu0 0.0
    %3729 = vmatprep.subr.mxu0 0.0
    %3730 = vmatpush1.msra.mxu0 0.0
    %3731 = vmatprep.subr.mxu0 0.0
    %3732 = vmatpush1.msra.mxu0 0.0
    %3733 = vmatprep.subr.mxu0 0.0
    %3734 = vmatpush1.msra.mxu0 0.0
    %3735 = vmatprep.subr.mxu0 0.0
    %3736 = vmatpush1.msra.mxu0 0.0
    %3737 = vmatprep.subr.mxu0 0.0
    %3738 = vmatpush1.msra.mxu0 0.0
    %3739 = vmatprep.subr.mxu0 0.0
    %3740 = vmatpush1.msra.mxu0 0.0
    %3741 = vmatprep.subr.mxu0 0.0
    %3742 = vmatpush1.msra.mxu0 0.0
    %3743 = vmatprep.subr.mxu0 0.0
    %3744 = vmatpush1.msra.mxu0 0.0
    %3745 = vmatprep.subr.mxu0 0.0
    %3746 = vmatpush1.msra.mxu0 0.0
    %3747 = vmatprep.mubr.f32.mxu0 0.0
    %3748 = vmatmul.mubr.f32.gmra.mrb[0].mxu0 %v1245
    %v3749 = vpop.f32.mrb[0].mxu0
    %v3750 = vadd.f32 0.0, %v3749
    %v3751 = vpop.f32.mrb[0].mxu0
    %3752 = vmatprep.mubr.f32.mxu0 0.0
    %3753 = vmatmul.mubr.f32.gmra.mrb[0].mxu0 %v1248
    %v3754 = vpop.f32.mrb[0].mxu0
    %v3755 = vadd.f32 0.0, %v3754
    %v3756 = vpop.f32.mrb[0].mxu0
    %3757 = vmatprep.mubr.f32.mxu0 0.0
    %3758 = vmatmul.mubr.f32.gmra.mrb[0].mxu0 %v1251
    %v3759 = vpop.f32.mrb[0].mxu0
    %v3760 = vadd.f32 0.0, %v3759
    %v3761 = vpop.f32.mrb[0].mxu0
    %3762 = vmatprep.mubr.f32.mxu0 0.0
    %3763 = vmatmul.mubr.f32.gmra.mrb[0].mxu0 %v1254
    %v3764 = vpop.f32.mrb[0].mxu0
    %v3765 = vadd.f32 0.0, %v3764
    %v3766 = vpop.f32.mrb[0].mxu0
    %3767 = vmatprep.mubr.f32.mxu0 0.0
    %3768 = vmatmul.mubr.f32.gmra.mrb[0].mxu0 %v1257
    %v3769 = vpop.f32.mrb[0].mxu0
    %v3770 = vadd.f32 0.0, %v3769
    %v3771 = vpop.f32.mrb[0].mxu0
    %3772 = vmatprep.mubr.f32.mxu0 0.0
    %3773 = vmatmul.mubr.f32.gmra.mrb[0].mxu0 %v1260
    %v3774 = vpop.f32.mrb[0].mxu0
    %v3775 = vadd.f32 0.0, %v3774
    %v3776 = vpop.f32.mrb[0].mxu0
    %3777 = vmatprep.mubr.f32.mxu0 0.0
    %3778 = vmatmul.mubr.f32.gmra.mrb[0].mxu0 %v1263
    %v3779 = vpop.f32.mrb[0].mxu0
    %v3780 = vadd.f32 0.0, %v3779
    %v3781 = vpop.f32.mrb[0].mxu0
    %3782 = vmatprep.mubr.f32.mxu0 0.0
    %3783 = vmatmul.mubr.f32.gmra.mrb[0].mxu0 %v1266
    %v3784 = vpop.f32.mrb[0].mxu0
    %v3785 = vadd.f32 0.0, %v3784
    %v3786 = vpop.f32.mrb[0].mxu0
    %3787 = vdwg.mxu0
    %vm3788 = vcmask 64512
    %v3790 = vsel %vm3788, %v1335, 0
    %v3793 = vsel %vm3788, %v1340, 0
    %v3796 = vsel %vm3788, %v1345, 0
    %v3799 = vsel %vm3788, %v1350, 0
    %v3802 = vsel %vm3788, %v1355, 0
    %v3805 = vsel %vm3788, %v1360, 0
    %v3808 = vsel %vm3788, %v1365, 0
    %v3811 = vsel %vm3788, %v1370, 0
    %v3814 = vsel %vm3788, %v2175, 0
    %v3817 = vsel %vm3788, %v2180, 0
    %v3820 = vsel %vm3788, %v2185, 0
    %v3823 = vsel %vm3788, %v2190, 0
    %v3826 = vsel %vm3788, %v2195, 0
    %v3829 = vsel %vm3788, %v2200, 0
    %v3832 = vsel %vm3788, %v2205, 0
    %v3835 = vsel %vm3788, %v2210, 0
    %3837 = vmatprep.subr.mxu0 0.0
    %3838 = vmatpush1.xpose.msra.mxu0 %v3814
    %3839 = vmatprep.subr.mxu0 0.0
    %3840 = vmatpush1.xpose.msra.mxu0 %v3817
    %3841 = vmatprep.subr.mxu0 0.0
    %3842 = vmatpush1.xpose.msra.mxu0 %v3820
    %3843 = vmatprep.subr.mxu0 0.0
    %3844 = vmatpush1.xpose.msra.mxu0 %v3823
    %3845 = vmatprep.subr.mxu0 0.0
    %3846 = vmatpush1.xpose.msra.mxu0 %v3826
    %3847 = vmatprep.subr.mxu0 0.0
    %3848 = vmatpush1.xpose.msra.mxu0 %v3829
    %3849 = vmatprep.subr.mxu0 0.0
    %3850 = vmatpush1.xpose.msra.mxu0 %v3832
    %3851 = vmatprep.subr.mxu0 0.0
    %3852 = vmatpush1.xpose.msra.mxu0 %v3835
    %3853 = vmatprep.subr.mxu0 0.0
    %3854 = vmatpush1.xpose.msra.mxu0 0.0
    %3855 = vmatprep.subr.mxu0 0.0
    %3856 = vmatpush1.xpose.msra.mxu0 0.0
    %3857 = vmatprep.subr.mxu0 0.0
    %3858 = vmatpush1.xpose.msra.mxu0 0.0
    %3859 = vmatprep.subr.mxu0 0.0
    %3860 = vmatpush1.xpose.msra.mxu0 0.0
    %3861 = vmatprep.subr.mxu0 0.0
    %3862 = vmatpush1.xpose.msra.mxu0 0.0
    %3863 = vmatprep.subr.mxu0 0.0
    %3864 = vmatpush1.xpose.msra.mxu0 0.0
    %3865 = vmatprep.subr.mxu0 0.0
    %3866 = vmatpush1.xpose.msra.mxu0 0.0
    %3867 = vmatprep.subr.mxu0 0.0
    %3868 = vmatpush1.xpose.msra.mxu0 0.0
    %3869 = vmatprep.subr.mxu0 0.0
    %3870 = vmatpush1.xpose.msra.mxu0 0.0
    %3871 = vmatprep.subr.mxu0 0.0
    %3872 = vmatpush1.xpose.msra.mxu0 0.0
    %3873 = vmatprep.subr.mxu0 0.0
    %3874 = vmatpush1.xpose.msra.mxu0 0.0
    %3875 = vmatprep.subr.mxu0 0.0
    %3876 = vmatpush1.xpose.msra.mxu0 0.0
    %3877 = vmatprep.subr.mxu0 0.0
    %3878 = vmatpush1.xpose.msra.mxu0 0.0
    %3879 = vmatprep.subr.mxu0 0.0
    %3880 = vmatpush1.xpose.msra.mxu0 0.0
    %3881 = vmatprep.subr.mxu0 0.0
    %3882 = vmatpush1.xpose.msra.mxu0 0.0
    %3883 = vmatprep.subr.mxu0 0.0
    %3884 = vmatpush1.xpose.msra.mxu0 0.0
    %3885 = vmatprep.subr.mxu0 0.0
    %3886 = vmatpush1.xpose.msra.mxu0 0.0
    %3887 = vmatprep.subr.mxu0 0.0
    %3888 = vmatpush1.xpose.msra.mxu0 0.0
    %3889 = vmatprep.subr.mxu0 0.0
    %3890 = vmatpush1.xpose.msra.mxu0 0.0
    %3891 = vmatprep.subr.mxu0 0.0
    %3892 = vmatpush1.xpose.msra.mxu0 0.0
    %3893 = vmatprep.subr.mxu0 0.0
    %3894 = vmatpush1.xpose.msra.mxu0 0.0
    %3895 = vmatprep.subr.mxu0 0.0
    %3896 = vmatpush1.xpose.msra.mxu0 0.0
    %3897 = vmatprep.subr.mxu0 0.0
    %3898 = vmatpush1.xpose.msra.mxu0 0.0
    %3899 = vmatprep.subr.mxu0 0.0
    %3900 = vmatpush1.xpose.msra.mxu0 0.0
    %3901 = vmatprep.mubr.f32.mxu0 0.0
    %3902 = vmatmul.mubr.f32.gmra.mrb[0].mxu0 %v3790
    %v3903 = vpop.f32.mrb[0].mxu0
    %v3904 = vadd.f32 0.0, %v3903
    %v3905 = vpop.f32.mrb[0].mxu0
    %3906 = vmatprep.mubr.f32.mxu0 0.0
    %3907 = vmatmul.mubr.f32.gmra.mrb[0].mxu0 %v3793
    %v3908 = vpop.f32.mrb[0].mxu0
    %v3909 = vadd.f32 0.0, %v3908
    %v3910 = vpop.f32.mrb[0].mxu0
    %3911 = vmatprep.mubr.f32.mxu0 0.0
    %3912 = vmatmul.mubr.f32.gmra.mrb[0].mxu0 %v3796
    %v3913 = vpop.f32.mrb[0].mxu0
    %v3914 = vadd.f32 0.0, %v3913
    %v3915 = vpop.f32.mrb[0].mxu0
    %3916 = vmatprep.mubr.f32.mxu0 0.0
    %3917 = vmatmul.mubr.f32.gmra.mrb[0].mxu0 %v3799
    %v3918 = vpop.f32.mrb[0].mxu0
    %v3919 = vadd.f32 0.0, %v3918
    %v3920 = vpop.f32.mrb[0].mxu0
    %3921 = vmatprep.mubr.f32.mxu0 0.0
    %3922 = vmatmul.mubr.f32.gmra.mrb[0].mxu0 %v3802
    %v3923 = vpop.f32.mrb[0].mxu0
    %v3924 = vadd.f32 0.0, %v3923
    %v3925 = vpop.f32.mrb[0].mxu0
    %3926 = vmatprep.mubr.f32.mxu0 0.0
    %3927 = vmatmul.mubr.f32.gmra.mrb[0].mxu0 %v3805
    %v3928 = vpop.f32.mrb[0].mxu0
    %v3929 = vadd.f32 0.0, %v3928
    %v3930 = vpop.f32.mrb[0].mxu0
    %3931 = vmatprep.mubr.f32.mxu0 0.0
    %3932 = vmatmul.mubr.f32.gmra.mrb[0].mxu0 %v3808
    %v3933 = vpop.f32.mrb[0].mxu0
    %v3934 = vadd.f32 0.0, %v3933
    %v3935 = vpop.f32.mrb[0].mxu0
    %3936 = vmatprep.mubr.f32.mxu0 0.0
    %3937 = vmatmul.mubr.f32.gmra.mrb[0].mxu0 %v3811
    %v3938 = vpop.f32.mrb[0].mxu0
    %v3939 = vadd.f32 0.0, %v3938
    %v3940 = vpop.f32.mrb[0].mxu0
    %3941 = vdwg.mxu0
    %v3943 = vsel %vm3788, %v1440, 0
    %v3946 = vsel %vm3788, %v1445, 0
    %v3949 = vsel %vm3788, %v1450, 0
    %v3952 = vsel %vm3788, %v1455, 0
    %v3955 = vsel %vm3788, %v1460, 0
    %v3958 = vsel %vm3788, %v1465, 0
    %v3961 = vsel %vm3788, %v1470, 0
    %v3964 = vsel %vm3788, %v1475, 0
    %v3967 = vsel %vm3788, %v2280, 0
    %v3970 = vsel %vm3788, %v2285, 0
    %v3973 = vsel %vm3788, %v2290, 0
    %v3976 = vsel %vm3788, %v2295, 0
    %v3979 = vsel %vm3788, %v2300, 0
    %v3982 = vsel %vm3788, %v2305, 0
    %v3985 = vsel %vm3788, %v2310, 0
    %v3988 = vsel %vm3788, %v2315, 0
    %3990 = vmatprep.subr.mxu0 0.0
    %3991 = vmatpush1.xpose.msra.mxu0 %v3967
    %3992 = vmatprep.subr.mxu0 0.0
    %3993 = vmatpush1.xpose.msra.mxu0 %v3970
    %3994 = vmatprep.subr.mxu0 0.0
    %3995 = vmatpush1.xpose.msra.mxu0 %v3973
    %3996 = vmatprep.subr.mxu0 0.0
    %3997 = vmatpush1.xpose.msra.mxu0 %v3976
    %3998 = vmatprep.subr.mxu0 0.0
    %3999 = vmatpush1.xpose.msra.mxu0 %v3979
    %4000 = vmatprep.subr.mxu0 0.0
    %4001 = vmatpush1.xpose.msra.mxu0 %v3982
    %4002 = vmatprep.subr.mxu0 0.0
    %4003 = vmatpush1.xpose.msra.mxu0 %v3985
    %4004 = vmatprep.subr.mxu0 0.0
    %4005 = vmatpush1.xpose.msra.mxu0 %v3988
    %4006 = vmatprep.subr.mxu0 0.0
    %4007 = vmatpush1.xpose.msra.mxu0 0.0
    %4008 = vmatprep.subr.mxu0 0.0
    %4009 = vmatpush1.xpose.msra.mxu0 0.0
    %4010 = vmatprep.subr.mxu0 0.0
    %4011 = vmatpush1.xpose.msra.mxu0 0.0
    %4012 = vmatprep.subr.mxu0 0.0
    %4013 = vmatpush1.xpose.msra.mxu0 0.0
    %4014 = vmatprep.subr.mxu0 0.0
    %4015 = vmatpush1.xpose.msra.mxu0 0.0
    %4016 = vmatprep.subr.mxu0 0.0
    %4017 = vmatpush1.xpose.msra.mxu0 0.0
    %4018 = vmatprep.subr.mxu0 0.0
    %4019 = vmatpush1.xpose.msra.mxu0 0.0
    %4020 = vmatprep.subr.mxu0 0.0
    %4021 = vmatpush1.xpose.msra.mxu0 0.0
    %4022 = vmatprep.subr.mxu0 0.0
    %4023 = vmatpush1.xpose.msra.mxu0 0.0
    %4024 = vmatprep.subr.mxu0 0.0
    %4025 = vmatpush1.xpose.msra.mxu0 0.0
    %4026 = vmatprep.subr.mxu0 0.0
    %4027 = vmatpush1.xpose.msra.mxu0 0.0
    %4028 = vmatprep.subr.mxu0 0.0
    %4029 = vmatpush1.xpose.msra.mxu0 0.0
    %4030 = vmatprep.subr.mxu0 0.0
    %4031 = vmatpush1.xpose.msra.mxu0 0.0
    %4032 = vmatprep.subr.mxu0 0.0
    %4033 = vmatpush1.xpose.msra.mxu0 0.0
    %4034 = vmatprep.subr.mxu0 0.0
    %4035 = vmatpush1.xpose.msra.mxu0 0.0
    %4036 = vmatprep.subr.mxu0 0.0
    %4037 = vmatpush1.xpose.msra.mxu0 0.0
    %4038 = vmatprep.subr.mxu0 0.0
    %4039 = vmatpush1.xpose.msra.mxu0 0.0
    %4040 = vmatprep.subr.mxu0 0.0
    %4041 = vmatpush1.xpose.msra.mxu0 0.0
    %4042 = vmatprep.subr.mxu0 0.0
    %4043 = vmatpush1.xpose.msra.mxu0 0.0
    %4044 = vmatprep.subr.mxu0 0.0
    %4045 = vmatpush1.xpose.msra.mxu0 0.0
    %4046 = vmatprep.subr.mxu0 0.0
    %4047 = vmatpush1.xpose.msra.mxu0 0.0
    %4048 = vmatprep.subr.mxu0 0.0
    %4049 = vmatpush1.xpose.msra.mxu0 0.0
    %4050 = vmatprep.subr.mxu0 0.0
    %4051 = vmatpush1.xpose.msra.mxu0 0.0
    %4052 = vmatprep.subr.mxu0 0.0
    %4053 = vmatpush1.xpose.msra.mxu0 0.0
    %4054 = vmatprep.mubr.f32.mxu0 0.0
    %4055 = vmatmul.mubr.f32.gmra.mrb[0].mxu0 %v3943
    %v4056 = vpop.f32.mrb[0].mxu0
    %v4057 = vadd.f32 0.0, %v4056
    %v4058 = vpop.f32.mrb[0].mxu0
    %4059 = vmatprep.mubr.f32.mxu0 0.0
    %4060 = vmatmul.mubr.f32.gmra.mrb[0].mxu0 %v3946
    %v4061 = vpop.f32.mrb[0].mxu0
    %v4062 = vadd.f32 0.0, %v4061
    %v4063 = vpop.f32.mrb[0].mxu0
    %4064 = vmatprep.mubr.f32.mxu0 0.0
    %4065 = vmatmul.mubr.f32.gmra.mrb[0].mxu0 %v3949
    %v4066 = vpop.f32.mrb[0].mxu0
    %v4067 = vadd.f32 0.0, %v4066
    %v4068 = vpop.f32.mrb[0].mxu0
    %4069 = vmatprep.mubr.f32.mxu0 0.0
    %4070 = vmatmul.mubr.f32.gmra.mrb[0].mxu0 %v3952
    %v4071 = vpop.f32.mrb[0].mxu0
    %v4072 = vadd.f32 0.0, %v4071
    %v4073 = vpop.f32.mrb[0].mxu0
    %4074 = vmatprep.mubr.f32.mxu0 0.0
    %4075 = vmatmul.mubr.f32.gmra.mrb[0].mxu0 %v3955
    %v4076 = vpop.f32.mrb[0].mxu0
    %v4077 = vadd.f32 0.0, %v4076
    %v4078 = vpop.f32.mrb[0].mxu0
    %4079 = vmatprep.mubr.f32.mxu0 0.0
    %4080 = vmatmul.mubr.f32.gmra.mrb[0].mxu0 %v3958
    %v4081 = vpop.f32.mrb[0].mxu0
    %v4082 = vadd.f32 0.0, %v4081
    %v4083 = vpop.f32.mrb[0].mxu0
    %4084 = vmatprep.mubr.f32.mxu0 0.0
    %4085 = vmatmul.mubr.f32.gmra.mrb[0].mxu0 %v3961
    %v4086 = vpop.f32.mrb[0].mxu0
    %v4087 = vadd.f32 0.0, %v4086
    %v4088 = vpop.f32.mrb[0].mxu0
    %4089 = vmatprep.mubr.f32.mxu0 0.0
    %4090 = vmatmul.mubr.f32.gmra.mrb[0].mxu0 %v3964
    %v4091 = vpop.f32.mrb[0].mxu0
    %v4092 = vadd.f32 0.0, %v4091
    %v4093 = vpop.f32.mrb[0].mxu0
    %4094 = vdwg.mxu0
    %v4096 = vsel %vm3788, %v1545, 0
    %v4099 = vsel %vm3788, %v1550, 0
    %v4102 = vsel %vm3788, %v1555, 0
    %v4105 = vsel %vm3788, %v1560, 0
    %v4108 = vsel %vm3788, %v1565, 0
    %v4111 = vsel %vm3788, %v1570, 0
    %v4114 = vsel %vm3788, %v1575, 0
    %v4117 = vsel %vm3788, %v1580, 0
    %v4120 = vsel %vm3788, %v2385, 0
    %v4123 = vsel %vm3788, %v2390, 0
    %v4126 = vsel %vm3788, %v2395, 0
    %v4129 = vsel %vm3788, %v2400, 0
    %v4132 = vsel %vm3788, %v2405, 0
    %v4135 = vsel %vm3788, %v2410, 0
    %v4138 = vsel %vm3788, %v2415, 0
    %v4141 = vsel %vm3788, %v2420, 0
    %4143 = vmatprep.subr.mxu0 0.0
    %4144 = vmatpush1.xpose.msra.mxu0 %v4120
    %4145 = vmatprep.subr.mxu0 0.0
    %4146 = vmatpush1.xpose.msra.mxu0 %v4123
    %4147 = vmatprep.subr.mxu0 0.0
    %4148 = vmatpush1.xpose.msra.mxu0 %v4126
    %4149 = vmatprep.subr.mxu0 0.0
    %4150 = vmatpush1.xpose.msra.mxu0 %v4129
    %4151 = vmatprep.subr.mxu0 0.0
    %4152 = vmatpush1.xpose.msra.mxu0 %v4132
    %4153 = vmatprep.subr.mxu0 0.0
    %4154 = vmatpush1.xpose.msra.mxu0 %v4135
    %4155 = vmatprep.subr.mxu0 0.0
    %4156 = vmatpush1.xpose.msra.mxu0 %v4138
    %4157 = vmatprep.subr.mxu0 0.0
    %4158 = vmatpush1.xpose.msra.mxu0 %v4141
    %4159 = vmatprep.subr.mxu0 0.0
    %4160 = vmatpush1.xpose.msra.mxu0 0.0
    %4161 = vmatprep.subr.mxu0 0.0
    %4162 = vmatpush1.xpose.msra.mxu0 0.0
    %4163 = vmatprep.subr.mxu0 0.0
    %4164 = vmatpush1.xpose.msra.mxu0 0.0
    %4165 = vmatprep.subr.mxu0 0.0
    %4166 = vmatpush1.xpose.msra.mxu0 0.0
    %4167 = vmatprep.subr.mxu0 0.0
    %4168 = vmatpush1.xpose.msra.mxu0 0.0
    %4169 = vmatprep.subr.mxu0 0.0
    %4170 = vmatpush1.xpose.msra.mxu0 0.0
    %4171 = vmatprep.subr.mxu0 0.0
    %4172 = vmatpush1.xpose.msra.mxu0 0.0
    %4173 = vmatprep.subr.mxu0 0.0
    %4174 = vmatpush1.xpose.msra.mxu0 0.0
    %4175 = vmatprep.subr.mxu0 0.0
    %4176 = vmatpush1.xpose.msra.mxu0 0.0
    %4177 = vmatprep.subr.mxu0 0.0
    %4178 = vmatpush1.xpose.msra.mxu0 0.0
    %4179 = vmatprep.subr.mxu0 0.0
    %4180 = vmatpush1.xpose.msra.mxu0 0.0
    %4181 = vmatprep.subr.mxu0 0.0
    %4182 = vmatpush1.xpose.msra.mxu0 0.0
    %4183 = vmatprep.subr.mxu0 0.0
    %4184 = vmatpush1.xpose.msra.mxu0 0.0
    %4185 = vmatprep.subr.mxu0 0.0
    %4186 = vmatpush1.xpose.msra.mxu0 0.0
    %4187 = vmatprep.subr.mxu0 0.0
    %4188 = vmatpush1.xpose.msra.mxu0 0.0
    %4189 = vmatprep.subr.mxu0 0.0
    %4190 = vmatpush1.xpose.msra.mxu0 0.0
    %4191 = vmatprep.subr.mxu0 0.0
    %4192 = vmatpush1.xpose.msra.mxu0 0.0
    %4193 = vmatprep.subr.mxu0 0.0
    %4194 = vmatpush1.xpose.msra.mxu0 0.0
    %4195 = vmatprep.subr.mxu0 0.0
    %4196 = vmatpush1.xpose.msra.mxu0 0.0
    %4197 = vmatprep.subr.mxu0 0.0
    %4198 = vmatpush1.xpose.msra.mxu0 0.0
    %4199 = vmatprep.subr.mxu0 0.0
    %4200 = vmatpush1.xpose.msra.mxu0 0.0
    %4201 = vmatprep.subr.mxu0 0.0
    %4202 = vmatpush1.xpose.msra.mxu0 0.0
    %4203 = vmatprep.subr.mxu0 0.0
    %4204 = vmatpush1.xpose.msra.mxu0 0.0
    %4205 = vmatprep.subr.mxu0 0.0
    %4206 = vmatpush1.xpose.msra.mxu0 0.0
    %4207 = vmatprep.mubr.f32.mxu0 0.0
    %4208 = vmatmul.mubr.f32.gmra.mrb[0].mxu0 %v4096
    %v4209 = vpop.f32.mrb[0].mxu0
    %v4210 = vadd.f32 0.0, %v4209
    %v4211 = vpop.f32.mrb[0].mxu0
    %4212 = vmatprep.mubr.f32.mxu0 0.0
    %4213 = vmatmul.mubr.f32.gmra.mrb[0].mxu0 %v4099
    %v4214 = vpop.f32.mrb[0].mxu0
    %v4215 = vadd.f32 0.0, %v4214
    %v4216 = vpop.f32.mrb[0].mxu0
    %4217 = vmatprep.mubr.f32.mxu0 0.0
    %4218 = vmatmul.mubr.f32.gmra.mrb[0].mxu0 %v4102
    %v4219 = vpop.f32.mrb[0].mxu0
    %v4220 = vadd.f32 0.0, %v4219
    %v4221 = vpop.f32.mrb[0].mxu0
    %4222 = vmatprep.mubr.f32.mxu0 0.0
    %4223 = vmatmul.mubr.f32.gmra.mrb[0].mxu0 %v4105
    %v4224 = vpop.f32.mrb[0].mxu0
    %v4225 = vadd.f32 0.0, %v4224
    %v4226 = vpop.f32.mrb[0].mxu0
    %4227 = vmatprep.mubr.f32.mxu0 0.0
    %4228 = vmatmul.mubr.f32.gmra.mrb[0].mxu0 %v4108
    %v4229 = vpop.f32.mrb[0].mxu0
    %v4230 = vadd.f32 0.0, %v4229
    %v4231 = vpop.f32.mrb[0].mxu0
    %4232 = vmatprep.mubr.f32.mxu0 0.0
    %4233 = vmatmul.mubr.f32.gmra.mrb[0].mxu0 %v4111
    %v4234 = vpop.f32.mrb[0].mxu0
    %v4235 = vadd.f32 0.0, %v4234
    %v4236 = vpop.f32.mrb[0].mxu0
    %4237 = vmatprep.mubr.f32.mxu0 0.0
    %4238 = vmatmul.mubr.f32.gmra.mrb[0].mxu0 %v4114
    %v4239 = vpop.f32.mrb[0].mxu0
    %v4240 = vadd.f32 0.0, %v4239
    %v4241 = vpop.f32.mrb[0].mxu0
    %4242 = vmatprep.mubr.f32.mxu0 0.0
    %4243 = vmatmul.mubr.f32.gmra.mrb[0].mxu0 %v4117
    %v4244 = vpop.f32.mrb[0].mxu0
    %v4245 = vadd.f32 0.0, %v4244
    %v4246 = vpop.f32.mrb[0].mxu0
    %4247 = vdwg.mxu0
    %v4249 = vsel %vm3788, %v1650, 0
    %v4252 = vsel %vm3788, %v1655, 0
    %v4255 = vsel %vm3788, %v1660, 0
    %v4258 = vsel %vm3788, %v1665, 0
    %v4261 = vsel %vm3788, %v1670, 0
    %v4264 = vsel %vm3788, %v1675, 0
    %v4267 = vsel %vm3788, %v1680, 0
    %v4270 = vsel %vm3788, %v1685, 0
    %v4273 = vsel %vm3788, %v2490, 0
    %v4276 = vsel %vm3788, %v2495, 0
    %v4279 = vsel %vm3788, %v2500, 0
    %v4282 = vsel %vm3788, %v2505, 0
    %v4285 = vsel %vm3788, %v2510, 0
    %v4288 = vsel %vm3788, %v2515, 0
    %v4291 = vsel %vm3788, %v2520, 0
    %v4294 = vsel %vm3788, %v2525, 0
    %4296 = vmatprep.subr.mxu0 0.0
    %4297 = vmatpush1.xpose.msra.mxu0 %v4273
    %4298 = vmatprep.subr.mxu0 0.0
    %4299 = vmatpush1.xpose.msra.mxu0 %v4276
    %4300 = vmatprep.subr.mxu0 0.0
    %4301 = vmatpush1.xpose.msra.mxu0 %v4279
    %4302 = vmatprep.subr.mxu0 0.0
    %4303 = vmatpush1.xpose.msra.mxu0 %v4282
    %4304 = vmatprep.subr.mxu0 0.0
    %4305 = vmatpush1.xpose.msra.mxu0 %v4285
    %4306 = vmatprep.subr.mxu0 0.0
    %4307 = vmatpush1.xpose.msra.mxu0 %v4288
    %4308 = vmatprep.subr.mxu0 0.0
    %4309 = vmatpush1.xpose.msra.mxu0 %v4291
    %4310 = vmatprep.subr.mxu0 0.0
    %4311 = vmatpush1.xpose.msra.mxu0 %v4294
    %4312 = vmatprep.subr.mxu0 0.0
    %4313 = vmatpush1.xpose.msra.mxu0 0.0
    %4314 = vmatprep.subr.mxu0 0.0
    %4315 = vmatpush1.xpose.msra.mxu0 0.0
    %4316 = vmatprep.subr.mxu0 0.0
    %4317 = vmatpush1.xpose.msra.mxu0 0.0
    %4318 = vmatprep.subr.mxu0 0.0
    %4319 = vmatpush1.xpose.msra.mxu0 0.0
    %4320 = vmatprep.subr.mxu0 0.0
    %4321 = vmatpush1.xpose.msra.mxu0 0.0
    %4322 = vmatprep.subr.mxu0 0.0
    %4323 = vmatpush1.xpose.msra.mxu0 0.0
    %4324 = vmatprep.subr.mxu0 0.0
    %4325 = vmatpush1.xpose.msra.mxu0 0.0
    %4326 = vmatprep.subr.mxu0 0.0
    %4327 = vmatpush1.xpose.msra.mxu0 0.0
    %4328 = vmatprep.subr.mxu0 0.0
    %4329 = vmatpush1.xpose.msra.mxu0 0.0
    %4330 = vmatprep.subr.mxu0 0.0
    %4331 = vmatpush1.xpose.msra.mxu0 0.0
    %4332 = vmatprep.subr.mxu0 0.0
    %4333 = vmatpush1.xpose.msra.mxu0 0.0
    %4334 = vmatprep.subr.mxu0 0.0
    %4335 = vmatpush1.xpose.msra.mxu0 0.0
    %4336 = vmatprep.subr.mxu0 0.0
    %4337 = vmatpush1.xpose.msra.mxu0 0.0
    %4338 = vmatprep.subr.mxu0 0.0
    %4339 = vmatpush1.xpose.msra.mxu0 0.0
    %4340 = vmatprep.subr.mxu0 0.0
    %4341 = vmatpush1.xpose.msra.mxu0 0.0
    %4342 = vmatprep.subr.mxu0 0.0
    %4343 = vmatpush1.xpose.msra.mxu0 0.0
    %4344 = vmatprep.subr.mxu0 0.0
    %4345 = vmatpush1.xpose.msra.mxu0 0.0
    %4346 = vmatprep.subr.mxu0 0.0
    %4347 = vmatpush1.xpose.msra.mxu0 0.0
    %4348 = vmatprep.subr.mxu0 0.0
    %4349 = vmatpush1.xpose.msra.mxu0 0.0
    %4350 = vmatprep.subr.mxu0 0.0
    %4351 = vmatpush1.xpose.msra.mxu0 0.0
    %4352 = vmatprep.subr.mxu0 0.0
    %4353 = vmatpush1.xpose.msra.mxu0 0.0
    %4354 = vmatprep.subr.mxu0 0.0
    %4355 = vmatpush1.xpose.msra.mxu0 0.0
    %4356 = vmatprep.subr.mxu0 0.0
    %4357 = vmatpush1.xpose.msra.mxu0 0.0
    %4358 = vmatprep.subr.mxu0 0.0
    %4359 = vmatpush1.xpose.msra.mxu0 0.0
    %4360 = vmatprep.mubr.f32.mxu0 0.0
    %4361 = vmatmul.mubr.f32.gmra.mrb[0].mxu0 %v4249
    %v4362 = vpop.f32.mrb[0].mxu0
    %v4363 = vadd.f32 0.0, %v4362
    %v4364 = vpop.f32.mrb[0].mxu0
    %4365 = vmatprep.mubr.f32.mxu0 0.0
    %4366 = vmatmul.mubr.f32.gmra.mrb[0].mxu0 %v4252
    %v4367 = vpop.f32.mrb[0].mxu0
    %v4368 = vadd.f32 0.0, %v4367
    %v4369 = vpop.f32.mrb[0].mxu0
    %4370 = vmatprep.mubr.f32.mxu0 0.0
    %4371 = vmatmul.mubr.f32.gmra.mrb[0].mxu0 %v4255
    %v4372 = vpop.f32.mrb[0].mxu0
    %v4373 = vadd.f32 0.0, %v4372
    %v4374 = vpop.f32.mrb[0].mxu0
    %4375 = vmatprep.mubr.f32.mxu0 0.0
    %4376 = vmatmul.mubr.f32.gmra.mrb[0].mxu0 %v4258
    %v4377 = vpop.f32.mrb[0].mxu0
    %v4378 = vadd.f32 0.0, %v4377
    %v4379 = vpop.f32.mrb[0].mxu0
    %4380 = vmatprep.mubr.f32.mxu0 0.0
    %4381 = vmatmul.mubr.f32.gmra.mrb[0].mxu0 %v4261
    %v4382 = vpop.f32.mrb[0].mxu0
    %v4383 = vadd.f32 0.0, %v4382
    %v4384 = vpop.f32.mrb[0].mxu0
    %4385 = vmatprep.mubr.f32.mxu0 0.0
    %4386 = vmatmul.mubr.f32.gmra.mrb[0].mxu0 %v4264
    %v4387 = vpop.f32.mrb[0].mxu0
    %v4388 = vadd.f32 0.0, %v4387
    %v4389 = vpop.f32.mrb[0].mxu0
    %4390 = vmatprep.mubr.f32.mxu0 0.0
    %4391 = vmatmul.mubr.f32.gmra.mrb[0].mxu0 %v4267
    %v4392 = vpop.f32.mrb[0].mxu0
    %v4393 = vadd.f32 0.0, %v4392
    %v4394 = vpop.f32.mrb[0].mxu0
    %4395 = vmatprep.mubr.f32.mxu0 0.0
    %4396 = vmatmul.mubr.f32.gmra.mrb[0].mxu0 %v4270
    %v4397 = vpop.f32.mrb[0].mxu0
    %v4398 = vadd.f32 0.0, %v4397
    %v4399 = vpop.f32.mrb[0].mxu0
    %4400 = vdwg.mxu0
    %v4402 = vsel %vm3788, %v1755, 0
    %v4405 = vsel %vm3788, %v1760, 0
    %v4408 = vsel %vm3788, %v1765, 0
    %v4411 = vsel %vm3788, %v1770, 0
    %v4414 = vsel %vm3788, %v1775, 0
    %v4417 = vsel %vm3788, %v1780, 0
    %v4420 = vsel %vm3788, %v1785, 0
    %v4423 = vsel %vm3788, %v1790, 0
    %v4426 = vsel %vm3788, %v2595, 0
    %v4429 = vsel %vm3788, %v2600, 0
    %v4432 = vsel %vm3788, %v2605, 0
    %v4435 = vsel %vm3788, %v2610, 0
    %v4438 = vsel %vm3788, %v2615, 0
    %v4441 = vsel %vm3788, %v2620, 0
    %v4444 = vsel %vm3788, %v2625, 0
    %v4447 = vsel %vm3788, %v2630, 0
    %4449 = vmatprep.subr.mxu0 0.0
    %4450 = vmatpush1.xpose.msra.mxu0 %v4426
    %4451 = vmatprep.subr.mxu0 0.0
    %4452 = vmatpush1.xpose.msra.mxu0 %v4429
    %4453 = vmatprep.subr.mxu0 0.0
    %4454 = vmatpush1.xpose.msra.mxu0 %v4432
    %4455 = vmatprep.subr.mxu0 0.0
    %4456 = vmatpush1.xpose.msra.mxu0 %v4435
    %4457 = vmatprep.subr.mxu0 0.0
    %4458 = vmatpush1.xpose.msra.mxu0 %v4438
    %4459 = vmatprep.subr.mxu0 0.0
    %4460 = vmatpush1.xpose.msra.mxu0 %v4441
    %4461 = vmatprep.subr.mxu0 0.0
    %4462 = vmatpush1.xpose.msra.mxu0 %v4444
    %4463 = vmatprep.subr.mxu0 0.0
    %4464 = vmatpush1.xpose.msra.mxu0 %v4447
    %4465 = vmatprep.subr.mxu0 0.0
    %4466 = vmatpush1.xpose.msra.mxu0 0.0
    %4467 = vmatprep.subr.mxu0 0.0
    %4468 = vmatpush1.xpose.msra.mxu0 0.0
    %4469 = vmatprep.subr.mxu0 0.0
    %4470 = vmatpush1.xpose.msra.mxu0 0.0
    %4471 = vmatprep.subr.mxu0 0.0
    %4472 = vmatpush1.xpose.msra.mxu0 0.0
    %4473 = vmatprep.subr.mxu0 0.0
    %4474 = vmatpush1.xpose.msra.mxu0 0.0
    %4475 = vmatprep.subr.mxu0 0.0
    %4476 = vmatpush1.xpose.msra.mxu0 0.0
    %4477 = vmatprep.subr.mxu0 0.0
    %4478 = vmatpush1.xpose.msra.mxu0 0.0
    %4479 = vmatprep.subr.mxu0 0.0
    %4480 = vmatpush1.xpose.msra.mxu0 0.0
    %4481 = vmatprep.subr.mxu0 0.0
    %4482 = vmatpush1.xpose.msra.mxu0 0.0
    %4483 = vmatprep.subr.mxu0 0.0
    %4484 = vmatpush1.xpose.msra.mxu0 0.0
    %4485 = vmatprep.subr.mxu0 0.0
    %4486 = vmatpush1.xpose.msra.mxu0 0.0
    %4487 = vmatprep.subr.mxu0 0.0
    %4488 = vmatpush1.xpose.msra.mxu0 0.0
    %4489 = vmatprep.subr.mxu0 0.0
    %4490 = vmatpush1.xpose.msra.mxu0 0.0
    %4491 = vmatprep.subr.mxu0 0.0
    %4492 = vmatpush1.xpose.msra.mxu0 0.0
    %4493 = vmatprep.subr.mxu0 0.0
    %4494 = vmatpush1.xpose.msra.mxu0 0.0
    %4495 = vmatprep.subr.mxu0 0.0
    %4496 = vmatpush1.xpose.msra.mxu0 0.0
    %4497 = vmatprep.subr.mxu0 0.0
    %4498 = vmatpush1.xpose.msra.mxu0 0.0
    %4499 = vmatprep.subr.mxu0 0.0
    %4500 = vmatpush1.xpose.msra.mxu0 0.0
    %4501 = vmatprep.subr.mxu0 0.0
    %4502 = vmatpush1.xpose.msra.mxu0 0.0
    %4503 = vmatprep.subr.mxu0 0.0
    %4504 = vmatpush1.xpose.msra.mxu0 0.0
    %4505 = vmatprep.subr.mxu0 0.0
    %4506 = vmatpush1.xpose.msra.mxu0 0.0
    %4507 = vmatprep.subr.mxu0 0.0
    %4508 = vmatpush1.xpose.msra.mxu0 0.0
    %4509 = vmatprep.subr.mxu0 0.0
    %4510 = vmatpush1.xpose.msra.mxu0 0.0
    %4511 = vmatprep.subr.mxu0 0.0
    %4512 = vmatpush1.xpose.msra.mxu0 0.0
    %4513 = vmatprep.mubr.f32.mxu0 0.0
    %4514 = vmatmul.mubr.f32.gmra.mrb[0].mxu0 %v4402
    %v4515 = vpop.f32.mrb[0].mxu0
    %v4516 = vadd.f32 0.0, %v4515
    %v4517 = vpop.f32.mrb[0].mxu0
    %4518 = vmatprep.mubr.f32.mxu0 0.0
    %4519 = vmatmul.mubr.f32.gmra.mrb[0].mxu0 %v4405
    %v4520 = vpop.f32.mrb[0].mxu0
    %v4521 = vadd.f32 0.0, %v4520
    %v4522 = vpop.f32.mrb[0].mxu0
    %4523 = vmatprep.mubr.f32.mxu0 0.0
    %4524 = vmatmul.mubr.f32.gmra.mrb[0].mxu0 %v4408
    %v4525 = vpop.f32.mrb[0].mxu0
    %v4526 = vadd.f32 0.0, %v4525
    %v4527 = vpop.f32.mrb[0].mxu0
    %4528 = vmatprep.mubr.f32.mxu0 0.0
    %4529 = vmatmul.mubr.f32.gmra.mrb[0].mxu0 %v4411
    %v4530 = vpop.f32.mrb[0].mxu0
    %v4531 = vadd.f32 0.0, %v4530
    %v4532 = vpop.f32.mrb[0].mxu0
    %4533 = vmatprep.mubr.f32.mxu0 0.0
    %4534 = vmatmul.mubr.f32.gmra.mrb[0].mxu0 %v4414
    %v4535 = vpop.f32.mrb[0].mxu0
    %v4536 = vadd.f32 0.0, %v4535
    %v4537 = vpop.f32.mrb[0].mxu0
    %4538 = vmatprep.mubr.f32.mxu0 0.0
    %4539 = vmatmul.mubr.f32.gmra.mrb[0].mxu0 %v4417
    %v4540 = vpop.f32.mrb[0].mxu0
    %v4541 = vadd.f32 0.0, %v4540
    %v4542 = vpop.f32.mrb[0].mxu0
    %4543 = vmatprep.mubr.f32.mxu0 0.0
    %4544 = vmatmul.mubr.f32.gmra.mrb[0].mxu0 %v4420
    %v4545 = vpop.f32.mrb[0].mxu0
    %v4546 = vadd.f32 0.0, %v4545
    %v4547 = vpop.f32.mrb[0].mxu0
    %4548 = vmatprep.mubr.f32.mxu0 0.0
    %4549 = vmatmul.mubr.f32.gmra.mrb[0].mxu0 %v4423
    %v4550 = vpop.f32.mrb[0].mxu0
    %v4551 = vadd.f32 0.0, %v4550
    %v4552 = vpop.f32.mrb[0].mxu0
    %4553 = vdwg.mxu0
    %v4555 = vsel %vm3788, %v1860, 0
    %v4558 = vsel %vm3788, %v1865, 0
    %v4561 = vsel %vm3788, %v1870, 0
    %v4564 = vsel %vm3788, %v1875, 0
    %v4567 = vsel %vm3788, %v1880, 0
    %v4570 = vsel %vm3788, %v1885, 0
    %v4573 = vsel %vm3788, %v1890, 0
    %v4576 = vsel %vm3788, %v1895, 0
    %v4579 = vsel %vm3788, %v2700, 0
    %v4582 = vsel %vm3788, %v2705, 0
    %v4585 = vsel %vm3788, %v2710, 0
    %v4588 = vsel %vm3788, %v2715, 0
    %v4591 = vsel %vm3788, %v2720, 0
    %v4594 = vsel %vm3788, %v2725, 0
    %v4597 = vsel %vm3788, %v2730, 0
    %v4600 = vsel %vm3788, %v2735, 0
    %4602 = vmatprep.subr.mxu0 0.0
    %4603 = vmatpush1.xpose.msra.mxu0 %v4579
    %4604 = vmatprep.subr.mxu0 0.0
    %4605 = vmatpush1.xpose.msra.mxu0 %v4582
    %4606 = vmatprep.subr.mxu0 0.0
    %4607 = vmatpush1.xpose.msra.mxu0 %v4585
    %4608 = vmatprep.subr.mxu0 0.0
    %4609 = vmatpush1.xpose.msra.mxu0 %v4588
    %4610 = vmatprep.subr.mxu0 0.0
    %4611 = vmatpush1.xpose.msra.mxu0 %v4591
    %4612 = vmatprep.subr.mxu0 0.0
    %4613 = vmatpush1.xpose.msra.mxu0 %v4594
    %4614 = vmatprep.subr.mxu0 0.0
    %4615 = vmatpush1.xpose.msra.mxu0 %v4597
    %4616 = vmatprep.subr.mxu0 0.0
    %4617 = vmatpush1.xpose.msra.mxu0 %v4600
    %4618 = vmatprep.subr.mxu0 0.0
    %4619 = vmatpush1.xpose.msra.mxu0 0.0
    %4620 = vmatprep.subr.mxu0 0.0
    %4621 = vmatpush1.xpose.msra.mxu0 0.0
    %4622 = vmatprep.subr.mxu0 0.0
    %4623 = vmatpush1.xpose.msra.mxu0 0.0
    %4624 = vmatprep.subr.mxu0 0.0
    %4625 = vmatpush1.xpose.msra.mxu0 0.0
    %4626 = vmatprep.subr.mxu0 0.0
    %4627 = vmatpush1.xpose.msra.mxu0 0.0
    %4628 = vmatprep.subr.mxu0 0.0
    %4629 = vmatpush1.xpose.msra.mxu0 0.0
    %4630 = vmatprep.subr.mxu0 0.0
    %4631 = vmatpush1.xpose.msra.mxu0 0.0
    %4632 = vmatprep.subr.mxu0 0.0
    %4633 = vmatpush1.xpose.msra.mxu0 0.0
    %4634 = vmatprep.subr.mxu0 0.0
    %4635 = vmatpush1.xpose.msra.mxu0 0.0
    %4636 = vmatprep.subr.mxu0 0.0
    %4637 = vmatpush1.xpose.msra.mxu0 0.0
    %4638 = vmatprep.subr.mxu0 0.0
    %4639 = vmatpush1.xpose.msra.mxu0 0.0
    %4640 = vmatprep.subr.mxu0 0.0
    %4641 = vmatpush1.xpose.msra.mxu0 0.0
    %4642 = vmatprep.subr.mxu0 0.0
    %4643 = vmatpush1.xpose.msra.mxu0 0.0
    %4644 = vmatprep.subr.mxu0 0.0
    %4645 = vmatpush1.xpose.msra.mxu0 0.0
    %4646 = vmatprep.subr.mxu0 0.0
    %4647 = vmatpush1.xpose.msra.mxu0 0.0
    %4648 = vmatprep.subr.mxu0 0.0
    %4649 = vmatpush1.xpose.msra.mxu0 0.0
    %4650 = vmatprep.subr.mxu0 0.0
    %4651 = vmatpush1.xpose.msra.mxu0 0.0
    %4652 = vmatprep.subr.mxu0 0.0
    %4653 = vmatpush1.xpose.msra.mxu0 0.0
    %4654 = vmatprep.subr.mxu0 0.0
    %4655 = vmatpush1.xpose.msra.mxu0 0.0
    %4656 = vmatprep.subr.mxu0 0.0
    %4657 = vmatpush1.xpose.msra.mxu0 0.0
    %4658 = vmatprep.subr.mxu0 0.0
    %4659 = vmatpush1.xpose.msra.mxu0 0.0
    %4660 = vmatprep.subr.mxu0 0.0
    %4661 = vmatpush1.xpose.msra.mxu0 0.0
    %4662 = vmatprep.subr.mxu0 0.0
    %4663 = vmatpush1.xpose.msra.mxu0 0.0
    %4664 = vmatprep.subr.mxu0 0.0
    %4665 = vmatpush1.xpose.msra.mxu0 0.0
    %4666 = vmatprep.mubr.f32.mxu0 0.0
    %4667 = vmatmul.mubr.f32.gmra.mrb[0].mxu0 %v4555
    %v4668 = vpop.f32.mrb[0].mxu0
    %v4669 = vadd.f32 0.0, %v4668
    %v4670 = vpop.f32.mrb[0].mxu0
    %4671 = vmatprep.mubr.f32.mxu0 0.0
    %4672 = vmatmul.mubr.f32.gmra.mrb[0].mxu0 %v4558
    %v4673 = vpop.f32.mrb[0].mxu0
    %v4674 = vadd.f32 0.0, %v4673
    %v4675 = vpop.f32.mrb[0].mxu0
    %4676 = vmatprep.mubr.f32.mxu0 0.0
    %4677 = vmatmul.mubr.f32.gmra.mrb[0].mxu0 %v4561
    %v4678 = vpop.f32.mrb[0].mxu0
    %v4679 = vadd.f32 0.0, %v4678
    %v4680 = vpop.f32.mrb[0].mxu0
    %4681 = vmatprep.mubr.f32.mxu0 0.0
    %4682 = vmatmul.mubr.f32.gmra.mrb[0].mxu0 %v4564
    %v4683 = vpop.f32.mrb[0].mxu0
    %v4684 = vadd.f32 0.0, %v4683
    %v4685 = vpop.f32.mrb[0].mxu0
    %4686 = vmatprep.mubr.f32.mxu0 0.0
    %4687 = vmatmul.mubr.f32.gmra.mrb[0].mxu0 %v4567
    %v4688 = vpop.f32.mrb[0].mxu0
    %v4689 = vadd.f32 0.0, %v4688
    %v4690 = vpop.f32.mrb[0].mxu0
    %4691 = vmatprep.mubr.f32.mxu0 0.0
    %4692 = vmatmul.mubr.f32.gmra.mrb[0].mxu0 %v4570
    %v4693 = vpop.f32.mrb[0].mxu0
    %v4694 = vadd.f32 0.0, %v4693
    %v4695 = vpop.f32.mrb[0].mxu0
    %4696 = vmatprep.mubr.f32.mxu0 0.0
    %4697 = vmatmul.mubr.f32.gmra.mrb[0].mxu0 %v4573
    %v4698 = vpop.f32.mrb[0].mxu0
    %v4699 = vadd.f32 0.0, %v4698
    %v4700 = vpop.f32.mrb[0].mxu0
    %4701 = vmatprep.mubr.f32.mxu0 0.0
    %4702 = vmatmul.mubr.f32.gmra.mrb[0].mxu0 %v4576
    %v4703 = vpop.f32.mrb[0].mxu0
    %v4704 = vadd.f32 0.0, %v4703
    %v4705 = vpop.f32.mrb[0].mxu0
    %4706 = vdwg.mxu0
    %v4708 = vsel %vm3788, %v1965, 0
    %v4711 = vsel %vm3788, %v1970, 0
    %v4714 = vsel %vm3788, %v1975, 0
    %v4717 = vsel %vm3788, %v1980, 0
    %v4720 = vsel %vm3788, %v1985, 0
    %v4723 = vsel %vm3788, %v1990, 0
    %v4726 = vsel %vm3788, %v1995, 0
    %v4729 = vsel %vm3788, %v2000, 0
    %v4732 = vsel %vm3788, %v2805, 0
    %v4735 = vsel %vm3788, %v2810, 0
    %v4738 = vsel %vm3788, %v2815, 0
    %v4741 = vsel %vm3788, %v2820, 0
    %v4744 = vsel %vm3788, %v2825, 0
    %v4747 = vsel %vm3788, %v2830, 0
    %v4750 = vsel %vm3788, %v2835, 0
    %v4753 = vsel %vm3788, %v2840, 0
    %4755 = vmatprep.subr.mxu0 0.0
    %4756 = vmatpush1.xpose.msra.mxu0 %v4732
    %4757 = vmatprep.subr.mxu0 0.0
    %4758 = vmatpush1.xpose.msra.mxu0 %v4735
    %4759 = vmatprep.subr.mxu0 0.0
    %4760 = vmatpush1.xpose.msra.mxu0 %v4738
    %4761 = vmatprep.subr.mxu0 0.0
    %4762 = vmatpush1.xpose.msra.mxu0 %v4741
    %4763 = vmatprep.subr.mxu0 0.0
    %4764 = vmatpush1.xpose.msra.mxu0 %v4744
    %4765 = vmatprep.subr.mxu0 0.0
    %4766 = vmatpush1.xpose.msra.mxu0 %v4747
    %4767 = vmatprep.subr.mxu0 0.0
    %4768 = vmatpush1.xpose.msra.mxu0 %v4750
    %4769 = vmatprep.subr.mxu0 0.0
    %4770 = vmatpush1.xpose.msra.mxu0 %v4753
    %4771 = vmatprep.subr.mxu0 0.0
    %4772 = vmatpush1.xpose.msra.mxu0 0.0
    %4773 = vmatprep.subr.mxu0 0.0
    %4774 = vmatpush1.xpose.msra.mxu0 0.0
    %4775 = vmatprep.subr.mxu0 0.0
    %4776 = vmatpush1.xpose.msra.mxu0 0.0
    %4777 = vmatprep.subr.mxu0 0.0
    %4778 = vmatpush1.xpose.msra.mxu0 0.0
    %4779 = vmatprep.subr.mxu0 0.0
    %4780 = vmatpush1.xpose.msra.mxu0 0.0
    %4781 = vmatprep.subr.mxu0 0.0
    %4782 = vmatpush1.xpose.msra.mxu0 0.0
    %4783 = vmatprep.subr.mxu0 0.0
    %4784 = vmatpush1.xpose.msra.mxu0 0.0
    %4785 = vmatprep.subr.mxu0 0.0
    %4786 = vmatpush1.xpose.msra.mxu0 0.0
    %4787 = vmatprep.subr.mxu0 0.0
    %4788 = vmatpush1.xpose.msra.mxu0 0.0
    %4789 = vmatprep.subr.mxu0 0.0
    %4790 = vmatpush1.xpose.msra.mxu0 0.0
    %4791 = vmatprep.subr.mxu0 0.0
    %4792 = vmatpush1.xpose.msra.mxu0 0.0
    %4793 = vmatprep.subr.mxu0 0.0
    %4794 = vmatpush1.xpose.msra.mxu0 0.0
    %4795 = vmatprep.subr.mxu0 0.0
    %4796 = vmatpush1.xpose.msra.mxu0 0.0
    %4797 = vmatprep.subr.mxu0 0.0
    %4798 = vmatpush1.xpose.msra.mxu0 0.0
    %4799 = vmatprep.subr.mxu0 0.0
    %4800 = vmatpush1.xpose.msra.mxu0 0.0
    %4801 = vmatprep.subr.mxu0 0.0
    %4802 = vmatpush1.xpose.msra.mxu0 0.0
    %4803 = vmatprep.subr.mxu0 0.0
    %4804 = vmatpush1.xpose.msra.mxu0 0.0
    %4805 = vmatprep.subr.mxu0 0.0
    %4806 = vmatpush1.xpose.msra.mxu0 0.0
    %4807 = vmatprep.subr.mxu0 0.0
    %4808 = vmatpush1.xpose.msra.mxu0 0.0
    %4809 = vmatprep.subr.mxu0 0.0
    %4810 = vmatpush1.xpose.msra.mxu0 0.0
    %4811 = vmatprep.subr.mxu0 0.0
    %4812 = vmatpush1.xpose.msra.mxu0 0.0
    %4813 = vmatprep.subr.mxu0 0.0
    %4814 = vmatpush1.xpose.msra.mxu0 0.0
    %4815 = vmatprep.subr.mxu0 0.0
    %4816 = vmatpush1.xpose.msra.mxu0 0.0
    %4817 = vmatprep.subr.mxu0 0.0
    %4818 = vmatpush1.xpose.msra.mxu0 0.0
    %4819 = vmatprep.mubr.f32.mxu0 0.0
    %4820 = vmatmul.mubr.f32.gmra.mrb[0].mxu0 %v4708
    %v4821 = vpop.f32.mrb[0].mxu0
    %v4822 = vadd.f32 0.0, %v4821
    %v4823 = vpop.f32.mrb[0].mxu0
    %4824 = vmatprep.mubr.f32.mxu0 0.0
    %4825 = vmatmul.mubr.f32.gmra.mrb[0].mxu0 %v4711
    %v4826 = vpop.f32.mrb[0].mxu0
    %v4827 = vadd.f32 0.0, %v4826
    %v4828 = vpop.f32.mrb[0].mxu0
    %4829 = vmatprep.mubr.f32.mxu0 0.0
    %4830 = vmatmul.mubr.f32.gmra.mrb[0].mxu0 %v4714
    %v4831 = vpop.f32.mrb[0].mxu0
    %v4832 = vadd.f32 0.0, %v4831
    %v4833 = vpop.f32.mrb[0].mxu0
    %4834 = vmatprep.mubr.f32.mxu0 0.0
    %4835 = vmatmul.mubr.f32.gmra.mrb[0].mxu0 %v4717
    %v4836 = vpop.f32.mrb[0].mxu0
    %v4837 = vadd.f32 0.0, %v4836
    %v4838 = vpop.f32.mrb[0].mxu0
    %4839 = vmatprep.mubr.f32.mxu0 0.0
    %4840 = vmatmul.mubr.f32.gmra.mrb[0].mxu0 %v4720
    %v4841 = vpop.f32.mrb[0].mxu0
    %v4842 = vadd.f32 0.0, %v4841
    %v4843 = vpop.f32.mrb[0].mxu0
    %4844 = vmatprep.mubr.f32.mxu0 0.0
    %4845 = vmatmul.mubr.f32.gmra.mrb[0].mxu0 %v4723
    %v4846 = vpop.f32.mrb[0].mxu0
    %v4847 = vadd.f32 0.0, %v4846
    %v4848 = vpop.f32.mrb[0].mxu0
    %4849 = vmatprep.mubr.f32.mxu0 0.0
    %4850 = vmatmul.mubr.f32.gmra.mrb[0].mxu0 %v4726
    %v4851 = vpop.f32.mrb[0].mxu0
    %v4852 = vadd.f32 0.0, %v4851
    %v4853 = vpop.f32.mrb[0].mxu0
    %4854 = vmatprep.mubr.f32.mxu0 0.0
    %4855 = vmatmul.mubr.f32.gmra.mrb[0].mxu0 %v4729
    %v4856 = vpop.f32.mrb[0].mxu0
    %v4857 = vadd.f32 0.0, %v4856
    %v4858 = vpop.f32.mrb[0].mxu0
    %4859 = vdwg.mxu0
    %v4861 = vsel %vm3788, %v2070, 0
    %v4864 = vsel %vm3788, %v2075, 0
    %v4867 = vsel %vm3788, %v2080, 0
    %v4870 = vsel %vm3788, %v2085, 0
    %v4873 = vsel %vm3788, %v2090, 0
    %v4876 = vsel %vm3788, %v2095, 0
    %v4879 = vsel %vm3788, %v2100, 0
    %v4882 = vsel %vm3788, %v2105, 0
    %v4885 = vsel %vm3788, %v2910, 0
    %v4888 = vsel %vm3788, %v2915, 0
    %v4891 = vsel %vm3788, %v2920, 0
    %v4894 = vsel %vm3788, %v2925, 0
    %v4897 = vsel %vm3788, %v2930, 0
    %v4900 = vsel %vm3788, %v2935, 0
    %v4903 = vsel %vm3788, %v2940, 0
    %v4906 = vsel %vm3788, %v2945, 0
    %4908 = vmatprep.subr.mxu0 0.0
    %4909 = vmatpush1.xpose.msra.mxu0 %v4885
    %4910 = vmatprep.subr.mxu0 0.0
    %4911 = vmatpush1.xpose.msra.mxu0 %v4888
    %4912 = vmatprep.subr.mxu0 0.0
    %4913 = vmatpush1.xpose.msra.mxu0 %v4891
    %4914 = vmatprep.subr.mxu0 0.0
    %4915 = vmatpush1.xpose.msra.mxu0 %v4894
    %4916 = vmatprep.subr.mxu0 0.0
    %4917 = vmatpush1.xpose.msra.mxu0 %v4897
    %4918 = vmatprep.subr.mxu0 0.0
    %4919 = vmatpush1.xpose.msra.mxu0 %v4900
    %4920 = vmatprep.subr.mxu0 0.0
    %4921 = vmatpush1.xpose.msra.mxu0 %v4903
    %4922 = vmatprep.subr.mxu0 0.0
    %4923 = vmatpush1.xpose.msra.mxu0 %v4906
    %4924 = vmatprep.subr.mxu0 0.0
    %4925 = vmatpush1.xpose.msra.mxu0 0.0
    %4926 = vmatprep.subr.mxu0 0.0
    %4927 = vmatpush1.xpose.msra.mxu0 0.0
    %4928 = vmatprep.subr.mxu0 0.0
    %4929 = vmatpush1.xpose.msra.mxu0 0.0
    %4930 = vmatprep.subr.mxu0 0.0
    %4931 = vmatpush1.xpose.msra.mxu0 0.0
    %4932 = vmatprep.subr.mxu0 0.0
    %4933 = vmatpush1.xpose.msra.mxu0 0.0
    %4934 = vmatprep.subr.mxu0 0.0
    %4935 = vmatpush1.xpose.msra.mxu0 0.0
    %4936 = vmatprep.subr.mxu0 0.0
    %4937 = vmatpush1.xpose.msra.mxu0 0.0
    %4938 = vmatprep.subr.mxu0 0.0
    %4939 = vmatpush1.xpose.msra.mxu0 0.0
    %4940 = vmatprep.subr.mxu0 0.0
    %4941 = vmatpush1.xpose.msra.mxu0 0.0
    %4942 = vmatprep.subr.mxu0 0.0
    %4943 = vmatpush1.xpose.msra.mxu0 0.0
    %4944 = vmatprep.subr.mxu0 0.0
    %4945 = vmatpush1.xpose.msra.mxu0 0.0
    %4946 = vmatprep.subr.mxu0 0.0
    %4947 = vmatpush1.xpose.msra.mxu0 0.0
    %4948 = vmatprep.subr.mxu0 0.0
    %4949 = vmatpush1.xpose.msra.mxu0 0.0
    %4950 = vmatprep.subr.mxu0 0.0
    %4951 = vmatpush1.xpose.msra.mxu0 0.0
    %4952 = vmatprep.subr.mxu0 0.0
    %4953 = vmatpush1.xpose.msra.mxu0 0.0
    %4954 = vmatprep.subr.mxu0 0.0
    %4955 = vmatpush1.xpose.msra.mxu0 0.0
    %4956 = vmatprep.subr.mxu0 0.0
    %4957 = vmatpush1.xpose.msra.mxu0 0.0
    %4958 = vmatprep.subr.mxu0 0.0
    %4959 = vmatpush1.xpose.msra.mxu0 0.0
    %4960 = vmatprep.subr.mxu0 0.0
    %4961 = vmatpush1.xpose.msra.mxu0 0.0
    %4962 = vmatprep.subr.mxu0 0.0
    %4963 = vmatpush1.xpose.msra.mxu0 0.0
    %4964 = vmatprep.subr.mxu0 0.0
    %4965 = vmatpush1.xpose.msra.mxu0 0.0
    %4966 = vmatprep.subr.mxu0 0.0
    %4967 = vmatpush1.xpose.msra.mxu0 0.0
    %4968 = vmatprep.subr.mxu0 0.0
    %4969 = vmatpush1.xpose.msra.mxu0 0.0
    %4970 = vmatprep.subr.mxu0 0.0
    %4971 = vmatpush1.xpose.msra.mxu0 0.0
    %4972 = vmatprep.mubr.f32.mxu0 0.0
    %4973 = vmatmul.mubr.f32.gmra.mrb[0].mxu0 %v4861
    %v4974 = vpop.f32.mrb[0].mxu0
    %v4975 = vadd.f32 0.0, %v4974
    %v4976 = vpop.f32.mrb[0].mxu0
    %4977 = vmatprep.mubr.f32.mxu0 0.0
    %4978 = vmatmul.mubr.f32.gmra.mrb[0].mxu0 %v4864
    %v4979 = vpop.f32.mrb[0].mxu0
    %v4980 = vadd.f32 0.0, %v4979
    %v4981 = vpop.f32.mrb[0].mxu0
    %4982 = vmatprep.mubr.f32.mxu0 0.0
    %4983 = vmatmul.mubr.f32.gmra.mrb[0].mxu0 %v4867
    %v4984 = vpop.f32.mrb[0].mxu0
    %v4985 = vadd.f32 0.0, %v4984
    %v4986 = vpop.f32.mrb[0].mxu0
    %4987 = vmatprep.mubr.f32.mxu0 0.0
    %4988 = vmatmul.mubr.f32.gmra.mrb[0].mxu0 %v4870
    %v4989 = vpop.f32.mrb[0].mxu0
    %v4990 = vadd.f32 0.0, %v4989
    %v4991 = vpop.f32.mrb[0].mxu0
    %4992 = vmatprep.mubr.f32.mxu0 0.0
    %4993 = vmatmul.mubr.f32.gmra.mrb[0].mxu0 %v4873
    %v4994 = vpop.f32.mrb[0].mxu0
    %v4995 = vadd.f32 0.0, %v4994
    %v4996 = vpop.f32.mrb[0].mxu0
    %4997 = vmatprep.mubr.f32.mxu0 0.0
    %4998 = vmatmul.mubr.f32.gmra.mrb[0].mxu0 %v4876
    %v4999 = vpop.f32.mrb[0].mxu0
    %v5000 = vadd.f32 0.0, %v4999
    %v5001 = vpop.f32.mrb[0].mxu0
    %5002 = vmatprep.mubr.f32.mxu0 0.0
    %5003 = vmatmul.mubr.f32.gmra.mrb[0].mxu0 %v4879
    %v5004 = vpop.f32.mrb[0].mxu0
    %v5005 = vadd.f32 0.0, %v5004
    %v5006 = vpop.f32.mrb[0].mxu0
    %5007 = vmatprep.mubr.f32.mxu0 0.0
    %5008 = vmatmul.mubr.f32.gmra.mrb[0].mxu0 %v4882
    %v5009 = vpop.f32.mrb[0].mxu0
    %v5010 = vadd.f32 0.0, %v5009
    %v5011 = vpop.f32.mrb[0].mxu0
    %5012 = vdwg.mxu0
    %v5013 = vmul.f32 %v3904, 0.35355338
    %v5014 = vmul.f32 %v3909, 0.35355338
    %v5015 = vmul.f32 %v3914, 0.35355338
    %v5016 = vmul.f32 %v3919, 0.35355338
    %v5017 = vmul.f32 %v3924, 0.35355338
    %v5018 = vmul.f32 %v3929, 0.35355338
    %v5019 = vmul.f32 %v3934, 0.35355338
    %v5020 = vmul.f32 %v3939, 0.35355338
    %v5021 = vmul.f32 %v4057, 0.35355338
    %v5022 = vmul.f32 %v4062, 0.35355338
    %v5023 = vmul.f32 %v4067, 0.35355338
    %v5024 = vmul.f32 %v4072, 0.35355338
    %v5025 = vmul.f32 %v4077, 0.35355338
    %v5026 = vmul.f32 %v4082, 0.35355338
    %v5027 = vmul.f32 %v4087, 0.35355338
    %v5028 = vmul.f32 %v4092, 0.35355338
    %v5029 = vmul.f32 %v4210, 0.35355338
    %v5030 = vmul.f32 %v4215, 0.35355338
    %v5031 = vmul.f32 %v4220, 0.35355338
    %v5032 = vmul.f32 %v4225, 0.35355338
    %v5033 = vmul.f32 %v4230, 0.35355338
    %v5034 = vmul.f32 %v4235, 0.35355338
    %v5035 = vmul.f32 %v4240, 0.35355338
    %v5036 = vmul.f32 %v4245, 0.35355338
    %v5037 = vmul.f32 %v4363, 0.35355338
    %v5038 = vmul.f32 %v4368, 0.35355338
    %v5039 = vmul.f32 %v4373, 0.35355338
    %v5040 = vmul.f32 %v4378, 0.35355338
    %v5041 = vmul.f32 %v4383, 0.35355338
    %v5042 = vmul.f32 %v4388, 0.35355338
    %v5043 = vmul.f32 %v4393, 0.35355338
    %v5044 = vmul.f32 %v4398, 0.35355338
    %v5045 = vmul.f32 %v4516, 0.35355338
    %v5046 = vmul.f32 %v4521, 0.35355338
    %v5047 = vmul.f32 %v4526, 0.35355338
    %v5048 = vmul.f32 %v4531, 0.35355338
    %v5049 = vmul.f32 %v4536, 0.35355338
    %v5050 = vmul.f32 %v4541, 0.35355338
    %v5051 = vmul.f32 %v4546, 0.35355338
    %v5052 = vmul.f32 %v4551, 0.35355338
    %v5053 = vmul.f32 %v4669, 0.35355338
    %v5054 = vmul.f32 %v4674, 0.35355338
    %v5055 = vmul.f32 %v4679, 0.35355338
    %v5056 = vmul.f32 %v4684, 0.35355338
    %v5057 = vmul.f32 %v4689, 0.35355338
    %v5058 = vmul.f32 %v4694, 0.35355338
    %v5059 = vmul.f32 %v4699, 0.35355338
    %v5060 = vmul.f32 %v4704, 0.35355338
    %v5061 = vmul.f32 %v4822, 0.35355338
    %v5062 = vmul.f32 %v4827, 0.35355338
    %v5063 = vmul.f32 %v4832, 0.35355338
    %v5064 = vmul.f32 %v4837, 0.35355338
    %v5065 = vmul.f32 %v4842, 0.35355338
    %v5066 = vmul.f32 %v4847, 0.35355338
    %v5067 = vmul.f32 %v4852, 0.35355338
    %v5068 = vmul.f32 %v4857, 0.35355338
    %v5069 = vmul.f32 %v4975, 0.35355338
    %v5070 = vmul.f32 %v4980, 0.35355338
    %v5071 = vmul.f32 %v4985, 0.35355338
    %v5072 = vmul.f32 %v4990, 0.35355338
    %v5073 = vmul.f32 %v4995, 0.35355338
    %v5074 = vmul.f32 %v5000, 0.35355338
    %v5075 = vmul.f32 %v5005, 0.35355338
    %v5076 = vmul.f32 %v5010, 0.35355338
    %v5077 = vsel %vm195, %v5013, -inf
    %5078 = vmax.xlane.f32.xlu0 %v5077
    %v5079 = vpop.xlane.xlu0 %5078
    %v5080 = vsel %vm195, %v5014, -inf
    %5081 = vmax.xlane.f32.xlu0 %v5080
    %v5082 = vpop.xlane.xlu0 %5081
    %v5083 = vsel %vm195, %v5015, -inf
    %5084 = vmax.xlane.f32.xlu0 %v5083
    %v5085 = vpop.xlane.xlu0 %5084
    %v5086 = vsel %vm195, %v5016, -inf
    %5087 = vmax.xlane.f32.xlu0 %v5086
    %v5088 = vpop.xlane.xlu0 %5087
    %v5089 = vsel %vm195, %v5017, -inf
    %5090 = vmax.xlane.f32.xlu0 %v5089
    %v5091 = vpop.xlane.xlu0 %5090
    %v5092 = vsel %vm195, %v5018, -inf
    %5093 = vmax.xlane.f32.xlu0 %v5092
    %v5094 = vpop.xlane.xlu0 %5093
    %v5095 = vsel %vm195, %v5019, -inf
    %5096 = vmax.xlane.f32.xlu0 %v5095
    %v5097 = vpop.xlane.xlu0 %5096
    %v5098 = vsel %vm195, %v5020, -inf
    %5099 = vmax.xlane.f32.xlu0 %v5098
    %v5100 = vpop.xlane.xlu0 %5099
    %v5101 = vsel %vm195, %v5021, -inf
    %5102 = vmax.xlane.f32.xlu0 %v5101
    %v5103 = vpop.xlane.xlu0 %5102
    %v5104 = vsel %vm195, %v5022, -inf
    %5105 = vmax.xlane.f32.xlu0 %v5104
    %v5106 = vpop.xlane.xlu0 %5105
    %v5107 = vsel %vm195, %v5023, -inf
    %5108 = vmax.xlane.f32.xlu0 %v5107
    %v5109 = vpop.xlane.xlu0 %5108
    %v5110 = vsel %vm195, %v5024, -inf
    %5111 = vmax.xlane.f32.xlu0 %v5110
    %v5112 = vpop.xlane.xlu0 %5111
    %v5113 = vsel %vm195, %v5025, -inf
    %5114 = vmax.xlane.f32.xlu0 %v5113
    %v5115 = vpop.xlane.xlu0 %5114
    %v5116 = vsel %vm195, %v5026, -inf
    %5117 = vmax.xlane.f32.xlu0 %v5116
    %v5118 = vpop.xlane.xlu0 %5117
    %v5119 = vsel %vm195, %v5027, -inf
    %5120 = vmax.xlane.f32.xlu0 %v5119
    %v5121 = vpop.xlane.xlu0 %5120
    %v5122 = vsel %vm195, %v5028, -inf
    %5123 = vmax.xlane.f32.xlu0 %v5122
    %v5124 = vpop.xlane.xlu0 %5123
    %v5125 = vsel %vm195, %v5029, -inf
    %5126 = vmax.xlane.f32.xlu0 %v5125
    %v5127 = vpop.xlane.xlu0 %5126
    %v5128 = vsel %vm195, %v5030, -inf
    %5129 = vmax.xlane.f32.xlu0 %v5128
    %v5130 = vpop.xlane.xlu0 %5129
    %v5131 = vsel %vm195, %v5031, -inf
    %5132 = vmax.xlane.f32.xlu0 %v5131
    %v5133 = vpop.xlane.xlu0 %5132
    %v5134 = vsel %vm195, %v5032, -inf
    %5135 = vmax.xlane.f32.xlu0 %v5134
    %v5136 = vpop.xlane.xlu0 %5135
    %v5137 = vsel %vm195, %v5033, -inf
    %5138 = vmax.xlane.f32.xlu0 %v5137
    %v5139 = vpop.xlane.xlu0 %5138
    %v5140 = vsel %vm195, %v5034, -inf
    %5141 = vmax.xlane.f32.xlu0 %v5140
    %v5142 = vpop.xlane.xlu0 %5141
    %v5143 = vsel %vm195, %v5035, -inf
    %5144 = vmax.xlane.f32.xlu0 %v5143
    %v5145 = vpop.xlane.xlu0 %5144
    %v5146 = vsel %vm195, %v5036, -inf
    %5147 = vmax.xlane.f32.xlu0 %v5146
    %v5148 = vpop.xlane.xlu0 %5147
    %v5149 = vsel %vm195, %v5037, -inf
    %5150 = vmax.xlane.f32.xlu0 %v5149
    %v5151 = vpop.xlane.xlu0 %5150
    %v5152 = vsel %vm195, %v5038, -inf
    %5153 = vmax.xlane.f32.xlu0 %v5152
    %v5154 = vpop.xlane.xlu0 %5153
    %v5155 = vsel %vm195, %v5039, -inf
    %5156 = vmax.xlane.f32.xlu0 %v5155
    %v5157 = vpop.xlane.xlu0 %5156
    %v5158 = vsel %vm195, %v5040, -inf
    %5159 = vmax.xlane.f32.xlu0 %v5158
    %v5160 = vpop.xlane.xlu0 %5159
    %v5161 = vsel %vm195, %v5041, -inf
    %5162 = vmax.xlane.f32.xlu0 %v5161
    %v5163 = vpop.xlane.xlu0 %5162
    %v5164 = vsel %vm195, %v5042, -inf
    %5165 = vmax.xlane.f32.xlu0 %v5164
    %v5166 = vpop.xlane.xlu0 %5165
    %v5167 = vsel %vm195, %v5043, -inf
    %5168 = vmax.xlane.f32.xlu0 %v5167
    %v5169 = vpop.xlane.xlu0 %5168
    %v5170 = vsel %vm195, %v5044, -inf
    %5171 = vmax.xlane.f32.xlu0 %v5170
    %v5172 = vpop.xlane.xlu0 %5171
    %v5173 = vsel %vm195, %v5045, -inf
    %5174 = vmax.xlane.f32.xlu0 %v5173
    %v5175 = vpop.xlane.xlu0 %5174
    %v5176 = vsel %vm195, %v5046, -inf
    %5177 = vmax.xlane.f32.xlu0 %v5176
    %v5178 = vpop.xlane.xlu0 %5177
    %v5179 = vsel %vm195, %v5047, -inf
    %5180 = vmax.xlane.f32.xlu0 %v5179
    %v5181 = vpop.xlane.xlu0 %5180
    %v5182 = vsel %vm195, %v5048, -inf
    %5183 = vmax.xlane.f32.xlu0 %v5182
    %v5184 = vpop.xlane.xlu0 %5183
    %v5185 = vsel %vm195, %v5049, -inf
    %5186 = vmax.xlane.f32.xlu0 %v5185
    %v5187 = vpop.xlane.xlu0 %5186
    %v5188 = vsel %vm195, %v5050, -inf
    %5189 = vmax.xlane.f32.xlu0 %v5188
    %v5190 = vpop.xlane.xlu0 %5189
    %v5191 = vsel %vm195, %v5051, -inf
    %5192 = vmax.xlane.f32.xlu0 %v5191
    %v5193 = vpop.xlane.xlu0 %5192
    %v5194 = vsel %vm195, %v5052, -inf
    %5195 = vmax.xlane.f32.xlu0 %v5194
    %v5196 = vpop.xlane.xlu0 %5195
    %v5197 = vsel %vm195, %v5053, -inf
    %5198 = vmax.xlane.f32.xlu0 %v5197
    %v5199 = vpop.xlane.xlu0 %5198
    %v5200 = vsel %vm195, %v5054, -inf
    %5201 = vmax.xlane.f32.xlu0 %v5200
    %v5202 = vpop.xlane.xlu0 %5201
    %v5203 = vsel %vm195, %v5055, -inf
    %5204 = vmax.xlane.f32.xlu0 %v5203
    %v5205 = vpop.xlane.xlu0 %5204
    %v5206 = vsel %vm195, %v5056, -inf
    %5207 = vmax.xlane.f32.xlu0 %v5206
    %v5208 = vpop.xlane.xlu0 %5207
    %v5209 = vsel %vm195, %v5057, -inf
    %5210 = vmax.xlane.f32.xlu0 %v5209
    %v5211 = vpop.xlane.xlu0 %5210
    %v5212 = vsel %vm195, %v5058, -inf
    %5213 = vmax.xlane.f32.xlu0 %v5212
    %v5214 = vpop.xlane.xlu0 %5213
    %v5215 = vsel %vm195, %v5059, -inf
    %5216 = vmax.xlane.f32.xlu0 %v5215
    %v5217 = vpop.xlane.xlu0 %5216
    %v5218 = vsel %vm195, %v5060, -inf
    %5219 = vmax.xlane.f32.xlu0 %v5218
    %v5220 = vpop.xlane.xlu0 %5219
    %v5221 = vsel %vm195, %v5061, -inf
    %5222 = vmax.xlane.f32.xlu0 %v5221
    %v5223 = vpop.xlane.xlu0 %5222
    %v5224 = vsel %vm195, %v5062, -inf
    %5225 = vmax.xlane.f32.xlu0 %v5224
    %v5226 = vpop.xlane.xlu0 %5225
    %v5227 = vsel %vm195, %v5063, -inf
    %5228 = vmax.xlane.f32.xlu0 %v5227
    %v5229 = vpop.xlane.xlu0 %5228
    %v5230 = vsel %vm195, %v5064, -inf
    %5231 = vmax.xlane.f32.xlu0 %v5230
    %v5232 = vpop.xlane.xlu0 %5231
    %v5233 = vsel %vm195, %v5065, -inf
    %5234 = vmax.xlane.f32.xlu0 %v5233
    %v5235 = vpop.xlane.xlu0 %5234
    %v5236 = vsel %vm195, %v5066, -inf
    %5237 = vmax.xlane.f32.xlu0 %v5236
    %v5238 = vpop.xlane.xlu0 %5237
    %v5239 = vsel %vm195, %v5067, -inf
    %5240 = vmax.xlane.f32.xlu0 %v5239
    %v5241 = vpop.xlane.xlu0 %5240
    %v5242 = vsel %vm195, %v5068, -inf
    %5243 = vmax.xlane.f32.xlu0 %v5242
    %v5244 = vpop.xlane.xlu0 %5243
    %v5245 = vsel %vm195, %v5069, -inf
    %5246 = vmax.xlane.f32.xlu0 %v5245
    %v5247 = vpop.xlane.xlu0 %5246
    %v5248 = vsel %vm195, %v5070, -inf
    %5249 = vmax.xlane.f32.xlu0 %v5248
    %v5250 = vpop.xlane.xlu0 %5249
    %v5251 = vsel %vm195, %v5071, -inf
    %5252 = vmax.xlane.f32.xlu0 %v5251
    %v5253 = vpop.xlane.xlu0 %5252
    %v5254 = vsel %vm195, %v5072, -inf
    %5255 = vmax.xlane.f32.xlu0 %v5254
    %v5256 = vpop.xlane.xlu0 %5255
    %v5257 = vsel %vm195, %v5073, -inf
    %5258 = vmax.xlane.f32.xlu0 %v5257
    %v5259 = vpop.xlane.xlu0 %5258
    %v5260 = vsel %vm195, %v5074, -inf
    %5261 = vmax.xlane.f32.xlu0 %v5260
    %v5262 = vpop.xlane.xlu0 %5261
    %v5263 = vsel %vm195, %v5075, -inf
    %5264 = vmax.xlane.f32.xlu0 %v5263
    %v5265 = vpop.xlane.xlu0 %5264
    %v5266 = vsel %vm195, %v5076, -inf
    %5267 = vmax.xlane.f32.xlu0 %v5266
    %v5268 = vpop.xlane.xlu0 %5267
    %v5269 = vsub.f32 %v5013, %v5079
    %v5270 = vsub.f32 %v5014, %v5082
    %v5271 = vsub.f32 %v5015, %v5085
    %v5272 = vsub.f32 %v5016, %v5088
    %v5273 = vsub.f32 %v5017, %v5091
    %v5274 = vsub.f32 %v5018, %v5094
    %v5275 = vsub.f32 %v5019, %v5097
    %v5276 = vsub.f32 %v5020, %v5100
    %v5277 = vsub.f32 %v5021, %v5103
    %v5278 = vsub.f32 %v5022, %v5106
    %v5279 = vsub.f32 %v5023, %v5109
    %v5280 = vsub.f32 %v5024, %v5112
    %v5281 = vsub.f32 %v5025, %v5115
    %v5282 = vsub.f32 %v5026, %v5118
    %v5283 = vsub.f32 %v5027, %v5121
    %v5284 = vsub.f32 %v5028, %v5124
    %v5285 = vsub.f32 %v5029, %v5127
    %v5286 = vsub.f32 %v5030, %v5130
    %v5287 = vsub.f32 %v5031, %v5133
    %v5288 = vsub.f32 %v5032, %v5136
    %v5289 = vsub.f32 %v5033, %v5139
    %v5290 = vsub.f32 %v5034, %v5142
    %v5291 = vsub.f32 %v5035, %v5145
    %v5292 = vsub.f32 %v5036, %v5148
    %v5293 = vsub.f32 %v5037, %v5151
    %v5294 = vsub.f32 %v5038, %v5154
    %v5295 = vsub.f32 %v5039, %v5157
    %v5296 = vsub.f32 %v5040, %v5160
    %v5297 = vsub.f32 %v5041, %v5163
    %v5298 = vsub.f32 %v5042, %v5166
    %v5299 = vsub.f32 %v5043, %v5169
    %v5300 = vsub.f32 %v5044, %v5172
    %v5301 = vsub.f32 %v5045, %v5175
    %v5302 = vsub.f32 %v5046, %v5178
    %v5303 = vsub.f32 %v5047, %v5181
    %v5304 = vsub.f32 %v5048, %v5184
    %v5305 = vsub.f32 %v5049, %v5187
    %v5306 = vsub.f32 %v5050, %v5190
    %v5307 = vsub.f32 %v5051, %v5193
    %v5308 = vsub.f32 %v5052, %v5196
    %v5309 = vsub.f32 %v5053, %v5199
    %v5310 = vsub.f32 %v5054, %v5202
    %v5311 = vsub.f32 %v5055, %v5205
    %v5312 = vsub.f32 %v5056, %v5208
    %v5313 = vsub.f32 %v5057, %v5211
    %v5314 = vsub.f32 %v5058, %v5214
    %v5315 = vsub.f32 %v5059, %v5217
    %v5316 = vsub.f32 %v5060, %v5220
    %v5317 = vsub.f32 %v5061, %v5223
    %v5318 = vsub.f32 %v5062, %v5226
    %v5319 = vsub.f32 %v5063, %v5229
    %v5320 = vsub.f32 %v5064, %v5232
    %v5321 = vsub.f32 %v5065, %v5235
    %v5322 = vsub.f32 %v5066, %v5238
    %v5323 = vsub.f32 %v5067, %v5241
    %v5324 = vsub.f32 %v5068, %v5244
    %v5325 = vsub.f32 %v5069, %v5247
    %v5326 = vsub.f32 %v5070, %v5250
    %v5327 = vsub.f32 %v5071, %v5253
    %v5328 = vsub.f32 %v5072, %v5256
    %v5329 = vsub.f32 %v5073, %v5259
    %v5330 = vsub.f32 %v5074, %v5262
    %v5331 = vsub.f32 %v5075, %v5265
    %v5332 = vsub.f32 %v5076, %v5268
    %v5333 = vmul.f32 %v5269, 1.442695
    %v5334 = vpow.pop %v5333
    %v5335 = vmul.f32 %v5270, 1.442695
    %v5336 = vpow.pop %v5335
    %v5337 = vmul.f32 %v5271, 1.442695
    %v5338 = vpow.pop %v5337
    %v5339 = vmul.f32 %v5272, 1.442695
    %v5340 = vpow.pop %v5339
    %v5341 = vmul.f32 %v5273, 1.442695
    %v5342 = vpow.pop %v5341
    %v5343 = vmul.f32 %v5274, 1.442695
    %v5344 = vpow.pop %v5343
    %v5345 = vmul.f32 %v5275, 1.442695
    %v5346 = vpow.pop %v5345
    %v5347 = vmul.f32 %v5276, 1.442695
    %v5348 = vpow.pop %v5347
    %v5349 = vmul.f32 %v5277, 1.442695
    %v5350 = vpow.pop %v5349
    %v5351 = vmul.f32 %v5278, 1.442695
    %v5352 = vpow.pop %v5351
    %v5353 = vmul.f32 %v5279, 1.442695
    %v5354 = vpow.pop %v5353
    %v5355 = vmul.f32 %v5280, 1.442695
    %v5356 = vpow.pop %v5355
    %v5357 = vmul.f32 %v5281, 1.442695
    %v5358 = vpow.pop %v5357
    %v5359 = vmul.f32 %v5282, 1.442695
    %v5360 = vpow.pop %v5359
    %v5361 = vmul.f32 %v5283, 1.442695
    %v5362 = vpow.pop %v5361
    %v5363 = vmul.f32 %v5284, 1.442695
    %v5364 = vpow.pop %v5363
    %v5365 = vmul.f32 %v5285, 1.442695
    %v5366 = vpow.pop %v5365
    %v5367 = vmul.f32 %v5286, 1.442695
    %v5368 = vpow.pop %v5367
    %v5369 = vmul.f32 %v5287, 1.442695
    %v5370 = vpow.pop %v5369
    %v5371 = vmul.f32 %v5288, 1.442695
    %v5372 = vpow.pop %v5371
    %v5373 = vmul.f32 %v5289, 1.442695
    %v5374 = vpow.pop %v5373
    %v5375 = vmul.f32 %v5290, 1.442695
    %v5376 = vpow.pop %v5375
    %v5377 = vmul.f32 %v5291, 1.442695
    %v5378 = vpow.pop %v5377
    %v5379 = vmul.f32 %v5292, 1.442695
    %v5380 = vpow.pop %v5379
    %v5381 = vmul.f32 %v5293, 1.442695
    %v5382 = vpow.pop %v5381
    %v5383 = vmul.f32 %v5294, 1.442695
    %v5384 = vpow.pop %v5383
    %v5385 = vmul.f32 %v5295, 1.442695
    %v5386 = vpow.pop %v5385
    %v5387 = vmul.f32 %v5296, 1.442695
    %v5388 = vpow.pop %v5387
    %v5389 = vmul.f32 %v5297, 1.442695
    %v5390 = vpow.pop %v5389
    %v5391 = vmul.f32 %v5298, 1.442695
    %v5392 = vpow.pop %v5391
    %v5393 = vmul.f32 %v5299, 1.442695
    %v5394 = vpow.pop %v5393
    %v5395 = vmul.f32 %v5300, 1.442695
    %v5396 = vpow.pop %v5395
    %v5397 = vmul.f32 %v5301, 1.442695
    %v5398 = vpow.pop %v5397
    %v5399 = vmul.f32 %v5302, 1.442695
    %v5400 = vpow.pop %v5399
    %v5401 = vmul.f32 %v5303, 1.442695
    %v5402 = vpow.pop %v5401
    %v5403 = vmul.f32 %v5304, 1.442695
    %v5404 = vpow.pop %v5403
    %v5405 = vmul.f32 %v5305, 1.442695
    %v5406 = vpow.pop %v5405
    %v5407 = vmul.f32 %v5306, 1.442695
    %v5408 = vpow.pop %v5407
    %v5409 = vmul.f32 %v5307, 1.442695
    %v5410 = vpow.pop %v5409
    %v5411 = vmul.f32 %v5308, 1.442695
    %v5412 = vpow.pop %v5411
    %v5413 = vmul.f32 %v5309, 1.442695
    %v5414 = vpow.pop %v5413
    %v5415 = vmul.f32 %v5310, 1.442695
    %v5416 = vpow.pop %v5415
    %v5417 = vmul.f32 %v5311, 1.442695
    %v5418 = vpow.pop %v5417
    %v5419 = vmul.f32 %v5312, 1.442695
    %v5420 = vpow.pop %v5419
    %v5421 = vmul.f32 %v5313, 1.442695
    %v5422 = vpow.pop %v5421
    %v5423 = vmul.f32 %v5314, 1.442695
    %v5424 = vpow.pop %v5423
    %v5425 = vmul.f32 %v5315, 1.442695
    %v5426 = vpow.pop %v5425
    %v5427 = vmul.f32 %v5316, 1.442695
    %v5428 = vpow.pop %v5427
    %v5429 = vmul.f32 %v5317, 1.442695
    %v5430 = vpow.pop %v5429
    %v5431 = vmul.f32 %v5318, 1.442695
    %v5432 = vpow.pop %v5431
    %v5433 = vmul.f32 %v5319, 1.442695
    %v5434 = vpow.pop %v5433
    %v5435 = vmul.f32 %v5320, 1.442695
    %v5436 = vpow.pop %v5435
    %v5437 = vmul.f32 %v5321, 1.442695
    %v5438 = vpow.pop %v5437
    %v5439 = vmul.f32 %v5322, 1.442695
    %v5440 = vpow.pop %v5439
    %v5441 = vmul.f32 %v5323, 1.442695
    %v5442 = vpow.pop %v5441
    %v5443 = vmul.f32 %v5324, 1.442695
    %v5444 = vpow.pop %v5443
    %v5445 = vmul.f32 %v5325, 1.442695
    %v5446 = vpow.pop %v5445
    %v5447 = vmul.f32 %v5326, 1.442695
    %v5448 = vpow.pop %v5447
    %v5449 = vmul.f32 %v5327, 1.442695
    %v5450 = vpow.pop %v5449
    %v5451 = vmul.f32 %v5328, 1.442695
    %v5452 = vpow.pop %v5451
    %v5453 = vmul.f32 %v5329, 1.442695
    %v5454 = vpow.pop %v5453
    %v5455 = vmul.f32 %v5330, 1.442695
    %v5456 = vpow.pop %v5455
    %v5457 = vmul.f32 %v5331, 1.442695
    %v5458 = vpow.pop %v5457
    %v5459 = vmul.f32 %v5332, 1.442695
    %v5460 = vpow.pop %v5459
    %v5461 = vsel %vm195, %v5334, 0.0
    %5462 = vadd.xlane.f32.xlu0 %v5461
    %v5463 = vpop.xlane.xlu0 %5462
    %v5464 = vsel %vm195, %v5336, 0.0
    %5465 = vadd.xlane.f32.xlu0 %v5464
    %v5466 = vpop.xlane.xlu0 %5465
    %v5467 = vsel %vm195, %v5338, 0.0
    %5468 = vadd.xlane.f32.xlu0 %v5467
    %v5469 = vpop.xlane.xlu0 %5468
    %v5470 = vsel %vm195, %v5340, 0.0
    %5471 = vadd.xlane.f32.xlu0 %v5470
    %v5472 = vpop.xlane.xlu0 %5471
    %v5473 = vsel %vm195, %v5342, 0.0
    %5474 = vadd.xlane.f32.xlu0 %v5473
    %v5475 = vpop.xlane.xlu0 %5474
    %v5476 = vsel %vm195, %v5344, 0.0
    %5477 = vadd.xlane.f32.xlu0 %v5476
    %v5478 = vpop.xlane.xlu0 %5477
    %v5479 = vsel %vm195, %v5346, 0.0
    %5480 = vadd.xlane.f32.xlu0 %v5479
    %v5481 = vpop.xlane.xlu0 %5480
    %v5482 = vsel %vm195, %v5348, 0.0
    %5483 = vadd.xlane.f32.xlu0 %v5482
    %v5484 = vpop.xlane.xlu0 %5483
    %v5485 = vsel %vm195, %v5350, 0.0
    %5486 = vadd.xlane.f32.xlu0 %v5485
    %v5487 = vpop.xlane.xlu0 %5486
    %v5488 = vsel %vm195, %v5352, 0.0
    %5489 = vadd.xlane.f32.xlu0 %v5488
    %v5490 = vpop.xlane.xlu0 %5489
    %v5491 = vsel %vm195, %v5354, 0.0
    %5492 = vadd.xlane.f32.xlu0 %v5491
    %v5493 = vpop.xlane.xlu0 %5492
    %v5494 = vsel %vm195, %v5356, 0.0
    %5495 = vadd.xlane.f32.xlu0 %v5494
    %v5496 = vpop.xlane.xlu0 %5495
    %v5497 = vsel %vm195, %v5358, 0.0
    %5498 = vadd.xlane.f32.xlu0 %v5497
    %v5499 = vpop.xlane.xlu0 %5498
    %v5500 = vsel %vm195, %v5360, 0.0
    %5501 = vadd.xlane.f32.xlu0 %v5500
    %v5502 = vpop.xlane.xlu0 %5501
    %v5503 = vsel %vm195, %v5362, 0.0
    %5504 = vadd.xlane.f32.xlu0 %v5503
    %v5505 = vpop.xlane.xlu0 %5504
    %v5506 = vsel %vm195, %v5364, 0.0
    %5507 = vadd.xlane.f32.xlu0 %v5506
    %v5508 = vpop.xlane.xlu0 %5507
    %v5509 = vsel %vm195, %v5366, 0.0
    %5510 = vadd.xlane.f32.xlu0 %v5509
    %v5511 = vpop.xlane.xlu0 %5510
    %v5512 = vsel %vm195, %v5368, 0.0
    %5513 = vadd.xlane.f32.xlu0 %v5512
    %v5514 = vpop.xlane.xlu0 %5513
    %v5515 = vsel %vm195, %v5370, 0.0
    %5516 = vadd.xlane.f32.xlu0 %v5515
    %v5517 = vpop.xlane.xlu0 %5516
    %v5518 = vsel %vm195, %v5372, 0.0
    %5519 = vadd.xlane.f32.xlu0 %v5518
    %v5520 = vpop.xlane.xlu0 %5519
    %v5521 = vsel %vm195, %v5374, 0.0
    %5522 = vadd.xlane.f32.xlu0 %v5521
    %v5523 = vpop.xlane.xlu0 %5522
    %v5524 = vsel %vm195, %v5376, 0.0
    %5525 = vadd.xlane.f32.xlu0 %v5524
    %v5526 = vpop.xlane.xlu0 %5525
    %v5527 = vsel %vm195, %v5378, 0.0
    %5528 = vadd.xlane.f32.xlu0 %v5527
    %v5529 = vpop.xlane.xlu0 %5528
    %v5530 = vsel %vm195, %v5380, 0.0
    %5531 = vadd.xlane.f32.xlu0 %v5530
    %v5532 = vpop.xlane.xlu0 %5531
    %v5533 = vsel %vm195, %v5382, 0.0
    %5534 = vadd.xlane.f32.xlu0 %v5533
    %v5535 = vpop.xlane.xlu0 %5534
    %v5536 = vsel %vm195, %v5384, 0.0
    %5537 = vadd.xlane.f32.xlu0 %v5536
    %v5538 = vpop.xlane.xlu0 %5537
    %v5539 = vsel %vm195, %v5386, 0.0
    %5540 = vadd.xlane.f32.xlu0 %v5539
    %v5541 = vpop.xlane.xlu0 %5540
    %v5542 = vsel %vm195, %v5388, 0.0
    %5543 = vadd.xlane.f32.xlu0 %v5542
    %v5544 = vpop.xlane.xlu0 %5543
    %v5545 = vsel %vm195, %v5390, 0.0
    %5546 = vadd.xlane.f32.xlu0 %v5545
    %v5547 = vpop.xlane.xlu0 %5546
    %v5548 = vsel %vm195, %v5392, 0.0
    %5549 = vadd.xlane.f32.xlu0 %v5548
    %v5550 = vpop.xlane.xlu0 %5549
    %v5551 = vsel %vm195, %v5394, 0.0
    %5552 = vadd.xlane.f32.xlu0 %v5551
    %v5553 = vpop.xlane.xlu0 %5552
    %v5554 = vsel %vm195, %v5396, 0.0
    %5555 = vadd.xlane.f32.xlu0 %v5554
    %v5556 = vpop.xlane.xlu0 %5555
    %v5557 = vsel %vm195, %v5398, 0.0
    %5558 = vadd.xlane.f32.xlu0 %v5557
    %v5559 = vpop.xlane.xlu0 %5558
    %v5560 = vsel %vm195, %v5400, 0.0
    %5561 = vadd.xlane.f32.xlu0 %v5560
    %v5562 = vpop.xlane.xlu0 %5561
    %v5563 = vsel %vm195, %v5402, 0.0
    %5564 = vadd.xlane.f32.xlu0 %v5563
    %v5565 = vpop.xlane.xlu0 %5564
    %v5566 = vsel %vm195, %v5404, 0.0
    %5567 = vadd.xlane.f32.xlu0 %v5566
    %v5568 = vpop.xlane.xlu0 %5567
    %v5569 = vsel %vm195, %v5406, 0.0
    %5570 = vadd.xlane.f32.xlu0 %v5569
    %v5571 = vpop.xlane.xlu0 %5570
    %v5572 = vsel %vm195, %v5408, 0.0
    %5573 = vadd.xlane.f32.xlu0 %v5572
    %v5574 = vpop.xlane.xlu0 %5573
    %v5575 = vsel %vm195, %v5410, 0.0
    %5576 = vadd.xlane.f32.xlu0 %v5575
    %v5577 = vpop.xlane.xlu0 %5576
    %v5578 = vsel %vm195, %v5412, 0.0
    %5579 = vadd.xlane.f32.xlu0 %v5578
    %v5580 = vpop.xlane.xlu0 %5579
    %v5581 = vsel %vm195, %v5414, 0.0
    %5582 = vadd.xlane.f32.xlu0 %v5581
    %v5583 = vpop.xlane.xlu0 %5582
    %v5584 = vsel %vm195, %v5416, 0.0
    %5585 = vadd.xlane.f32.xlu0 %v5584
    %v5586 = vpop.xlane.xlu0 %5585
    %v5587 = vsel %vm195, %v5418, 0.0
    %5588 = vadd.xlane.f32.xlu0 %v5587
    %v5589 = vpop.xlane.xlu0 %5588
    %v5590 = vsel %vm195, %v5420, 0.0
    %5591 = vadd.xlane.f32.xlu0 %v5590
    %v5592 = vpop.xlane.xlu0 %5591
    %v5593 = vsel %vm195, %v5422, 0.0
    %5594 = vadd.xlane.f32.xlu0 %v5593
    %v5595 = vpop.xlane.xlu0 %5594
    %v5596 = vsel %vm195, %v5424, 0.0
    %5597 = vadd.xlane.f32.xlu0 %v5596
    %v5598 = vpop.xlane.xlu0 %5597
    %v5599 = vsel %vm195, %v5426, 0.0
    %5600 = vadd.xlane.f32.xlu0 %v5599
    %v5601 = vpop.xlane.xlu0 %5600
    %v5602 = vsel %vm195, %v5428, 0.0
    %5603 = vadd.xlane.f32.xlu0 %v5602
    %v5604 = vpop.xlane.xlu0 %5603
    %v5605 = vsel %vm195, %v5430, 0.0
    %5606 = vadd.xlane.f32.xlu0 %v5605
    %v5607 = vpop.xlane.xlu0 %5606
    %v5608 = vsel %vm195, %v5432, 0.0
    %5609 = vadd.xlane.f32.xlu0 %v5608
    %v5610 = vpop.xlane.xlu0 %5609
    %v5611 = vsel %vm195, %v5434, 0.0
    %5612 = vadd.xlane.f32.xlu0 %v5611
    %v5613 = vpop.xlane.xlu0 %5612
    %v5614 = vsel %vm195, %v5436, 0.0
    %5615 = vadd.xlane.f32.xlu0 %v5614
    %v5616 = vpop.xlane.xlu0 %5615
    %v5617 = vsel %vm195, %v5438, 0.0
    %5618 = vadd.xlane.f32.xlu0 %v5617
    %v5619 = vpop.xlane.xlu0 %5618
    %v5620 = vsel %vm195, %v5440, 0.0
    %5621 = vadd.xlane.f32.xlu0 %v5620
    %v5622 = vpop.xlane.xlu0 %5621
    %v5623 = vsel %vm195, %v5442, 0.0
    %5624 = vadd.xlane.f32.xlu0 %v5623
    %v5625 = vpop.xlane.xlu0 %5624
    %v5626 = vsel %vm195, %v5444, 0.0
    %5627 = vadd.xlane.f32.xlu0 %v5626
    %v5628 = vpop.xlane.xlu0 %5627
    %v5629 = vsel %vm195, %v5446, 0.0
    %5630 = vadd.xlane.f32.xlu0 %v5629
    %v5631 = vpop.xlane.xlu0 %5630
    %v5632 = vsel %vm195, %v5448, 0.0
    %5633 = vadd.xlane.f32.xlu0 %v5632
    %v5634 = vpop.xlane.xlu0 %5633
    %v5635 = vsel %vm195, %v5450, 0.0
    %5636 = vadd.xlane.f32.xlu0 %v5635
    %v5637 = vpop.xlane.xlu0 %5636
    %v5638 = vsel %vm195, %v5452, 0.0
    %5639 = vadd.xlane.f32.xlu0 %v5638
    %v5640 = vpop.xlane.xlu0 %5639
    %v5641 = vsel %vm195, %v5454, 0.0
    %5642 = vadd.xlane.f32.xlu0 %v5641
    %v5643 = vpop.xlane.xlu0 %5642
    %v5644 = vsel %vm195, %v5456, 0.0
    %5645 = vadd.xlane.f32.xlu0 %v5644
    %v5646 = vpop.xlane.xlu0 %5645
    %v5647 = vsel %vm195, %v5458, 0.0
    %5648 = vadd.xlane.f32.xlu0 %v5647
    %v5649 = vpop.xlane.xlu0 %5648
    %v5650 = vsel %vm195, %v5460, 0.0
    %5651 = vadd.xlane.f32.xlu0 %v5650
    %v5652 = vpop.xlane.xlu0 %5651
    %v5653 = vrcp.pop %v5463
    %v5654 = vrcp.pop %v5466
    %v5655 = vrcp.pop %v5469
    %v5656 = vrcp.pop %v5472
    %v5657 = vrcp.pop %v5475
    %v5658 = vrcp.pop %v5478
    %v5659 = vrcp.pop %v5481
    %v5660 = vrcp.pop %v5484
    %v5661 = vrcp.pop %v5487
    %v5662 = vrcp.pop %v5490
    %v5663 = vrcp.pop %v5493
    %v5664 = vrcp.pop %v5496
    %v5665 = vrcp.pop %v5499
    %v5666 = vrcp.pop %v5502
    %v5667 = vrcp.pop %v5505
    %v5668 = vrcp.pop %v5508
    %v5669 = vrcp.pop %v5511
    %v5670 = vrcp.pop %v5514
    %v5671 = vrcp.pop %v5517
    %v5672 = vrcp.pop %v5520
    %v5673 = vrcp.pop %v5523
    %v5674 = vrcp.pop %v5526
    %v5675 = vrcp.pop %v5529
    %v5676 = vrcp.pop %v5532
    %v5677 = vrcp.pop %v5535
    %v5678 = vrcp.pop %v5538
    %v5679 = vrcp.pop %v5541
    %v5680 = vrcp.pop %v5544
    %v5681 = vrcp.pop %v5547
    %v5682 = vrcp.pop %v5550
    %v5683 = vrcp.pop %v5553
    %v5684 = vrcp.pop %v5556
    %v5685 = vrcp.pop %v5559
    %v5686 = vrcp.pop %v5562
    %v5687 = vrcp.pop %v5565
    %v5688 = vrcp.pop %v5568
    %v5689 = vrcp.pop %v5571
    %v5690 = vrcp.pop %v5574
    %v5691 = vrcp.pop %v5577
    %v5692 = vrcp.pop %v5580
    %v5693 = vrcp.pop %v5583
    %v5694 = vrcp.pop %v5586
    %v5695 = vrcp.pop %v5589
    %v5696 = vrcp.pop %v5592
    %v5697 = vrcp.pop %v5595
    %v5698 = vrcp.pop %v5598
    %v5699 = vrcp.pop %v5601
    %v5700 = vrcp.pop %v5604
    %v5701 = vrcp.pop %v5607
    %v5702 = vrcp.pop %v5610
    %v5703 = vrcp.pop %v5613
    %v5704 = vrcp.pop %v5616
    %v5705 = vrcp.pop %v5619
    %v5706 = vrcp.pop %v5622
    %v5707 = vrcp.pop %v5625
    %v5708 = vrcp.pop %v5628
    %v5709 = vrcp.pop %v5631
    %v5710 = vrcp.pop %v5634
    %v5711 = vrcp.pop %v5637
    %v5712 = vrcp.pop %v5640
    %v5713 = vrcp.pop %v5643
    %v5714 = vrcp.pop %v5646
    %v5715 = vrcp.pop %v5649
    %v5716 = vrcp.pop %v5652
    %v5717 = vmul.f32 %v5334, %v5653
    %v5718 = vmul.f32 %v5336, %v5654
    %v5719 = vmul.f32 %v5338, %v5655
    %v5720 = vmul.f32 %v5340, %v5656
    %v5721 = vmul.f32 %v5342, %v5657
    %v5722 = vmul.f32 %v5344, %v5658
    %v5723 = vmul.f32 %v5346, %v5659
    %v5724 = vmul.f32 %v5348, %v5660
    %v5725 = vmul.f32 %v5350, %v5661
    %v5726 = vmul.f32 %v5352, %v5662
    %v5727 = vmul.f32 %v5354, %v5663
    %v5728 = vmul.f32 %v5356, %v5664
    %v5729 = vmul.f32 %v5358, %v5665
    %v5730 = vmul.f32 %v5360, %v5666
    %v5731 = vmul.f32 %v5362, %v5667
    %v5732 = vmul.f32 %v5364, %v5668
    %v5733 = vmul.f32 %v5366, %v5669
    %v5734 = vmul.f32 %v5368, %v5670
    %v5735 = vmul.f32 %v5370, %v5671
    %v5736 = vmul.f32 %v5372, %v5672
    %v5737 = vmul.f32 %v5374, %v5673
    %v5738 = vmul.f32 %v5376, %v5674
    %v5739 = vmul.f32 %v5378, %v5675
    %v5740 = vmul.f32 %v5380, %v5676
    %v5741 = vmul.f32 %v5382, %v5677
    %v5742 = vmul.f32 %v5384, %v5678
    %v5743 = vmul.f32 %v5386, %v5679
    %v5744 = vmul.f32 %v5388, %v5680
    %v5745 = vmul.f32 %v5390, %v5681
    %v5746 = vmul.f32 %v5392, %v5682
    %v5747 = vmul.f32 %v5394, %v5683
    %v5748 = vmul.f32 %v5396, %v5684
    %v5749 = vmul.f32 %v5398, %v5685
    %v5750 = vmul.f32 %v5400, %v5686
    %v5751 = vmul.f32 %v5402, %v5687
    %v5752 = vmul.f32 %v5404, %v5688
    %v5753 = vmul.f32 %v5406, %v5689
    %v5754 = vmul.f32 %v5408, %v5690
    %v5755 = vmul.f32 %v5410, %v5691
    %v5756 = vmul.f32 %v5412, %v5692
    %v5757 = vmul.f32 %v5414, %v5693
    %v5758 = vmul.f32 %v5416, %v5694
    %v5759 = vmul.f32 %v5418, %v5695
    %v5760 = vmul.f32 %v5420, %v5696
    %v5761 = vmul.f32 %v5422, %v5697
    %v5762 = vmul.f32 %v5424, %v5698
    %v5763 = vmul.f32 %v5426, %v5699
    %v5764 = vmul.f32 %v5428, %v5700
    %v5765 = vmul.f32 %v5430, %v5701
    %v5766 = vmul.f32 %v5432, %v5702
    %v5767 = vmul.f32 %v5434, %v5703
    %v5768 = vmul.f32 %v5436, %v5704
    %v5769 = vmul.f32 %v5438, %v5705
    %v5770 = vmul.f32 %v5440, %v5706
    %v5771 = vmul.f32 %v5442, %v5707
    %v5772 = vmul.f32 %v5444, %v5708
    %v5773 = vmul.f32 %v5446, %v5709
    %v5774 = vmul.f32 %v5448, %v5710
    %v5775 = vmul.f32 %v5450, %v5711
    %v5776 = vmul.f32 %v5452, %v5712
    %v5777 = vmul.f32 %v5454, %v5713
    %v5778 = vmul.f32 %v5456, %v5714
    %v5779 = vmul.f32 %v5458, %v5715
    %v5780 = vmul.f32 %v5460, %v5716
    %5781 = vxpose.xlu0.b32.start [1/16] %v3015, 128
    %5782 = vxpose.xlu0.b32.cont [2/16] %v3020, 128
    %5783 = vxpose.xlu0.b32.cont [3/16] %v3025, 128
    %5784 = vxpose.xlu0.b32.cont [4/16] %v3030, 128
    %5785 = vxpose.xlu0.b32.cont [5/16] %v3035, 128
    %5786 = vxpose.xlu0.b32.cont [6/16] %v3040, 128
    %5787 = vxpose.xlu0.b32.cont [7/16] %v3045, 128
    %5788 = vxpose.xlu0.b32.cont [8/16] %v3050, 128
    %5789 = vxpose.xlu0.b32.cont [9/16] 0.0, 128
    %5790 = vxpose.xlu0.b32.cont [10/16] 0.0, 128
    %5791 = vxpose.xlu0.b32.cont [11/16] 0.0, 128
    %5792 = vxpose.xlu0.b32.cont [12/16] 0.0, 128
    %5793 = vxpose.xlu0.b32.cont [13/16] 0.0, 128
    %5794 = vxpose.xlu0.b32.cont [14/16] 0.0, 128
    %5795 = vxpose.xlu0.b32.cont [15/16] 0.0, 128
    %5796 = vxpose.xlu0.b32.end [16/16] 0.0, 128
    %v5797 = vpop.trf.xlu0
    %v5798 = vpop.trf.xlu0
    %v5799 = vpop.trf.xlu0
    %v5800 = vpop.trf.xlu0
    %v5801 = vpop.trf.xlu0
    %v5802 = vpop.trf.xlu0
    %v5803 = vpop.trf.xlu0
    %v5804 = vpop.trf.xlu0
    %v5805 = vpop.trf.xlu0
    %v5806 = vpop.trf.xlu0
    %v5807 = vpop.trf.xlu0
    %v5808 = vpop.trf.xlu0
    %v5809 = vpop.trf.xlu0
    %v5810 = vpop.trf.xlu0
    %v5811 = vpop.trf.xlu0
    %v5812 = vpop.trf.xlu0
    %v5814 = vsel %vm195, %v5797, 0
    %v5817 = vsel %vm195, %v5717, 0
    %v5820 = vsel %vm195, %v5718, 0
    %v5823 = vsel %vm195, %v5719, 0
    %v5826 = vsel %vm195, %v5720, 0
    %v5829 = vsel %vm195, %v5721, 0
    %v5832 = vsel %vm195, %v5722, 0
    %v5835 = vsel %vm195, %v5723, 0
    %v5838 = vsel %vm195, %v5724, 0
    %5840 = vmatprep.subr.mxu0 0.0
    %5841 = vmatpush1.xpose.msra.mxu0 %v5817
    %5842 = vmatprep.subr.mxu0 0.0
    %5843 = vmatpush1.xpose.msra.mxu0 %v5820
    %5844 = vmatprep.subr.mxu0 0.0
    %5845 = vmatpush1.xpose.msra.mxu0 %v5823
    %5846 = vmatprep.subr.mxu0 0.0
    %5847 = vmatpush1.xpose.msra.mxu0 %v5826
    %5848 = vmatprep.subr.mxu0 0.0
    %5849 = vmatpush1.xpose.msra.mxu0 %v5829
    %5850 = vmatprep.subr.mxu0 0.0
    %5851 = vmatpush1.xpose.msra.mxu0 %v5832
    %5852 = vmatprep.subr.mxu0 0.0
    %5853 = vmatpush1.xpose.msra.mxu0 %v5835
    %5854 = vmatprep.subr.mxu0 0.0
    %5855 = vmatpush1.xpose.msra.mxu0 %v5838
    %5856 = vmatprep.subr.mxu0 0.0
    %5857 = vmatpush1.xpose.msra.mxu0 0.0
    %5858 = vmatprep.subr.mxu0 0.0
    %5859 = vmatpush1.xpose.msra.mxu0 0.0
    %5860 = vmatprep.subr.mxu0 0.0
    %5861 = vmatpush1.xpose.msra.mxu0 0.0
    %5862 = vmatprep.subr.mxu0 0.0
    %5863 = vmatpush1.xpose.msra.mxu0 0.0
    %5864 = vmatprep.subr.mxu0 0.0
    %5865 = vmatpush1.xpose.msra.mxu0 0.0
    %5866 = vmatprep.subr.mxu0 0.0
    %5867 = vmatpush1.xpose.msra.mxu0 0.0
    %5868 = vmatprep.subr.mxu0 0.0
    %5869 = vmatpush1.xpose.msra.mxu0 0.0
    %5870 = vmatprep.subr.mxu0 0.0
    %5871 = vmatpush1.xpose.msra.mxu0 0.0
    %5872 = vmatprep.subr.mxu0 0.0
    %5873 = vmatpush1.xpose.msra.mxu0 0.0
    %5874 = vmatprep.subr.mxu0 0.0
    %5875 = vmatpush1.xpose.msra.mxu0 0.0
    %5876 = vmatprep.subr.mxu0 0.0
    %5877 = vmatpush1.xpose.msra.mxu0 0.0
    %5878 = vmatprep.subr.mxu0 0.0
    %5879 = vmatpush1.xpose.msra.mxu0 0.0
    %5880 = vmatprep.subr.mxu0 0.0
    %5881 = vmatpush1.xpose.msra.mxu0 0.0
    %5882 = vmatprep.subr.mxu0 0.0
    %5883 = vmatpush1.xpose.msra.mxu0 0.0
    %5884 = vmatprep.subr.mxu0 0.0
    %5885 = vmatpush1.xpose.msra.mxu0 0.0
    %5886 = vmatprep.subr.mxu0 0.0
    %5887 = vmatpush1.xpose.msra.mxu0 0.0
    %5888 = vmatprep.subr.mxu0 0.0
    %5889 = vmatpush1.xpose.msra.mxu0 0.0
    %5890 = vmatprep.subr.mxu0 0.0
    %5891 = vmatpush1.xpose.msra.mxu0 0.0
    %5892 = vmatprep.subr.mxu0 0.0
    %5893 = vmatpush1.xpose.msra.mxu0 0.0
    %5894 = vmatprep.subr.mxu0 0.0
    %5895 = vmatpush1.xpose.msra.mxu0 0.0
    %5896 = vmatprep.subr.mxu0 0.0
    %5897 = vmatpush1.xpose.msra.mxu0 0.0
    %5898 = vmatprep.subr.mxu0 0.0
    %5899 = vmatpush1.xpose.msra.mxu0 0.0
    %5900 = vmatprep.subr.mxu0 0.0
    %5901 = vmatpush1.xpose.msra.mxu0 0.0
    %5902 = vmatprep.subr.mxu0 0.0
    %5903 = vmatpush1.xpose.msra.mxu0 0.0
    %5904 = vmatprep.mubr.f32.mxu0 0.0
    %5905 = vmatmul.mubr.f32.gmra.mrb[0].mxu0 %v5814
    %v5906 = vpop.f32.mrb[0].mxu0
    %v5907 = vadd.f32 0.0, %v5906
    %v5908 = vpop.f32.mrb[0].mxu0
    %5909 = vdwg.mxu0
    %5910 = vxpose.xlu0.b32.start [1/16] %v3120, 128
    %5911 = vxpose.xlu0.b32.cont [2/16] %v3125, 128
    %5912 = vxpose.xlu0.b32.cont [3/16] %v3130, 128
    %5913 = vxpose.xlu0.b32.cont [4/16] %v3135, 128
    %5914 = vxpose.xlu0.b32.cont [5/16] %v3140, 128
    %5915 = vxpose.xlu0.b32.cont [6/16] %v3145, 128
    %5916 = vxpose.xlu0.b32.cont [7/16] %v3150, 128
    %5917 = vxpose.xlu0.b32.cont [8/16] %v3155, 128
    %5918 = vxpose.xlu0.b32.cont [9/16] 0.0, 128
    %5919 = vxpose.xlu0.b32.cont [10/16] 0.0, 128
    %5920 = vxpose.xlu0.b32.cont [11/16] 0.0, 128
    %5921 = vxpose.xlu0.b32.cont [12/16] 0.0, 128
    %5922 = vxpose.xlu0.b32.cont [13/16] 0.0, 128
    %5923 = vxpose.xlu0.b32.cont [14/16] 0.0, 128
    %5924 = vxpose.xlu0.b32.cont [15/16] 0.0, 128
    %5925 = vxpose.xlu0.b32.end [16/16] 0.0, 128
    %v5926 = vpop.trf.xlu0
    %v5927 = vpop.trf.xlu0
    %v5928 = vpop.trf.xlu0
    %v5929 = vpop.trf.xlu0
    %v5930 = vpop.trf.xlu0
    %v5931 = vpop.trf.xlu0
    %v5932 = vpop.trf.xlu0
    %v5933 = vpop.trf.xlu0
    %v5934 = vpop.trf.xlu0
    %v5935 = vpop.trf.xlu0
    %v5936 = vpop.trf.xlu0
    %v5937 = vpop.trf.xlu0
    %v5938 = vpop.trf.xlu0
    %v5939 = vpop.trf.xlu0
    %v5940 = vpop.trf.xlu0
    %v5941 = vpop.trf.xlu0
    %v5943 = vsel %vm195, %v5926, 0
    %v5946 = vsel %vm195, %v5725, 0
    %v5949 = vsel %vm195, %v5726, 0
    %v5952 = vsel %vm195, %v5727, 0
    %v5955 = vsel %vm195, %v5728, 0
    %v5958 = vsel %vm195, %v5729, 0
    %v5961 = vsel %vm195, %v5730, 0
    %v5964 = vsel %vm195, %v5731, 0
    %v5967 = vsel %vm195, %v5732, 0
    %5969 = vmatprep.subr.mxu0 0.0
    %5970 = vmatpush1.xpose.msra.mxu0 %v5946
    %5971 = vmatprep.subr.mxu0 0.0
    %5972 = vmatpush1.xpose.msra.mxu0 %v5949
    %5973 = vmatprep.subr.mxu0 0.0
    %5974 = vmatpush1.xpose.msra.mxu0 %v5952
    %5975 = vmatprep.subr.mxu0 0.0
    %5976 = vmatpush1.xpose.msra.mxu0 %v5955
    %5977 = vmatprep.subr.mxu0 0.0
    %5978 = vmatpush1.xpose.msra.mxu0 %v5958
    %5979 = vmatprep.subr.mxu0 0.0
    %5980 = vmatpush1.xpose.msra.mxu0 %v5961
    %5981 = vmatprep.subr.mxu0 0.0
    %5982 = vmatpush1.xpose.msra.mxu0 %v5964
    %5983 = vmatprep.subr.mxu0 0.0
    %5984 = vmatpush1.xpose.msra.mxu0 %v5967
    %5985 = vmatprep.subr.mxu0 0.0
    %5986 = vmatpush1.xpose.msra.mxu0 0.0
    %5987 = vmatprep.subr.mxu0 0.0
    %5988 = vmatpush1.xpose.msra.mxu0 0.0
    %5989 = vmatprep.subr.mxu0 0.0
    %5990 = vmatpush1.xpose.msra.mxu0 0.0
    %5991 = vmatprep.subr.mxu0 0.0
    %5992 = vmatpush1.xpose.msra.mxu0 0.0
    %5993 = vmatprep.subr.mxu0 0.0
    %5994 = vmatpush1.xpose.msra.mxu0 0.0
    %5995 = vmatprep.subr.mxu0 0.0
    %5996 = vmatpush1.xpose.msra.mxu0 0.0
    %5997 = vmatprep.subr.mxu0 0.0
    %5998 = vmatpush1.xpose.msra.mxu0 0.0
    %5999 = vmatprep.subr.mxu0 0.0
    %6000 = vmatpush1.xpose.msra.mxu0 0.0
    %6001 = vmatprep.subr.mxu0 0.0
    %6002 = vmatpush1.xpose.msra.mxu0 0.0
    %6003 = vmatprep.subr.mxu0 0.0
    %6004 = vmatpush1.xpose.msra.mxu0 0.0
    %6005 = vmatprep.subr.mxu0 0.0
    %6006 = vmatpush1.xpose.msra.mxu0 0.0
    %6007 = vmatprep.subr.mxu0 0.0
    %6008 = vmatpush1.xpose.msra.mxu0 0.0
    %6009 = vmatprep.subr.mxu0 0.0
    %6010 = vmatpush1.xpose.msra.mxu0 0.0
    %6011 = vmatprep.subr.mxu0 0.0
    %6012 = vmatpush1.xpose.msra.mxu0 0.0
    %6013 = vmatprep.subr.mxu0 0.0
    %6014 = vmatpush1.xpose.msra.mxu0 0.0
    %6015 = vmatprep.subr.mxu0 0.0
    %6016 = vmatpush1.xpose.msra.mxu0 0.0
    %6017 = vmatprep.subr.mxu0 0.0
    %6018 = vmatpush1.xpose.msra.mxu0 0.0
    %6019 = vmatprep.subr.mxu0 0.0
    %6020 = vmatpush1.xpose.msra.mxu0 0.0
    %6021 = vmatprep.subr.mxu0 0.0
    %6022 = vmatpush1.xpose.msra.mxu0 0.0
    %6023 = vmatprep.subr.mxu0 0.0
    %6024 = vmatpush1.xpose.msra.mxu0 0.0
    %6025 = vmatprep.subr.mxu0 0.0
    %6026 = vmatpush1.xpose.msra.mxu0 0.0
    %6027 = vmatprep.subr.mxu0 0.0
    %6028 = vmatpush1.xpose.msra.mxu0 0.0
    %6029 = vmatprep.subr.mxu0 0.0
    %6030 = vmatpush1.xpose.msra.mxu0 0.0
    %6031 = vmatprep.subr.mxu0 0.0
    %6032 = vmatpush1.xpose.msra.mxu0 0.0
    %6033 = vmatprep.mubr.f32.mxu0 0.0
    %6034 = vmatmul.mubr.f32.gmra.mrb[0].mxu0 %v5943
    %v6035 = vpop.f32.mrb[0].mxu0
    %v6036 = vadd.f32 0.0, %v6035
    %v6037 = vpop.f32.mrb[0].mxu0
    %6038 = vdwg.mxu0
    %6039 = vxpose.xlu0.b32.start [1/16] %v3225, 128
    %6040 = vxpose.xlu0.b32.cont [2/16] %v3230, 128
    %6041 = vxpose.xlu0.b32.cont [3/16] %v3235, 128
    %6042 = vxpose.xlu0.b32.cont [4/16] %v3240, 128
    %6043 = vxpose.xlu0.b32.cont [5/16] %v3245, 128
    %6044 = vxpose.xlu0.b32.cont [6/16] %v3250, 128
    %6045 = vxpose.xlu0.b32.cont [7/16] %v3255, 128
    %6046 = vxpose.xlu0.b32.cont [8/16] %v3260, 128
    %6047 = vxpose.xlu0.b32.cont [9/16] 0.0, 128
    %6048 = vxpose.xlu0.b32.cont [10/16] 0.0, 128
    %6049 = vxpose.xlu0.b32.cont [11/16] 0.0, 128
    %6050 = vxpose.xlu0.b32.cont [12/16] 0.0, 128
    %6051 = vxpose.xlu0.b32.cont [13/16] 0.0, 128
    %6052 = vxpose.xlu0.b32.cont [14/16] 0.0, 128
    %6053 = vxpose.xlu0.b32.cont [15/16] 0.0, 128
    %6054 = vxpose.xlu0.b32.end [16/16] 0.0, 128
    %v6055 = vpop.trf.xlu0
    %v6056 = vpop.trf.xlu0
    %v6057 = vpop.trf.xlu0
    %v6058 = vpop.trf.xlu0
    %v6059 = vpop.trf.xlu0
    %v6060 = vpop.trf.xlu0
    %v6061 = vpop.trf.xlu0
    %v6062 = vpop.trf.xlu0
    %v6063 = vpop.trf.xlu0
    %v6064 = vpop.trf.xlu0
    %v6065 = vpop.trf.xlu0
    %v6066 = vpop.trf.xlu0
    %v6067 = vpop.trf.xlu0
    %v6068 = vpop.trf.xlu0
    %v6069 = vpop.trf.xlu0
    %v6070 = vpop.trf.xlu0
    %v6072 = vsel %vm195, %v6055, 0
    %v6075 = vsel %vm195, %v5733, 0
    %v6078 = vsel %vm195, %v5734, 0
    %v6081 = vsel %vm195, %v5735, 0
    %v6084 = vsel %vm195, %v5736, 0
    %v6087 = vsel %vm195, %v5737, 0
    %v6090 = vsel %vm195, %v5738, 0
    %v6093 = vsel %vm195, %v5739, 0
    %v6096 = vsel %vm195, %v5740, 0
    %6098 = vmatprep.subr.mxu0 0.0
    %6099 = vmatpush1.xpose.msra.mxu0 %v6075
    %6100 = vmatprep.subr.mxu0 0.0
    %6101 = vmatpush1.xpose.msra.mxu0 %v6078
    %6102 = vmatprep.subr.mxu0 0.0
    %6103 = vmatpush1.xpose.msra.mxu0 %v6081
    %6104 = vmatprep.subr.mxu0 0.0
    %6105 = vmatpush1.xpose.msra.mxu0 %v6084
    %6106 = vmatprep.subr.mxu0 0.0
    %6107 = vmatpush1.xpose.msra.mxu0 %v6087
    %6108 = vmatprep.subr.mxu0 0.0
    %6109 = vmatpush1.xpose.msra.mxu0 %v6090
    %6110 = vmatprep.subr.mxu0 0.0
    %6111 = vmatpush1.xpose.msra.mxu0 %v6093
    %6112 = vmatprep.subr.mxu0 0.0
    %6113 = vmatpush1.xpose.msra.mxu0 %v6096
    %6114 = vmatprep.subr.mxu0 0.0
    %6115 = vmatpush1.xpose.msra.mxu0 0.0
    %6116 = vmatprep.subr.mxu0 0.0
    %6117 = vmatpush1.xpose.msra.mxu0 0.0
    %6118 = vmatprep.subr.mxu0 0.0
    %6119 = vmatpush1.xpose.msra.mxu0 0.0
    %6120 = vmatprep.subr.mxu0 0.0
    %6121 = vmatpush1.xpose.msra.mxu0 0.0
    %6122 = vmatprep.subr.mxu0 0.0
    %6123 = vmatpush1.xpose.msra.mxu0 0.0
    %6124 = vmatprep.subr.mxu0 0.0
    %6125 = vmatpush1.xpose.msra.mxu0 0.0
    %6126 = vmatprep.subr.mxu0 0.0
    %6127 = vmatpush1.xpose.msra.mxu0 0.0
    %6128 = vmatprep.subr.mxu0 0.0
    %6129 = vmatpush1.xpose.msra.mxu0 0.0
    %6130 = vmatprep.subr.mxu0 0.0
    %6131 = vmatpush1.xpose.msra.mxu0 0.0
    %6132 = vmatprep.subr.mxu0 0.0
    %6133 = vmatpush1.xpose.msra.mxu0 0.0
    %6134 = vmatprep.subr.mxu0 0.0
    %6135 = vmatpush1.xpose.msra.mxu0 0.0
    %6136 = vmatprep.subr.mxu0 0.0
    %6137 = vmatpush1.xpose.msra.mxu0 0.0
    %6138 = vmatprep.subr.mxu0 0.0
    %6139 = vmatpush1.xpose.msra.mxu0 0.0
    %6140 = vmatprep.subr.mxu0 0.0
    %6141 = vmatpush1.xpose.msra.mxu0 0.0
    %6142 = vmatprep.subr.mxu0 0.0
    %6143 = vmatpush1.xpose.msra.mxu0 0.0
    %6144 = vmatprep.subr.mxu0 0.0
    %6145 = vmatpush1.xpose.msra.mxu0 0.0
    %6146 = vmatprep.subr.mxu0 0.0
    %6147 = vmatpush1.xpose.msra.mxu0 0.0
    %6148 = vmatprep.subr.mxu0 0.0
    %6149 = vmatpush1.xpose.msra.mxu0 0.0
    %6150 = vmatprep.subr.mxu0 0.0
    %6151 = vmatpush1.xpose.msra.mxu0 0.0
    %6152 = vmatprep.subr.mxu0 0.0
    %6153 = vmatpush1.xpose.msra.mxu0 0.0
    %6154 = vmatprep.subr.mxu0 0.0
    %6155 = vmatpush1.xpose.msra.mxu0 0.0
    %6156 = vmatprep.subr.mxu0 0.0
    %6157 = vmatpush1.xpose.msra.mxu0 0.0
    %6158 = vmatprep.subr.mxu0 0.0
    %6159 = vmatpush1.xpose.msra.mxu0 0.0
    %6160 = vmatprep.subr.mxu0 0.0
    %6161 = vmatpush1.xpose.msra.mxu0 0.0
    %6162 = vmatprep.mubr.f32.mxu0 0.0
    %6163 = vmatmul.mubr.f32.gmra.mrb[0].mxu0 %v6072
    %v6164 = vpop.f32.mrb[0].mxu0
    %v6165 = vadd.f32 0.0, %v6164
    %v6166 = vpop.f32.mrb[0].mxu0
    %6167 = vdwg.mxu0
    %6168 = vxpose.xlu0.b32.start [1/16] %v3330, 128
    %6169 = vxpose.xlu0.b32.cont [2/16] %v3335, 128
    %6170 = vxpose.xlu0.b32.cont [3/16] %v3340, 128
    %6171 = vxpose.xlu0.b32.cont [4/16] %v3345, 128
    %6172 = vxpose.xlu0.b32.cont [5/16] %v3350, 128
    %6173 = vxpose.xlu0.b32.cont [6/16] %v3355, 128
    %6174 = vxpose.xlu0.b32.cont [7/16] %v3360, 128
    %6175 = vxpose.xlu0.b32.cont [8/16] %v3365, 128
    %6176 = vxpose.xlu0.b32.cont [9/16] 0.0, 128
    %6177 = vxpose.xlu0.b32.cont [10/16] 0.0, 128
    %6178 = vxpose.xlu0.b32.cont [11/16] 0.0, 128
    %6179 = vxpose.xlu0.b32.cont [12/16] 0.0, 128
    %6180 = vxpose.xlu0.b32.cont [13/16] 0.0, 128
    %6181 = vxpose.xlu0.b32.cont [14/16] 0.0, 128
    %6182 = vxpose.xlu0.b32.cont [15/16] 0.0, 128
    %6183 = vxpose.xlu0.b32.end [16/16] 0.0, 128
    %v6184 = vpop.trf.xlu0
    %v6185 = vpop.trf.xlu0
    %v6186 = vpop.trf.xlu0
    %v6187 = vpop.trf.xlu0
    %v6188 = vpop.trf.xlu0
    %v6189 = vpop.trf.xlu0
    %v6190 = vpop.trf.xlu0
    %v6191 = vpop.trf.xlu0
    %v6192 = vpop.trf.xlu0
    %v6193 = vpop.trf.xlu0
    %v6194 = vpop.trf.xlu0
    %v6195 = vpop.trf.xlu0
    %v6196 = vpop.trf.xlu0
    %v6197 = vpop.trf.xlu0
    %v6198 = vpop.trf.xlu0
    %v6199 = vpop.trf.xlu0
    %v6201 = vsel %vm195, %v6184, 0
    %v6204 = vsel %vm195, %v5741, 0
    %v6207 = vsel %vm195, %v5742, 0
    %v6210 = vsel %vm195, %v5743, 0
    %v6213 = vsel %vm195, %v5744, 0
    %v6216 = vsel %vm195, %v5745, 0
    %v6219 = vsel %vm195, %v5746, 0
    %v6222 = vsel %vm195, %v5747, 0
    %v6225 = vsel %vm195, %v5748, 0
    %6227 = vmatprep.subr.mxu0 0.0
    %6228 = vmatpush1.xpose.msra.mxu0 %v6204
    %6229 = vmatprep.subr.mxu0 0.0
    %6230 = vmatpush1.xpose.msra.mxu0 %v6207
    %6231 = vmatprep.subr.mxu0 0.0
    %6232 = vmatpush1.xpose.msra.mxu0 %v6210
    %6233 = vmatprep.subr.mxu0 0.0
    %6234 = vmatpush1.xpose.msra.mxu0 %v6213
    %6235 = vmatprep.subr.mxu0 0.0
    %6236 = vmatpush1.xpose.msra.mxu0 %v6216
    %6237 = vmatprep.subr.mxu0 0.0
    %6238 = vmatpush1.xpose.msra.mxu0 %v6219
    %6239 = vmatprep.subr.mxu0 0.0
    %6240 = vmatpush1.xpose.msra.mxu0 %v6222
    %6241 = vmatprep.subr.mxu0 0.0
    %6242 = vmatpush1.xpose.msra.mxu0 %v6225
    %6243 = vmatprep.subr.mxu0 0.0
    %6244 = vmatpush1.xpose.msra.mxu0 0.0
    %6245 = vmatprep.subr.mxu0 0.0
    %6246 = vmatpush1.xpose.msra.mxu0 0.0
    %6247 = vmatprep.subr.mxu0 0.0
    %6248 = vmatpush1.xpose.msra.mxu0 0.0
    %6249 = vmatprep.subr.mxu0 0.0
    %6250 = vmatpush1.xpose.msra.mxu0 0.0
    %6251 = vmatprep.subr.mxu0 0.0
    %6252 = vmatpush1.xpose.msra.mxu0 0.0
    %6253 = vmatprep.subr.mxu0 0.0
    %6254 = vmatpush1.xpose.msra.mxu0 0.0
    %6255 = vmatprep.subr.mxu0 0.0
    %6256 = vmatpush1.xpose.msra.mxu0 0.0
    %6257 = vmatprep.subr.mxu0 0.0
    %6258 = vmatpush1.xpose.msra.mxu0 0.0
    %6259 = vmatprep.subr.mxu0 0.0
    %6260 = vmatpush1.xpose.msra.mxu0 0.0
    %6261 = vmatprep.subr.mxu0 0.0
    %6262 = vmatpush1.xpose.msra.mxu0 0.0
    %6263 = vmatprep.subr.mxu0 0.0
    %6264 = vmatpush1.xpose.msra.mxu0 0.0
    %6265 = vmatprep.subr.mxu0 0.0
    %6266 = vmatpush1.xpose.msra.mxu0 0.0
    %6267 = vmatprep.subr.mxu0 0.0
    %6268 = vmatpush1.xpose.msra.mxu0 0.0
    %6269 = vmatprep.subr.mxu0 0.0
    %6270 = vmatpush1.xpose.msra.mxu0 0.0
    %6271 = vmatprep.subr.mxu0 0.0
    %6272 = vmatpush1.xpose.msra.mxu0 0.0
    %6273 = vmatprep.subr.mxu0 0.0
    %6274 = vmatpush1.xpose.msra.mxu0 0.0
    %6275 = vmatprep.subr.mxu0 0.0
    %6276 = vmatpush1.xpose.msra.mxu0 0.0
    %6277 = vmatprep.subr.mxu0 0.0
    %6278 = vmatpush1.xpose.msra.mxu0 0.0
    %6279 = vmatprep.subr.mxu0 0.0
    %6280 = vmatpush1.xpose.msra.mxu0 0.0
    %6281 = vmatprep.subr.mxu0 0.0
    %6282 = vmatpush1.xpose.msra.mxu0 0.0
    %6283 = vmatprep.subr.mxu0 0.0
    %6284 = vmatpush1.xpose.msra.mxu0 0.0
    %6285 = vmatprep.subr.mxu0 0.0
    %6286 = vmatpush1.xpose.msra.mxu0 0.0
    %6287 = vmatprep.subr.mxu0 0.0
    %6288 = vmatpush1.xpose.msra.mxu0 0.0
    %6289 = vmatprep.subr.mxu0 0.0
    %6290 = vmatpush1.xpose.msra.mxu0 0.0
    %6291 = vmatprep.mubr.f32.mxu0 0.0
    %6292 = vmatmul.mubr.f32.gmra.mrb[0].mxu0 %v6201
    %v6293 = vpop.f32.mrb[0].mxu0
    %v6294 = vadd.f32 0.0, %v6293
    %v6295 = vpop.f32.mrb[0].mxu0
    %6296 = vdwg.mxu0
    %6297 = vxpose.xlu0.b32.start [1/16] %v3435, 128
    %6298 = vxpose.xlu0.b32.cont [2/16] %v3440, 128
    %6299 = vxpose.xlu0.b32.cont [3/16] %v3445, 128
    %6300 = vxpose.xlu0.b32.cont [4/16] %v3450, 128
    %6301 = vxpose.xlu0.b32.cont [5/16] %v3455, 128
    %6302 = vxpose.xlu0.b32.cont [6/16] %v3460, 128
    %6303 = vxpose.xlu0.b32.cont [7/16] %v3465, 128
    %6304 = vxpose.xlu0.b32.cont [8/16] %v3470, 128
    %6305 = vxpose.xlu0.b32.cont [9/16] 0.0, 128
    %6306 = vxpose.xlu0.b32.cont [10/16] 0.0, 128
    %6307 = vxpose.xlu0.b32.cont [11/16] 0.0, 128
    %6308 = vxpose.xlu0.b32.cont [12/16] 0.0, 128
    %6309 = vxpose.xlu0.b32.cont [13/16] 0.0, 128
    %6310 = vxpose.xlu0.b32.cont [14/16] 0.0, 128
    %6311 = vxpose.xlu0.b32.cont [15/16] 0.0, 128
    %6312 = vxpose.xlu0.b32.end [16/16] 0.0, 128
    %v6313 = vpop.trf.xlu0
    %v6314 = vpop.trf.xlu0
    %v6315 = vpop.trf.xlu0
    %v6316 = vpop.trf.xlu0
    %v6317 = vpop.trf.xlu0
    %v6318 = vpop.trf.xlu0
    %v6319 = vpop.trf.xlu0
    %v6320 = vpop.trf.xlu0
    %v6321 = vpop.trf.xlu0
    %v6322 = vpop.trf.xlu0
    %v6323 = vpop.trf.xlu0
    %v6324 = vpop.trf.xlu0
    %v6325 = vpop.trf.xlu0
    %v6326 = vpop.trf.xlu0
    %v6327 = vpop.trf.xlu0
    %v6328 = vpop.trf.xlu0
    %v6330 = vsel %vm195, %v6313, 0
    %v6333 = vsel %vm195, %v5749, 0
    %v6336 = vsel %vm195, %v5750, 0
    %v6339 = vsel %vm195, %v5751, 0
    %v6342 = vsel %vm195, %v5752, 0
    %v6345 = vsel %vm195, %v5753, 0
    %v6348 = vsel %vm195, %v5754, 0
    %v6351 = vsel %vm195, %v5755, 0
    %v6354 = vsel %vm195, %v5756, 0
    %6356 = vmatprep.subr.mxu0 0.0
    %6357 = vmatpush1.xpose.msra.mxu0 %v6333
    %6358 = vmatprep.subr.mxu0 0.0
    %6359 = vmatpush1.xpose.msra.mxu0 %v6336
    %6360 = vmatprep.subr.mxu0 0.0
    %6361 = vmatpush1.xpose.msra.mxu0 %v6339
    %6362 = vmatprep.subr.mxu0 0.0
    %6363 = vmatpush1.xpose.msra.mxu0 %v6342
    %6364 = vmatprep.subr.mxu0 0.0
    %6365 = vmatpush1.xpose.msra.mxu0 %v6345
    %6366 = vmatprep.subr.mxu0 0.0
    %6367 = vmatpush1.xpose.msra.mxu0 %v6348
    %6368 = vmatprep.subr.mxu0 0.0
    %6369 = vmatpush1.xpose.msra.mxu0 %v6351
    %6370 = vmatprep.subr.mxu0 0.0
    %6371 = vmatpush1.xpose.msra.mxu0 %v6354
    %6372 = vmatprep.subr.mxu0 0.0
    %6373 = vmatpush1.xpose.msra.mxu0 0.0
    %6374 = vmatprep.subr.mxu0 0.0
    %6375 = vmatpush1.xpose.msra.mxu0 0.0
    %6376 = vmatprep.subr.mxu0 0.0
    %6377 = vmatpush1.xpose.msra.mxu0 0.0
    %6378 = vmatprep.subr.mxu0 0.0
    %6379 = vmatpush1.xpose.msra.mxu0 0.0
    %6380 = vmatprep.subr.mxu0 0.0
    %6381 = vmatpush1.xpose.msra.mxu0 0.0
    %6382 = vmatprep.subr.mxu0 0.0
    %6383 = vmatpush1.xpose.msra.mxu0 0.0
    %6384 = vmatprep.subr.mxu0 0.0
    %6385 = vmatpush1.xpose.msra.mxu0 0.0
    %6386 = vmatprep.subr.mxu0 0.0
    %6387 = vmatpush1.xpose.msra.mxu0 0.0
    %6388 = vmatprep.subr.mxu0 0.0
    %6389 = vmatpush1.xpose.msra.mxu0 0.0
    %6390 = vmatprep.subr.mxu0 0.0
    %6391 = vmatpush1.xpose.msra.mxu0 0.0
    %6392 = vmatprep.subr.mxu0 0.0
    %6393 = vmatpush1.xpose.msra.mxu0 0.0
    %6394 = vmatprep.subr.mxu0 0.0
    %6395 = vmatpush1.xpose.msra.mxu0 0.0
    %6396 = vmatprep.subr.mxu0 0.0
    %6397 = vmatpush1.xpose.msra.mxu0 0.0
    %6398 = vmatprep.subr.mxu0 0.0
    %6399 = vmatpush1.xpose.msra.mxu0 0.0
    %6400 = vmatprep.subr.mxu0 0.0
    %6401 = vmatpush1.xpose.msra.mxu0 0.0
    %6402 = vmatprep.subr.mxu0 0.0
    %6403 = vmatpush1.xpose.msra.mxu0 0.0
    %6404 = vmatprep.subr.mxu0 0.0
    %6405 = vmatpush1.xpose.msra.mxu0 0.0
    %6406 = vmatprep.subr.mxu0 0.0
    %6407 = vmatpush1.xpose.msra.mxu0 0.0
    %6408 = vmatprep.subr.mxu0 0.0
    %6409 = vmatpush1.xpose.msra.mxu0 0.0
    %6410 = vmatprep.subr.mxu0 0.0
    %6411 = vmatpush1.xpose.msra.mxu0 0.0
    %6412 = vmatprep.subr.mxu0 0.0
    %6413 = vmatpush1.xpose.msra.mxu0 0.0
    %6414 = vmatprep.subr.mxu0 0.0
    %6415 = vmatpush1.xpose.msra.mxu0 0.0
    %6416 = vmatprep.subr.mxu0 0.0
    %6417 = vmatpush1.xpose.msra.mxu0 0.0
    %6418 = vmatprep.subr.mxu0 0.0
    %6419 = vmatpush1.xpose.msra.mxu0 0.0
    %6420 = vmatprep.mubr.f32.mxu0 0.0
    %6421 = vmatmul.mubr.f32.gmra.mrb[0].mxu0 %v6330
    %v6422 = vpop.f32.mrb[0].mxu0
    %v6423 = vadd.f32 0.0, %v6422
    %v6424 = vpop.f32.mrb[0].mxu0
    %6425 = vdwg.mxu0
    %6426 = vxpose.xlu0.b32.start [1/16] %v3540, 128
    %6427 = vxpose.xlu0.b32.cont [2/16] %v3545, 128
    %6428 = vxpose.xlu0.b32.cont [3/16] %v3550, 128
    %6429 = vxpose.xlu0.b32.cont [4/16] %v3555, 128
    %6430 = vxpose.xlu0.b32.cont [5/16] %v3560, 128
    %6431 = vxpose.xlu0.b32.cont [6/16] %v3565, 128
    %6432 = vxpose.xlu0.b32.cont [7/16] %v3570, 128
    %6433 = vxpose.xlu0.b32.cont [8/16] %v3575, 128
    %6434 = vxpose.xlu0.b32.cont [9/16] 0.0, 128
    %6435 = vxpose.xlu0.b32.cont [10/16] 0.0, 128
    %6436 = vxpose.xlu0.b32.cont [11/16] 0.0, 128
    %6437 = vxpose.xlu0.b32.cont [12/16] 0.0, 128
    %6438 = vxpose.xlu0.b32.cont [13/16] 0.0, 128
    %6439 = vxpose.xlu0.b32.cont [14/16] 0.0, 128
    %6440 = vxpose.xlu0.b32.cont [15/16] 0.0, 128
    %6441 = vxpose.xlu0.b32.end [16/16] 0.0, 128
    %v6442 = vpop.trf.xlu0
    %v6443 = vpop.trf.xlu0
    %v6444 = vpop.trf.xlu0
    %v6445 = vpop.trf.xlu0
    %v6446 = vpop.trf.xlu0
    %v6447 = vpop.trf.xlu0
    %v6448 = vpop.trf.xlu0
    %v6449 = vpop.trf.xlu0
    %v6450 = vpop.trf.xlu0
    %v6451 = vpop.trf.xlu0
    %v6452 = vpop.trf.xlu0
    %v6453 = vpop.trf.xlu0
    %v6454 = vpop.trf.xlu0
    %v6455 = vpop.trf.xlu0
    %v6456 = vpop.trf.xlu0
    %v6457 = vpop.trf.xlu0
    %v6459 = vsel %vm195, %v6442, 0
    %v6462 = vsel %vm195, %v5757, 0
    %v6465 = vsel %vm195, %v5758, 0
    %v6468 = vsel %vm195, %v5759, 0
    %v6471 = vsel %vm195, %v5760, 0
    %v6474 = vsel %vm195, %v5761, 0
    %v6477 = vsel %vm195, %v5762, 0
    %v6480 = vsel %vm195, %v5763, 0
    %v6483 = vsel %vm195, %v5764, 0
    %6485 = vmatprep.subr.mxu0 0.0
    %6486 = vmatpush1.xpose.msra.mxu0 %v6462
    %6487 = vmatprep.subr.mxu0 0.0
    %6488 = vmatpush1.xpose.msra.mxu0 %v6465
    %6489 = vmatprep.subr.mxu0 0.0
    %6490 = vmatpush1.xpose.msra.mxu0 %v6468
    %6491 = vmatprep.subr.mxu0 0.0
    %6492 = vmatpush1.xpose.msra.mxu0 %v6471
    %6493 = vmatprep.subr.mxu0 0.0
    %6494 = vmatpush1.xpose.msra.mxu0 %v6474
    %6495 = vmatprep.subr.mxu0 0.0
    %6496 = vmatpush1.xpose.msra.mxu0 %v6477
    %6497 = vmatprep.subr.mxu0 0.0
    %6498 = vmatpush1.xpose.msra.mxu0 %v6480
    %6499 = vmatprep.subr.mxu0 0.0
    %6500 = vmatpush1.xpose.msra.mxu0 %v6483
    %6501 = vmatprep.subr.mxu0 0.0
    %6502 = vmatpush1.xpose.msra.mxu0 0.0
    %6503 = vmatprep.subr.mxu0 0.0
    %6504 = vmatpush1.xpose.msra.mxu0 0.0
    %6505 = vmatprep.subr.mxu0 0.0
    %6506 = vmatpush1.xpose.msra.mxu0 0.0
    %6507 = vmatprep.subr.mxu0 0.0
    %6508 = vmatpush1.xpose.msra.mxu0 0.0
    %6509 = vmatprep.subr.mxu0 0.0
    %6510 = vmatpush1.xpose.msra.mxu0 0.0
    %6511 = vmatprep.subr.mxu0 0.0
    %6512 = vmatpush1.xpose.msra.mxu0 0.0
    %6513 = vmatprep.subr.mxu0 0.0
    %6514 = vmatpush1.xpose.msra.mxu0 0.0
    %6515 = vmatprep.subr.mxu0 0.0
    %6516 = vmatpush1.xpose.msra.mxu0 0.0
    %6517 = vmatprep.subr.mxu0 0.0
    %6518 = vmatpush1.xpose.msra.mxu0 0.0
    %6519 = vmatprep.subr.mxu0 0.0
    %6520 = vmatpush1.xpose.msra.mxu0 0.0
    %6521 = vmatprep.subr.mxu0 0.0
    %6522 = vmatpush1.xpose.msra.mxu0 0.0
    %6523 = vmatprep.subr.mxu0 0.0
    %6524 = vmatpush1.xpose.msra.mxu0 0.0
    %6525 = vmatprep.subr.mxu0 0.0
    %6526 = vmatpush1.xpose.msra.mxu0 0.0
    %6527 = vmatprep.subr.mxu0 0.0
    %6528 = vmatpush1.xpose.msra.mxu0 0.0
    %6529 = vmatprep.subr.mxu0 0.0
    %6530 = vmatpush1.xpose.msra.mxu0 0.0
    %6531 = vmatprep.subr.mxu0 0.0
    %6532 = vmatpush1.xpose.msra.mxu0 0.0
    %6533 = vmatprep.subr.mxu0 0.0
    %6534 = vmatpush1.xpose.msra.mxu0 0.0
    %6535 = vmatprep.subr.mxu0 0.0
    %6536 = vmatpush1.xpose.msra.mxu0 0.0
    %6537 = vmatprep.subr.mxu0 0.0
    %6538 = vmatpush1.xpose.msra.mxu0 0.0
    %6539 = vmatprep.subr.mxu0 0.0
    %6540 = vmatpush1.xpose.msra.mxu0 0.0
    %6541 = vmatprep.subr.mxu0 0.0
    %6542 = vmatpush1.xpose.msra.mxu0 0.0
    %6543 = vmatprep.subr.mxu0 0.0
    %6544 = vmatpush1.xpose.msra.mxu0 0.0
    %6545 = vmatprep.subr.mxu0 0.0
    %6546 = vmatpush1.xpose.msra.mxu0 0.0
    %6547 = vmatprep.subr.mxu0 0.0
    %6548 = vmatpush1.xpose.msra.mxu0 0.0
    %6549 = vmatprep.mubr.f32.mxu0 0.0
    %6550 = vmatmul.mubr.f32.gmra.mrb[0].mxu0 %v6459
    %v6551 = vpop.f32.mrb[0].mxu0
    %v6552 = vadd.f32 0.0, %v6551
    %v6553 = vpop.f32.mrb[0].mxu0
    %6554 = vdwg.mxu0
    %6555 = vxpose.xlu0.b32.start [1/16] %v3645, 128
    %6556 = vxpose.xlu0.b32.cont [2/16] %v3650, 128
    %6557 = vxpose.xlu0.b32.cont [3/16] %v3655, 128
    %6558 = vxpose.xlu0.b32.cont [4/16] %v3660, 128
    %6559 = vxpose.xlu0.b32.cont [5/16] %v3665, 128
    %6560 = vxpose.xlu0.b32.cont [6/16] %v3670, 128
    %6561 = vxpose.xlu0.b32.cont [7/16] %v3675, 128
    %6562 = vxpose.xlu0.b32.cont [8/16] %v3680, 128
    %6563 = vxpose.xlu0.b32.cont [9/16] 0.0, 128
    %6564 = vxpose.xlu0.b32.cont [10/16] 0.0, 128
    %6565 = vxpose.xlu0.b32.cont [11/16] 0.0, 128
    %6566 = vxpose.xlu0.b32.cont [12/16] 0.0, 128
    %6567 = vxpose.xlu0.b32.cont [13/16] 0.0, 128
    %6568 = vxpose.xlu0.b32.cont [14/16] 0.0, 128
    %6569 = vxpose.xlu0.b32.cont [15/16] 0.0, 128
    %6570 = vxpose.xlu0.b32.end [16/16] 0.0, 128
    %v6571 = vpop.trf.xlu0
    %v6572 = vpop.trf.xlu0
    %v6573 = vpop.trf.xlu0
    %v6574 = vpop.trf.xlu0
    %v6575 = vpop.trf.xlu0
    %v6576 = vpop.trf.xlu0
    %v6577 = vpop.trf.xlu0
    %v6578 = vpop.trf.xlu0
    %v6579 = vpop.trf.xlu0
    %v6580 = vpop.trf.xlu0
    %v6581 = vpop.trf.xlu0
    %v6582 = vpop.trf.xlu0
    %v6583 = vpop.trf.xlu0
    %v6584 = vpop.trf.xlu0
    %v6585 = vpop.trf.xlu0
    %v6586 = vpop.trf.xlu0
    %v6588 = vsel %vm195, %v6571, 0
    %v6591 = vsel %vm195, %v5765, 0
    %v6594 = vsel %vm195, %v5766, 0
    %v6597 = vsel %vm195, %v5767, 0
    %v6600 = vsel %vm195, %v5768, 0
    %v6603 = vsel %vm195, %v5769, 0
    %v6606 = vsel %vm195, %v5770, 0
    %v6609 = vsel %vm195, %v5771, 0
    %v6612 = vsel %vm195, %v5772, 0
    %6614 = vmatprep.subr.mxu0 0.0
    %6615 = vmatpush1.xpose.msra.mxu0 %v6591
    %6616 = vmatprep.subr.mxu0 0.0
    %6617 = vmatpush1.xpose.msra.mxu0 %v6594
    %6618 = vmatprep.subr.mxu0 0.0
    %6619 = vmatpush1.xpose.msra.mxu0 %v6597
    %6620 = vmatprep.subr.mxu0 0.0
    %6621 = vmatpush1.xpose.msra.mxu0 %v6600
    %6622 = vmatprep.subr.mxu0 0.0
    %6623 = vmatpush1.xpose.msra.mxu0 %v6603
    %6624 = vmatprep.subr.mxu0 0.0
    %6625 = vmatpush1.xpose.msra.mxu0 %v6606
    %6626 = vmatprep.subr.mxu0 0.0
    %6627 = vmatpush1.xpose.msra.mxu0 %v6609
    %6628 = vmatprep.subr.mxu0 0.0
    %6629 = vmatpush1.xpose.msra.mxu0 %v6612
    %6630 = vmatprep.subr.mxu0 0.0
    %6631 = vmatpush1.xpose.msra.mxu0 0.0
    %6632 = vmatprep.subr.mxu0 0.0
    %6633 = vmatpush1.xpose.msra.mxu0 0.0
    %6634 = vmatprep.subr.mxu0 0.0
    %6635 = vmatpush1.xpose.msra.mxu0 0.0
    %6636 = vmatprep.subr.mxu0 0.0
    %6637 = vmatpush1.xpose.msra.mxu0 0.0
    %6638 = vmatprep.subr.mxu0 0.0
    %6639 = vmatpush1.xpose.msra.mxu0 0.0
    %6640 = vmatprep.subr.mxu0 0.0
    %6641 = vmatpush1.xpose.msra.mxu0 0.0
    %6642 = vmatprep.subr.mxu0 0.0
    %6643 = vmatpush1.xpose.msra.mxu0 0.0
    %6644 = vmatprep.subr.mxu0 0.0
    %6645 = vmatpush1.xpose.msra.mxu0 0.0
    %6646 = vmatprep.subr.mxu0 0.0
    %6647 = vmatpush1.xpose.msra.mxu0 0.0
    %6648 = vmatprep.subr.mxu0 0.0
    %6649 = vmatpush1.xpose.msra.mxu0 0.0
    %6650 = vmatprep.subr.mxu0 0.0
    %6651 = vmatpush1.xpose.msra.mxu0 0.0
    %6652 = vmatprep.subr.mxu0 0.0
    %6653 = vmatpush1.xpose.msra.mxu0 0.0
    %6654 = vmatprep.subr.mxu0 0.0
    %6655 = vmatpush1.xpose.msra.mxu0 0.0
    %6656 = vmatprep.subr.mxu0 0.0
    %6657 = vmatpush1.xpose.msra.mxu0 0.0
    %6658 = vmatprep.subr.mxu0 0.0
    %6659 = vmatpush1.xpose.msra.mxu0 0.0
    %6660 = vmatprep.subr.mxu0 0.0
    %6661 = vmatpush1.xpose.msra.mxu0 0.0
    %6662 = vmatprep.subr.mxu0 0.0
    %6663 = vmatpush1.xpose.msra.mxu0 0.0
    %6664 = vmatprep.subr.mxu0 0.0
    %6665 = vmatpush1.xpose.msra.mxu0 0.0
    %6666 = vmatprep.subr.mxu0 0.0
    %6667 = vmatpush1.xpose.msra.mxu0 0.0
    %6668 = vmatprep.subr.mxu0 0.0
    %6669 = vmatpush1.xpose.msra.mxu0 0.0
    %6670 = vmatprep.subr.mxu0 0.0
    %6671 = vmatpush1.xpose.msra.mxu0 0.0
    %6672 = vmatprep.subr.mxu0 0.0
    %6673 = vmatpush1.xpose.msra.mxu0 0.0
    %6674 = vmatprep.subr.mxu0 0.0
    %6675 = vmatpush1.xpose.msra.mxu0 0.0
    %6676 = vmatprep.subr.mxu0 0.0
    %6677 = vmatpush1.xpose.msra.mxu0 0.0
    %6678 = vmatprep.mubr.f32.mxu0 0.0
    %6679 = vmatmul.mubr.f32.gmra.mrb[0].mxu0 %v6588
    %v6680 = vpop.f32.mrb[0].mxu0
    %v6681 = vadd.f32 0.0, %v6680
    %v6682 = vpop.f32.mrb[0].mxu0
    %6683 = vdwg.mxu0
    %6684 = vxpose.xlu0.b32.start [1/16] %v3750, 128
    %6685 = vxpose.xlu0.b32.cont [2/16] %v3755, 128
    %6686 = vxpose.xlu0.b32.cont [3/16] %v3760, 128
    %6687 = vxpose.xlu0.b32.cont [4/16] %v3765, 128
    %6688 = vxpose.xlu0.b32.cont [5/16] %v3770, 128
    %6689 = vxpose.xlu0.b32.cont [6/16] %v3775, 128
    %6690 = vxpose.xlu0.b32.cont [7/16] %v3780, 128
    %6691 = vxpose.xlu0.b32.cont [8/16] %v3785, 128
    %6692 = vxpose.xlu0.b32.cont [9/16] 0.0, 128
    %6693 = vxpose.xlu0.b32.cont [10/16] 0.0, 128
    %6694 = vxpose.xlu0.b32.cont [11/16] 0.0, 128
    %6695 = vxpose.xlu0.b32.cont [12/16] 0.0, 128
    %6696 = vxpose.xlu0.b32.cont [13/16] 0.0, 128
    %6697 = vxpose.xlu0.b32.cont [14/16] 0.0, 128
    %6698 = vxpose.xlu0.b32.cont [15/16] 0.0, 128
    %6699 = vxpose.xlu0.b32.end [16/16] 0.0, 128
    %v6700 = vpop.trf.xlu0
    %v6701 = vpop.trf.xlu0
    %v6702 = vpop.trf.xlu0
    %v6703 = vpop.trf.xlu0
    %v6704 = vpop.trf.xlu0
    %v6705 = vpop.trf.xlu0
    %v6706 = vpop.trf.xlu0
    %v6707 = vpop.trf.xlu0
    %v6708 = vpop.trf.xlu0
    %v6709 = vpop.trf.xlu0
    %v6710 = vpop.trf.xlu0
    %v6711 = vpop.trf.xlu0
    %v6712 = vpop.trf.xlu0
    %v6713 = vpop.trf.xlu0
    %v6714 = vpop.trf.xlu0
    %v6715 = vpop.trf.xlu0
    %v6717 = vsel %vm195, %v6700, 0
    %v6720 = vsel %vm195, %v5773, 0
    %v6723 = vsel %vm195, %v5774, 0
    %v6726 = vsel %vm195, %v5775, 0
    %v6729 = vsel %vm195, %v5776, 0
    %v6732 = vsel %vm195, %v5777, 0
    %v6735 = vsel %vm195, %v5778, 0
    %v6738 = vsel %vm195, %v5779, 0
    %v6741 = vsel %vm195, %v5780, 0
    %6743 = vmatprep.subr.mxu0 0.0
    %6744 = vmatpush1.xpose.msra.mxu0 %v6720
    %6745 = vmatprep.subr.mxu0 0.0
    %6746 = vmatpush1.xpose.msra.mxu0 %v6723
    %6747 = vmatprep.subr.mxu0 0.0
    %6748 = vmatpush1.xpose.msra.mxu0 %v6726
    %6749 = vmatprep.subr.mxu0 0.0
    %6750 = vmatpush1.xpose.msra.mxu0 %v6729
    %6751 = vmatprep.subr.mxu0 0.0
    %6752 = vmatpush1.xpose.msra.mxu0 %v6732
    %6753 = vmatprep.subr.mxu0 0.0
    %6754 = vmatpush1.xpose.msra.mxu0 %v6735
    %6755 = vmatprep.subr.mxu0 0.0
    %6756 = vmatpush1.xpose.msra.mxu0 %v6738
    %6757 = vmatprep.subr.mxu0 0.0
    %6758 = vmatpush1.xpose.msra.mxu0 %v6741
    %6759 = vmatprep.subr.mxu0 0.0
    %6760 = vmatpush1.xpose.msra.mxu0 0.0
    %6761 = vmatprep.subr.mxu0 0.0
    %6762 = vmatpush1.xpose.msra.mxu0 0.0
    %6763 = vmatprep.subr.mxu0 0.0
    %6764 = vmatpush1.xpose.msra.mxu0 0.0
    %6765 = vmatprep.subr.mxu0 0.0
    %6766 = vmatpush1.xpose.msra.mxu0 0.0
    %6767 = vmatprep.subr.mxu0 0.0
    %6768 = vmatpush1.xpose.msra.mxu0 0.0
    %6769 = vmatprep.subr.mxu0 0.0
    %6770 = vmatpush1.xpose.msra.mxu0 0.0
    %6771 = vmatprep.subr.mxu0 0.0
    %6772 = vmatpush1.xpose.msra.mxu0 0.0
    %6773 = vmatprep.subr.mxu0 0.0
    %6774 = vmatpush1.xpose.msra.mxu0 0.0
    %6775 = vmatprep.subr.mxu0 0.0
    %6776 = vmatpush1.xpose.msra.mxu0 0.0
    %6777 = vmatprep.subr.mxu0 0.0
    %6778 = vmatpush1.xpose.msra.mxu0 0.0
    %6779 = vmatprep.subr.mxu0 0.0
    %6780 = vmatpush1.xpose.msra.mxu0 0.0
    %6781 = vmatprep.subr.mxu0 0.0
    %6782 = vmatpush1.xpose.msra.mxu0 0.0
    %6783 = vmatprep.subr.mxu0 0.0
    %6784 = vmatpush1.xpose.msra.mxu0 0.0
    %6785 = vmatprep.subr.mxu0 0.0
    %6786 = vmatpush1.xpose.msra.mxu0 0.0
    %6787 = vmatprep.subr.mxu0 0.0
    %6788 = vmatpush1.xpose.msra.mxu0 0.0
    %6789 = vmatprep.subr.mxu0 0.0
    %6790 = vmatpush1.xpose.msra.mxu0 0.0
    %6791 = vmatprep.subr.mxu0 0.0
    %6792 = vmatpush1.xpose.msra.mxu0 0.0
    %6793 = vmatprep.subr.mxu0 0.0
    %6794 = vmatpush1.xpose.msra.mxu0 0.0
    %6795 = vmatprep.subr.mxu0 0.0
    %6796 = vmatpush1.xpose.msra.mxu0 0.0
    %6797 = vmatprep.subr.mxu0 0.0
    %6798 = vmatpush1.xpose.msra.mxu0 0.0
    %6799 = vmatprep.subr.mxu0 0.0
    %6800 = vmatpush1.xpose.msra.mxu0 0.0
    %6801 = vmatprep.subr.mxu0 0.0
    %6802 = vmatpush1.xpose.msra.mxu0 0.0
    %6803 = vmatprep.subr.mxu0 0.0
    %6804 = vmatpush1.xpose.msra.mxu0 0.0
    %6805 = vmatprep.subr.mxu0 0.0
    %6806 = vmatpush1.xpose.msra.mxu0 0.0
    %6807 = vmatprep.mubr.f32.mxu0 0.0
    %6808 = vmatmul.mubr.f32.gmra.mrb[0].mxu0 %v6717
    %v6809 = vpop.f32.mrb[0].mxu0
    %v6810 = vadd.f32 0.0, %v6809
    %v6811 = vpop.f32.mrb[0].mxu0
    %6812 = vdwg.mxu0
    %v6813 = vld [vmem:[%s7] sm:$0xff]
    %v6814 = vld [vmem:[%s7 + $0x8] sm:$0xff]
    %v6815 = vld [vmem:[%s7 + $0x10] sm:$0xff]
    %v6816 = vld [vmem:[%s7 + $0x18] sm:$0xff]
    %v6817 = vld [vmem:[%s7 + $0x20] sm:$0xff]
    %v6818 = vld [vmem:[%s7 + $0x28] sm:$0xff]
    %v6819 = vld [vmem:[%s7 + $0x30] sm:$0xff]
    %v6820 = vld [vmem:[%s7 + $0x38] sm:$0xff]
    %v6822 = vsel %vm195, %v5907, 0
    %v6825 = vsel %vm195, %v6036, 0
    %v6828 = vsel %vm195, %v6165, 0
    %v6831 = vsel %vm195, %v6294, 0
    %v6834 = vsel %vm195, %v6423, 0
    %v6837 = vsel %vm195, %v6552, 0
    %v6840 = vsel %vm195, %v6681, 0
    %v6843 = vsel %vm195, %v6810, 0
    %6845 = vmatprep.subr.mxu0 0.0
    %6846 = vmatpush1.msra.mxu0 %v6813
    %6847 = vmatprep.subr.mxu0 0.0
    %6848 = vmatpush1.msra.mxu0 %v6814
    %6849 = vmatprep.subr.mxu0 0.0
    %6850 = vmatpush1.msra.mxu0 %v6815
    %6851 = vmatprep.subr.mxu0 0.0
    %6852 = vmatpush1.msra.mxu0 %v6816
    %6853 = vmatprep.subr.mxu0 0.0
    %6854 = vmatpush1.msra.mxu0 %v6817
    %6855 = vmatprep.subr.mxu0 0.0
    %6856 = vmatpush1.msra.mxu0 %v6818
    %6857 = vmatprep.subr.mxu0 0.0
    %6858 = vmatpush1.msra.mxu0 %v6819
    %6859 = vmatprep.subr.mxu0 0.0
    %6860 = vmatpush1.msra.mxu0 %v6820
    %6861 = vmatprep.subr.mxu0 0.0
    %6862 = vmatpush1.msra.mxu0 0.0
    %6863 = vmatprep.subr.mxu0 0.0
    %6864 = vmatpush1.msra.mxu0 0.0
    %6865 = vmatprep.subr.mxu0 0.0
    %6866 = vmatpush1.msra.mxu0 0.0
    %6867 = vmatprep.subr.mxu0 0.0
    %6868 = vmatpush1.msra.mxu0 0.0
    %6869 = vmatprep.subr.mxu0 0.0
    %6870 = vmatpush1.msra.mxu0 0.0
    %6871 = vmatprep.subr.mxu0 0.0
    %6872 = vmatpush1.msra.mxu0 0.0
    %6873 = vmatprep.subr.mxu0 0.0
    %6874 = vmatpush1.msra.mxu0 0.0
    %6875 = vmatprep.subr.mxu0 0.0
    %6876 = vmatpush1.msra.mxu0 0.0
    %6877 = vmatprep.subr.mxu0 0.0
    %6878 = vmatpush1.msra.mxu0 0.0
    %6879 = vmatprep.subr.mxu0 0.0
    %6880 = vmatpush1.msra.mxu0 0.0
    %6881 = vmatprep.subr.mxu0 0.0
    %6882 = vmatpush1.msra.mxu0 0.0
    %6883 = vmatprep.subr.mxu0 0.0
    %6884 = vmatpush1.msra.mxu0 0.0
    %6885 = vmatprep.subr.mxu0 0.0
    %6886 = vmatpush1.msra.mxu0 0.0
    %6887 = vmatprep.subr.mxu0 0.0
    %6888 = vmatpush1.msra.mxu0 0.0
    %6889 = vmatprep.subr.mxu0 0.0
    %6890 = vmatpush1.msra.mxu0 0.0
    %6891 = vmatprep.subr.mxu0 0.0
    %6892 = vmatpush1.msra.mxu0 0.0
    %6893 = vmatprep.subr.mxu0 0.0
    %6894 = vmatpush1.msra.mxu0 0.0
    %6895 = vmatprep.subr.mxu0 0.0
    %6896 = vmatpush1.msra.mxu0 0.0
    %6897 = vmatprep.subr.mxu0 0.0
    %6898 = vmatpush1.msra.mxu0 0.0
    %6899 = vmatprep.subr.mxu0 0.0
    %6900 = vmatpush1.msra.mxu0 0.0
    %6901 = vmatprep.subr.mxu0 0.0
    %6902 = vmatpush1.msra.mxu0 0.0
    %6903 = vmatprep.subr.mxu0 0.0
    %6904 = vmatpush1.msra.mxu0 0.0
    %6905 = vmatprep.subr.mxu0 0.0
    %6906 = vmatpush1.msra.mxu0 0.0
    %6907 = vmatprep.subr.mxu0 0.0
    %6908 = vmatpush1.msra.mxu0 0.0
    %6909 = vmatprep.mubr.f32.mxu0 0.0
    %6910 = vmatmul.mubr.f32.gmra.mrb[0].mxu0 %v6822
    %v6911 = vpop.f32.mrb[0].mxu0
    %v6912 = vadd.f32 %v1014, %v6911
    %v6913 = vpop.f32.mrb[0].mxu0
    %6914 = vmatprep.mubr.f32.mxu0 0.0
    %6915 = vmatmul.mubr.f32.gmra.mrb[0].mxu0 %v6825
    %v6916 = vpop.f32.mrb[0].mxu0
    %v6917 = vadd.f32 %v1019, %v6916
    %v6918 = vpop.f32.mrb[0].mxu0
    %6919 = vmatprep.mubr.f32.mxu0 0.0
    %6920 = vmatmul.mubr.f32.gmra.mrb[0].mxu0 %v6828
    %v6921 = vpop.f32.mrb[0].mxu0
    %v6922 = vadd.f32 %v1024, %v6921
    %v6923 = vpop.f32.mrb[0].mxu0
    %6924 = vmatprep.mubr.f32.mxu0 0.0
    %6925 = vmatmul.mubr.f32.gmra.mrb[0].mxu0 %v6831
    %v6926 = vpop.f32.mrb[0].mxu0
    %v6927 = vadd.f32 %v1029, %v6926
    %v6928 = vpop.f32.mrb[0].mxu0
    %6929 = vmatprep.mubr.f32.mxu0 0.0
    %6930 = vmatmul.mubr.f32.gmra.mrb[0].mxu0 %v6834
    %v6931 = vpop.f32.mrb[0].mxu0
    %v6932 = vadd.f32 %v1034, %v6931
    %v6933 = vpop.f32.mrb[0].mxu0
    %6934 = vmatprep.mubr.f32.mxu0 0.0
    %6935 = vmatmul.mubr.f32.gmra.mrb[0].mxu0 %v6837
    %v6936 = vpop.f32.mrb[0].mxu0
    %v6937 = vadd.f32 %v1039, %v6936
    %v6938 = vpop.f32.mrb[0].mxu0
    %6939 = vmatprep.mubr.f32.mxu0 0.0
    %6940 = vmatmul.mubr.f32.gmra.mrb[0].mxu0 %v6840
    %v6941 = vpop.f32.mrb[0].mxu0
    %v6942 = vadd.f32 %v1044, %v6941
    %v6943 = vpop.f32.mrb[0].mxu0
    %6944 = vmatprep.mubr.f32.mxu0 0.0
    %6945 = vmatmul.mubr.f32.gmra.mrb[0].mxu0 %v6843
    %v6946 = vpop.f32.mrb[0].mxu0
    %v6947 = vadd.f32 %v1049, %v6946
    %v6948 = vpop.f32.mrb[0].mxu0
    %6949 = vdwg.mxu0
    %v6950 = vsel %vm195, %v6912, 0.0
    %6951 = vadd.xlane.f32.xlu0 %v6950
    %v6952 = vpop.xlane.xlu0 %6951
    %v6953 = vsel %vm195, %v6917, 0.0
    %6954 = vadd.xlane.f32.xlu0 %v6953
    %v6955 = vpop.xlane.xlu0 %6954
    %v6956 = vsel %vm195, %v6922, 0.0
    %6957 = vadd.xlane.f32.xlu0 %v6956
    %v6958 = vpop.xlane.xlu0 %6957
    %v6959 = vsel %vm195, %v6927, 0.0
    %6960 = vadd.xlane.f32.xlu0 %v6959
    %v6961 = vpop.xlane.xlu0 %6960
    %v6962 = vsel %vm195, %v6932, 0.0
    %6963 = vadd.xlane.f32.xlu0 %v6962
    %v6964 = vpop.xlane.xlu0 %6963
    %v6965 = vsel %vm195, %v6937, 0.0
    %6966 = vadd.xlane.f32.xlu0 %v6965
    %v6967 = vpop.xlane.xlu0 %6966
    %v6968 = vsel %vm195, %v6942, 0.0
    %6969 = vadd.xlane.f32.xlu0 %v6968
    %v6970 = vpop.xlane.xlu0 %6969
    %v6971 = vsel %vm195, %v6947, 0.0
    %6972 = vadd.xlane.f32.xlu0 %v6971
    %v6973 = vpop.xlane.xlu0 %6972
    %v6974 = vrcp.pop 64.0
    %v6975 = vmul.f32 %v6952, %v6974
    %v6976 = vmul.f32 %v6955, %v6974
    %v6977 = vmul.f32 %v6958, %v6974
    %v6978 = vmul.f32 %v6961, %v6974
    %v6979 = vmul.f32 %v6964, %v6974
    %v6980 = vmul.f32 %v6967, %v6974
    %v6981 = vmul.f32 %v6970, %v6974
    %v6982 = vmul.f32 %v6973, %v6974
    %v6983 = vsub.f32 %v6912, %v6975
    %v6984 = vsub.f32 %v6917, %v6976
    %v6985 = vsub.f32 %v6922, %v6977
    %v6986 = vsub.f32 %v6927, %v6978
    %v6987 = vsub.f32 %v6932, %v6979
    %v6988 = vsub.f32 %v6937, %v6980
    %v6989 = vsub.f32 %v6942, %v6981
    %v6990 = vsub.f32 %v6947, %v6982
    %v6991 = vmul.f32 %v6983, %v6983
    %v6992 = vmul.f32 %v6984, %v6984
    %v6993 = vmul.f32 %v6985, %v6985
    %v6994 = vmul.f32 %v6986, %v6986
    %v6995 = vmul.f32 %v6987, %v6987
    %v6996 = vmul.f32 %v6988, %v6988
    %v6997 = vmul.f32 %v6989, %v6989
    %v6998 = vmul.f32 %v6990, %v6990
    %v6999 = vsel %vm195, %v6991, 0.0
    %7000 = vadd.xlane.f32.xlu0 %v6999
    %v7001 = vpop.xlane.xlu0 %7000
    %v7002 = vsel %vm195, %v6992, 0.0
    %7003 = vadd.xlane.f32.xlu0 %v7002
    %v7004 = vpop.xlane.xlu0 %7003
    %v7005 = vsel %vm195, %v6993, 0.0
    %7006 = vadd.xlane.f32.xlu0 %v7005
    %v7007 = vpop.xlane.xlu0 %7006
    %v7008 = vsel %vm195, %v6994, 0.0
    %7009 = vadd.xlane.f32.xlu0 %v7008
    %v7010 = vpop.xlane.xlu0 %7009
    %v7011 = vsel %vm195, %v6995, 0.0
    %7012 = vadd.xlane.f32.xlu0 %v7011
    %v7013 = vpop.xlane.xlu0 %7012
    %v7014 = vsel %vm195, %v6996, 0.0
    %7015 = vadd.xlane.f32.xlu0 %v7014
    %v7016 = vpop.xlane.xlu0 %7015
    %v7017 = vsel %vm195, %v6997, 0.0
    %7018 = vadd.xlane.f32.xlu0 %v7017
    %v7019 = vpop.xlane.xlu0 %7018
    %v7020 = vsel %vm195, %v6998, 0.0
    %7021 = vadd.xlane.f32.xlu0 %v7020
    %v7022 = vpop.xlane.xlu0 %7021
    %v7023 = vmul.f32 %v7001, %v6974
    %v7024 = vmul.f32 %v7004, %v6974
    %v7025 = vmul.f32 %v7007, %v6974
    %v7026 = vmul.f32 %v7010, %v6974
    %v7027 = vmul.f32 %v7013, %v6974
    %v7028 = vmul.f32 %v7016, %v6974
    %v7029 = vmul.f32 %v7019, %v6974
    %v7030 = vmul.f32 %v7022, %v6974
    %v7031 = vadd.f32 %v7023, 1e-05
    %v7032 = vadd.f32 %v7024, 1e-05
    %v7033 = vadd.f32 %v7025, 1e-05
    %v7034 = vadd.f32 %v7026, 1e-05
    %v7035 = vadd.f32 %v7027, 1e-05
    %v7036 = vadd.f32 %v7028, 1e-05
    %v7037 = vadd.f32 %v7029, 1e-05
    %v7038 = vadd.f32 %v7030, 1e-05
    %v7039 = vrsqrt.pop %v7031
    %v7040 = vrsqrt.pop %v7032
    %v7041 = vrsqrt.pop %v7033
    %v7042 = vrsqrt.pop %v7034
    %v7043 = vrsqrt.pop %v7035
    %v7044 = vrsqrt.pop %v7036
    %v7045 = vrsqrt.pop %v7037
    %v7046 = vrsqrt.pop %v7038
    %v7047 = vmul.f32 %v6983, %v7039
    %v7048 = vmul.f32 %v6984, %v7040
    %v7049 = vmul.f32 %v6985, %v7041
    %v7050 = vmul.f32 %v6986, %v7042
    %v7051 = vmul.f32 %v6987, %v7043
    %v7052 = vmul.f32 %v6988, %v7044
    %v7053 = vmul.f32 %v6989, %v7045
    %v7054 = vmul.f32 %v6990, %v7046
    %v7055 = vld [vmem:[%s8] sm:$0x1]
    %v7057 = vlaneseq
    %v7058 = vshrl.u32 %v7057, 7
    %v7059 = vsub.s32 0, %v7058
    %v7060 = vrot.slane %v7055, %v7059
    %v7062 = vmul.f32 %v7047, %v7060
    %v7063 = vmul.f32 %v7048, %v7060
    %v7064 = vmul.f32 %v7049, %v7060
    %v7065 = vmul.f32 %v7050, %v7060
    %v7066 = vmul.f32 %v7051, %v7060
    %v7067 = vmul.f32 %v7052, %v7060
    %v7068 = vmul.f32 %v7053, %v7060
    %v7069 = vmul.f32 %v7054, %v7060
    %v7070 = vld [vmem:[%s9] sm:$0x1]
    %v7072 = vlaneseq
    %v7073 = vshrl.u32 %v7072, 7
    %v7074 = vsub.s32 0, %v7073
    %v7075 = vrot.slane %v7070, %v7074
    %v7077 = vadd.f32 %v7062, %v7075
    %v7078 = vadd.f32 %v7063, %v7075
    %v7079 = vadd.f32 %v7064, %v7075
    %v7080 = vadd.f32 %v7065, %v7075
    %v7081 = vadd.f32 %v7066, %v7075
    %v7082 = vadd.f32 %v7067, %v7075
    %v7083 = vadd.f32 %v7068, %v7075
    %v7084 = vadd.f32 %v7069, %v7075
    %v7085 = vld [vmem:[%s10] sm:$0xff]
    %v7086 = vld [vmem:[%s10 + $0x8] sm:$0xff]
    %v7087 = vld [vmem:[%s10 + $0x10] sm:$0xff]
    %v7088 = vld [vmem:[%s10 + $0x18] sm:$0xff]
    %v7089 = vld [vmem:[%s10 + $0x20] sm:$0xff]
    %v7090 = vld [vmem:[%s10 + $0x28] sm:$0xff]
    %v7091 = vld [vmem:[%s10 + $0x30] sm:$0xff]
    %v7092 = vld [vmem:[%s10 + $0x38] sm:$0xff]
    %v7093 = vld [vmem:[%s11] sm:$0x1]
    %v7095 = vlaneseq
    %v7096 = vshrl.u32 %v7095, 7
    %v7097 = vsub.s32 0, %v7096
    %v7098 = vrot.slane %v7093, %v7097
    %v7101 = vsel %vm195, %v7077, 0
    %v7104 = vsel %vm195, %v7078, 0
    %v7107 = vsel %vm195, %v7079, 0
    %v7110 = vsel %vm195, %v7080, 0
    %v7113 = vsel %vm195, %v7081, 0
    %v7116 = vsel %vm195, %v7082, 0
    %v7119 = vsel %vm195, %v7083, 0
    %v7122 = vsel %vm195, %v7084, 0
    %7124 = vmatprep.subr.mxu0 0.0
    %7125 = vmatpush1.msra.mxu0 %v7085
    %7126 = vmatprep.subr.mxu0 0.0
    %7127 = vmatpush1.msra.mxu0 %v7086
    %7128 = vmatprep.subr.mxu0 0.0
    %7129 = vmatpush1.msra.mxu0 %v7087
    %7130 = vmatprep.subr.mxu0 0.0
    %7131 = vmatpush1.msra.mxu0 %v7088
    %7132 = vmatprep.subr.mxu0 0.0
    %7133 = vmatpush1.msra.mxu0 %v7089
    %7134 = vmatprep.subr.mxu0 0.0
    %7135 = vmatpush1.msra.mxu0 %v7090
    %7136 = vmatprep.subr.mxu0 0.0
    %7137 = vmatpush1.msra.mxu0 %v7091
    %7138 = vmatprep.subr.mxu0 0.0
    %7139 = vmatpush1.msra.mxu0 %v7092
    %7140 = vmatprep.subr.mxu0 0.0
    %7141 = vmatpush1.msra.mxu0 0.0
    %7142 = vmatprep.subr.mxu0 0.0
    %7143 = vmatpush1.msra.mxu0 0.0
    %7144 = vmatprep.subr.mxu0 0.0
    %7145 = vmatpush1.msra.mxu0 0.0
    %7146 = vmatprep.subr.mxu0 0.0
    %7147 = vmatpush1.msra.mxu0 0.0
    %7148 = vmatprep.subr.mxu0 0.0
    %7149 = vmatpush1.msra.mxu0 0.0
    %7150 = vmatprep.subr.mxu0 0.0
    %7151 = vmatpush1.msra.mxu0 0.0
    %7152 = vmatprep.subr.mxu0 0.0
    %7153 = vmatpush1.msra.mxu0 0.0
    %7154 = vmatprep.subr.mxu0 0.0
    %7155 = vmatpush1.msra.mxu0 0.0
    %7156 = vmatprep.subr.mxu0 0.0
    %7157 = vmatpush1.msra.mxu0 0.0
    %7158 = vmatprep.subr.mxu0 0.0
    %7159 = vmatpush1.msra.mxu0 0.0
    %7160 = vmatprep.subr.mxu0 0.0
    %7161 = vmatpush1.msra.mxu0 0.0
    %7162 = vmatprep.subr.mxu0 0.0
    %7163 = vmatpush1.msra.mxu0 0.0
    %7164 = vmatprep.subr.mxu0 0.0
    %7165 = vmatpush1.msra.mxu0 0.0
    %7166 = vmatprep.subr.mxu0 0.0
    %7167 = vmatpush1.msra.mxu0 0.0
    %7168 = vmatprep.subr.mxu0 0.0
    %7169 = vmatpush1.msra.mxu0 0.0
    %7170 = vmatprep.subr.mxu0 0.0
    %7171 = vmatpush1.msra.mxu0 0.0
    %7172 = vmatprep.subr.mxu0 0.0
    %7173 = vmatpush1.msra.mxu0 0.0
    %7174 = vmatprep.subr.mxu0 0.0
    %7175 = vmatpush1.msra.mxu0 0.0
    %7176 = vmatprep.subr.mxu0 0.0
    %7177 = vmatpush1.msra.mxu0 0.0
    %7178 = vmatprep.subr.mxu0 0.0
    %7179 = vmatpush1.msra.mxu0 0.0
    %7180 = vmatprep.subr.mxu0 0.0
    %7181 = vmatpush1.msra.mxu0 0.0
    %7182 = vmatprep.subr.mxu0 0.0
    %7183 = vmatpush1.msra.mxu0 0.0
    %7184 = vmatprep.subr.mxu0 0.0
    %7185 = vmatpush1.msra.mxu0 0.0
    %7186 = vmatprep.subr.mxu0 0.0
    %7187 = vmatpush1.msra.mxu0 0.0
    %7188 = vmatprep.mubr.f32.mxu0 0.0
    %7189 = vmatmul.mubr.f32.gmra.mrb[0].mxu0 %v7101
    %v7190 = vpop.f32.mrb[0].mxu0
    %v7191 = vadd.f32 %v7098, %v7190
    %v7192 = vpop.f32.mrb[0].mxu0
    %7193 = vmatprep.mubr.f32.mxu0 0.0
    %7194 = vmatmul.mubr.f32.gmra.mrb[0].mxu0 %v7104
    %v7195 = vpop.f32.mrb[0].mxu0
    %v7196 = vadd.f32 %v7098, %v7195
    %v7197 = vpop.f32.mrb[0].mxu0
    %7198 = vmatprep.mubr.f32.mxu0 0.0
    %7199 = vmatmul.mubr.f32.gmra.mrb[0].mxu0 %v7107
    %v7200 = vpop.f32.mrb[0].mxu0
    %v7201 = vadd.f32 %v7098, %v7200
    %v7202 = vpop.f32.mrb[0].mxu0
    %7203 = vmatprep.mubr.f32.mxu0 0.0
    %7204 = vmatmul.mubr.f32.gmra.mrb[0].mxu0 %v7110
    %v7205 = vpop.f32.mrb[0].mxu0
    %v7206 = vadd.f32 %v7098, %v7205
    %v7207 = vpop.f32.mrb[0].mxu0
    %7208 = vmatprep.mubr.f32.mxu0 0.0
    %7209 = vmatmul.mubr.f32.gmra.mrb[0].mxu0 %v7113
    %v7210 = vpop.f32.mrb[0].mxu0
    %v7211 = vadd.f32 %v7098, %v7210
    %v7212 = vpop.f32.mrb[0].mxu0
    %7213 = vmatprep.mubr.f32.mxu0 0.0
    %7214 = vmatmul.mubr.f32.gmra.mrb[0].mxu0 %v7116
    %v7215 = vpop.f32.mrb[0].mxu0
    %v7216 = vadd.f32 %v7098, %v7215
    %v7217 = vpop.f32.mrb[0].mxu0
    %7218 = vmatprep.mubr.f32.mxu0 0.0
    %7219 = vmatmul.mubr.f32.gmra.mrb[0].mxu0 %v7119
    %v7220 = vpop.f32.mrb[0].mxu0
    %v7221 = vadd.f32 %v7098, %v7220
    %v7222 = vpop.f32.mrb[0].mxu0
    %7223 = vmatprep.mubr.f32.mxu0 0.0
    %7224 = vmatmul.mubr.f32.gmra.mrb[0].mxu0 %v7122
    %v7225 = vpop.f32.mrb[0].mxu0
    %v7226 = vadd.f32 %v7098, %v7225
    %v7227 = vpop.f32.mrb[0].mxu0
    %7228 = vdwg.mxu0
    %7229 = vst [vmem:[%s12] sm:$0xff] %v7191
    %7230 = vst [vmem:[%s12 + $0x8] sm:$0xff] %v7196
    %7231 = vst [vmem:[%s12 + $0x10] sm:$0xff] %v7201
    %7232 = vst [vmem:[%s12 + $0x18] sm:$0xff] %v7206
    %7233 = vst [vmem:[%s12 + $0x20] sm:$0xff] %v7211
    %7234 = vst [vmem:[%s12 + $0x28] sm:$0xff] %v7216
    %7235 = vst [vmem:[%s12 + $0x30] sm:$0xff] %v7221
    %7236 = vst [vmem:[%s12 + $0x38] sm:$0xff] %v7226
    // Predicated region
    $region54: #{_lambda_.1} parent=1 // pred_check
      _
    $region55: #{_lambda_.1} parent=1 // pred_check_branch
      %7238 = sbr.rel (0) target = $region57
    $region56: #{_lambda_.1} parent=1 // pred_region
      _
    $region57: #{_lambda_.1} parent=1 // pred_fallthru
      _
    // Predicated region
    $region58: #{_lambda_.1} parent=1 // pred_check
      _
    $region59: #{_lambda_.1} parent=1 // pred_check_branch
      %7240 = sbr.rel (0) target = $region61
    $region60: #{_lambda_.1} parent=1 // pred_region
      _
    $region61: #{_lambda_.1} parent=1 // pred_fallthru
      _
    %7241 = vsyncpa [#allocation3], 1

</llo_original>
